<compile_context>
chip_gen: v7x
topology: tpu7x:2x2x1
jax: 0.10.0
libtpu: 0.0.40
codegen_flags: <defaults>
</compile_context>

<pallas_src>
import functools

import jax
import jax.numpy as jnp
from jax.experimental import pallas as pl
from jax.experimental.pallas import tpu as pltpu

K = 3       # cubic kernel size of reg_head
_PAD = 128  # lane padding of the local slab so every tap slice stays in-bounds


def _conv3d_head_kernel(xm_ref, xp_ref, xn_ref, w_ref, b_ref, m_ref, o_ref, *,
                        W):
    # xm_ref: (1, C, TD*H*W)  this tile's D-planes, flat lane-dense spatial axis
    # xp_ref: (1, C, H*W)     plane just below the tile (index clamped at d=0)
    # xn_ref: (1, C, H*W)     plane just above the tile (index clamped at d=D-1)
    # w_ref:  (27, CO, C)     per-tap weights, tap = (kd*3 + kh)*3 + kw
    # b_ref:  (CO, 1)
    # m_ref:  (4, H*W)        f32 border masks: [h>=1, h<=H-2, w>=1, w<=W-2]
    # o_ref:  (1, CO, TD*H*W)
    C = xm_ref.shape[1]
    HW = xp_ref.shape[2]
    T = xm_ref.shape[2]
    TD = T // HW
    CO = o_ref.shape[1]

    t = pl.program_id(1)
    last = pl.num_programs(1) - 1

    xm = xm_ref[0]                                     # (C, T)
    xp = xp_ref[0]                                     # (C, HW)
    xn = xn_ref[0]                                     # (C, HW)
    # 'same' zero padding in D: the halo planes of the first/last tile lie
    # outside the volume, so force them to zero (this *is* the conv padding).
    xp = jnp.where(t == 0, jnp.zeros_like(xp), xp)
    xn = jnp.where(t == last, jnp.zeros_like(xn), xn)

    # Local slab [pad | prev plane | tile | next plane | pad]; every piece is a
    # 128-lane multiple so the concatenate is copy-only.  _PAD (> W+1) keeps all
    # 27 tap windows structurally in bounds; values read from the pad region
    # only ever feed masked-out border contributions.
    zpad = jnp.zeros((C, _PAD), xm.dtype)
    slab = jnp.concatenate([zpad, xp, xm, xn, zpad], axis=1)

    # H/W border masks, tiled from one plane to the whole tile (lane concat,
    # done once per grid step).
    m = jnp.concatenate([m_ref[...]] * TD, axis=1)     # (4, T) f32

    def border_mask(kh, kw):
        mh = None if kh == 1 else (m[0:1] if kh == 0 else m[1:2])
        mw = None if kw == 1 else (m[2:3] if kw == 0 else m[3:4])
        if mh is None:
            return mw
        if mw is None:
            return mh
        return mh * mw

    acc = jnp.zeros((CO, T), jnp.float32)
    base = _PAD + HW
    for kh in range(K):
        for kw in range(K):
            part = None
            for kd in range(K):
                start = base + (kd - 1) * HW + (kh - 1) * W + (kw - 1)
                tap = slab[:, start:start + T]                   # (C, T)
                wk = w_ref[(kd * K + kh) * K + kw]               # (CO, C)
                contrib = jnp.dot(wk, tap,
                                  preferred_element_type=jnp.float32)
                part = contrib if part is None else part + contrib
            mk = border_mask(kh, kw)        # independent of kd -> applied once
            acc = acc + (part if mk is None else part * mk)

    o_ref[0] = (acc + b_ref[...]).astype(o_ref.dtype)


def _choose_d_tile(d, hw, target_lanes=8 * 1024):
    """Largest divisor of `d` whose tile (td * hw output lanes) fits the target."""
    best = 1
    for td in range(1, d + 1):
        if d % td == 0 and td * hw <= target_lanes:
            best = td
    return best


def deform_head_block(x, weight, bias, *, d_tile=None):
    """Forward pass of DeformHead_block (Conv3d(C, 3, k=3, padding='same')).

    Args:
      x:      (N, C, D, H, W)  NCDHW, like the PyTorch module.
      weight: (CO, C, 3, 3, 3) PyTorch Conv3d weight layout (OIDHW).
      bias:   (CO,)
      d_tile: D-planes per grid step (must divide D).  Default: auto-chosen.
    Returns:
      (N, CO, D, H, W)
    """
    N, C, D, H, W = x.shape
    CO = weight.shape[0]
    HW = H * W

    # Plane-granular halo BlockSpecs need the per-plane extent to be lane-dense.
    # TODO(synk): support H*W % 128 != 0 (tile-granular halo or pl.Element windows).
    assert HW % 128 == 0, "H*W must be a multiple of 128 for this kernel"
    assert W + 1 <= _PAD

    if d_tile is None:
        d_tile = _choose_d_tile(D, HW)
    assert D % d_tile == 0, "d_tile must divide D"
    TD = d_tile
    NT = D // TD

    # Free reshape: spatial dims collapsed to one lane-dense trailing axis.
    x_flat = x.reshape(N, C, D * HW)

    # weight (CO, C, kd, kh, kw) -> (27, CO, C), tap-major.
    w_taps = jnp.transpose(weight, (2, 3, 4, 0, 1)).reshape(K * K * K, CO, C)
    b_col = bias.reshape(CO, 1)

    # Per-plane border masks for the 'same' padding in H and W.
    hh = jnp.repeat(jnp.arange(H, dtype=jnp.int32), W)
    ww = jnp.tile(jnp.arange(W, dtype=jnp.int32), H)
    hw_masks = jnp.stack([hh >= 1, hh <= H - 2, ww >= 1, ww <= W - 2],
                         axis=0).astype(jnp.float32)              # (4, H*W)

    kernel = functools.partial(_conv3d_head_kernel, W=W)

    out_flat = pl.pallas_call(
        kernel,
        out_shape=jax.ShapeDtypeStruct((N, CO, D * HW), x.dtype),
        grid_spec=pltpu.PrefetchScalarGridSpec(
            num_scalar_prefetch=0,
            grid=(N, NT),
            in_specs=[
                # This tile's TD planes.
                pl.BlockSpec((1, C, TD * HW), lambda n, t: (n, 0, t)),
                # One-plane halo below / above (block index in plane units,
                # clamped at the volume edge; the kernel zeroes it there).
                pl.BlockSpec((1, C, HW),
                             lambda n, t: (n, 0, jnp.maximum(t * TD - 1, 0))),
                pl.BlockSpec((1, C, HW),
                             lambda n, t: (n, 0, jnp.minimum(t * TD + TD, D - 1))),
                pl.BlockSpec((K * K * K, CO, C), lambda n, t: (0, 0, 0)),
                pl.BlockSpec((CO, 1), lambda n, t: (0, 0)),
                pl.BlockSpec((4, HW), lambda n, t: (0, 0)),
            ],
            out_specs=pl.BlockSpec((1, CO, TD * HW), lambda n, t: (n, 0, t)),
        ),
        compiler_params=pltpu.CompilerParams(
            dimension_semantics=("parallel", "parallel"),
            vmem_limit_bytes=32 * 1024 * 1024,
        ),
    )(x_flat, x_flat, x_flat, w_taps, b_col, hw_masks)

    # Free reshape (split of the trailing dim) back to NCDHW.
    return out_flat.reshape(N, CO, D, H, W)


def _ref_conv3d(x, weight, bias):
    out = jax.lax.conv_general_dilated(
        x, weight, window_strides=(1, 1, 1), padding="SAME",
        dimension_numbers=("NCDHW", "OIDHW", "NCDHW"))
    return out + bias.reshape(1, -1, 1, 1, 1)


if __name__ == "__main__":
    key = jax.random.PRNGKey(0)
    k_x, k_w = jax.random.split(key)

    N, C, D, H, W = 2, 4, 16, 16, 16
    CO = 3

    x = jax.random.normal(k_x, (N, C, D, H, W), dtype=jnp.float32)
    # reg_head.weight ~ Normal(0, 1e-5), reg_head.bias = 0  (matches module init)
    weight = jax.random.normal(k_w, (CO, C, K, K, K), dtype=jnp.float32) * 1e-5
    bias = jnp.zeros((CO,), dtype=jnp.float32)

    ref = _ref_conv3d(x, weight, bias)

    # Multi-tile path: 4 D-planes per grid step -> grid (2, 4), halo exercised.
    out = jax.block_until_ready(deform_head_block(x, weight, bias, d_tile=4))
    assert out.shape == (N, CO, D, H, W), out.shape
    assert jnp.allclose(out, ref, atol=5e-6, rtol=5e-3), \
        float(jnp.max(jnp.abs(out - ref)))

    # Auto-tiled path (the whole volume fits one tile at this size).
    out2 = jax.block_until_ready(deform_head_block(x, weight, bias))
    assert jnp.allclose(out2, ref, atol=5e-6, rtol=5e-3), \
        float(jnp.max(jnp.abs(out2 - ref)))

    # TODO(synk): torch.utils.checkpoint branch is a training-time remat detail;
    # forward semantics are identical, so it is intentionally not reproduced.
    print("KERNEL_OK")
</pallas_src>

<mosaic_0001>
module attributes {stable_mosaic.version = 11 : i64} {
  func.func @_conv3d_head_kernel(%arg0: i32, %arg1: i32, %arg2: memref<1x4x1024xf32, #tpu.memory_space<vmem>>, %arg3: memref<1x4x256xf32, #tpu.memory_space<vmem>>, %arg4: memref<1x4x256xf32, #tpu.memory_space<vmem>>, %arg5: memref<27x3x4xf32, #tpu.memory_space<vmem>>, %arg6: memref<3x1xf32, #tpu.memory_space<vmem>>, %arg7: memref<4x256xf32, #tpu.memory_space<vmem>>, %arg8: memref<1x3x1024xf32, #tpu.memory_space<vmem>>) attributes {dimension_semantics = [#tpu.dimension_semantics<parallel>, #tpu.dimension_semantics<parallel>], iteration_bounds = array<i64: 2, 4>, scalar_prefetch = 0 : i64, scratch_operands = 0 : i64, tpu.core_type = #tpu.core_type<tc>, window_params = [{transform_indices = @transform_0, window_bounds = array<i64: 1, 4, 1024>}, {transform_indices = @transform_1, window_bounds = array<i64: 1, 4, 256>}, {transform_indices = @transform_2, window_bounds = array<i64: 1, 4, 256>}, {pipeline_mode = #tpu.pipeline_mode<synchronous>, transform_indices = @transform_3, window_bounds = array<i64: 27, 3, 4>}, {pipeline_mode = #tpu.pipeline_mode<synchronous>, transform_indices = @transform_4, window_bounds = array<i64: 3, 1>}, {pipeline_mode = #tpu.pipeline_mode<synchronous>, transform_indices = @transform_5, window_bounds = array<i64: 4, 256>}, {transform_indices = @transform_6, window_bounds = array<i64: 1, 3, 1024>}]} {
    %c0 = arith.constant 0 : index
    %c0_0 = arith.constant 0 : index
    %c0_1 = arith.constant 0 : index
    %0 = vector.load %arg2[%c0, %c0_0, %c0_1] : memref<1x4x1024xf32, #tpu.memory_space<vmem>>, vector<1x4x1024xf32>
    %1 = vector.shape_cast %0 : vector<1x4x1024xf32> to vector<4x1024xf32>
    %c0_2 = arith.constant 0 : index
    %c0_3 = arith.constant 0 : index
    %c0_4 = arith.constant 0 : index
    %2 = vector.load %arg3[%c0_2, %c0_3, %c0_4] : memref<1x4x256xf32, #tpu.memory_space<vmem>>, vector<1x4x256xf32>
    %3 = vector.shape_cast %2 : vector<1x4x256xf32> to vector<4x256xf32>
    %c0_5 = arith.constant 0 : index
    %c0_6 = arith.constant 0 : index
    %c0_7 = arith.constant 0 : index
    %4 = vector.load %arg4[%c0_5, %c0_6, %c0_7] : memref<1x4x256xf32, #tpu.memory_space<vmem>>, vector<1x4x256xf32>
    %5 = vector.shape_cast %4 : vector<1x4x256xf32> to vector<4x256xf32>
    %c0_i32 = arith.constant 0 : i32
    %6 = arith.cmpi eq, %arg1, %c0_i32 : i32
    %cst = arith.constant 0.000000e+00 : f32
    %7 = vector.broadcast %cst : f32 to vector<4x256xf32>
    %8 = arith.select %6, %7, %3 : vector<4x256xf32>
    %c3_i32 = arith.constant 3 : i32
    %9 = arith.cmpi eq, %arg1, %c3_i32 : i32
    %cst_8 = arith.constant 0.000000e+00 : f32
    %10 = vector.broadcast %cst_8 : f32 to vector<4x256xf32>
    %11 = arith.select %9, %10, %5 : vector<4x256xf32>
    %cst_9 = arith.constant 0.000000e+00 : f32
    %12 = vector.broadcast %cst_9 : f32 to vector<4x128xf32>
    %13 = tpu.concatenate %12, %8, %1, %11, %12 in 1 : vector<4x128xf32>, vector<4x256xf32>, vector<4x1024xf32>, vector<4x256xf32>, vector<4x128xf32> -> vector<4x1792xf32>
    %c0_10 = arith.constant 0 : index
    %c0_11 = arith.constant 0 : index
    %14 = vector.load %arg7[%c0_10, %c0_11] : memref<4x256xf32, #tpu.memory_space<vmem>>, vector<4x256xf32>
    %15 = tpu.concatenate %14, %14, %14, %14 in 1 : vector<4x256xf32>, vector<4x256xf32>, vector<4x256xf32>, vector<4x256xf32> -> vector<4x1024xf32>
    %cst_12 = arith.constant 0.000000e+00 : f32
    %16 = vector.broadcast %cst_12 : f32 to vector<3x1024xf32>
    %17 = vector.extract_strided_slice %13 {offsets = [0, 111], sizes = [4, 1024], strides = [1, 1]} : vector<4x1792xf32> to vector<4x1024xf32>
    %c0_13 = arith.constant 0 : index
    %c0_14 = arith.constant 0 : index
    %c0_15 = arith.constant 0 : index
    %18 = vector.load %arg5[%c0_13, %c0_14, %c0_15] : memref<27x3x4xf32, #tpu.memory_space<vmem>>, vector<1x3x4xf32>
    %19 = vector.shape_cast %18 : vector<1x3x4xf32> to vector<3x4xf32>
    %cst_16 = arith.constant dense<0.000000e+00> : vector<3x1024xf32>
    %20 = tpu.matmul %19, %17, %cst_16 {dimension_numbers = #tpu.dot_dimension_numbers<[1], [0], [0], [1], [0, 0, 1, 1], [], []>} : vector<3x4xf32>, vector<4x1024xf32>, vector<3x1024xf32> -> vector<3x1024xf32>
    %21 = vector.extract_strided_slice %13 {offsets = [0, 367], sizes = [4, 1024], strides = [1, 1]} : vector<4x1792xf32> to vector<4x1024xf32>
    %c9 = arith.constant 9 : index
    %c0_17 = arith.constant 0 : index
    %c0_18 = arith.constant 0 : index
    %22 = vector.load %arg5[%c9, %c0_17, %c0_18] : memref<27x3x4xf32, #tpu.memory_space<vmem>>, vector<1x3x4xf32>
    %23 = vector.shape_cast %22 : vector<1x3x4xf32> to vector<3x4xf32>
    %cst_19 = arith.constant dense<0.000000e+00> : vector<3x1024xf32>
    %24 = tpu.matmul %23, %21, %cst_19 {dimension_numbers = #tpu.dot_dimension_numbers<[1], [0], [0], [1], [0, 0, 1, 1], [], []>} : vector<3x4xf32>, vector<4x1024xf32>, vector<3x1024xf32> -> vector<3x1024xf32>
    %25 = arith.addf %20, %24 : vector<3x1024xf32>
    %26 = vector.extract_strided_slice %13 {offsets = [0, 623], sizes = [4, 1024], strides = [1, 1]} : vector<4x1792xf32> to vector<4x1024xf32>
    %c18 = arith.constant 18 : index
    %c0_20 = arith.constant 0 : index
    %c0_21 = arith.constant 0 : index
    %27 = vector.load %arg5[%c18, %c0_20, %c0_21] : memref<27x3x4xf32, #tpu.memory_space<vmem>>, vector<1x3x4xf32>
    %28 = vector.shape_cast %27 : vector<1x3x4xf32> to vector<3x4xf32>
    %cst_22 = arith.constant dense<0.000000e+00> : vector<3x1024xf32>
    %29 = tpu.matmul %28, %26, %cst_22 {dimension_numbers = #tpu.dot_dimension_numbers<[1], [0], [0], [1], [0, 0, 1, 1], [], []>} : vector<3x4xf32>, vector<4x1024xf32>, vector<3x1024xf32> -> vector<3x1024xf32>
    %30 = arith.addf %25, %29 : vector<3x1024xf32>
    %31 = vector.extract_strided_slice %15 {offsets = [0, 0], sizes = [1, 1024], strides = [1, 1]} : vector<4x1024xf32> to vector<1x1024xf32>
    %32 = vector.extract_strided_slice %15 {offsets = [2, 0], sizes = [1, 1024], strides = [1, 1]} : vector<4x1024xf32> to vector<1x1024xf32>
    %33 = arith.mulf %31, %32 : vector<1x1024xf32>
    %34 = vector.broadcast %33 : vector<1x1024xf32> to vector<3x1024xf32>
    %35 = arith.mulf %30, %34 : vector<3x1024xf32>
    %36 = arith.addf %16, %35 : vector<3x1024xf32>
    %37 = vector.extract_strided_slice %13 {offsets = [0, 112], sizes = [4, 1024], strides = [1, 1]} : vector<4x1792xf32> to vector<4x1024xf32>
    %c1 = arith.constant 1 : index
    %c0_23 = arith.constant 0 : index
    %c0_24 = arith.constant 0 : index
    %38 = vector.load %arg5[%c1, %c0_23, %c0_24] : memref<27x3x4xf32, #tpu.memory_space<vmem>>, vector<1x3x4xf32>
    %39 = vector.shape_cast %38 : vector<1x3x4xf32> to vector<3x4xf32>
    %cst_25 = arith.constant dense<0.000000e+00> : vector<3x1024xf32>
    %40 = tpu.matmul %39, %37, %cst_25 {dimension_numbers = #tpu.dot_dimension_numbers<[1], [0], [0], [1], [0, 0, 1, 1], [], []>} : vector<3x4xf32>, vector<4x1024xf32>, vector<3x1024xf32> -> vector<3x1024xf32>
    %41 = vector.extract_strided_slice %13 {offsets = [0, 368], sizes = [4, 1024], strides = [1, 1]} : vector<4x1792xf32> to vector<4x1024xf32>
    %c10 = arith.constant 10 : index
    %c0_26 = arith.constant 0 : index
    %c0_27 = arith.constant 0 : index
    %42 = vector.load %arg5[%c10, %c0_26, %c0_27] : memref<27x3x4xf32, #tpu.memory_space<vmem>>, vector<1x3x4xf32>
    %43 = vector.shape_cast %42 : vector<1x3x4xf32> to vector<3x4xf32>
    %cst_28 = arith.constant dense<0.000000e+00> : vector<3x1024xf32>
    %44 = tpu.matmul %43, %41, %cst_28 {dimension_numbers = #tpu.dot_dimension_numbers<[1], [0], [0], [1], [0, 0, 1, 1], [], []>} : vector<3x4xf32>, vector<4x1024xf32>, vector<3x1024xf32> -> vector<3x1024xf32>
    %45 = arith.addf %40, %44 : vector<3x1024xf32>
    %46 = vector.extract_strided_slice %13 {offsets = [0, 624], sizes = [4, 1024], strides = [1, 1]} : vector<4x1792xf32> to vector<4x1024xf32>
    %c19 = arith.constant 19 : index
    %c0_29 = arith.constant 0 : index
    %c0_30 = arith.constant 0 : index
    %47 = vector.load %arg5[%c19, %c0_29, %c0_30] : memref<27x3x4xf32, #tpu.memory_space<vmem>>, vector<1x3x4xf32>
    %48 = vector.shape_cast %47 : vector<1x3x4xf32> to vector<3x4xf32>
    %cst_31 = arith.constant dense<0.000000e+00> : vector<3x1024xf32>
    %49 = tpu.matmul %48, %46, %cst_31 {dimension_numbers = #tpu.dot_dimension_numbers<[1], [0], [0], [1], [0, 0, 1, 1], [], []>} : vector<3x4xf32>, vector<4x1024xf32>, vector<3x1024xf32> -> vector<3x1024xf32>
    %50 = arith.addf %45, %49 : vector<3x1024xf32>
    %51 = vector.extract_strided_slice %15 {offsets = [0, 0], sizes = [1, 1024], strides = [1, 1]} : vector<4x1024xf32> to vector<1x1024xf32>
    %52 = vector.broadcast %51 : vector<1x1024xf32> to vector<3x1024xf32>
    %53 = arith.mulf %50, %52 : vector<3x1024xf32>
    %54 = arith.addf %36, %53 : vector<3x1024xf32>
    %55 = vector.extract_strided_slice %13 {offsets = [0, 113], sizes = [4, 1024], strides = [1, 1]} : vector<4x1792xf32> to vector<4x1024xf32>
    %c2 = arith.constant 2 : index
    %c0_32 = arith.constant 0 : index
    %c0_33 = arith.constant 0 : index
    %56 = vector.load %arg5[%c2, %c0_32, %c0_33] : memref<27x3x4xf32, #tpu.memory_space<vmem>>, vector<1x3x4xf32>
    %57 = vector.shape_cast %56 : vector<1x3x4xf32> to vector<3x4xf32>
    %cst_34 = arith.constant dense<0.000000e+00> : vector<3x1024xf32>
    %58 = tpu.matmul %57, %55, %cst_34 {dimension_numbers = #tpu.dot_dimension_numbers<[1], [0], [0], [1], [0, 0, 1, 1], [], []>} : vector<3x4xf32>, vector<4x1024xf32>, vector<3x1024xf32> -> vector<3x1024xf32>
    %59 = vector.extract_strided_slice %13 {offsets = [0, 369], sizes = [4, 1024], strides = [1, 1]} : vector<4x1792xf32> to vector<4x1024xf32>
    %c11 = arith.constant 11 : index
    %c0_35 = arith.constant 0 : index
    %c0_36 = arith.constant 0 : index
    %60 = vector.load %arg5[%c11, %c0_35, %c0_36] : memref<27x3x4xf32, #tpu.memory_space<vmem>>, vector<1x3x4xf32>
    %61 = vector.shape_cast %60 : vector<1x3x4xf32> to vector<3x4xf32>
    %cst_37 = arith.constant dense<0.000000e+00> : vector<3x1024xf32>
    %62 = tpu.matmul %61, %59, %cst_37 {dimension_numbers = #tpu.dot_dimension_numbers<[1], [0], [0], [1], [0, 0, 1, 1], [], []>} : vector<3x4xf32>, vector<4x1024xf32>, vector<3x1024xf32> -> vector<3x1024xf32>
    %63 = arith.addf %58, %62 : vector<3x1024xf32>
    %64 = vector.extract_strided_slice %13 {offsets = [0, 625], sizes = [4, 1024], strides = [1, 1]} : vector<4x1792xf32> to vector<4x1024xf32>
    %c20 = arith.constant 20 : index
    %c0_38 = arith.constant 0 : index
    %c0_39 = arith.constant 0 : index
    %65 = vector.load %arg5[%c20, %c0_38, %c0_39] : memref<27x3x4xf32, #tpu.memory_space<vmem>>, vector<1x3x4xf32>
    %66 = vector.shape_cast %65 : vector<1x3x4xf32> to vector<3x4xf32>
    %cst_40 = arith.constant dense<0.000000e+00> : vector<3x1024xf32>
    %67 = tpu.matmul %66, %64, %cst_40 {dimension_numbers = #tpu.dot_dimension_numbers<[1], [0], [0], [1], [0, 0, 1, 1], [], []>} : vector<3x4xf32>, vector<4x1024xf32>, vector<3x1024xf32> -> vector<3x1024xf32>
    %68 = arith.addf %63, %67 : vector<3x1024xf32>
    %69 = vector.extract_strided_slice %15 {offsets = [0, 0], sizes = [1, 1024], strides = [1, 1]} : vector<4x1024xf32> to vector<1x1024xf32>
    %70 = vector.extract_strided_slice %15 {offsets = [3, 0], sizes = [1, 1024], strides = [1, 1]} : vector<4x1024xf32> to vector<1x1024xf32>
    %71 = arith.mulf %69, %70 : vector<1x1024xf32>
    %72 = vector.broadcast %71 : vector<1x1024xf32> to vector<3x1024xf32>
    %73 = arith.mulf %68, %72 : vector<3x1024xf32>
    %74 = arith.addf %54, %73 : vector<3x1024xf32>
    %75 = vector.extract_strided_slice %13 {offsets = [0, 127], sizes = [4, 1024], strides = [1, 1]} : vector<4x1792xf32> to vector<4x1024xf32>
    %c3 = arith.constant 3 : index
    %c0_41 = arith.constant 0 : index
    %c0_42 = arith.constant 0 : index
    %76 = vector.load %arg5[%c3, %c0_41, %c0_42] : memref<27x3x4xf32, #tpu.memory_space<vmem>>, vector<1x3x4xf32>
    %77 = vector.shape_cast %76 : vector<1x3x4xf32> to vector<3x4xf32>
    %cst_43 = arith.constant dense<0.000000e+00> : vector<3x1024xf32>
    %78 = tpu.matmul %77, %75, %cst_43 {dimension_numbers = #tpu.dot_dimension_numbers<[1], [0], [0], [1], [0, 0, 1, 1], [], []>} : vector<3x4xf32>, vector<4x1024xf32>, vector<3x1024xf32> -> vector<3x1024xf32>
    %79 = vector.extract_strided_slice %13 {offsets = [0, 383], sizes = [4, 1024], strides = [1, 1]} : vector<4x1792xf32> to vector<4x1024xf32>
    %c12 = arith.constant 12 : index
    %c0_44 = arith.constant 0 : index
    %c0_45 = arith.constant 0 : index
    %80 = vector.load %arg5[%c12, %c0_44, %c0_45] : memref<27x3x4xf32, #tpu.memory_space<vmem>>, vector<1x3x4xf32>
    %81 = vector.shape_cast %80 : vector<1x3x4xf32> to vector<3x4xf32>
    %cst_46 = arith.constant dense<0.000000e+00> : vector<3x1024xf32>
    %82 = tpu.matmul %81, %79, %cst_46 {dimension_numbers = #tpu.dot_dimension_numbers<[1], [0], [0], [1], [0, 0, 1, 1], [], []>} : vector<3x4xf32>, vector<4x1024xf32>, vector<3x1024xf32> -> vector<3x1024xf32>
    %83 = arith.addf %78, %82 : vector<3x1024xf32>
    %84 = vector.extract_strided_slice %13 {offsets = [0, 639], sizes = [4, 1024], strides = [1, 1]} : vector<4x1792xf32> to vector<4x1024xf32>
    %c21 = arith.constant 21 : index
    %c0_47 = arith.constant 0 : index
    %c0_48 = arith.constant 0 : index
    %85 = vector.load %arg5[%c21, %c0_47, %c0_48] : memref<27x3x4xf32, #tpu.memory_space<vmem>>, vector<1x3x4xf32>
    %86 = vector.shape_cast %85 : vector<1x3x4xf32> to vector<3x4xf32>
    %cst_49 = arith.constant dense<0.000000e+00> : vector<3x1024xf32>
    %87 = tpu.matmul %86, %84, %cst_49 {dimension_numbers = #tpu.dot_dimension_numbers<[1], [0], [0], [1], [0, 0, 1, 1], [], []>} : vector<3x4xf32>, vector<4x1024xf32>, vector<3x1024xf32> -> vector<3x1024xf32>
    %88 = arith.addf %83, %87 : vector<3x1024xf32>
    %89 = vector.extract_strided_slice %15 {offsets = [2, 0], sizes = [1, 1024], strides = [1, 1]} : vector<4x1024xf32> to vector<1x1024xf32>
    %90 = vector.broadcast %89 : vector<1x1024xf32> to vector<3x1024xf32>
    %91 = arith.mulf %88, %90 : vector<3x1024xf32>
    %92 = arith.addf %74, %91 : vector<3x1024xf32>
    %93 = vector.extract_strided_slice %13 {offsets = [0, 128], sizes = [4, 1024], strides = [1, 1]} : vector<4x1792xf32> to vector<4x1024xf32>
    %c4 = arith.constant 4 : index
    %c0_50 = arith.constant 0 : index
    %c0_51 = arith.constant 0 : index
    %94 = vector.load %arg5[%c4, %c0_50, %c0_51] : memref<27x3x4xf32, #tpu.memory_space<vmem>>, vector<1x3x4xf32>
    %95 = vector.shape_cast %94 : vector<1x3x4xf32> to vector<3x4xf32>
    %cst_52 = arith.constant dense<0.000000e+00> : vector<3x1024xf32>
    %96 = tpu.matmul %95, %93, %cst_52 {dimension_numbers = #tpu.dot_dimension_numbers<[1], [0], [0], [1], [0, 0, 1, 1], [], []>} : vector<3x4xf32>, vector<4x1024xf32>, vector<3x1024xf32> -> vector<3x1024xf32>
    %97 = vector.extract_strided_slice %13 {offsets = [0, 384], sizes = [4, 1024], strides = [1, 1]} : vector<4x1792xf32> to vector<4x1024xf32>
    %c13 = arith.constant 13 : index
    %c0_53 = arith.constant 0 : index
    %c0_54 = arith.constant 0 : index
    %98 = vector.load %arg5[%c13, %c0_53, %c0_54] : memref<27x3x4xf32, #tpu.memory_space<vmem>>, vector<1x3x4xf32>
    %99 = vector.shape_cast %98 : vector<1x3x4xf32> to vector<3x4xf32>
    %cst_55 = arith.constant dense<0.000000e+00> : vector<3x1024xf32>
    %100 = tpu.matmul %99, %97, %cst_55 {dimension_numbers = #tpu.dot_dimension_numbers<[1], [0], [0], [1], [0, 0, 1, 1], [], []>} : vector<3x4xf32>, vector<4x1024xf32>, vector<3x1024xf32> -> vector<3x1024xf32>
    %101 = arith.addf %96, %100 : vector<3x1024xf32>
    %102 = vector.extract_strided_slice %13 {offsets = [0, 640], sizes = [4, 1024], strides = [1, 1]} : vector<4x1792xf32> to vector<4x1024xf32>
    %c22 = arith.constant 22 : index
    %c0_56 = arith.constant 0 : index
    %c0_57 = arith.constant 0 : index
    %103 = vector.load %arg5[%c22, %c0_56, %c0_57] : memref<27x3x4xf32, #tpu.memory_space<vmem>>, vector<1x3x4xf32>
    %104 = vector.shape_cast %103 : vector<1x3x4xf32> to vector<3x4xf32>
    %cst_58 = arith.constant dense<0.000000e+00> : vector<3x1024xf32>
    %105 = tpu.matmul %104, %102, %cst_58 {dimension_numbers = #tpu.dot_dimension_numbers<[1], [0], [0], [1], [0, 0, 1, 1], [], []>} : vector<3x4xf32>, vector<4x1024xf32>, vector<3x1024xf32> -> vector<3x1024xf32>
    %106 = arith.addf %101, %105 : vector<3x1024xf32>
    %107 = arith.addf %92, %106 : vector<3x1024xf32>
    %108 = vector.extract_strided_slice %13 {offsets = [0, 129], sizes = [4, 1024], strides = [1, 1]} : vector<4x1792xf32> to vector<4x1024xf32>
    %c5 = arith.constant 5 : index
    %c0_59 = arith.constant 0 : index
    %c0_60 = arith.constant 0 : index
    %109 = vector.load %arg5[%c5, %c0_59, %c0_60] : memref<27x3x4xf32, #tpu.memory_space<vmem>>, vector<1x3x4xf32>
    %110 = vector.shape_cast %109 : vector<1x3x4xf32> to vector<3x4xf32>
    %cst_61 = arith.constant dense<0.000000e+00> : vector<3x1024xf32>
    %111 = tpu.matmul %110, %108, %cst_61 {dimension_numbers = #tpu.dot_dimension_numbers<[1], [0], [0], [1], [0, 0, 1, 1], [], []>} : vector<3x4xf32>, vector<4x1024xf32>, vector<3x1024xf32> -> vector<3x1024xf32>
    %112 = vector.extract_strided_slice %13 {offsets = [0, 385], sizes = [4, 1024], strides = [1, 1]} : vector<4x1792xf32> to vector<4x1024xf32>
    %c14 = arith.constant 14 : index
    %c0_62 = arith.constant 0 : index
    %c0_63 = arith.constant 0 : index
    %113 = vector.load %arg5[%c14, %c0_62, %c0_63] : memref<27x3x4xf32, #tpu.memory_space<vmem>>, vector<1x3x4xf32>
    %114 = vector.shape_cast %113 : vector<1x3x4xf32> to vector<3x4xf32>
    %cst_64 = arith.constant dense<0.000000e+00> : vector<3x1024xf32>
    %115 = tpu.matmul %114, %112, %cst_64 {dimension_numbers = #tpu.dot_dimension_numbers<[1], [0], [0], [1], [0, 0, 1, 1], [], []>} : vector<3x4xf32>, vector<4x1024xf32>, vector<3x1024xf32> -> vector<3x1024xf32>
    %116 = arith.addf %111, %115 : vector<3x1024xf32>
    %117 = vector.extract_strided_slice %13 {offsets = [0, 641], sizes = [4, 1024], strides = [1, 1]} : vector<4x1792xf32> to vector<4x1024xf32>
    %c23 = arith.constant 23 : index
    %c0_65 = arith.constant 0 : index
    %c0_66 = arith.constant 0 : index
    %118 = vector.load %arg5[%c23, %c0_65, %c0_66] : memref<27x3x4xf32, #tpu.memory_space<vmem>>, vector<1x3x4xf32>
    %119 = vector.shape_cast %118 : vector<1x3x4xf32> to vector<3x4xf32>
    %cst_67 = arith.constant dense<0.000000e+00> : vector<3x1024xf32>
    %120 = tpu.matmul %119, %117, %cst_67 {dimension_numbers = #tpu.dot_dimension_numbers<[1], [0], [0], [1], [0, 0, 1, 1], [], []>} : vector<3x4xf32>, vector<4x1024xf32>, vector<3x1024xf32> -> vector<3x1024xf32>
    %121 = arith.addf %116, %120 : vector<3x1024xf32>
    %122 = vector.extract_strided_slice %15 {offsets = [3, 0], sizes = [1, 1024], strides = [1, 1]} : vector<4x1024xf32> to vector<1x1024xf32>
    %123 = vector.broadcast %122 : vector<1x1024xf32> to vector<3x1024xf32>
    %124 = arith.mulf %121, %123 : vector<3x1024xf32>
    %125 = arith.addf %107, %124 : vector<3x1024xf32>
    %126 = vector.extract_strided_slice %13 {offsets = [0, 143], sizes = [4, 1024], strides = [1, 1]} : vector<4x1792xf32> to vector<4x1024xf32>
    %c6 = arith.constant 6 : index
    %c0_68 = arith.constant 0 : index
    %c0_69 = arith.constant 0 : index
    %127 = vector.load %arg5[%c6, %c0_68, %c0_69] : memref<27x3x4xf32, #tpu.memory_space<vmem>>, vector<1x3x4xf32>
    %128 = vector.shape_cast %127 : vector<1x3x4xf32> to vector<3x4xf32>
    %cst_70 = arith.constant dense<0.000000e+00> : vector<3x1024xf32>
    %129 = tpu.matmul %128, %126, %cst_70 {dimension_numbers = #tpu.dot_dimension_numbers<[1], [0], [0], [1], [0, 0, 1, 1], [], []>} : vector<3x4xf32>, vector<4x1024xf32>, vector<3x1024xf32> -> vector<3x1024xf32>
    %130 = vector.extract_strided_slice %13 {offsets = [0, 399], sizes = [4, 1024], strides = [1, 1]} : vector<4x1792xf32> to vector<4x1024xf32>
    %c15 = arith.constant 15 : index
    %c0_71 = arith.constant 0 : index
    %c0_72 = arith.constant 0 : index
    %131 = vector.load %arg5[%c15, %c0_71, %c0_72] : memref<27x3x4xf32, #tpu.memory_space<vmem>>, vector<1x3x4xf32>
    %132 = vector.shape_cast %131 : vector<1x3x4xf32> to vector<3x4xf32>
    %cst_73 = arith.constant dense<0.000000e+00> : vector<3x1024xf32>
    %133 = tpu.matmul %132, %130, %cst_73 {dimension_numbers = #tpu.dot_dimension_numbers<[1], [0], [0], [1], [0, 0, 1, 1], [], []>} : vector<3x4xf32>, vector<4x1024xf32>, vector<3x1024xf32> -> vector<3x1024xf32>
    %134 = arith.addf %129, %133 : vector<3x1024xf32>
    %135 = vector.extract_strided_slice %13 {offsets = [0, 655], sizes = [4, 1024], strides = [1, 1]} : vector<4x1792xf32> to vector<4x1024xf32>
    %c24 = arith.constant 24 : index
    %c0_74 = arith.constant 0 : index
    %c0_75 = arith.constant 0 : index
    %136 = vector.load %arg5[%c24, %c0_74, %c0_75] : memref<27x3x4xf32, #tpu.memory_space<vmem>>, vector<1x3x4xf32>
    %137 = vector.shape_cast %136 : vector<1x3x4xf32> to vector<3x4xf32>
    %cst_76 = arith.constant dense<0.000000e+00> : vector<3x1024xf32>
    %138 = tpu.matmul %137, %135, %cst_76 {dimension_numbers = #tpu.dot_dimension_numbers<[1], [0], [0], [1], [0, 0, 1, 1], [], []>} : vector<3x4xf32>, vector<4x1024xf32>, vector<3x1024xf32> -> vector<3x1024xf32>
    %139 = arith.addf %134, %138 : vector<3x1024xf32>
    %140 = vector.extract_strided_slice %15 {offsets = [1, 0], sizes = [1, 1024], strides = [1, 1]} : vector<4x1024xf32> to vector<1x1024xf32>
    %141 = vector.extract_strided_slice %15 {offsets = [2, 0], sizes = [1, 1024], strides = [1, 1]} : vector<4x1024xf32> to vector<1x1024xf32>
    %142 = arith.mulf %140, %141 : vector<1x1024xf32>
    %143 = vector.broadcast %142 : vector<1x1024xf32> to vector<3x1024xf32>
    %144 = arith.mulf %139, %143 : vector<3x1024xf32>
    %145 = arith.addf %125, %144 : vector<3x1024xf32>
    %146 = vector.extract_strided_slice %13 {offsets = [0, 144], sizes = [4, 1024], strides = [1, 1]} : vector<4x1792xf32> to vector<4x1024xf32>
    %c7 = arith.constant 7 : index
    %c0_77 = arith.constant 0 : index
    %c0_78 = arith.constant 0 : index
    %147 = vector.load %arg5[%c7, %c0_77, %c0_78] : memref<27x3x4xf32, #tpu.memory_space<vmem>>, vector<1x3x4xf32>
    %148 = vector.shape_cast %147 : vector<1x3x4xf32> to vector<3x4xf32>
    %cst_79 = arith.constant dense<0.000000e+00> : vector<3x1024xf32>
    %149 = tpu.matmul %148, %146, %cst_79 {dimension_numbers = #tpu.dot_dimension_numbers<[1], [0], [0], [1], [0, 0, 1, 1], [], []>} : vector<3x4xf32>, vector<4x1024xf32>, vector<3x1024xf32> -> vector<3x1024xf32>
    %150 = vector.extract_strided_slice %13 {offsets = [0, 400], sizes = [4, 1024], strides = [1, 1]} : vector<4x1792xf32> to vector<4x1024xf32>
    %c16 = arith.constant 16 : index
    %c0_80 = arith.constant 0 : index
    %c0_81 = arith.constant 0 : index
    %151 = vector.load %arg5[%c16, %c0_80, %c0_81] : memref<27x3x4xf32, #tpu.memory_space<vmem>>, vector<1x3x4xf32>
    %152 = vector.shape_cast %151 : vector<1x3x4xf32> to vector<3x4xf32>
    %cst_82 = arith.constant dense<0.000000e+00> : vector<3x1024xf32>
    %153 = tpu.matmul %152, %150, %cst_82 {dimension_numbers = #tpu.dot_dimension_numbers<[1], [0], [0], [1], [0, 0, 1, 1], [], []>} : vector<3x4xf32>, vector<4x1024xf32>, vector<3x1024xf32> -> vector<3x1024xf32>
    %154 = arith.addf %149, %153 : vector<3x1024xf32>
    %155 = vector.extract_strided_slice %13 {offsets = [0, 656], sizes = [4, 1024], strides = [1, 1]} : vector<4x1792xf32> to vector<4x1024xf32>
    %c25 = arith.constant 25 : index
    %c0_83 = arith.constant 0 : index
    %c0_84 = arith.constant 0 : index
    %156 = vector.load %arg5[%c25, %c0_83, %c0_84] : memref<27x3x4xf32, #tpu.memory_space<vmem>>, vector<1x3x4xf32>
    %157 = vector.shape_cast %156 : vector<1x3x4xf32> to vector<3x4xf32>
    %cst_85 = arith.constant dense<0.000000e+00> : vector<3x1024xf32>
    %158 = tpu.matmul %157, %155, %cst_85 {dimension_numbers = #tpu.dot_dimension_numbers<[1], [0], [0], [1], [0, 0, 1, 1], [], []>} : vector<3x4xf32>, vector<4x1024xf32>, vector<3x1024xf32> -> vector<3x1024xf32>
    %159 = arith.addf %154, %158 : vector<3x1024xf32>
    %160 = vector.extract_strided_slice %15 {offsets = [1, 0], sizes = [1, 1024], strides = [1, 1]} : vector<4x1024xf32> to vector<1x1024xf32>
    %161 = vector.broadcast %160 : vector<1x1024xf32> to vector<3x1024xf32>
    %162 = arith.mulf %159, %161 : vector<3x1024xf32>
    %163 = arith.addf %145, %162 : vector<3x1024xf32>
    %164 = vector.extract_strided_slice %13 {offsets = [0, 145], sizes = [4, 1024], strides = [1, 1]} : vector<4x1792xf32> to vector<4x1024xf32>
    %c8 = arith.constant 8 : index
    %c0_86 = arith.constant 0 : index
    %c0_87 = arith.constant 0 : index
    %165 = vector.load %arg5[%c8, %c0_86, %c0_87] : memref<27x3x4xf32, #tpu.memory_space<vmem>>, vector<1x3x4xf32>
    %166 = vector.shape_cast %165 : vector<1x3x4xf32> to vector<3x4xf32>
    %cst_88 = arith.constant dense<0.000000e+00> : vector<3x1024xf32>
    %167 = tpu.matmul %166, %164, %cst_88 {dimension_numbers = #tpu.dot_dimension_numbers<[1], [0], [0], [1], [0, 0, 1, 1], [], []>} : vector<3x4xf32>, vector<4x1024xf32>, vector<3x1024xf32> -> vector<3x1024xf32>
    %168 = vector.extract_strided_slice %13 {offsets = [0, 401], sizes = [4, 1024], strides = [1, 1]} : vector<4x1792xf32> to vector<4x1024xf32>
    %c17 = arith.constant 17 : index
    %c0_89 = arith.constant 0 : index
    %c0_90 = arith.constant 0 : index
    %169 = vector.load %arg5[%c17, %c0_89, %c0_90] : memref<27x3x4xf32, #tpu.memory_space<vmem>>, vector<1x3x4xf32>
    %170 = vector.shape_cast %169 : vector<1x3x4xf32> to vector<3x4xf32>
    %cst_91 = arith.constant dense<0.000000e+00> : vector<3x1024xf32>
    %171 = tpu.matmul %170, %168, %cst_91 {dimension_numbers = #tpu.dot_dimension_numbers<[1], [0], [0], [1], [0, 0, 1, 1], [], []>} : vector<3x4xf32>, vector<4x1024xf32>, vector<3x1024xf32> -> vector<3x1024xf32>
    %172 = arith.addf %167, %171 : vector<3x1024xf32>
    %173 = vector.extract_strided_slice %13 {offsets = [0, 657], sizes = [4, 1024], strides = [1, 1]} : vector<4x1792xf32> to vector<4x1024xf32>
    %c26 = arith.constant 26 : index
    %c0_92 = arith.constant 0 : index
    %c0_93 = arith.constant 0 : index
    %174 = vector.load %arg5[%c26, %c0_92, %c0_93] : memref<27x3x4xf32, #tpu.memory_space<vmem>>, vector<1x3x4xf32>
    %175 = vector.shape_cast %174 : vector<1x3x4xf32> to vector<3x4xf32>
    %cst_94 = arith.constant dense<0.000000e+00> : vector<3x1024xf32>
    %176 = tpu.matmul %175, %173, %cst_94 {dimension_numbers = #tpu.dot_dimension_numbers<[1], [0], [0], [1], [0, 0, 1, 1], [], []>} : vector<3x4xf32>, vector<4x1024xf32>, vector<3x1024xf32> -> vector<3x1024xf32>
    %177 = arith.addf %172, %176 : vector<3x1024xf32>
    %178 = vector.extract_strided_slice %15 {offsets = [1, 0], sizes = [1, 1024], strides = [1, 1]} : vector<4x1024xf32> to vector<1x1024xf32>
    %179 = vector.extract_strided_slice %15 {offsets = [3, 0], sizes = [1, 1024], strides = [1, 1]} : vector<4x1024xf32> to vector<1x1024xf32>
    %180 = arith.mulf %178, %179 : vector<1x1024xf32>
    %181 = vector.broadcast %180 : vector<1x1024xf32> to vector<3x1024xf32>
    %182 = arith.mulf %177, %181 : vector<3x1024xf32>
    %183 = arith.addf %163, %182 : vector<3x1024xf32>
    %c0_95 = arith.constant 0 : index
    %c0_96 = arith.constant 0 : index
    %184 = vector.load %arg6[%c0_95, %c0_96] : memref<3x1xf32, #tpu.memory_space<vmem>>, vector<3x1xf32>
    %185 = vector.broadcast %184 : vector<3x1xf32> to vector<3x1024xf32>
    %186 = arith.addf %183, %185 : vector<3x1024xf32>
    %c0_97 = arith.constant 0 : index
    %c0_98 = arith.constant 0 : index
    %c0_99 = arith.constant 0 : index
    %187 = vector.load %arg8[%c0_97, %c0_98, %c0_99] : memref<1x3x1024xf32, #tpu.memory_space<vmem>>, vector<1x3x1024xf32>
    %188 = vector.shape_cast %187 : vector<1x3x1024xf32> to vector<3x1024xf32>
    %189 = vector.shape_cast %186 : vector<3x1024xf32> to vector<1x3x1024xf32>
    tpu.vector_store %arg8[%c0_97, %c0_98, %c0_99], %189 {strides = array<i32>} : memref<1x3x1024xf32, #tpu.memory_space<vmem>>, vector<1x3x1024xf32>,
    return
  }
  func.func @transform_0(%arg0: i32, %arg1: i32) -> (i32, i32, i32) {
    %c0_i32 = arith.constant 0 : i32
    %c0_i32_0 = arith.constant 0 : i32
    return %arg0, %c0_i32, %arg1 : i32, i32, i32
  }
  func.func @transform_1(%arg0: i32, %arg1: i32) -> (i32, i32, i32) {
    %c4_i32 = arith.constant 4 : i32
    %0 = arith.muli %arg1, %c4_i32 : i32
    %c1_i32 = arith.constant 1 : i32
    %1 = arith.subi %0, %c1_i32 : i32
    %c0_i32 = arith.constant 0 : i32
    %2 = arith.maxsi %1, %c0_i32 : i32
    %c0_i32_0 = arith.constant 0 : i32
    %c0_i32_1 = arith.constant 0 : i32
    return %arg0, %c0_i32_0, %2 : i32, i32, i32
  }
  func.func @transform_2(%arg0: i32, %arg1: i32) -> (i32, i32, i32) {
    %c4_i32 = arith.constant 4 : i32
    %0 = arith.muli %arg1, %c4_i32 : i32
    %c4_i32_0 = arith.constant 4 : i32
    %1 = arith.addi %0, %c4_i32_0 : i32
    %c15_i32 = arith.constant 15 : i32
    %2 = arith.minsi %1, %c15_i32 : i32
    %c0_i32 = arith.constant 0 : i32
    %c0_i32_1 = arith.constant 0 : i32
    return %arg0, %c0_i32, %2 : i32, i32, i32
  }
  func.func @transform_3(%arg0: i32, %arg1: i32) -> (i32, i32, i32) {
    %c0_i32 = arith.constant 0 : i32
    %c0_i32_0 = arith.constant 0 : i32
    %c0_i32_1 = arith.constant 0 : i32
    %c0_i32_2 = arith.constant 0 : i32
    return %c0_i32, %c0_i32_0, %c0_i32_1 : i32, i32, i32
  }
  func.func @transform_4(%arg0: i32, %arg1: i32) -> (i32, i32) {
    %c0_i32 = arith.constant 0 : i32
    %c0_i32_0 = arith.constant 0 : i32
    %c0_i32_1 = arith.constant 0 : i32
    return %c0_i32, %c0_i32_0 : i32, i32
  }
  func.func @transform_5(%arg0: i32, %arg1: i32) -> (i32, i32) {
    %c0_i32 = arith.constant 0 : i32
    %c0_i32_0 = arith.constant 0 : i32
    %c0_i32_1 = arith.constant 0 : i32
    return %c0_i32, %c0_i32_0 : i32, i32
  }
  func.func @transform_6(%arg0: i32, %arg1: i32) -> (i32, i32, i32) {
    %c0_i32 = arith.constant 0 : i32
    %c0_i32_0 = arith.constant 0 : i32
    return %arg0, %c0_i32, %arg1 : i32, i32, i32
  }
}

</mosaic_0001>

<llo_original>
// kernel: tpu_custom_call.1
$region0: #{tpu_custom_call.1}
  #allocation0 [shape = 'u32[]', space=smem, size = 0x4, offset = 0x4, fixed_abs, tag = 'smem constant byte address 0x4 - core index']
  #allocation1 [shape = 'u32[144,128]{1,0:T(1,128)}', space=vmem, size = 0x12000, scoped, tag = 'internal scratch']
  %s0 = inlined_call_operand.hbm [shape: f32[2,4,4096], index: 0, kind: input, shape index: {}]
  %s1 = inlined_call_operand.hbm [shape: f32[2,4,4096], index: 1, kind: input, shape index: {}]
  %s2 = inlined_call_operand.hbm [shape: f32[2,4,4096], index: 2, kind: input, shape index: {}]
  %s3 = inlined_call_operand.vmem [shape: f32[27,3,4], index: 3, kind: input, shape index: {}]
  %s4 = inlined_call_operand.vmem [shape: f32[3,1], index: 4, kind: input, shape index: {}]
  %s5 = inlined_call_operand.vmem [shape: f32[4,256], index: 5, kind: input, shape index: {}]
  %s6 = inlined_call_operand.vmem [shape: f32[2,3,4096], index: 6, kind: output, shape index: {}]
  %s7 = sld [smem:[#allocation0]]
  $region69: #{tpu_custom_call.1} parent=0
    _
  %s9 = ssub.s32 1, %s7
  %s10 = scalar_select 0, %s9, %s7
  $region1: #{tpu_custom_call.1} parent=0
    #allocation2 [shape = 'u8[32768]{0}', space=vmem, size = 0x8000, scoped, tag = 'input window, operand 0']
    #allocation3 [shape = 's32[2]{0}', space=sflag, size = 0x8, scoped, tag = 'scoped memory for tpu_custom_call.1']
    #allocation4 [shape = 'u8[8192]{0}', space=vmem, size = 0x2000, scoped, tag = 'input window, operand 1']
    #allocation5 [shape = 's32[2]{0}', space=sflag, size = 0x8, scoped, tag = 'scoped memory for tpu_custom_call.1']
    #allocation6 [shape = 'u8[8192]{0}', space=vmem, size = 0x2000, scoped, tag = 'input window, operand 2']
    %11 = vsyncpa [#allocation3], 0
    %s12 = scalar_lea.sflag [#allocation3], 1
    %13 = vsyncpa %s12, 0
    %14 = vsyncpa [#allocation5], 0
    %s15 = scalar_lea.sflag [#allocation5], 1
    %16 = vsyncpa %s15, 0
    loop: start=0, step=1, limit=10
    $region2: #{tpu_custom_call.1} parent=1 // loop_pre_header
      _
    $region3: #{tpu_custom_call.1} parent=1 // loop_header
      %s18 = sphi 0, %s22
      %p19 = scmp.ge.s32.totalorder %s18, 10
      %s25 = sphi 0, %s37
      %s26 = sphi 0, %s33
      %s27 = sphi 0, %s25
      %s28 = sphi 0, %s26
      %s29 = sphi 0, %s27
      %s30 = sphi 0, %s28
      %s42 = sphi 0, %s44
      %s45 = sphi 0, %s42
      %s46 = sphi 0, %s45
      %s62 = sphi 0, %s46
      %s78 = sphi 0, %s80
      %s81 = sphi 0, %s78
      %s82 = sphi 0, %s81
      %s98 = sphi 0, %s82
      %s114 = sphi 0, %s116
      %s117 = sphi 0, %s114
      %s118 = sphi 0, %s117
      %s134 = sphi 0, %s118
      %s138 = sphi 0, %s138
      %s140 = sphi 0, %s138
      %s141 = sphi 0, %s140
      %s155 = sphi 0, %s141
      %s159 = sphi 0, %s159
      %s161 = sphi 0, %s159
      %s162 = sphi 0, %s161
      %s176 = sphi 0, %s162
      %s180 = sphi 0, %s180
      %s182 = sphi 0, %s180
      %s183 = sphi 0, %s182
      %s197 = sphi 0, %s183
      %s205 = sphi 0, %s207
      %s208 = sphi 0, %s205
      %s209 = sphi 0, %s208
      %s225 = sphi 0, %s209
    $region4: #{tpu_custom_call.1} parent=1 // loop_header_branch
      %21 = sbr.rel (%p19) target = $region8
    $region5: #{tpu_custom_call.1} parent=1 // loop_body
      %s23 = ssub.s32 %s18, 1
      %s24 = ssub.s32 %s18, 2
      %s31 = sadd.s32 1, %s26
      %p32 = scmp.ge.s32.totalorder %s31, 4
      %s33 = scalar_select %p32, 0, %s31
      %s34 = sadd.s32 1, %s25
      %s35 = scalar_select %p32, %s34, %s25
      %p36 = scmp.ge.s32.totalorder %s35, 2
      %s37 = scalar_select %p36, 0, %s35
      %s38 = ssub.s32 %s25, %s37
      %s39 = ssub.s32 %s26, %s33
      %s40 = sor.u32 %s38, %s39
      %p41 = scmp.eq.s32.totalorder %s40, 0
      %s43 = sadd.s32 %s42, 1
      %s44 = scalar_select %p41, %s42, %s43
      %p47 = pneg %p41
      %p48 = scmp.eq.s32.totalorder %s18, 7
      %p49 = por %p47, %p48
      %p50 = scmp.ne.s32.totalorder %s42, %s45
      %p51 = scmp.eq.s32.totalorder %s18, 0
      %p52 = por %p50, %p51
      %p53 = scmp.ne.s32.totalorder %s42, %s45
      %p54 = scmp.eq.s32.totalorder %s23, 7
      %p55 = por %p53, %p54
      %p56 = scmp.ne.s32.totalorder %s45, %s46
      %p57 = scmp.eq.s32.totalorder %s23, 0
      %p58 = por %p56, %p57
      %p59 = scmp.ne.s32.totalorder %s45, %s46
      %p60 = scmp.eq.s32.totalorder %s24, 7
      %p61 = por %p59, %p60
      %p63 = scmp.ne.s32.totalorder %s46, %s62
      %p64 = scmp.eq.s32.totalorder %s24, 0
      %p65 = por %p63, %p64
      %s66 = smul.u32 %s26, 4
      %s67 = ssub.s32 %s66, 1
      %p68 = scmp.gt.s32.totalorder %s67, 0
      %s69 = scalar_select %p68, %s67, 0
      %s70 = smul.u32 %s33, 4
      %s71 = ssub.s32 %s70, 1
      %p72 = scmp.gt.s32.totalorder %s71, 0
      %s73 = scalar_select %p72, %s71, 0
      %s74 = ssub.s32 %s25, %s37
      %s75 = ssub.s32 %s69, %s73
      %s76 = sor.u32 %s74, %s75
      %p77 = scmp.eq.s32.totalorder %s76, 0
      %s79 = sadd.s32 %s78, 1
      %s80 = scalar_select %p77, %s78, %s79
      %p83 = pneg %p77
      %p84 = scmp.eq.s32.totalorder %s18, 7
      %p85 = por %p83, %p84
      %p86 = scmp.ne.s32.totalorder %s78, %s81
      %p87 = scmp.eq.s32.totalorder %s18, 0
      %p88 = por %p86, %p87
      %p89 = scmp.ne.s32.totalorder %s78, %s81
      %p90 = scmp.eq.s32.totalorder %s23, 7
      %p91 = por %p89, %p90
      %p92 = scmp.ne.s32.totalorder %s81, %s82
      %p93 = scmp.eq.s32.totalorder %s23, 0
      %p94 = por %p92, %p93
      %p95 = scmp.ne.s32.totalorder %s81, %s82
      %p96 = scmp.eq.s32.totalorder %s24, 7
      %p97 = por %p95, %p96
      %p99 = scmp.ne.s32.totalorder %s82, %s98
      %p100 = scmp.eq.s32.totalorder %s24, 0
      %p101 = por %p99, %p100
      %s102 = smul.u32 %s26, 4
      %s103 = sadd.s32 %s102, 4
      %p104 = scmp.lt.s32.totalorder %s103, 15
      %s105 = scalar_select %p104, %s103, 15
      %s106 = smul.u32 %s33, 4
      %s107 = sadd.s32 %s106, 4
      %p108 = scmp.lt.s32.totalorder %s107, 15
      %s109 = scalar_select %p108, %s107, 15
      %s110 = ssub.s32 %s25, %s37
      %s111 = ssub.s32 %s105, %s109
      %s112 = sor.u32 %s110, %s111
      %p113 = scmp.eq.s32.totalorder %s112, 0
      %s115 = sadd.s32 %s114, 1
      %s116 = scalar_select %p113, %s114, %s115
      %p119 = pneg %p113
      %p120 = scmp.eq.s32.totalorder %s18, 7
      %p121 = por %p119, %p120
      %p122 = scmp.ne.s32.totalorder %s114, %s117
      %p123 = scmp.eq.s32.totalorder %s18, 0
      %p124 = por %p122, %p123
      %p125 = scmp.ne.s32.totalorder %s114, %s117
      %p126 = scmp.eq.s32.totalorder %s23, 7
      %p127 = por %p125, %p126
      %p128 = scmp.ne.s32.totalorder %s117, %s118
      %p129 = scmp.eq.s32.totalorder %s23, 0
      %p130 = por %p128, %p129
      %p131 = scmp.ne.s32.totalorder %s117, %s118
      %p132 = scmp.eq.s32.totalorder %s24, 7
      %p133 = por %p131, %p132
      %p135 = scmp.ne.s32.totalorder %s118, %s134
      %p136 = scmp.eq.s32.totalorder %s24, 0
      %p137 = por %p135, %p136
      %s139 = sadd.s32 %s138, 1
      %p142 = scmp.eq.s32.totalorder %s18, 7
      %p143 = scmp.ne.s32.totalorder %s138, %s140
      %p144 = scmp.eq.s32.totalorder %s18, 0
      %p145 = por %p143, %p144
      %p146 = scmp.ne.s32.totalorder %s138, %s140
      %p147 = scmp.eq.s32.totalorder %s23, 7
      %p148 = por %p146, %p147
      %p149 = scmp.ne.s32.totalorder %s140, %s141
      %p150 = scmp.eq.s32.totalorder %s23, 0
      %p151 = por %p149, %p150
      %p152 = scmp.ne.s32.totalorder %s140, %s141
      %p153 = scmp.eq.s32.totalorder %s24, 7
      %p154 = por %p152, %p153
      %p156 = scmp.ne.s32.totalorder %s141, %s155
      %p157 = scmp.eq.s32.totalorder %s24, 0
      %p158 = por %p156, %p157
      %s160 = sadd.s32 %s159, 1
      %p163 = scmp.eq.s32.totalorder %s18, 7
      %p164 = scmp.ne.s32.totalorder %s159, %s161
      %p165 = scmp.eq.s32.totalorder %s18, 0
      %p166 = por %p164, %p165
      %p167 = scmp.ne.s32.totalorder %s159, %s161
      %p168 = scmp.eq.s32.totalorder %s23, 7
      %p169 = por %p167, %p168
      %p170 = scmp.ne.s32.totalorder %s161, %s162
      %p171 = scmp.eq.s32.totalorder %s23, 0
      %p172 = por %p170, %p171
      %p173 = scmp.ne.s32.totalorder %s161, %s162
      %p174 = scmp.eq.s32.totalorder %s24, 7
      %p175 = por %p173, %p174
      %p177 = scmp.ne.s32.totalorder %s162, %s176
      %p178 = scmp.eq.s32.totalorder %s24, 0
      %p179 = por %p177, %p178
      %s181 = sadd.s32 %s180, 1
      %p184 = scmp.eq.s32.totalorder %s18, 7
      %p185 = scmp.ne.s32.totalorder %s180, %s182
      %p186 = scmp.eq.s32.totalorder %s18, 0
      %p187 = por %p185, %p186
      %p188 = scmp.ne.s32.totalorder %s180, %s182
      %p189 = scmp.eq.s32.totalorder %s23, 7
      %p190 = por %p188, %p189
      %p191 = scmp.ne.s32.totalorder %s182, %s183
      %p192 = scmp.eq.s32.totalorder %s23, 0
      %p193 = por %p191, %p192
      %p194 = scmp.ne.s32.totalorder %s182, %s183
      %p195 = scmp.eq.s32.totalorder %s24, 7
      %p196 = por %p194, %p195
      %p198 = scmp.ne.s32.totalorder %s183, %s197
      %p199 = scmp.eq.s32.totalorder %s24, 0
      %p200 = por %p198, %p199
      %s201 = ssub.s32 %s25, %s37
      %s202 = ssub.s32 %s26, %s33
      %s203 = sor.u32 %s201, %s202
      %p204 = scmp.eq.s32.totalorder %s203, 0
      %s206 = sadd.s32 %s205, 1
      %s207 = scalar_select %p204, %s205, %s206
      %p210 = pneg %p204
      %p211 = scmp.eq.s32.totalorder %s18, 7
      %p212 = por %p210, %p211
      %p213 = scmp.ne.s32.totalorder %s205, %s208
      %p214 = scmp.eq.s32.totalorder %s18, 0
      %p215 = por %p213, %p214
      %p216 = scmp.ne.s32.totalorder %s205, %s208
      %p217 = scmp.eq.s32.totalorder %s23, 7
      %p218 = por %p216, %p217
      %p219 = scmp.ne.s32.totalorder %s208, %s209
      %p220 = scmp.eq.s32.totalorder %s23, 0
      %p221 = por %p219, %p220
      %p222 = scmp.ne.s32.totalorder %s208, %s209
      %p223 = scmp.eq.s32.totalorder %s24, 7
      %p224 = por %p222, %p223
      %p226 = scmp.ne.s32.totalorder %s209, %s225
      %p227 = scmp.eq.s32.totalorder %s24, 0
      %p228 = por %p226, %p227
      %p229 = scmp.le.s32.totalorder 1, %s18
      %p230 = scmp.lt.s32.totalorder %s18, 9
      %p231 = pnand %p229, %p230
      %p232 = pneg %p231
      // Predicated region
      $region9: #{tpu_custom_call.1} parent=5 // pred_check
        _
      $region10: #{tpu_custom_call.1} parent=5 // pred_check_branch
        %234 = sbr.rel (%p231) target = $region12
      $region11: #{tpu_custom_call.1} parent=5 // pred_region
        %s235 = ssub.s32 %s18, 1
        // Predicated region
        $region13: #{tpu_custom_call.1} parent=11 // pred_check
          %p236 = pneg %p151
        $region14: #{tpu_custom_call.1} parent=11 // pred_check_branch
          %238 = sbr.rel (%p236) target = $region16
        $region15: #{tpu_custom_call.1} parent=11 // pred_region
          _
        $region16: #{tpu_custom_call.1} parent=11 // pred_fallthru
          _
        // Predicated region
        $region17: #{tpu_custom_call.1} parent=11 // pred_check
          %p239 = pneg %p172
        $region18: #{tpu_custom_call.1} parent=11 // pred_check_branch
          %241 = sbr.rel (%p239) target = $region20
        $region19: #{tpu_custom_call.1} parent=11 // pred_region
          _
        $region20: #{tpu_custom_call.1} parent=11 // pred_fallthru
          _
        // Predicated region
        $region21: #{tpu_custom_call.1} parent=11 // pred_check
          %p242 = pneg %p193
        $region22: #{tpu_custom_call.1} parent=11 // pred_check_branch
          %244 = sbr.rel (%p242) target = $region24
        $region23: #{tpu_custom_call.1} parent=11 // pred_region
          _
        $region24: #{tpu_custom_call.1} parent=11 // pred_fallthru
          _
      $region12: #{tpu_custom_call.1} parent=5 // pred_fallthru
        _
      %p245 = scmp.lt.s32.totalorder %s18, 8
      // Predicated region
      $region25: #{tpu_custom_call.1} parent=5 // pred_check
        %p246 = pneg %p245
      $region26: #{tpu_custom_call.1} parent=5 // pred_check_branch
        %248 = sbr.rel (%p246) target = $region28
      $region27: #{tpu_custom_call.1} parent=5 // pred_region
        // Predicated region
        $region29: #{tpu_custom_call.1} parent=27 // pred_check
          %p249 = pneg %p52
        $region30: #{tpu_custom_call.1} parent=27 // pred_check_branch
          %251 = sbr.rel (%p249) target = $region32
        $region31: #{tpu_custom_call.1} parent=27 // pred_region
          %s252 = sand.u32 %s42, 1
          %s253 = scalar_lea.sflag [#allocation3], %s252
          %s254 = sand.u32 %s42, 1
          %s255 = smul.addr %s254, 32
          %s256 = scalar_lea.vmem [#allocation2], %s255
          %s257 = smul.u32 8, %s26
          %s259 = ssub.s32 512, 512
          %260 = vsyncadd %s253, %s259
          %s261 = smul.addr %s25, 32
          %s262 = sadd.s32 %s257, %s261
          %s263 = smul.addr %s262, 64
          %s264 = scalar_lea.hbm %s0, %s263
          %s266 = sshll.u32 %s256, 4
          %s267 = int_to_ptr.vmem [resolvable:$true] %s266
          %269 = dma.hbm_to_vmem [thread:$0]  %s264, 512, %s267, %s253
        $region32: #{tpu_custom_call.1} parent=27 // pred_fallthru
          _
        // Predicated region
        $region33: #{tpu_custom_call.1} parent=27 // pred_check
          %p270 = pneg %p88
        $region34: #{tpu_custom_call.1} parent=27 // pred_check_branch
          %272 = sbr.rel (%p270) target = $region36
        $region35: #{tpu_custom_call.1} parent=27 // pred_region
          %s273 = sand.u32 %s18, 1
          %s274 = scalar_lea.sflag [#allocation5], %s273
          %s275 = sand.u32 %s78, 1
          %s276 = smul.addr %s275, 8
          %s277 = scalar_lea.vmem [#allocation4], %s276
          %s278 = smul.u32 %s26, 4
          %s279 = ssub.s32 %s278, 1
          %p280 = scmp.gt.s32.totalorder %s279, 0
          %s281 = scalar_select %p280, %s279, 0
          %s282 = smul.u32 2, %s281
          %s284 = ssub.s32 128, 128
          %285 = vsyncadd %s274, %s284
          %s286 = smul.addr %s25, 32
          %s287 = sadd.s32 %s282, %s286
          %s288 = smul.addr %s287, 64
          %s289 = scalar_lea.hbm %s1, %s288
          %s291 = sshll.u32 %s277, 4
          %s292 = int_to_ptr.vmem [resolvable:$true] %s291
          %294 = dma.hbm_to_vmem [thread:$0]  %s289, 128, %s292, %s274
        $region36: #{tpu_custom_call.1} parent=27 // pred_fallthru
          _
        // Predicated region
        $region37: #{tpu_custom_call.1} parent=27 // pred_check
          %p295 = pneg %p124
        $region38: #{tpu_custom_call.1} parent=27 // pred_check_branch
          %297 = sbr.rel (%p295) target = $region40
        $region39: #{tpu_custom_call.1} parent=27 // pred_region
          %s298 = sand.u32 %s18, 1
          %s299 = scalar_lea.sflag [#allocation5], %s298
          %s300 = sand.u32 %s114, 1
          %s301 = smul.addr %s300, 8
          %s302 = scalar_lea.vmem [#allocation6], %s301
          %s303 = smul.u32 %s26, 4
          %s304 = sadd.s32 %s303, 4
          %p305 = scmp.lt.s32.totalorder %s304, 15
          %s306 = scalar_select %p305, %s304, 15
          %s307 = smul.u32 2, %s306
          %s309 = ssub.s32 128, 128
          %310 = vsyncadd %s299, %s309
          %s311 = smul.addr %s25, 32
          %s312 = sadd.s32 %s307, %s311
          %s313 = smul.addr %s312, 64
          %s314 = scalar_lea.hbm %s2, %s313
          %s316 = sshll.u32 %s302, 4
          %s317 = int_to_ptr.vmem [resolvable:$true] %s316
          %319 = dma.hbm_to_vmem [thread:$0]  %s314, 128, %s317, %s299
        $region40: #{tpu_custom_call.1} parent=27 // pred_fallthru
          _
      $region28: #{tpu_custom_call.1} parent=5 // pred_fallthru
        _
      %p320 = scmp.le.s32.totalorder 1, %s18
      %p321 = scmp.lt.s32.totalorder %s18, 9
      %p322 = pnand %p320, %p321
      %p323 = pneg %p322
      // Predicated region
      $region41: #{tpu_custom_call.1} parent=5 // pred_check
        _
      $region42: #{tpu_custom_call.1} parent=5 // pred_check_branch
        %325 = sbr.rel (%p322) target = $region44
      $region43: #{tpu_custom_call.1} parent=5 // pred_region
        %s326 = ssub.s32 %s18, 1
        %s327 = sand.u32 %s45, 1
        %s328 = scalar_lea.sflag [#allocation3], %s327
        %s329 = sand.u32 %s45, 1
        %s330 = smul.addr %s329, 32
        %s331 = scalar_lea.vmem [#allocation2], %s330
        // Predicated region
        $region45: #{tpu_custom_call.1} parent=43 // pred_check
          %p332 = pneg %p58
        $region46: #{tpu_custom_call.1} parent=43 // pred_check_branch
          %334 = sbr.rel (%p332) target = $region48
        $region47: #{tpu_custom_call.1} parent=43 // pred_region
          %335 = dma.done %s328, 512
        $region48: #{tpu_custom_call.1} parent=43 // pred_fallthru
          _
        %s336 = sand.u32 %s23, 1
        %s337 = scalar_lea.sflag [#allocation5], %s336
        %s338 = sand.u32 %s81, 1
        %s339 = smul.addr %s338, 8
        %s340 = scalar_lea.vmem [#allocation4], %s339
        // Predicated region
        $region49: #{tpu_custom_call.1} parent=43 // pred_check
          %p341 = pneg %p94
        $region50: #{tpu_custom_call.1} parent=43 // pred_check_branch
          %343 = sbr.rel (%p341) target = $region52
        $region51: #{tpu_custom_call.1} parent=43 // pred_region
          %344 = dma.done %s337, 128
        $region52: #{tpu_custom_call.1} parent=43 // pred_fallthru
          _
        %s345 = sand.u32 %s23, 1
        %s346 = scalar_lea.sflag [#allocation5], %s345
        %s347 = sand.u32 %s117, 1
        %s348 = smul.addr %s347, 8
        %s349 = scalar_lea.vmem [#allocation6], %s348
        // Predicated region
        $region53: #{tpu_custom_call.1} parent=43 // pred_check
          %p350 = pneg %p130
        $region54: #{tpu_custom_call.1} parent=43 // pred_check_branch
          %352 = sbr.rel (%p350) target = $region56
        $region55: #{tpu_custom_call.1} parent=43 // pred_region
          %353 = dma.done %s346, 128
        $region56: #{tpu_custom_call.1} parent=43 // pred_fallthru
          _
        %s354 = sand.u32 %s45, 1
        %s355 = scalar_lea.sflag [#allocation3], %s354
        %s356 = sand.u32 %s45, 1
        %s357 = smul.addr %s356, 32
        %s358 = scalar_lea.vmem [#allocation2], %s357
        %p359 = pneg %p58
        %p360 = pneg %p55
        %s361 = sand.u32 %s23, 1
        %s362 = scalar_lea.sflag [#allocation5], %s361
        %s363 = sand.u32 %s81, 1
        %s364 = smul.addr %s363, 8
        %s365 = scalar_lea.vmem [#allocation4], %s364
        %p366 = pneg %p94
        %p367 = pneg %p91
        %s368 = sand.u32 %s23, 1
        %s369 = scalar_lea.sflag [#allocation5], %s368
        %s370 = sand.u32 %s117, 1
        %s371 = smul.addr %s370, 8
        %s372 = scalar_lea.vmem [#allocation6], %s371
        %p373 = pneg %p130
        %p374 = pneg %p127
        %p375 = pneg %p151
        %p376 = pneg %p148
        %p377 = pneg %p172
        %p378 = pneg %p169
        %p379 = pneg %p193
        %p380 = pneg %p190
        %p381 = pneg %p221
        %p382 = pneg %p218
        %s383 = smul.u32 8, %s28
        %p384 = scmp.lt.s32.totalorder %s27, 1
        %s385 = scalar_select %p384, %s27, 1
        %p386 = scmp.lt.s32.totalorder %s383, 31
        %s387 = scalar_select %p386, %s383, 31
        %s388 = smul.addr %s385, 32
        %s389 = sadd.s32 %s387, %s388
        %s390 = smul.addr %s389, 4
        %s391 = scalar_lea.vmem %s6, %s390
        %s392 = smul.u32 8, %s28
        %s393 = smul.u32 %s28, 4
        %s394 = ssub.s32 %s393, 1
        %p395 = scmp.gt.s32.totalorder %s394, 0
        %s396 = scalar_select %p395, %s394, 0
        %s397 = smul.u32 2, %s396
        %s398 = smul.u32 %s28, 4
        %s399 = sadd.s32 %s398, 4
        %p400 = scmp.lt.s32.totalorder %s399, 15
        %s401 = scalar_select %p400, %s399, 15
        %s402 = smul.u32 2, %s401
        %s403 = smul.u32 8, %s28
        %p404 = scmp.lt.s32.totalorder %s27, 1
        %s405 = scalar_select %p404, %s27, 1
        %p406 = scmp.lt.s32.totalorder %s403, 31
        %s407 = scalar_select %p406, %s403, 31
        %s408 = smul.addr %s405, 32
        %s409 = sadd.s32 %s407, %s408
        %s410 = smul.addr %s409, 4
        %s411 = scalar_lea.vmem %s6, %s410
        %s412 = smul.u32 8, %s28
        %v413 = vld [vmem:[%s331] sm:$0xff]
        %v414 = vld [vmem:[%s331 + $0x8] sm:$0xff]
        %v415 = vld [vmem:[%s331 + $0x10] sm:$0xff]
        %v416 = vld [vmem:[%s331 + $0x18] sm:$0xff]
        %v417 = vld [vmem:[%s340] sm:$0xff]
        %v418 = vld [vmem:[%s349] sm:$0xff]
        %p419 = scmp.eq.s32.totalorder %s28, 0
        %s420 = scalar_select %p419, 1, 0
        %v421 = vstv %s420
        %vm422 = vcmp.eq.s32.totalorder %v421, 1
        %v423 = vsel %vm422, 0.0, %v417
        %p424 = scmp.eq.s32.totalorder %s28, 3
        %s425 = scalar_select %p424, 1, 0
        %v426 = vstv %s425
        %vm427 = vcmp.eq.s32.totalorder %v426, 1
        %v428 = vsel %vm427, 0.0, %v418
        %v430 = vcombine.high %v423, %v423
        %v435 = vcombine.high %v413, %v413
        %v436 = vcombine.high %v414, %v414
        %v437 = vcombine.high %v415, %v415
        %v438 = vcombine.high %v416, %v416
        %v440 = vcombine.high %v428, %v428
        %v441 = vld [vmem:[%s5] sm:$0xff]
        %v443 = vcombine.high %v441, %v441
        %v445 = vld [vmem:[%s3] sm:$0x7]
        %s446 = scalar_lea.vmem %s3, 36
        %v447 = vld [vmem:[%s446] sm:$0x7]
        %448 = vrot.lane.b32.xlu0 %v430, 17
        %v449 = vpop.permute.xlu0 %448
        %450 = vrot.lane.b32.xlu0 %v413, 17
        %v451 = vpop.permute.xlu0 %450
        %452 = vrot.lane.b32.xlu0 %v435, 17
        %v453 = vpop.permute.xlu0 %452
        %454 = vrot.lane.b32.xlu0 %v414, 17
        %v455 = vpop.permute.xlu0 %454
        %456 = vrot.lane.b32.xlu0 %v436, 17
        %v457 = vpop.permute.xlu0 %456
        %458 = vrot.lane.b32.xlu0 %v415, 17
        %v459 = vpop.permute.xlu0 %458
        %460 = vrot.lane.b32.xlu0 %v437, 17
        %v461 = vpop.permute.xlu0 %460
        %462 = vrot.lane.b32.xlu0 %v416, 17
        %v463 = vpop.permute.xlu0 %462
        %464 = vrot.lane.b32.xlu0 %v438, 17
        %v465 = vpop.permute.xlu0 %464
        %vm466 = vcmask 138240
        %v467 = vsel %vm466, %v449, %v451
        %v468 = vsel %vm466, %v451, %v453
        %v469 = vsel %vm466, %v453, %v455
        %v470 = vsel %vm466, %v455, %v457
        %v471 = vsel %vm466, %v457, %v459
        %v472 = vsel %vm466, %v459, %v461
        %v473 = vsel %vm466, %v461, %v463
        %v474 = vsel %vm466, %v463, %v465
        %vm475 = vcmask 31744
        %v477 = vsel %vm475, %v447, 0
        %vm479 = vcmask 1043456
        %v480 = vsel %vm479, %v467, 0
        %v482 = vsel %vm479, %v468, 0
        %v484 = vsel %vm479, %v469, 0
        %v486 = vsel %vm479, %v470, 0
        %v488 = vsel %vm479, %v471, 0
        %v490 = vsel %vm479, %v472, 0
        %v492 = vsel %vm479, %v473, 0
        %v494 = vsel %vm479, %v474, 0
        %496 = vmatprep.subr.mxu0 %v482
        %497 = vmatpush1.msra.mxu0 %v480
        %498 = vmatprep.subr.mxu0 0.0
        %499 = vmatpush1.msra.mxu0 0.0
        %500 = vmatprep.subr.mxu0 0.0
        %501 = vmatpush1.msra.mxu0 0.0
        %502 = vmatprep.subr.mxu0 0.0
        %503 = vmatpush1.msra.mxu0 0.0
        %504 = vmatprep.subr.mxu0 0.0
        %505 = vmatpush1.msra.mxu0 0.0
        %506 = vmatprep.subr.mxu0 0.0
        %507 = vmatpush1.msra.mxu0 0.0
        %508 = vmatprep.subr.mxu0 0.0
        %509 = vmatpush1.msra.mxu0 0.0
        %510 = vmatprep.subr.mxu0 0.0
        %511 = vmatpush1.msra.mxu0 0.0
        %512 = vmatprep.subr.mxu0 0.0
        %513 = vmatpush1.msra.mxu0 0.0
        %514 = vmatprep.subr.mxu0 0.0
        %515 = vmatpush1.msra.mxu0 0.0
        %516 = vmatprep.subr.mxu0 0.0
        %517 = vmatpush1.msra.mxu0 0.0
        %518 = vmatprep.subr.mxu0 0.0
        %519 = vmatpush1.msra.mxu0 0.0
        %520 = vmatprep.subr.mxu0 0.0
        %521 = vmatpush1.msra.mxu0 0.0
        %522 = vmatprep.subr.mxu0 0.0
        %523 = vmatpush1.msra.mxu0 0.0
        %524 = vmatprep.subr.mxu0 0.0
        %525 = vmatpush1.msra.mxu0 0.0
        %526 = vmatprep.subr.mxu0 0.0
        %527 = vmatpush1.msra.mxu0 0.0
        %528 = vmatprep.subr.mxu0 0.0
        %529 = vmatpush1.msra.mxu0 0.0
        %530 = vmatprep.subr.mxu0 0.0
        %531 = vmatpush1.msra.mxu0 0.0
        %532 = vmatprep.subr.mxu0 0.0
        %533 = vmatpush1.msra.mxu0 0.0
        %534 = vmatprep.subr.mxu0 0.0
        %535 = vmatpush1.msra.mxu0 0.0
        %536 = vmatprep.subr.mxu0 0.0
        %537 = vmatpush1.msra.mxu0 0.0
        %538 = vmatprep.subr.mxu0 0.0
        %539 = vmatpush1.msra.mxu0 0.0
        %540 = vmatprep.subr.mxu0 0.0
        %541 = vmatpush1.msra.mxu0 0.0
        %542 = vmatprep.subr.mxu0 0.0
        %543 = vmatpush1.msra.mxu0 0.0
        %544 = vmatprep.subr.mxu0 0.0
        %545 = vmatpush1.msra.mxu0 0.0
        %546 = vmatprep.subr.mxu0 0.0
        %547 = vmatpush1.msra.mxu0 0.0
        %548 = vmatprep.subr.mxu0 0.0
        %549 = vmatpush1.msra.mxu0 0.0
        %550 = vmatprep.subr.mxu0 0.0
        %551 = vmatpush1.msra.mxu0 0.0
        %552 = vmatprep.subr.mxu0 0.0
        %553 = vmatpush1.msra.mxu0 0.0
        %554 = vmatprep.subr.mxu0 0.0
        %555 = vmatpush1.msra.mxu0 0.0
        %556 = vmatprep.subr.mxu0 0.0
        %557 = vmatpush1.msra.mxu0 0.0
        %558 = vmatprep.subr.mxu0 0.0
        %559 = vmatpush1.msra.mxu0 0.0
        %560 = vmatprep.mubr.f32.mxu0 0.0
        %561 = vmatmul.mubr.f32.gmra.mrb[0].mxu0 %v477
        %v562 = vpop.f32.mrb[0].mxu0
        %v563 = vadd.f32 0.0, %v562
        %v564 = vpop.f32.mrb[0].mxu0
        %v565 = vadd.f32 0.0, %v564
        %566 = vdwg.mxu0
        %567 = vmatprep.subr.mxu0 %v486
        %568 = vmatpush1.msra.mxu0 %v484
        %569 = vmatprep.subr.mxu0 0.0
        %570 = vmatpush1.msra.mxu0 0.0
        %571 = vmatprep.subr.mxu0 0.0
        %572 = vmatpush1.msra.mxu0 0.0
        %573 = vmatprep.subr.mxu0 0.0
        %574 = vmatpush1.msra.mxu0 0.0
        %575 = vmatprep.subr.mxu0 0.0
        %576 = vmatpush1.msra.mxu0 0.0
        %577 = vmatprep.subr.mxu0 0.0
        %578 = vmatpush1.msra.mxu0 0.0
        %579 = vmatprep.subr.mxu0 0.0
        %580 = vmatpush1.msra.mxu0 0.0
        %581 = vmatprep.subr.mxu0 0.0
        %582 = vmatpush1.msra.mxu0 0.0
        %583 = vmatprep.subr.mxu0 0.0
        %584 = vmatpush1.msra.mxu0 0.0
        %585 = vmatprep.subr.mxu0 0.0
        %586 = vmatpush1.msra.mxu0 0.0
        %587 = vmatprep.subr.mxu0 0.0
        %588 = vmatpush1.msra.mxu0 0.0
        %589 = vmatprep.subr.mxu0 0.0
        %590 = vmatpush1.msra.mxu0 0.0
        %591 = vmatprep.subr.mxu0 0.0
        %592 = vmatpush1.msra.mxu0 0.0
        %593 = vmatprep.subr.mxu0 0.0
        %594 = vmatpush1.msra.mxu0 0.0
        %595 = vmatprep.subr.mxu0 0.0
        %596 = vmatpush1.msra.mxu0 0.0
        %597 = vmatprep.subr.mxu0 0.0
        %598 = vmatpush1.msra.mxu0 0.0
        %599 = vmatprep.subr.mxu0 0.0
        %600 = vmatpush1.msra.mxu0 0.0
        %601 = vmatprep.subr.mxu0 0.0
        %602 = vmatpush1.msra.mxu0 0.0
        %603 = vmatprep.subr.mxu0 0.0
        %604 = vmatpush1.msra.mxu0 0.0
        %605 = vmatprep.subr.mxu0 0.0
        %606 = vmatpush1.msra.mxu0 0.0
        %607 = vmatprep.subr.mxu0 0.0
        %608 = vmatpush1.msra.mxu0 0.0
        %609 = vmatprep.subr.mxu0 0.0
        %610 = vmatpush1.msra.mxu0 0.0
        %611 = vmatprep.subr.mxu0 0.0
        %612 = vmatpush1.msra.mxu0 0.0
        %613 = vmatprep.subr.mxu0 0.0
        %614 = vmatpush1.msra.mxu0 0.0
        %615 = vmatprep.subr.mxu0 0.0
        %616 = vmatpush1.msra.mxu0 0.0
        %617 = vmatprep.subr.mxu0 0.0
        %618 = vmatpush1.msra.mxu0 0.0
        %619 = vmatprep.subr.mxu0 0.0
        %620 = vmatpush1.msra.mxu0 0.0
        %621 = vmatprep.subr.mxu0 0.0
        %622 = vmatpush1.msra.mxu0 0.0
        %623 = vmatprep.subr.mxu0 0.0
        %624 = vmatpush1.msra.mxu0 0.0
        %625 = vmatprep.subr.mxu0 0.0
        %626 = vmatpush1.msra.mxu0 0.0
        %627 = vmatprep.subr.mxu0 0.0
        %628 = vmatpush1.msra.mxu0 0.0
        %629 = vmatprep.subr.mxu0 0.0
        %630 = vmatpush1.msra.mxu0 0.0
        %631 = vmatprep.mubr.f32.mxu0 0.0
        %632 = vmatmul.mubr.f32.gmra.mrb[0].mxu0 %v477
        %v633 = vpop.f32.mrb[0].mxu0
        %v634 = vadd.f32 0.0, %v633
        %v635 = vpop.f32.mrb[0].mxu0
        %v636 = vadd.f32 0.0, %v635
        %637 = vdwg.mxu0
        %638 = vmatprep.subr.mxu0 %v490
        %639 = vmatpush1.msra.mxu0 %v488
        %640 = vmatprep.subr.mxu0 0.0
        %641 = vmatpush1.msra.mxu0 0.0
        %642 = vmatprep.subr.mxu0 0.0
        %643 = vmatpush1.msra.mxu0 0.0
        %644 = vmatprep.subr.mxu0 0.0
        %645 = vmatpush1.msra.mxu0 0.0
        %646 = vmatprep.subr.mxu0 0.0
        %647 = vmatpush1.msra.mxu0 0.0
        %648 = vmatprep.subr.mxu0 0.0
        %649 = vmatpush1.msra.mxu0 0.0
        %650 = vmatprep.subr.mxu0 0.0
        %651 = vmatpush1.msra.mxu0 0.0
        %652 = vmatprep.subr.mxu0 0.0
        %653 = vmatpush1.msra.mxu0 0.0
        %654 = vmatprep.subr.mxu0 0.0
        %655 = vmatpush1.msra.mxu0 0.0
        %656 = vmatprep.subr.mxu0 0.0
        %657 = vmatpush1.msra.mxu0 0.0
        %658 = vmatprep.subr.mxu0 0.0
        %659 = vmatpush1.msra.mxu0 0.0
        %660 = vmatprep.subr.mxu0 0.0
        %661 = vmatpush1.msra.mxu0 0.0
        %662 = vmatprep.subr.mxu0 0.0
        %663 = vmatpush1.msra.mxu0 0.0
        %664 = vmatprep.subr.mxu0 0.0
        %665 = vmatpush1.msra.mxu0 0.0
        %666 = vmatprep.subr.mxu0 0.0
        %667 = vmatpush1.msra.mxu0 0.0
        %668 = vmatprep.subr.mxu0 0.0
        %669 = vmatpush1.msra.mxu0 0.0
        %670 = vmatprep.subr.mxu0 0.0
        %671 = vmatpush1.msra.mxu0 0.0
        %672 = vmatprep.subr.mxu0 0.0
        %673 = vmatpush1.msra.mxu0 0.0
        %674 = vmatprep.subr.mxu0 0.0
        %675 = vmatpush1.msra.mxu0 0.0
        %676 = vmatprep.subr.mxu0 0.0
        %677 = vmatpush1.msra.mxu0 0.0
        %678 = vmatprep.subr.mxu0 0.0
        %679 = vmatpush1.msra.mxu0 0.0
        %680 = vmatprep.subr.mxu0 0.0
        %681 = vmatpush1.msra.mxu0 0.0
        %682 = vmatprep.subr.mxu0 0.0
        %683 = vmatpush1.msra.mxu0 0.0
        %684 = vmatprep.subr.mxu0 0.0
        %685 = vmatpush1.msra.mxu0 0.0
        %686 = vmatprep.subr.mxu0 0.0
        %687 = vmatpush1.msra.mxu0 0.0
        %688 = vmatprep.subr.mxu0 0.0
        %689 = vmatpush1.msra.mxu0 0.0
        %690 = vmatprep.subr.mxu0 0.0
        %691 = vmatpush1.msra.mxu0 0.0
        %692 = vmatprep.subr.mxu0 0.0
        %693 = vmatpush1.msra.mxu0 0.0
        %694 = vmatprep.subr.mxu0 0.0
        %695 = vmatpush1.msra.mxu0 0.0
        %696 = vmatprep.subr.mxu0 0.0
        %697 = vmatpush1.msra.mxu0 0.0
        %698 = vmatprep.subr.mxu0 0.0
        %699 = vmatpush1.msra.mxu0 0.0
        %700 = vmatprep.subr.mxu0 0.0
        %701 = vmatpush1.msra.mxu0 0.0
        %702 = vmatprep.mubr.f32.mxu0 0.0
        %703 = vmatmul.mubr.f32.gmra.mrb[0].mxu0 %v477
        %v704 = vpop.f32.mrb[0].mxu0
        %v705 = vadd.f32 0.0, %v704
        %v706 = vpop.f32.mrb[0].mxu0
        %v707 = vadd.f32 0.0, %v706
        %708 = vdwg.mxu0
        %709 = vmatprep.subr.mxu0 %v494
        %710 = vmatpush1.msra.mxu0 %v492
        %711 = vmatprep.subr.mxu0 0.0
        %712 = vmatpush1.msra.mxu0 0.0
        %713 = vmatprep.subr.mxu0 0.0
        %714 = vmatpush1.msra.mxu0 0.0
        %715 = vmatprep.subr.mxu0 0.0
        %716 = vmatpush1.msra.mxu0 0.0
        %717 = vmatprep.subr.mxu0 0.0
        %718 = vmatpush1.msra.mxu0 0.0
        %719 = vmatprep.subr.mxu0 0.0
        %720 = vmatpush1.msra.mxu0 0.0
        %721 = vmatprep.subr.mxu0 0.0
        %722 = vmatpush1.msra.mxu0 0.0
        %723 = vmatprep.subr.mxu0 0.0
        %724 = vmatpush1.msra.mxu0 0.0
        %725 = vmatprep.subr.mxu0 0.0
        %726 = vmatpush1.msra.mxu0 0.0
        %727 = vmatprep.subr.mxu0 0.0
        %728 = vmatpush1.msra.mxu0 0.0
        %729 = vmatprep.subr.mxu0 0.0
        %730 = vmatpush1.msra.mxu0 0.0
        %731 = vmatprep.subr.mxu0 0.0
        %732 = vmatpush1.msra.mxu0 0.0
        %733 = vmatprep.subr.mxu0 0.0
        %734 = vmatpush1.msra.mxu0 0.0
        %735 = vmatprep.subr.mxu0 0.0
        %736 = vmatpush1.msra.mxu0 0.0
        %737 = vmatprep.subr.mxu0 0.0
        %738 = vmatpush1.msra.mxu0 0.0
        %739 = vmatprep.subr.mxu0 0.0
        %740 = vmatpush1.msra.mxu0 0.0
        %741 = vmatprep.subr.mxu0 0.0
        %742 = vmatpush1.msra.mxu0 0.0
        %743 = vmatprep.subr.mxu0 0.0
        %744 = vmatpush1.msra.mxu0 0.0
        %745 = vmatprep.subr.mxu0 0.0
        %746 = vmatpush1.msra.mxu0 0.0
        %747 = vmatprep.subr.mxu0 0.0
        %748 = vmatpush1.msra.mxu0 0.0
        %749 = vmatprep.subr.mxu0 0.0
        %750 = vmatpush1.msra.mxu0 0.0
        %751 = vmatprep.subr.mxu0 0.0
        %752 = vmatpush1.msra.mxu0 0.0
        %753 = vmatprep.subr.mxu0 0.0
        %754 = vmatpush1.msra.mxu0 0.0
        %755 = vmatprep.subr.mxu0 0.0
        %756 = vmatpush1.msra.mxu0 0.0
        %757 = vmatprep.subr.mxu0 0.0
        %758 = vmatpush1.msra.mxu0 0.0
        %759 = vmatprep.subr.mxu0 0.0
        %760 = vmatpush1.msra.mxu0 0.0
        %761 = vmatprep.subr.mxu0 0.0
        %762 = vmatpush1.msra.mxu0 0.0
        %763 = vmatprep.subr.mxu0 0.0
        %764 = vmatpush1.msra.mxu0 0.0
        %765 = vmatprep.subr.mxu0 0.0
        %766 = vmatpush1.msra.mxu0 0.0
        %767 = vmatprep.subr.mxu0 0.0
        %768 = vmatpush1.msra.mxu0 0.0
        %769 = vmatprep.subr.mxu0 0.0
        %770 = vmatpush1.msra.mxu0 0.0
        %771 = vmatprep.subr.mxu0 0.0
        %772 = vmatpush1.msra.mxu0 0.0
        %773 = vmatprep.mubr.f32.mxu0 0.0
        %774 = vmatmul.mubr.f32.gmra.mrb[0].mxu0 %v477
        %v775 = vpop.f32.mrb[0].mxu0
        %v776 = vadd.f32 0.0, %v775
        %v777 = vpop.f32.mrb[0].mxu0
        %v778 = vadd.f32 0.0, %v777
        %779 = vdwg.mxu0
        %781 = vrot.lane.b32.xlu0 0.0, 17
        %v782 = vpop.permute.xlu0 %781
        %783 = vrot.lane.b32.xlu0 %v423, 17
        %v784 = vpop.permute.xlu0 %783
        %v785 = vsel %vm466, %v782, %v784
        %v786 = vsel %vm466, %v784, %v449
        %v788 = vsel %vm475, %v445, 0
        %v790 = vsel %vm479, %v785, 0
        %v792 = vsel %vm479, %v786, 0
        %794 = vmatprep.subr.mxu0 %v792
        %795 = vmatpush1.msra.mxu0 %v790
        %796 = vmatprep.subr.mxu0 0.0
        %797 = vmatpush1.msra.mxu0 0.0
        %798 = vmatprep.subr.mxu0 0.0
        %799 = vmatpush1.msra.mxu0 0.0
        %800 = vmatprep.subr.mxu0 0.0
        %801 = vmatpush1.msra.mxu0 0.0
        %802 = vmatprep.subr.mxu0 0.0
        %803 = vmatpush1.msra.mxu0 0.0
        %804 = vmatprep.subr.mxu0 0.0
        %805 = vmatpush1.msra.mxu0 0.0
        %806 = vmatprep.subr.mxu0 0.0
        %807 = vmatpush1.msra.mxu0 0.0
        %808 = vmatprep.subr.mxu0 0.0
        %809 = vmatpush1.msra.mxu0 0.0
        %810 = vmatprep.subr.mxu0 0.0
        %811 = vmatpush1.msra.mxu0 0.0
        %812 = vmatprep.subr.mxu0 0.0
        %813 = vmatpush1.msra.mxu0 0.0
        %814 = vmatprep.subr.mxu0 0.0
        %815 = vmatpush1.msra.mxu0 0.0
        %816 = vmatprep.subr.mxu0 0.0
        %817 = vmatpush1.msra.mxu0 0.0
        %818 = vmatprep.subr.mxu0 0.0
        %819 = vmatpush1.msra.mxu0 0.0
        %820 = vmatprep.subr.mxu0 0.0
        %821 = vmatpush1.msra.mxu0 0.0
        %822 = vmatprep.subr.mxu0 0.0
        %823 = vmatpush1.msra.mxu0 0.0
        %824 = vmatprep.subr.mxu0 0.0
        %825 = vmatpush1.msra.mxu0 0.0
        %826 = vmatprep.subr.mxu0 0.0
        %827 = vmatpush1.msra.mxu0 0.0
        %828 = vmatprep.subr.mxu0 0.0
        %829 = vmatpush1.msra.mxu0 0.0
        %830 = vmatprep.subr.mxu0 0.0
        %831 = vmatpush1.msra.mxu0 0.0
        %832 = vmatprep.subr.mxu0 0.0
        %833 = vmatpush1.msra.mxu0 0.0
        %834 = vmatprep.subr.mxu0 0.0
        %835 = vmatpush1.msra.mxu0 0.0
        %836 = vmatprep.subr.mxu0 0.0
        %837 = vmatpush1.msra.mxu0 0.0
        %838 = vmatprep.subr.mxu0 0.0
        %839 = vmatpush1.msra.mxu0 0.0
        %840 = vmatprep.subr.mxu0 0.0
        %841 = vmatpush1.msra.mxu0 0.0
        %842 = vmatprep.subr.mxu0 0.0
        %843 = vmatpush1.msra.mxu0 0.0
        %844 = vmatprep.subr.mxu0 0.0
        %845 = vmatpush1.msra.mxu0 0.0
        %846 = vmatprep.subr.mxu0 0.0
        %847 = vmatpush1.msra.mxu0 0.0
        %848 = vmatprep.subr.mxu0 0.0
        %849 = vmatpush1.msra.mxu0 0.0
        %850 = vmatprep.subr.mxu0 0.0
        %851 = vmatpush1.msra.mxu0 0.0
        %852 = vmatprep.subr.mxu0 0.0
        %853 = vmatpush1.msra.mxu0 0.0
        %854 = vmatprep.subr.mxu0 0.0
        %855 = vmatpush1.msra.mxu0 0.0
        %856 = vmatprep.subr.mxu0 0.0
        %857 = vmatpush1.msra.mxu0 0.0
        %858 = vmatprep.mubr.f32.mxu0 0.0
        %859 = vmatmul.mubr.f32.gmra.mrb[0].mxu0 %v788
        %v860 = vpop.f32.mrb[0].mxu0
        %v861 = vadd.f32 %v563, %v860
        %v862 = vpop.f32.mrb[0].mxu0
        %v863 = vadd.f32 %v565, %v862
        %864 = vdwg.mxu0
        %865 = vmatprep.subr.mxu0 %v482
        %866 = vmatpush1.msra.mxu0 %v480
        %867 = vmatprep.subr.mxu0 0.0
        %868 = vmatpush1.msra.mxu0 0.0
        %869 = vmatprep.subr.mxu0 0.0
        %870 = vmatpush1.msra.mxu0 0.0
        %871 = vmatprep.subr.mxu0 0.0
        %872 = vmatpush1.msra.mxu0 0.0
        %873 = vmatprep.subr.mxu0 0.0
        %874 = vmatpush1.msra.mxu0 0.0
        %875 = vmatprep.subr.mxu0 0.0
        %876 = vmatpush1.msra.mxu0 0.0
        %877 = vmatprep.subr.mxu0 0.0
        %878 = vmatpush1.msra.mxu0 0.0
        %879 = vmatprep.subr.mxu0 0.0
        %880 = vmatpush1.msra.mxu0 0.0
        %881 = vmatprep.subr.mxu0 0.0
        %882 = vmatpush1.msra.mxu0 0.0
        %883 = vmatprep.subr.mxu0 0.0
        %884 = vmatpush1.msra.mxu0 0.0
        %885 = vmatprep.subr.mxu0 0.0
        %886 = vmatpush1.msra.mxu0 0.0
        %887 = vmatprep.subr.mxu0 0.0
        %888 = vmatpush1.msra.mxu0 0.0
        %889 = vmatprep.subr.mxu0 0.0
        %890 = vmatpush1.msra.mxu0 0.0
        %891 = vmatprep.subr.mxu0 0.0
        %892 = vmatpush1.msra.mxu0 0.0
        %893 = vmatprep.subr.mxu0 0.0
        %894 = vmatpush1.msra.mxu0 0.0
        %895 = vmatprep.subr.mxu0 0.0
        %896 = vmatpush1.msra.mxu0 0.0
        %897 = vmatprep.subr.mxu0 0.0
        %898 = vmatpush1.msra.mxu0 0.0
        %899 = vmatprep.subr.mxu0 0.0
        %900 = vmatpush1.msra.mxu0 0.0
        %901 = vmatprep.subr.mxu0 0.0
        %902 = vmatpush1.msra.mxu0 0.0
        %903 = vmatprep.subr.mxu0 0.0
        %904 = vmatpush1.msra.mxu0 0.0
        %905 = vmatprep.subr.mxu0 0.0
        %906 = vmatpush1.msra.mxu0 0.0
        %907 = vmatprep.subr.mxu0 0.0
        %908 = vmatpush1.msra.mxu0 0.0
        %909 = vmatprep.subr.mxu0 0.0
        %910 = vmatpush1.msra.mxu0 0.0
        %911 = vmatprep.subr.mxu0 0.0
        %912 = vmatpush1.msra.mxu0 0.0
        %913 = vmatprep.subr.mxu0 0.0
        %914 = vmatpush1.msra.mxu0 0.0
        %915 = vmatprep.subr.mxu0 0.0
        %916 = vmatpush1.msra.mxu0 0.0
        %917 = vmatprep.subr.mxu0 0.0
        %918 = vmatpush1.msra.mxu0 0.0
        %919 = vmatprep.subr.mxu0 0.0
        %920 = vmatpush1.msra.mxu0 0.0
        %921 = vmatprep.subr.mxu0 0.0
        %922 = vmatpush1.msra.mxu0 0.0
        %923 = vmatprep.subr.mxu0 0.0
        %924 = vmatpush1.msra.mxu0 0.0
        %925 = vmatprep.subr.mxu0 0.0
        %926 = vmatpush1.msra.mxu0 0.0
        %927 = vmatprep.subr.mxu0 0.0
        %928 = vmatpush1.msra.mxu0 0.0
        %929 = vmatprep.mubr.f32.mxu0 0.0
        %930 = vmatmul.mubr.f32.gmra.mrb[0].mxu0 %v788
        %v931 = vpop.f32.mrb[0].mxu0
        %v932 = vadd.f32 %v634, %v931
        %v933 = vpop.f32.mrb[0].mxu0
        %v934 = vadd.f32 %v636, %v933
        %935 = vdwg.mxu0
        %936 = vmatprep.subr.mxu0 %v486
        %937 = vmatpush1.msra.mxu0 %v484
        %938 = vmatprep.subr.mxu0 0.0
        %939 = vmatpush1.msra.mxu0 0.0
        %940 = vmatprep.subr.mxu0 0.0
        %941 = vmatpush1.msra.mxu0 0.0
        %942 = vmatprep.subr.mxu0 0.0
        %943 = vmatpush1.msra.mxu0 0.0
        %944 = vmatprep.subr.mxu0 0.0
        %945 = vmatpush1.msra.mxu0 0.0
        %946 = vmatprep.subr.mxu0 0.0
        %947 = vmatpush1.msra.mxu0 0.0
        %948 = vmatprep.subr.mxu0 0.0
        %949 = vmatpush1.msra.mxu0 0.0
        %950 = vmatprep.subr.mxu0 0.0
        %951 = vmatpush1.msra.mxu0 0.0
        %952 = vmatprep.subr.mxu0 0.0
        %953 = vmatpush1.msra.mxu0 0.0
        %954 = vmatprep.subr.mxu0 0.0
        %955 = vmatpush1.msra.mxu0 0.0
        %956 = vmatprep.subr.mxu0 0.0
        %957 = vmatpush1.msra.mxu0 0.0
        %958 = vmatprep.subr.mxu0 0.0
        %959 = vmatpush1.msra.mxu0 0.0
        %960 = vmatprep.subr.mxu0 0.0
        %961 = vmatpush1.msra.mxu0 0.0
        %962 = vmatprep.subr.mxu0 0.0
        %963 = vmatpush1.msra.mxu0 0.0
        %964 = vmatprep.subr.mxu0 0.0
        %965 = vmatpush1.msra.mxu0 0.0
        %966 = vmatprep.subr.mxu0 0.0
        %967 = vmatpush1.msra.mxu0 0.0
        %968 = vmatprep.subr.mxu0 0.0
        %969 = vmatpush1.msra.mxu0 0.0
        %970 = vmatprep.subr.mxu0 0.0
        %971 = vmatpush1.msra.mxu0 0.0
        %972 = vmatprep.subr.mxu0 0.0
        %973 = vmatpush1.msra.mxu0 0.0
        %974 = vmatprep.subr.mxu0 0.0
        %975 = vmatpush1.msra.mxu0 0.0
        %976 = vmatprep.subr.mxu0 0.0
        %977 = vmatpush1.msra.mxu0 0.0
        %978 = vmatprep.subr.mxu0 0.0
        %979 = vmatpush1.msra.mxu0 0.0
        %980 = vmatprep.subr.mxu0 0.0
        %981 = vmatpush1.msra.mxu0 0.0
        %982 = vmatprep.subr.mxu0 0.0
        %983 = vmatpush1.msra.mxu0 0.0
        %984 = vmatprep.subr.mxu0 0.0
        %985 = vmatpush1.msra.mxu0 0.0
        %986 = vmatprep.subr.mxu0 0.0
        %987 = vmatpush1.msra.mxu0 0.0
        %988 = vmatprep.subr.mxu0 0.0
        %989 = vmatpush1.msra.mxu0 0.0
        %990 = vmatprep.subr.mxu0 0.0
        %991 = vmatpush1.msra.mxu0 0.0
        %992 = vmatprep.subr.mxu0 0.0
        %993 = vmatpush1.msra.mxu0 0.0
        %994 = vmatprep.subr.mxu0 0.0
        %995 = vmatpush1.msra.mxu0 0.0
        %996 = vmatprep.subr.mxu0 0.0
        %997 = vmatpush1.msra.mxu0 0.0
        %998 = vmatprep.subr.mxu0 0.0
        %999 = vmatpush1.msra.mxu0 0.0
        %1000 = vmatprep.mubr.f32.mxu0 0.0
        %1001 = vmatmul.mubr.f32.gmra.mrb[0].mxu0 %v788
        %v1002 = vpop.f32.mrb[0].mxu0
        %v1003 = vadd.f32 %v705, %v1002
        %v1004 = vpop.f32.mrb[0].mxu0
        %v1005 = vadd.f32 %v707, %v1004
        %1006 = vdwg.mxu0
        %1007 = vmatprep.subr.mxu0 %v490
        %1008 = vmatpush1.msra.mxu0 %v488
        %1009 = vmatprep.subr.mxu0 0.0
        %1010 = vmatpush1.msra.mxu0 0.0
        %1011 = vmatprep.subr.mxu0 0.0
        %1012 = vmatpush1.msra.mxu0 0.0
        %1013 = vmatprep.subr.mxu0 0.0
        %1014 = vmatpush1.msra.mxu0 0.0
        %1015 = vmatprep.subr.mxu0 0.0
        %1016 = vmatpush1.msra.mxu0 0.0
        %1017 = vmatprep.subr.mxu0 0.0
        %1018 = vmatpush1.msra.mxu0 0.0
        %1019 = vmatprep.subr.mxu0 0.0
        %1020 = vmatpush1.msra.mxu0 0.0
        %1021 = vmatprep.subr.mxu0 0.0
        %1022 = vmatpush1.msra.mxu0 0.0
        %1023 = vmatprep.subr.mxu0 0.0
        %1024 = vmatpush1.msra.mxu0 0.0
        %1025 = vmatprep.subr.mxu0 0.0
        %1026 = vmatpush1.msra.mxu0 0.0
        %1027 = vmatprep.subr.mxu0 0.0
        %1028 = vmatpush1.msra.mxu0 0.0
        %1029 = vmatprep.subr.mxu0 0.0
        %1030 = vmatpush1.msra.mxu0 0.0
        %1031 = vmatprep.subr.mxu0 0.0
        %1032 = vmatpush1.msra.mxu0 0.0
        %1033 = vmatprep.subr.mxu0 0.0
        %1034 = vmatpush1.msra.mxu0 0.0
        %1035 = vmatprep.subr.mxu0 0.0
        %1036 = vmatpush1.msra.mxu0 0.0
        %1037 = vmatprep.subr.mxu0 0.0
        %1038 = vmatpush1.msra.mxu0 0.0
        %1039 = vmatprep.subr.mxu0 0.0
        %1040 = vmatpush1.msra.mxu0 0.0
        %1041 = vmatprep.subr.mxu0 0.0
        %1042 = vmatpush1.msra.mxu0 0.0
        %1043 = vmatprep.subr.mxu0 0.0
        %1044 = vmatpush1.msra.mxu0 0.0
        %1045 = vmatprep.subr.mxu0 0.0
        %1046 = vmatpush1.msra.mxu0 0.0
        %1047 = vmatprep.subr.mxu0 0.0
        %1048 = vmatpush1.msra.mxu0 0.0
        %1049 = vmatprep.subr.mxu0 0.0
        %1050 = vmatpush1.msra.mxu0 0.0
        %1051 = vmatprep.subr.mxu0 0.0
        %1052 = vmatpush1.msra.mxu0 0.0
        %1053 = vmatprep.subr.mxu0 0.0
        %1054 = vmatpush1.msra.mxu0 0.0
        %1055 = vmatprep.subr.mxu0 0.0
        %1056 = vmatpush1.msra.mxu0 0.0
        %1057 = vmatprep.subr.mxu0 0.0
        %1058 = vmatpush1.msra.mxu0 0.0
        %1059 = vmatprep.subr.mxu0 0.0
        %1060 = vmatpush1.msra.mxu0 0.0
        %1061 = vmatprep.subr.mxu0 0.0
        %1062 = vmatpush1.msra.mxu0 0.0
        %1063 = vmatprep.subr.mxu0 0.0
        %1064 = vmatpush1.msra.mxu0 0.0
        %1065 = vmatprep.subr.mxu0 0.0
        %1066 = vmatpush1.msra.mxu0 0.0
        %1067 = vmatprep.subr.mxu0 0.0
        %1068 = vmatpush1.msra.mxu0 0.0
        %1069 = vmatprep.subr.mxu0 0.0
        %1070 = vmatpush1.msra.mxu0 0.0
        %1071 = vmatprep.mubr.f32.mxu0 0.0
        %1072 = vmatmul.mubr.f32.gmra.mrb[0].mxu0 %v788
        %v1073 = vpop.f32.mrb[0].mxu0
        %v1074 = vadd.f32 %v776, %v1073
        %v1075 = vpop.f32.mrb[0].mxu0
        %v1076 = vadd.f32 %v778, %v1075
        %1077 = vdwg.mxu0
        %s1078 = scalar_lea.vmem %s3, 72
        %v1079 = vld [vmem:[%s1078] sm:$0x7]
        %1080 = vrot.lane.b32.xlu0 %v428, 17
        %v1081 = vpop.permute.xlu0 %1080
        %1082 = vrot.lane.b32.xlu0 %v440, 17
        %v1083 = vpop.permute.xlu0 %1082
        %v1084 = vsel %vm466, %v465, %v1081
        %v1085 = vsel %vm466, %v1081, %v1083
        %v1087 = vsel %vm475, %v1079, 0
        %v1089 = vsel %vm479, %v1084, 0
        %v1091 = vsel %vm479, %v1085, 0
        %1093 = vmatprep.subr.mxu0 %v486
        %1094 = vmatpush1.msra.mxu0 %v484
        %1095 = vmatprep.subr.mxu0 0.0
        %1096 = vmatpush1.msra.mxu0 0.0
        %1097 = vmatprep.subr.mxu0 0.0
        %1098 = vmatpush1.msra.mxu0 0.0
        %1099 = vmatprep.subr.mxu0 0.0
        %1100 = vmatpush1.msra.mxu0 0.0
        %1101 = vmatprep.subr.mxu0 0.0
        %1102 = vmatpush1.msra.mxu0 0.0
        %1103 = vmatprep.subr.mxu0 0.0
        %1104 = vmatpush1.msra.mxu0 0.0
        %1105 = vmatprep.subr.mxu0 0.0
        %1106 = vmatpush1.msra.mxu0 0.0
        %1107 = vmatprep.subr.mxu0 0.0
        %1108 = vmatpush1.msra.mxu0 0.0
        %1109 = vmatprep.subr.mxu0 0.0
        %1110 = vmatpush1.msra.mxu0 0.0
        %1111 = vmatprep.subr.mxu0 0.0
        %1112 = vmatpush1.msra.mxu0 0.0
        %1113 = vmatprep.subr.mxu0 0.0
        %1114 = vmatpush1.msra.mxu0 0.0
        %1115 = vmatprep.subr.mxu0 0.0
        %1116 = vmatpush1.msra.mxu0 0.0
        %1117 = vmatprep.subr.mxu0 0.0
        %1118 = vmatpush1.msra.mxu0 0.0
        %1119 = vmatprep.subr.mxu0 0.0
        %1120 = vmatpush1.msra.mxu0 0.0
        %1121 = vmatprep.subr.mxu0 0.0
        %1122 = vmatpush1.msra.mxu0 0.0
        %1123 = vmatprep.subr.mxu0 0.0
        %1124 = vmatpush1.msra.mxu0 0.0
        %1125 = vmatprep.subr.mxu0 0.0
        %1126 = vmatpush1.msra.mxu0 0.0
        %1127 = vmatprep.subr.mxu0 0.0
        %1128 = vmatpush1.msra.mxu0 0.0
        %1129 = vmatprep.subr.mxu0 0.0
        %1130 = vmatpush1.msra.mxu0 0.0
        %1131 = vmatprep.subr.mxu0 0.0
        %1132 = vmatpush1.msra.mxu0 0.0
        %1133 = vmatprep.subr.mxu0 0.0
        %1134 = vmatpush1.msra.mxu0 0.0
        %1135 = vmatprep.subr.mxu0 0.0
        %1136 = vmatpush1.msra.mxu0 0.0
        %1137 = vmatprep.subr.mxu0 0.0
        %1138 = vmatpush1.msra.mxu0 0.0
        %1139 = vmatprep.subr.mxu0 0.0
        %1140 = vmatpush1.msra.mxu0 0.0
        %1141 = vmatprep.subr.mxu0 0.0
        %1142 = vmatpush1.msra.mxu0 0.0
        %1143 = vmatprep.subr.mxu0 0.0
        %1144 = vmatpush1.msra.mxu0 0.0
        %1145 = vmatprep.subr.mxu0 0.0
        %1146 = vmatpush1.msra.mxu0 0.0
        %1147 = vmatprep.subr.mxu0 0.0
        %1148 = vmatpush1.msra.mxu0 0.0
        %1149 = vmatprep.subr.mxu0 0.0
        %1150 = vmatpush1.msra.mxu0 0.0
        %1151 = vmatprep.subr.mxu0 0.0
        %1152 = vmatpush1.msra.mxu0 0.0
        %1153 = vmatprep.subr.mxu0 0.0
        %1154 = vmatpush1.msra.mxu0 0.0
        %1155 = vmatprep.subr.mxu0 0.0
        %1156 = vmatpush1.msra.mxu0 0.0
        %1157 = vmatprep.mubr.f32.mxu0 0.0
        %1158 = vmatmul.mubr.f32.gmra.mrb[0].mxu0 %v1087
        %v1159 = vpop.f32.mrb[0].mxu0
        %v1160 = vadd.f32 0.0, %v1159
        %v1161 = vpop.f32.mrb[0].mxu0
        %v1162 = vadd.f32 0.0, %v1161
        %1163 = vdwg.mxu0
        %1164 = vmatprep.subr.mxu0 %v490
        %1165 = vmatpush1.msra.mxu0 %v488
        %1166 = vmatprep.subr.mxu0 0.0
        %1167 = vmatpush1.msra.mxu0 0.0
        %1168 = vmatprep.subr.mxu0 0.0
        %1169 = vmatpush1.msra.mxu0 0.0
        %1170 = vmatprep.subr.mxu0 0.0
        %1171 = vmatpush1.msra.mxu0 0.0
        %1172 = vmatprep.subr.mxu0 0.0
        %1173 = vmatpush1.msra.mxu0 0.0
        %1174 = vmatprep.subr.mxu0 0.0
        %1175 = vmatpush1.msra.mxu0 0.0
        %1176 = vmatprep.subr.mxu0 0.0
        %1177 = vmatpush1.msra.mxu0 0.0
        %1178 = vmatprep.subr.mxu0 0.0
        %1179 = vmatpush1.msra.mxu0 0.0
        %1180 = vmatprep.subr.mxu0 0.0
        %1181 = vmatpush1.msra.mxu0 0.0
        %1182 = vmatprep.subr.mxu0 0.0
        %1183 = vmatpush1.msra.mxu0 0.0
        %1184 = vmatprep.subr.mxu0 0.0
        %1185 = vmatpush1.msra.mxu0 0.0
        %1186 = vmatprep.subr.mxu0 0.0
        %1187 = vmatpush1.msra.mxu0 0.0
        %1188 = vmatprep.subr.mxu0 0.0
        %1189 = vmatpush1.msra.mxu0 0.0
        %1190 = vmatprep.subr.mxu0 0.0
        %1191 = vmatpush1.msra.mxu0 0.0
        %1192 = vmatprep.subr.mxu0 0.0
        %1193 = vmatpush1.msra.mxu0 0.0
        %1194 = vmatprep.subr.mxu0 0.0
        %1195 = vmatpush1.msra.mxu0 0.0
        %1196 = vmatprep.subr.mxu0 0.0
        %1197 = vmatpush1.msra.mxu0 0.0
        %1198 = vmatprep.subr.mxu0 0.0
        %1199 = vmatpush1.msra.mxu0 0.0
        %1200 = vmatprep.subr.mxu0 0.0
        %1201 = vmatpush1.msra.mxu0 0.0
        %1202 = vmatprep.subr.mxu0 0.0
        %1203 = vmatpush1.msra.mxu0 0.0
        %1204 = vmatprep.subr.mxu0 0.0
        %1205 = vmatpush1.msra.mxu0 0.0
        %1206 = vmatprep.subr.mxu0 0.0
        %1207 = vmatpush1.msra.mxu0 0.0
        %1208 = vmatprep.subr.mxu0 0.0
        %1209 = vmatpush1.msra.mxu0 0.0
        %1210 = vmatprep.subr.mxu0 0.0
        %1211 = vmatpush1.msra.mxu0 0.0
        %1212 = vmatprep.subr.mxu0 0.0
        %1213 = vmatpush1.msra.mxu0 0.0
        %1214 = vmatprep.subr.mxu0 0.0
        %1215 = vmatpush1.msra.mxu0 0.0
        %1216 = vmatprep.subr.mxu0 0.0
        %1217 = vmatpush1.msra.mxu0 0.0
        %1218 = vmatprep.subr.mxu0 0.0
        %1219 = vmatpush1.msra.mxu0 0.0
        %1220 = vmatprep.subr.mxu0 0.0
        %1221 = vmatpush1.msra.mxu0 0.0
        %1222 = vmatprep.subr.mxu0 0.0
        %1223 = vmatpush1.msra.mxu0 0.0
        %1224 = vmatprep.subr.mxu0 0.0
        %1225 = vmatpush1.msra.mxu0 0.0
        %1226 = vmatprep.subr.mxu0 0.0
        %1227 = vmatpush1.msra.mxu0 0.0
        %1228 = vmatprep.mubr.f32.mxu0 0.0
        %1229 = vmatmul.mubr.f32.gmra.mrb[0].mxu0 %v1087
        %v1230 = vpop.f32.mrb[0].mxu0
        %v1231 = vadd.f32 0.0, %v1230
        %v1232 = vpop.f32.mrb[0].mxu0
        %v1233 = vadd.f32 0.0, %v1232
        %1234 = vdwg.mxu0
        %1235 = vmatprep.subr.mxu0 %v494
        %1236 = vmatpush1.msra.mxu0 %v492
        %1237 = vmatprep.subr.mxu0 0.0
        %1238 = vmatpush1.msra.mxu0 0.0
        %1239 = vmatprep.subr.mxu0 0.0
        %1240 = vmatpush1.msra.mxu0 0.0
        %1241 = vmatprep.subr.mxu0 0.0
        %1242 = vmatpush1.msra.mxu0 0.0
        %1243 = vmatprep.subr.mxu0 0.0
        %1244 = vmatpush1.msra.mxu0 0.0
        %1245 = vmatprep.subr.mxu0 0.0
        %1246 = vmatpush1.msra.mxu0 0.0
        %1247 = vmatprep.subr.mxu0 0.0
        %1248 = vmatpush1.msra.mxu0 0.0
        %1249 = vmatprep.subr.mxu0 0.0
        %1250 = vmatpush1.msra.mxu0 0.0
        %1251 = vmatprep.subr.mxu0 0.0
        %1252 = vmatpush1.msra.mxu0 0.0
        %1253 = vmatprep.subr.mxu0 0.0
        %1254 = vmatpush1.msra.mxu0 0.0
        %1255 = vmatprep.subr.mxu0 0.0
        %1256 = vmatpush1.msra.mxu0 0.0
        %1257 = vmatprep.subr.mxu0 0.0
        %1258 = vmatpush1.msra.mxu0 0.0
        %1259 = vmatprep.subr.mxu0 0.0
        %1260 = vmatpush1.msra.mxu0 0.0
        %1261 = vmatprep.subr.mxu0 0.0
        %1262 = vmatpush1.msra.mxu0 0.0
        %1263 = vmatprep.subr.mxu0 0.0
        %1264 = vmatpush1.msra.mxu0 0.0
        %1265 = vmatprep.subr.mxu0 0.0
        %1266 = vmatpush1.msra.mxu0 0.0
        %1267 = vmatprep.subr.mxu0 0.0
        %1268 = vmatpush1.msra.mxu0 0.0
        %1269 = vmatprep.subr.mxu0 0.0
        %1270 = vmatpush1.msra.mxu0 0.0
        %1271 = vmatprep.subr.mxu0 0.0
        %1272 = vmatpush1.msra.mxu0 0.0
        %1273 = vmatprep.subr.mxu0 0.0
        %1274 = vmatpush1.msra.mxu0 0.0
        %1275 = vmatprep.subr.mxu0 0.0
        %1276 = vmatpush1.msra.mxu0 0.0
        %1277 = vmatprep.subr.mxu0 0.0
        %1278 = vmatpush1.msra.mxu0 0.0
        %1279 = vmatprep.subr.mxu0 0.0
        %1280 = vmatpush1.msra.mxu0 0.0
        %1281 = vmatprep.subr.mxu0 0.0
        %1282 = vmatpush1.msra.mxu0 0.0
        %1283 = vmatprep.subr.mxu0 0.0
        %1284 = vmatpush1.msra.mxu0 0.0
        %1285 = vmatprep.subr.mxu0 0.0
        %1286 = vmatpush1.msra.mxu0 0.0
        %1287 = vmatprep.subr.mxu0 0.0
        %1288 = vmatpush1.msra.mxu0 0.0
        %1289 = vmatprep.subr.mxu0 0.0
        %1290 = vmatpush1.msra.mxu0 0.0
        %1291 = vmatprep.subr.mxu0 0.0
        %1292 = vmatpush1.msra.mxu0 0.0
        %1293 = vmatprep.subr.mxu0 0.0
        %1294 = vmatpush1.msra.mxu0 0.0
        %1295 = vmatprep.subr.mxu0 0.0
        %1296 = vmatpush1.msra.mxu0 0.0
        %1297 = vmatprep.subr.mxu0 0.0
        %1298 = vmatpush1.msra.mxu0 0.0
        %1299 = vmatprep.mubr.f32.mxu0 0.0
        %1300 = vmatmul.mubr.f32.gmra.mrb[0].mxu0 %v1087
        %v1301 = vpop.f32.mrb[0].mxu0
        %v1302 = vadd.f32 0.0, %v1301
        %v1303 = vpop.f32.mrb[0].mxu0
        %v1304 = vadd.f32 0.0, %v1303
        %1305 = vdwg.mxu0
        %1306 = vmatprep.subr.mxu0 %v1091
        %1307 = vmatpush1.msra.mxu0 %v1089
        %1308 = vmatprep.subr.mxu0 0.0
        %1309 = vmatpush1.msra.mxu0 0.0
        %1310 = vmatprep.subr.mxu0 0.0
        %1311 = vmatpush1.msra.mxu0 0.0
        %1312 = vmatprep.subr.mxu0 0.0
        %1313 = vmatpush1.msra.mxu0 0.0
        %1314 = vmatprep.subr.mxu0 0.0
        %1315 = vmatpush1.msra.mxu0 0.0
        %1316 = vmatprep.subr.mxu0 0.0
        %1317 = vmatpush1.msra.mxu0 0.0
        %1318 = vmatprep.subr.mxu0 0.0
        %1319 = vmatpush1.msra.mxu0 0.0
        %1320 = vmatprep.subr.mxu0 0.0
        %1321 = vmatpush1.msra.mxu0 0.0
        %1322 = vmatprep.subr.mxu0 0.0
        %1323 = vmatpush1.msra.mxu0 0.0
        %1324 = vmatprep.subr.mxu0 0.0
        %1325 = vmatpush1.msra.mxu0 0.0
        %1326 = vmatprep.subr.mxu0 0.0
        %1327 = vmatpush1.msra.mxu0 0.0
        %1328 = vmatprep.subr.mxu0 0.0
        %1329 = vmatpush1.msra.mxu0 0.0
        %1330 = vmatprep.subr.mxu0 0.0
        %1331 = vmatpush1.msra.mxu0 0.0
        %1332 = vmatprep.subr.mxu0 0.0
        %1333 = vmatpush1.msra.mxu0 0.0
        %1334 = vmatprep.subr.mxu0 0.0
        %1335 = vmatpush1.msra.mxu0 0.0
        %1336 = vmatprep.subr.mxu0 0.0
        %1337 = vmatpush1.msra.mxu0 0.0
        %1338 = vmatprep.subr.mxu0 0.0
        %1339 = vmatpush1.msra.mxu0 0.0
        %1340 = vmatprep.subr.mxu0 0.0
        %1341 = vmatpush1.msra.mxu0 0.0
        %1342 = vmatprep.subr.mxu0 0.0
        %1343 = vmatpush1.msra.mxu0 0.0
        %1344 = vmatprep.subr.mxu0 0.0
        %1345 = vmatpush1.msra.mxu0 0.0
        %1346 = vmatprep.subr.mxu0 0.0
        %1347 = vmatpush1.msra.mxu0 0.0
        %1348 = vmatprep.subr.mxu0 0.0
        %1349 = vmatpush1.msra.mxu0 0.0
        %1350 = vmatprep.subr.mxu0 0.0
        %1351 = vmatpush1.msra.mxu0 0.0
        %1352 = vmatprep.subr.mxu0 0.0
        %1353 = vmatpush1.msra.mxu0 0.0
        %1354 = vmatprep.subr.mxu0 0.0
        %1355 = vmatpush1.msra.mxu0 0.0
        %1356 = vmatprep.subr.mxu0 0.0
        %1357 = vmatpush1.msra.mxu0 0.0
        %1358 = vmatprep.subr.mxu0 0.0
        %1359 = vmatpush1.msra.mxu0 0.0
        %1360 = vmatprep.subr.mxu0 0.0
        %1361 = vmatpush1.msra.mxu0 0.0
        %1362 = vmatprep.subr.mxu0 0.0
        %1363 = vmatpush1.msra.mxu0 0.0
        %1364 = vmatprep.subr.mxu0 0.0
        %1365 = vmatpush1.msra.mxu0 0.0
        %1366 = vmatprep.subr.mxu0 0.0
        %1367 = vmatpush1.msra.mxu0 0.0
        %1368 = vmatprep.subr.mxu0 0.0
        %1369 = vmatpush1.msra.mxu0 0.0
        %1370 = vmatprep.mubr.f32.mxu0 0.0
        %1371 = vmatmul.mubr.f32.gmra.mrb[0].mxu0 %v1087
        %v1372 = vpop.f32.mrb[0].mxu0
        %v1373 = vadd.f32 0.0, %v1372
        %v1374 = vpop.f32.mrb[0].mxu0
        %v1375 = vadd.f32 0.0, %v1374
        %1376 = vdwg.mxu0
        %v1377 = vadd.f32 %v861, %v1160
        %v1378 = vadd.f32 %v863, %v1162
        %v1379 = vadd.f32 %v932, %v1231
        %v1380 = vadd.f32 %v934, %v1233
        %v1381 = vadd.f32 %v1003, %v1302
        %v1382 = vadd.f32 %v1005, %v1304
        %v1383 = vadd.f32 %v1074, %v1373
        %v1384 = vadd.f32 %v1076, %v1375
        %v1385 = vrot.slane %v441, 2
        %v1386 = vrot.slane %v443, 2
        %v1389 = vmul.f32 %v441, %v1385
        %v1390 = vmul.f32 %v443, %v1386
        %v1391 = vlaneseq
        %v1392 = vshrl.u32 %v1391, 7
        %v1393 = vsub.s32 0, %v1392
        %v1394 = vrot.slane %v1389, %v1393
        %v1395 = vlaneseq
        %v1396 = vshrl.u32 %v1395, 7
        %v1397 = vsub.s32 0, %v1396
        %v1398 = vrot.slane %v1390, %v1397
        %v1399 = vmul.f32 %v1377, %v1394
        %v1400 = vmul.f32 %v1378, %v1398
        %v1401 = vmul.f32 %v1379, %v1394
        %v1402 = vmul.f32 %v1380, %v1398
        %v1403 = vmul.f32 %v1381, %v1394
        %v1404 = vmul.f32 %v1382, %v1398
        %v1405 = vmul.f32 %v1383, %v1394
        %v1406 = vmul.f32 %v1384, %v1398
        %v1407 = vadd.f32 %v1399, 0.0
        %v1408 = vadd.f32 %v1400, 0.0
        %v1409 = vadd.f32 %v1401, 0.0
        %v1410 = vadd.f32 %v1402, 0.0
        %v1411 = vadd.f32 %v1403, 0.0
        %v1412 = vadd.f32 %v1404, 0.0
        %v1413 = vadd.f32 %v1405, 0.0
        %v1414 = vadd.f32 %v1406, 0.0
        %s1415 = scalar_lea.vmem %s3, 4
        %v1416 = vld [vmem:[%s1415] sm:$0x7]
        %s1417 = scalar_lea.vmem %s3, 40
        %v1418 = vld [vmem:[%s1417] sm:$0x7]
        %1419 = vrot.lane.b32.xlu0 %v430, 16
        %v1420 = vpop.permute.xlu0 %1419
        %1421 = vrot.lane.b32.xlu0 %v413, 16
        %v1422 = vpop.permute.xlu0 %1421
        %1423 = vrot.lane.b32.xlu0 %v435, 16
        %v1424 = vpop.permute.xlu0 %1423
        %1425 = vrot.lane.b32.xlu0 %v414, 16
        %v1426 = vpop.permute.xlu0 %1425
        %1427 = vrot.lane.b32.xlu0 %v436, 16
        %v1428 = vpop.permute.xlu0 %1427
        %1429 = vrot.lane.b32.xlu0 %v415, 16
        %v1430 = vpop.permute.xlu0 %1429
        %1431 = vrot.lane.b32.xlu0 %v437, 16
        %v1432 = vpop.permute.xlu0 %1431
        %1433 = vrot.lane.b32.xlu0 %v416, 16
        %v1434 = vpop.permute.xlu0 %1433
        %1435 = vrot.lane.b32.xlu0 %v438, 16
        %v1436 = vpop.permute.xlu0 %1435
        %vm1437 = vcmask 130048
        %v1438 = vsel %vm1437, %v1420, %v1422
        %v1439 = vsel %vm1437, %v1422, %v1424
        %v1440 = vsel %vm1437, %v1424, %v1426
        %v1441 = vsel %vm1437, %v1426, %v1428
        %v1442 = vsel %vm1437, %v1428, %v1430
        %v1443 = vsel %vm1437, %v1430, %v1432
        %v1444 = vsel %vm1437, %v1432, %v1434
        %v1445 = vsel %vm1437, %v1434, %v1436
        %v1447 = vsel %vm475, %v1418, 0
        %v1449 = vsel %vm479, %v1438, 0
        %v1451 = vsel %vm479, %v1439, 0
        %v1453 = vsel %vm479, %v1440, 0
        %v1455 = vsel %vm479, %v1441, 0
        %v1457 = vsel %vm479, %v1442, 0
        %v1459 = vsel %vm479, %v1443, 0
        %v1461 = vsel %vm479, %v1444, 0
        %v1463 = vsel %vm479, %v1445, 0
        %1465 = vmatprep.subr.mxu0 %v1451
        %1466 = vmatpush1.msra.mxu0 %v1449
        %1467 = vmatprep.subr.mxu0 0.0
        %1468 = vmatpush1.msra.mxu0 0.0
        %1469 = vmatprep.subr.mxu0 0.0
        %1470 = vmatpush1.msra.mxu0 0.0
        %1471 = vmatprep.subr.mxu0 0.0
        %1472 = vmatpush1.msra.mxu0 0.0
        %1473 = vmatprep.subr.mxu0 0.0
        %1474 = vmatpush1.msra.mxu0 0.0
        %1475 = vmatprep.subr.mxu0 0.0
        %1476 = vmatpush1.msra.mxu0 0.0
        %1477 = vmatprep.subr.mxu0 0.0
        %1478 = vmatpush1.msra.mxu0 0.0
        %1479 = vmatprep.subr.mxu0 0.0
        %1480 = vmatpush1.msra.mxu0 0.0
        %1481 = vmatprep.subr.mxu0 0.0
        %1482 = vmatpush1.msra.mxu0 0.0
        %1483 = vmatprep.subr.mxu0 0.0
        %1484 = vmatpush1.msra.mxu0 0.0
        %1485 = vmatprep.subr.mxu0 0.0
        %1486 = vmatpush1.msra.mxu0 0.0
        %1487 = vmatprep.subr.mxu0 0.0
        %1488 = vmatpush1.msra.mxu0 0.0
        %1489 = vmatprep.subr.mxu0 0.0
        %1490 = vmatpush1.msra.mxu0 0.0
        %1491 = vmatprep.subr.mxu0 0.0
        %1492 = vmatpush1.msra.mxu0 0.0
        %1493 = vmatprep.subr.mxu0 0.0
        %1494 = vmatpush1.msra.mxu0 0.0
        %1495 = vmatprep.subr.mxu0 0.0
        %1496 = vmatpush1.msra.mxu0 0.0
        %1497 = vmatprep.subr.mxu0 0.0
        %1498 = vmatpush1.msra.mxu0 0.0
        %1499 = vmatprep.subr.mxu0 0.0
        %1500 = vmatpush1.msra.mxu0 0.0
        %1501 = vmatprep.subr.mxu0 0.0
        %1502 = vmatpush1.msra.mxu0 0.0
        %1503 = vmatprep.subr.mxu0 0.0
        %1504 = vmatpush1.msra.mxu0 0.0
        %1505 = vmatprep.subr.mxu0 0.0
        %1506 = vmatpush1.msra.mxu0 0.0
        %1507 = vmatprep.subr.mxu0 0.0
        %1508 = vmatpush1.msra.mxu0 0.0
        %1509 = vmatprep.subr.mxu0 0.0
        %1510 = vmatpush1.msra.mxu0 0.0
        %1511 = vmatprep.subr.mxu0 0.0
        %1512 = vmatpush1.msra.mxu0 0.0
        %1513 = vmatprep.subr.mxu0 0.0
        %1514 = vmatpush1.msra.mxu0 0.0
        %1515 = vmatprep.subr.mxu0 0.0
        %1516 = vmatpush1.msra.mxu0 0.0
        %1517 = vmatprep.subr.mxu0 0.0
        %1518 = vmatpush1.msra.mxu0 0.0
        %1519 = vmatprep.subr.mxu0 0.0
        %1520 = vmatpush1.msra.mxu0 0.0
        %1521 = vmatprep.subr.mxu0 0.0
        %1522 = vmatpush1.msra.mxu0 0.0
        %1523 = vmatprep.subr.mxu0 0.0
        %1524 = vmatpush1.msra.mxu0 0.0
        %1525 = vmatprep.subr.mxu0 0.0
        %1526 = vmatpush1.msra.mxu0 0.0
        %1527 = vmatprep.subr.mxu0 0.0
        %1528 = vmatpush1.msra.mxu0 0.0
        %1529 = vmatprep.mubr.f32.mxu0 0.0
        %1530 = vmatmul.mubr.f32.gmra.mrb[0].mxu0 %v1447
        %v1531 = vpop.f32.mrb[0].mxu0
        %v1532 = vadd.f32 0.0, %v1531
        %v1533 = vpop.f32.mrb[0].mxu0
        %v1534 = vadd.f32 0.0, %v1533
        %1535 = vdwg.mxu0
        %1536 = vmatprep.subr.mxu0 %v1455
        %1537 = vmatpush1.msra.mxu0 %v1453
        %1538 = vmatprep.subr.mxu0 0.0
        %1539 = vmatpush1.msra.mxu0 0.0
        %1540 = vmatprep.subr.mxu0 0.0
        %1541 = vmatpush1.msra.mxu0 0.0
        %1542 = vmatprep.subr.mxu0 0.0
        %1543 = vmatpush1.msra.mxu0 0.0
        %1544 = vmatprep.subr.mxu0 0.0
        %1545 = vmatpush1.msra.mxu0 0.0
        %1546 = vmatprep.subr.mxu0 0.0
        %1547 = vmatpush1.msra.mxu0 0.0
        %1548 = vmatprep.subr.mxu0 0.0
        %1549 = vmatpush1.msra.mxu0 0.0
        %1550 = vmatprep.subr.mxu0 0.0
        %1551 = vmatpush1.msra.mxu0 0.0
        %1552 = vmatprep.subr.mxu0 0.0
        %1553 = vmatpush1.msra.mxu0 0.0
        %1554 = vmatprep.subr.mxu0 0.0
        %1555 = vmatpush1.msra.mxu0 0.0
        %1556 = vmatprep.subr.mxu0 0.0
        %1557 = vmatpush1.msra.mxu0 0.0
        %1558 = vmatprep.subr.mxu0 0.0
        %1559 = vmatpush1.msra.mxu0 0.0
        %1560 = vmatprep.subr.mxu0 0.0
        %1561 = vmatpush1.msra.mxu0 0.0
        %1562 = vmatprep.subr.mxu0 0.0
        %1563 = vmatpush1.msra.mxu0 0.0
        %1564 = vmatprep.subr.mxu0 0.0
        %1565 = vmatpush1.msra.mxu0 0.0
        %1566 = vmatprep.subr.mxu0 0.0
        %1567 = vmatpush1.msra.mxu0 0.0
        %1568 = vmatprep.subr.mxu0 0.0
        %1569 = vmatpush1.msra.mxu0 0.0
        %1570 = vmatprep.subr.mxu0 0.0
        %1571 = vmatpush1.msra.mxu0 0.0
        %1572 = vmatprep.subr.mxu0 0.0
        %1573 = vmatpush1.msra.mxu0 0.0
        %1574 = vmatprep.subr.mxu0 0.0
        %1575 = vmatpush1.msra.mxu0 0.0
        %1576 = vmatprep.subr.mxu0 0.0
        %1577 = vmatpush1.msra.mxu0 0.0
        %1578 = vmatprep.subr.mxu0 0.0
        %1579 = vmatpush1.msra.mxu0 0.0
        %1580 = vmatprep.subr.mxu0 0.0
        %1581 = vmatpush1.msra.mxu0 0.0
        %1582 = vmatprep.subr.mxu0 0.0
        %1583 = vmatpush1.msra.mxu0 0.0
        %1584 = vmatprep.subr.mxu0 0.0
        %1585 = vmatpush1.msra.mxu0 0.0
        %1586 = vmatprep.subr.mxu0 0.0
        %1587 = vmatpush1.msra.mxu0 0.0
        %1588 = vmatprep.subr.mxu0 0.0
        %1589 = vmatpush1.msra.mxu0 0.0
        %1590 = vmatprep.subr.mxu0 0.0
        %1591 = vmatpush1.msra.mxu0 0.0
        %1592 = vmatprep.subr.mxu0 0.0
        %1593 = vmatpush1.msra.mxu0 0.0
        %1594 = vmatprep.subr.mxu0 0.0
        %1595 = vmatpush1.msra.mxu0 0.0
        %1596 = vmatprep.subr.mxu0 0.0
        %1597 = vmatpush1.msra.mxu0 0.0
        %1598 = vmatprep.subr.mxu0 0.0
        %1599 = vmatpush1.msra.mxu0 0.0
        %1600 = vmatprep.mubr.f32.mxu0 0.0
        %1601 = vmatmul.mubr.f32.gmra.mrb[0].mxu0 %v1447
        %v1602 = vpop.f32.mrb[0].mxu0
        %v1603 = vadd.f32 0.0, %v1602
        %v1604 = vpop.f32.mrb[0].mxu0
        %v1605 = vadd.f32 0.0, %v1604
        %1606 = vdwg.mxu0
        %1607 = vmatprep.subr.mxu0 %v1459
        %1608 = vmatpush1.msra.mxu0 %v1457
        %1609 = vmatprep.subr.mxu0 0.0
        %1610 = vmatpush1.msra.mxu0 0.0
        %1611 = vmatprep.subr.mxu0 0.0
        %1612 = vmatpush1.msra.mxu0 0.0
        %1613 = vmatprep.subr.mxu0 0.0
        %1614 = vmatpush1.msra.mxu0 0.0
        %1615 = vmatprep.subr.mxu0 0.0
        %1616 = vmatpush1.msra.mxu0 0.0
        %1617 = vmatprep.subr.mxu0 0.0
        %1618 = vmatpush1.msra.mxu0 0.0
        %1619 = vmatprep.subr.mxu0 0.0
        %1620 = vmatpush1.msra.mxu0 0.0
        %1621 = vmatprep.subr.mxu0 0.0
        %1622 = vmatpush1.msra.mxu0 0.0
        %1623 = vmatprep.subr.mxu0 0.0
        %1624 = vmatpush1.msra.mxu0 0.0
        %1625 = vmatprep.subr.mxu0 0.0
        %1626 = vmatpush1.msra.mxu0 0.0
        %1627 = vmatprep.subr.mxu0 0.0
        %1628 = vmatpush1.msra.mxu0 0.0
        %1629 = vmatprep.subr.mxu0 0.0
        %1630 = vmatpush1.msra.mxu0 0.0
        %1631 = vmatprep.subr.mxu0 0.0
        %1632 = vmatpush1.msra.mxu0 0.0
        %1633 = vmatprep.subr.mxu0 0.0
        %1634 = vmatpush1.msra.mxu0 0.0
        %1635 = vmatprep.subr.mxu0 0.0
        %1636 = vmatpush1.msra.mxu0 0.0
        %1637 = vmatprep.subr.mxu0 0.0
        %1638 = vmatpush1.msra.mxu0 0.0
        %1639 = vmatprep.subr.mxu0 0.0
        %1640 = vmatpush1.msra.mxu0 0.0
        %1641 = vmatprep.subr.mxu0 0.0
        %1642 = vmatpush1.msra.mxu0 0.0
        %1643 = vmatprep.subr.mxu0 0.0
        %1644 = vmatpush1.msra.mxu0 0.0
        %1645 = vmatprep.subr.mxu0 0.0
        %1646 = vmatpush1.msra.mxu0 0.0
        %1647 = vmatprep.subr.mxu0 0.0
        %1648 = vmatpush1.msra.mxu0 0.0
        %1649 = vmatprep.subr.mxu0 0.0
        %1650 = vmatpush1.msra.mxu0 0.0
        %1651 = vmatprep.subr.mxu0 0.0
        %1652 = vmatpush1.msra.mxu0 0.0
        %1653 = vmatprep.subr.mxu0 0.0
        %1654 = vmatpush1.msra.mxu0 0.0
        %1655 = vmatprep.subr.mxu0 0.0
        %1656 = vmatpush1.msra.mxu0 0.0
        %1657 = vmatprep.subr.mxu0 0.0
        %1658 = vmatpush1.msra.mxu0 0.0
        %1659 = vmatprep.subr.mxu0 0.0
        %1660 = vmatpush1.msra.mxu0 0.0
        %1661 = vmatprep.subr.mxu0 0.0
        %1662 = vmatpush1.msra.mxu0 0.0
        %1663 = vmatprep.subr.mxu0 0.0
        %1664 = vmatpush1.msra.mxu0 0.0
        %1665 = vmatprep.subr.mxu0 0.0
        %1666 = vmatpush1.msra.mxu0 0.0
        %1667 = vmatprep.subr.mxu0 0.0
        %1668 = vmatpush1.msra.mxu0 0.0
        %1669 = vmatprep.subr.mxu0 0.0
        %1670 = vmatpush1.msra.mxu0 0.0
        %1671 = vmatprep.mubr.f32.mxu0 0.0
        %1672 = vmatmul.mubr.f32.gmra.mrb[0].mxu0 %v1447
        %v1673 = vpop.f32.mrb[0].mxu0
        %v1674 = vadd.f32 0.0, %v1673
        %v1675 = vpop.f32.mrb[0].mxu0
        %v1676 = vadd.f32 0.0, %v1675
        %1677 = vdwg.mxu0
        %1678 = vmatprep.subr.mxu0 %v1463
        %1679 = vmatpush1.msra.mxu0 %v1461
        %1680 = vmatprep.subr.mxu0 0.0
        %1681 = vmatpush1.msra.mxu0 0.0
        %1682 = vmatprep.subr.mxu0 0.0
        %1683 = vmatpush1.msra.mxu0 0.0
        %1684 = vmatprep.subr.mxu0 0.0
        %1685 = vmatpush1.msra.mxu0 0.0
        %1686 = vmatprep.subr.mxu0 0.0
        %1687 = vmatpush1.msra.mxu0 0.0
        %1688 = vmatprep.subr.mxu0 0.0
        %1689 = vmatpush1.msra.mxu0 0.0
        %1690 = vmatprep.subr.mxu0 0.0
        %1691 = vmatpush1.msra.mxu0 0.0
        %1692 = vmatprep.subr.mxu0 0.0
        %1693 = vmatpush1.msra.mxu0 0.0
        %1694 = vmatprep.subr.mxu0 0.0
        %1695 = vmatpush1.msra.mxu0 0.0
        %1696 = vmatprep.subr.mxu0 0.0
        %1697 = vmatpush1.msra.mxu0 0.0
        %1698 = vmatprep.subr.mxu0 0.0
        %1699 = vmatpush1.msra.mxu0 0.0
        %1700 = vmatprep.subr.mxu0 0.0
        %1701 = vmatpush1.msra.mxu0 0.0
        %1702 = vmatprep.subr.mxu0 0.0
        %1703 = vmatpush1.msra.mxu0 0.0
        %1704 = vmatprep.subr.mxu0 0.0
        %1705 = vmatpush1.msra.mxu0 0.0
        %1706 = vmatprep.subr.mxu0 0.0
        %1707 = vmatpush1.msra.mxu0 0.0
        %1708 = vmatprep.subr.mxu0 0.0
        %1709 = vmatpush1.msra.mxu0 0.0
        %1710 = vmatprep.subr.mxu0 0.0
        %1711 = vmatpush1.msra.mxu0 0.0
        %1712 = vmatprep.subr.mxu0 0.0
        %1713 = vmatpush1.msra.mxu0 0.0
        %1714 = vmatprep.subr.mxu0 0.0
        %1715 = vmatpush1.msra.mxu0 0.0
        %1716 = vmatprep.subr.mxu0 0.0
        %1717 = vmatpush1.msra.mxu0 0.0
        %1718 = vmatprep.subr.mxu0 0.0
        %1719 = vmatpush1.msra.mxu0 0.0
        %1720 = vmatprep.subr.mxu0 0.0
        %1721 = vmatpush1.msra.mxu0 0.0
        %1722 = vmatprep.subr.mxu0 0.0
        %1723 = vmatpush1.msra.mxu0 0.0
        %1724 = vmatprep.subr.mxu0 0.0
        %1725 = vmatpush1.msra.mxu0 0.0
        %1726 = vmatprep.subr.mxu0 0.0
        %1727 = vmatpush1.msra.mxu0 0.0
        %1728 = vmatprep.subr.mxu0 0.0
        %1729 = vmatpush1.msra.mxu0 0.0
        %1730 = vmatprep.subr.mxu0 0.0
        %1731 = vmatpush1.msra.mxu0 0.0
        %1732 = vmatprep.subr.mxu0 0.0
        %1733 = vmatpush1.msra.mxu0 0.0
        %1734 = vmatprep.subr.mxu0 0.0
        %1735 = vmatpush1.msra.mxu0 0.0
        %1736 = vmatprep.subr.mxu0 0.0
        %1737 = vmatpush1.msra.mxu0 0.0
        %1738 = vmatprep.subr.mxu0 0.0
        %1739 = vmatpush1.msra.mxu0 0.0
        %1740 = vmatprep.subr.mxu0 0.0
        %1741 = vmatpush1.msra.mxu0 0.0
        %1742 = vmatprep.mubr.f32.mxu0 0.0
        %1743 = vmatmul.mubr.f32.gmra.mrb[0].mxu0 %v1447
        %v1744 = vpop.f32.mrb[0].mxu0
        %v1745 = vadd.f32 0.0, %v1744
        %v1746 = vpop.f32.mrb[0].mxu0
        %v1747 = vadd.f32 0.0, %v1746
        %1748 = vdwg.mxu0
        %1749 = vrot.lane.b32.xlu0 0.0, 16
        %v1750 = vpop.permute.xlu0 %1749
        %1751 = vrot.lane.b32.xlu0 %v423, 16
        %v1752 = vpop.permute.xlu0 %1751
        %v1753 = vsel %vm1437, %v1750, %v1752
        %v1754 = vsel %vm1437, %v1752, %v1420
        %v1756 = vsel %vm475, %v1416, 0
        %v1758 = vsel %vm479, %v1753, 0
        %v1760 = vsel %vm479, %v1754, 0
        %1762 = vmatprep.subr.mxu0 %v1760
        %1763 = vmatpush1.msra.mxu0 %v1758
        %1764 = vmatprep.subr.mxu0 0.0
        %1765 = vmatpush1.msra.mxu0 0.0
        %1766 = vmatprep.subr.mxu0 0.0
        %1767 = vmatpush1.msra.mxu0 0.0
        %1768 = vmatprep.subr.mxu0 0.0
        %1769 = vmatpush1.msra.mxu0 0.0
        %1770 = vmatprep.subr.mxu0 0.0
        %1771 = vmatpush1.msra.mxu0 0.0
        %1772 = vmatprep.subr.mxu0 0.0
        %1773 = vmatpush1.msra.mxu0 0.0
        %1774 = vmatprep.subr.mxu0 0.0
        %1775 = vmatpush1.msra.mxu0 0.0
        %1776 = vmatprep.subr.mxu0 0.0
        %1777 = vmatpush1.msra.mxu0 0.0
        %1778 = vmatprep.subr.mxu0 0.0
        %1779 = vmatpush1.msra.mxu0 0.0
        %1780 = vmatprep.subr.mxu0 0.0
        %1781 = vmatpush1.msra.mxu0 0.0
        %1782 = vmatprep.subr.mxu0 0.0
        %1783 = vmatpush1.msra.mxu0 0.0
        %1784 = vmatprep.subr.mxu0 0.0
        %1785 = vmatpush1.msra.mxu0 0.0
        %1786 = vmatprep.subr.mxu0 0.0
        %1787 = vmatpush1.msra.mxu0 0.0
        %1788 = vmatprep.subr.mxu0 0.0
        %1789 = vmatpush1.msra.mxu0 0.0
        %1790 = vmatprep.subr.mxu0 0.0
        %1791 = vmatpush1.msra.mxu0 0.0
        %1792 = vmatprep.subr.mxu0 0.0
        %1793 = vmatpush1.msra.mxu0 0.0
        %1794 = vmatprep.subr.mxu0 0.0
        %1795 = vmatpush1.msra.mxu0 0.0
        %1796 = vmatprep.subr.mxu0 0.0
        %1797 = vmatpush1.msra.mxu0 0.0
        %1798 = vmatprep.subr.mxu0 0.0
        %1799 = vmatpush1.msra.mxu0 0.0
        %1800 = vmatprep.subr.mxu0 0.0
        %1801 = vmatpush1.msra.mxu0 0.0
        %1802 = vmatprep.subr.mxu0 0.0
        %1803 = vmatpush1.msra.mxu0 0.0
        %1804 = vmatprep.subr.mxu0 0.0
        %1805 = vmatpush1.msra.mxu0 0.0
        %1806 = vmatprep.subr.mxu0 0.0
        %1807 = vmatpush1.msra.mxu0 0.0
        %1808 = vmatprep.subr.mxu0 0.0
        %1809 = vmatpush1.msra.mxu0 0.0
        %1810 = vmatprep.subr.mxu0 0.0
        %1811 = vmatpush1.msra.mxu0 0.0
        %1812 = vmatprep.subr.mxu0 0.0
        %1813 = vmatpush1.msra.mxu0 0.0
        %1814 = vmatprep.subr.mxu0 0.0
        %1815 = vmatpush1.msra.mxu0 0.0
        %1816 = vmatprep.subr.mxu0 0.0
        %1817 = vmatpush1.msra.mxu0 0.0
        %1818 = vmatprep.subr.mxu0 0.0
        %1819 = vmatpush1.msra.mxu0 0.0
        %1820 = vmatprep.subr.mxu0 0.0
        %1821 = vmatpush1.msra.mxu0 0.0
        %1822 = vmatprep.subr.mxu0 0.0
        %1823 = vmatpush1.msra.mxu0 0.0
        %1824 = vmatprep.subr.mxu0 0.0
        %1825 = vmatpush1.msra.mxu0 0.0
        %1826 = vmatprep.mubr.f32.mxu0 0.0
        %1827 = vmatmul.mubr.f32.gmra.mrb[0].mxu0 %v1756
        %v1828 = vpop.f32.mrb[0].mxu0
        %v1829 = vadd.f32 %v1532, %v1828
        %v1830 = vpop.f32.mrb[0].mxu0
        %v1831 = vadd.f32 %v1534, %v1830
        %1832 = vdwg.mxu0
        %1833 = vmatprep.subr.mxu0 %v1451
        %1834 = vmatpush1.msra.mxu0 %v1449
        %1835 = vmatprep.subr.mxu0 0.0
        %1836 = vmatpush1.msra.mxu0 0.0
        %1837 = vmatprep.subr.mxu0 0.0
        %1838 = vmatpush1.msra.mxu0 0.0
        %1839 = vmatprep.subr.mxu0 0.0
        %1840 = vmatpush1.msra.mxu0 0.0
        %1841 = vmatprep.subr.mxu0 0.0
        %1842 = vmatpush1.msra.mxu0 0.0
        %1843 = vmatprep.subr.mxu0 0.0
        %1844 = vmatpush1.msra.mxu0 0.0
        %1845 = vmatprep.subr.mxu0 0.0
        %1846 = vmatpush1.msra.mxu0 0.0
        %1847 = vmatprep.subr.mxu0 0.0
        %1848 = vmatpush1.msra.mxu0 0.0
        %1849 = vmatprep.subr.mxu0 0.0
        %1850 = vmatpush1.msra.mxu0 0.0
        %1851 = vmatprep.subr.mxu0 0.0
        %1852 = vmatpush1.msra.mxu0 0.0
        %1853 = vmatprep.subr.mxu0 0.0
        %1854 = vmatpush1.msra.mxu0 0.0
        %1855 = vmatprep.subr.mxu0 0.0
        %1856 = vmatpush1.msra.mxu0 0.0
        %1857 = vmatprep.subr.mxu0 0.0
        %1858 = vmatpush1.msra.mxu0 0.0
        %1859 = vmatprep.subr.mxu0 0.0
        %1860 = vmatpush1.msra.mxu0 0.0
        %1861 = vmatprep.subr.mxu0 0.0
        %1862 = vmatpush1.msra.mxu0 0.0
        %1863 = vmatprep.subr.mxu0 0.0
        %1864 = vmatpush1.msra.mxu0 0.0
        %1865 = vmatprep.subr.mxu0 0.0
        %1866 = vmatpush1.msra.mxu0 0.0
        %1867 = vmatprep.subr.mxu0 0.0
        %1868 = vmatpush1.msra.mxu0 0.0
        %1869 = vmatprep.subr.mxu0 0.0
        %1870 = vmatpush1.msra.mxu0 0.0
        %1871 = vmatprep.subr.mxu0 0.0
        %1872 = vmatpush1.msra.mxu0 0.0
        %1873 = vmatprep.subr.mxu0 0.0
        %1874 = vmatpush1.msra.mxu0 0.0
        %1875 = vmatprep.subr.mxu0 0.0
        %1876 = vmatpush1.msra.mxu0 0.0
        %1877 = vmatprep.subr.mxu0 0.0
        %1878 = vmatpush1.msra.mxu0 0.0
        %1879 = vmatprep.subr.mxu0 0.0
        %1880 = vmatpush1.msra.mxu0 0.0
        %1881 = vmatprep.subr.mxu0 0.0
        %1882 = vmatpush1.msra.mxu0 0.0
        %1883 = vmatprep.subr.mxu0 0.0
        %1884 = vmatpush1.msra.mxu0 0.0
        %1885 = vmatprep.subr.mxu0 0.0
        %1886 = vmatpush1.msra.mxu0 0.0
        %1887 = vmatprep.subr.mxu0 0.0
        %1888 = vmatpush1.msra.mxu0 0.0
        %1889 = vmatprep.subr.mxu0 0.0
        %1890 = vmatpush1.msra.mxu0 0.0
        %1891 = vmatprep.subr.mxu0 0.0
        %1892 = vmatpush1.msra.mxu0 0.0
        %1893 = vmatprep.subr.mxu0 0.0
        %1894 = vmatpush1.msra.mxu0 0.0
        %1895 = vmatprep.subr.mxu0 0.0
        %1896 = vmatpush1.msra.mxu0 0.0
        %1897 = vmatprep.mubr.f32.mxu0 0.0
        %1898 = vmatmul.mubr.f32.gmra.mrb[0].mxu0 %v1756
        %v1899 = vpop.f32.mrb[0].mxu0
        %v1900 = vadd.f32 %v1603, %v1899
        %v1901 = vpop.f32.mrb[0].mxu0
        %v1902 = vadd.f32 %v1605, %v1901
        %1903 = vdwg.mxu0
        %1904 = vmatprep.subr.mxu0 %v1455
        %1905 = vmatpush1.msra.mxu0 %v1453
        %1906 = vmatprep.subr.mxu0 0.0
        %1907 = vmatpush1.msra.mxu0 0.0
        %1908 = vmatprep.subr.mxu0 0.0
        %1909 = vmatpush1.msra.mxu0 0.0
        %1910 = vmatprep.subr.mxu0 0.0
        %1911 = vmatpush1.msra.mxu0 0.0
        %1912 = vmatprep.subr.mxu0 0.0
        %1913 = vmatpush1.msra.mxu0 0.0
        %1914 = vmatprep.subr.mxu0 0.0
        %1915 = vmatpush1.msra.mxu0 0.0
        %1916 = vmatprep.subr.mxu0 0.0
        %1917 = vmatpush1.msra.mxu0 0.0
        %1918 = vmatprep.subr.mxu0 0.0
        %1919 = vmatpush1.msra.mxu0 0.0
        %1920 = vmatprep.subr.mxu0 0.0
        %1921 = vmatpush1.msra.mxu0 0.0
        %1922 = vmatprep.subr.mxu0 0.0
        %1923 = vmatpush1.msra.mxu0 0.0
        %1924 = vmatprep.subr.mxu0 0.0
        %1925 = vmatpush1.msra.mxu0 0.0
        %1926 = vmatprep.subr.mxu0 0.0
        %1927 = vmatpush1.msra.mxu0 0.0
        %1928 = vmatprep.subr.mxu0 0.0
        %1929 = vmatpush1.msra.mxu0 0.0
        %1930 = vmatprep.subr.mxu0 0.0
        %1931 = vmatpush1.msra.mxu0 0.0
        %1932 = vmatprep.subr.mxu0 0.0
        %1933 = vmatpush1.msra.mxu0 0.0
        %1934 = vmatprep.subr.mxu0 0.0
        %1935 = vmatpush1.msra.mxu0 0.0
        %1936 = vmatprep.subr.mxu0 0.0
        %1937 = vmatpush1.msra.mxu0 0.0
        %1938 = vmatprep.subr.mxu0 0.0
        %1939 = vmatpush1.msra.mxu0 0.0
        %1940 = vmatprep.subr.mxu0 0.0
        %1941 = vmatpush1.msra.mxu0 0.0
        %1942 = vmatprep.subr.mxu0 0.0
        %1943 = vmatpush1.msra.mxu0 0.0
        %1944 = vmatprep.subr.mxu0 0.0
        %1945 = vmatpush1.msra.mxu0 0.0
        %1946 = vmatprep.subr.mxu0 0.0
        %1947 = vmatpush1.msra.mxu0 0.0
        %1948 = vmatprep.subr.mxu0 0.0
        %1949 = vmatpush1.msra.mxu0 0.0
        %1950 = vmatprep.subr.mxu0 0.0
        %1951 = vmatpush1.msra.mxu0 0.0
        %1952 = vmatprep.subr.mxu0 0.0
        %1953 = vmatpush1.msra.mxu0 0.0
        %1954 = vmatprep.subr.mxu0 0.0
        %1955 = vmatpush1.msra.mxu0 0.0
        %1956 = vmatprep.subr.mxu0 0.0
        %1957 = vmatpush1.msra.mxu0 0.0
        %1958 = vmatprep.subr.mxu0 0.0
        %1959 = vmatpush1.msra.mxu0 0.0
        %1960 = vmatprep.subr.mxu0 0.0
        %1961 = vmatpush1.msra.mxu0 0.0
        %1962 = vmatprep.subr.mxu0 0.0
        %1963 = vmatpush1.msra.mxu0 0.0
        %1964 = vmatprep.subr.mxu0 0.0
        %1965 = vmatpush1.msra.mxu0 0.0
        %1966 = vmatprep.subr.mxu0 0.0
        %1967 = vmatpush1.msra.mxu0 0.0
        %1968 = vmatprep.mubr.f32.mxu0 0.0
        %1969 = vmatmul.mubr.f32.gmra.mrb[0].mxu0 %v1756
        %v1970 = vpop.f32.mrb[0].mxu0
        %v1971 = vadd.f32 %v1674, %v1970
        %v1972 = vpop.f32.mrb[0].mxu0
        %v1973 = vadd.f32 %v1676, %v1972
        %1974 = vdwg.mxu0
        %1975 = vmatprep.subr.mxu0 %v1459
        %1976 = vmatpush1.msra.mxu0 %v1457
        %1977 = vmatprep.subr.mxu0 0.0
        %1978 = vmatpush1.msra.mxu0 0.0
        %1979 = vmatprep.subr.mxu0 0.0
        %1980 = vmatpush1.msra.mxu0 0.0
        %1981 = vmatprep.subr.mxu0 0.0
        %1982 = vmatpush1.msra.mxu0 0.0
        %1983 = vmatprep.subr.mxu0 0.0
        %1984 = vmatpush1.msra.mxu0 0.0
        %1985 = vmatprep.subr.mxu0 0.0
        %1986 = vmatpush1.msra.mxu0 0.0
        %1987 = vmatprep.subr.mxu0 0.0
        %1988 = vmatpush1.msra.mxu0 0.0
        %1989 = vmatprep.subr.mxu0 0.0
        %1990 = vmatpush1.msra.mxu0 0.0
        %1991 = vmatprep.subr.mxu0 0.0
        %1992 = vmatpush1.msra.mxu0 0.0
        %1993 = vmatprep.subr.mxu0 0.0
        %1994 = vmatpush1.msra.mxu0 0.0
        %1995 = vmatprep.subr.mxu0 0.0
        %1996 = vmatpush1.msra.mxu0 0.0
        %1997 = vmatprep.subr.mxu0 0.0
        %1998 = vmatpush1.msra.mxu0 0.0
        %1999 = vmatprep.subr.mxu0 0.0
        %2000 = vmatpush1.msra.mxu0 0.0
        %2001 = vmatprep.subr.mxu0 0.0
        %2002 = vmatpush1.msra.mxu0 0.0
        %2003 = vmatprep.subr.mxu0 0.0
        %2004 = vmatpush1.msra.mxu0 0.0
        %2005 = vmatprep.subr.mxu0 0.0
        %2006 = vmatpush1.msra.mxu0 0.0
        %2007 = vmatprep.subr.mxu0 0.0
        %2008 = vmatpush1.msra.mxu0 0.0
        %2009 = vmatprep.subr.mxu0 0.0
        %2010 = vmatpush1.msra.mxu0 0.0
        %2011 = vmatprep.subr.mxu0 0.0
        %2012 = vmatpush1.msra.mxu0 0.0
        %2013 = vmatprep.subr.mxu0 0.0
        %2014 = vmatpush1.msra.mxu0 0.0
        %2015 = vmatprep.subr.mxu0 0.0
        %2016 = vmatpush1.msra.mxu0 0.0
        %2017 = vmatprep.subr.mxu0 0.0
        %2018 = vmatpush1.msra.mxu0 0.0
        %2019 = vmatprep.subr.mxu0 0.0
        %2020 = vmatpush1.msra.mxu0 0.0
        %2021 = vmatprep.subr.mxu0 0.0
        %2022 = vmatpush1.msra.mxu0 0.0
        %2023 = vmatprep.subr.mxu0 0.0
        %2024 = vmatpush1.msra.mxu0 0.0
        %2025 = vmatprep.subr.mxu0 0.0
        %2026 = vmatpush1.msra.mxu0 0.0
        %2027 = vmatprep.subr.mxu0 0.0
        %2028 = vmatpush1.msra.mxu0 0.0
        %2029 = vmatprep.subr.mxu0 0.0
        %2030 = vmatpush1.msra.mxu0 0.0
        %2031 = vmatprep.subr.mxu0 0.0
        %2032 = vmatpush1.msra.mxu0 0.0
        %2033 = vmatprep.subr.mxu0 0.0
        %2034 = vmatpush1.msra.mxu0 0.0
        %2035 = vmatprep.subr.mxu0 0.0
        %2036 = vmatpush1.msra.mxu0 0.0
        %2037 = vmatprep.subr.mxu0 0.0
        %2038 = vmatpush1.msra.mxu0 0.0
        %2039 = vmatprep.mubr.f32.mxu0 0.0
        %2040 = vmatmul.mubr.f32.gmra.mrb[0].mxu0 %v1756
        %v2041 = vpop.f32.mrb[0].mxu0
        %v2042 = vadd.f32 %v1745, %v2041
        %v2043 = vpop.f32.mrb[0].mxu0
        %v2044 = vadd.f32 %v1747, %v2043
        %2045 = vdwg.mxu0
        %s2046 = scalar_lea.vmem %s3, 76
        %v2047 = vld [vmem:[%s2046] sm:$0x7]
        %2048 = vrot.lane.b32.xlu0 %v428, 16
        %v2049 = vpop.permute.xlu0 %2048
        %2050 = vrot.lane.b32.xlu0 %v440, 16
        %v2051 = vpop.permute.xlu0 %2050
        %v2052 = vsel %vm1437, %v1436, %v2049
        %v2053 = vsel %vm1437, %v2049, %v2051
        %v2055 = vsel %vm475, %v2047, 0
        %v2057 = vsel %vm479, %v2052, 0
        %v2059 = vsel %vm479, %v2053, 0
        %2061 = vmatprep.subr.mxu0 %v1455
        %2062 = vmatpush1.msra.mxu0 %v1453
        %2063 = vmatprep.subr.mxu0 0.0
        %2064 = vmatpush1.msra.mxu0 0.0
        %2065 = vmatprep.subr.mxu0 0.0
        %2066 = vmatpush1.msra.mxu0 0.0
        %2067 = vmatprep.subr.mxu0 0.0
        %2068 = vmatpush1.msra.mxu0 0.0
        %2069 = vmatprep.subr.mxu0 0.0
        %2070 = vmatpush1.msra.mxu0 0.0
        %2071 = vmatprep.subr.mxu0 0.0
        %2072 = vmatpush1.msra.mxu0 0.0
        %2073 = vmatprep.subr.mxu0 0.0
        %2074 = vmatpush1.msra.mxu0 0.0
        %2075 = vmatprep.subr.mxu0 0.0
        %2076 = vmatpush1.msra.mxu0 0.0
        %2077 = vmatprep.subr.mxu0 0.0
        %2078 = vmatpush1.msra.mxu0 0.0
        %2079 = vmatprep.subr.mxu0 0.0
        %2080 = vmatpush1.msra.mxu0 0.0
        %2081 = vmatprep.subr.mxu0 0.0
        %2082 = vmatpush1.msra.mxu0 0.0
        %2083 = vmatprep.subr.mxu0 0.0
        %2084 = vmatpush1.msra.mxu0 0.0
        %2085 = vmatprep.subr.mxu0 0.0
        %2086 = vmatpush1.msra.mxu0 0.0
        %2087 = vmatprep.subr.mxu0 0.0
        %2088 = vmatpush1.msra.mxu0 0.0
        %2089 = vmatprep.subr.mxu0 0.0
        %2090 = vmatpush1.msra.mxu0 0.0
        %2091 = vmatprep.subr.mxu0 0.0
        %2092 = vmatpush1.msra.mxu0 0.0
        %2093 = vmatprep.subr.mxu0 0.0
        %2094 = vmatpush1.msra.mxu0 0.0
        %2095 = vmatprep.subr.mxu0 0.0
        %2096 = vmatpush1.msra.mxu0 0.0
        %2097 = vmatprep.subr.mxu0 0.0
        %2098 = vmatpush1.msra.mxu0 0.0
        %2099 = vmatprep.subr.mxu0 0.0
        %2100 = vmatpush1.msra.mxu0 0.0
        %2101 = vmatprep.subr.mxu0 0.0
        %2102 = vmatpush1.msra.mxu0 0.0
        %2103 = vmatprep.subr.mxu0 0.0
        %2104 = vmatpush1.msra.mxu0 0.0
        %2105 = vmatprep.subr.mxu0 0.0
        %2106 = vmatpush1.msra.mxu0 0.0
        %2107 = vmatprep.subr.mxu0 0.0
        %2108 = vmatpush1.msra.mxu0 0.0
        %2109 = vmatprep.subr.mxu0 0.0
        %2110 = vmatpush1.msra.mxu0 0.0
        %2111 = vmatprep.subr.mxu0 0.0
        %2112 = vmatpush1.msra.mxu0 0.0
        %2113 = vmatprep.subr.mxu0 0.0
        %2114 = vmatpush1.msra.mxu0 0.0
        %2115 = vmatprep.subr.mxu0 0.0
        %2116 = vmatpush1.msra.mxu0 0.0
        %2117 = vmatprep.subr.mxu0 0.0
        %2118 = vmatpush1.msra.mxu0 0.0
        %2119 = vmatprep.subr.mxu0 0.0
        %2120 = vmatpush1.msra.mxu0 0.0
        %2121 = vmatprep.subr.mxu0 0.0
        %2122 = vmatpush1.msra.mxu0 0.0
        %2123 = vmatprep.subr.mxu0 0.0
        %2124 = vmatpush1.msra.mxu0 0.0
        %2125 = vmatprep.mubr.f32.mxu0 0.0
        %2126 = vmatmul.mubr.f32.gmra.mrb[0].mxu0 %v2055
        %v2127 = vpop.f32.mrb[0].mxu0
        %v2128 = vadd.f32 0.0, %v2127
        %v2129 = vpop.f32.mrb[0].mxu0
        %v2130 = vadd.f32 0.0, %v2129
        %2131 = vdwg.mxu0
        %2132 = vmatprep.subr.mxu0 %v1459
        %2133 = vmatpush1.msra.mxu0 %v1457
        %2134 = vmatprep.subr.mxu0 0.0
        %2135 = vmatpush1.msra.mxu0 0.0
        %2136 = vmatprep.subr.mxu0 0.0
        %2137 = vmatpush1.msra.mxu0 0.0
        %2138 = vmatprep.subr.mxu0 0.0
        %2139 = vmatpush1.msra.mxu0 0.0
        %2140 = vmatprep.subr.mxu0 0.0
        %2141 = vmatpush1.msra.mxu0 0.0
        %2142 = vmatprep.subr.mxu0 0.0
        %2143 = vmatpush1.msra.mxu0 0.0
        %2144 = vmatprep.subr.mxu0 0.0
        %2145 = vmatpush1.msra.mxu0 0.0
        %2146 = vmatprep.subr.mxu0 0.0
        %2147 = vmatpush1.msra.mxu0 0.0
        %2148 = vmatprep.subr.mxu0 0.0
        %2149 = vmatpush1.msra.mxu0 0.0
        %2150 = vmatprep.subr.mxu0 0.0
        %2151 = vmatpush1.msra.mxu0 0.0
        %2152 = vmatprep.subr.mxu0 0.0
        %2153 = vmatpush1.msra.mxu0 0.0
        %2154 = vmatprep.subr.mxu0 0.0
        %2155 = vmatpush1.msra.mxu0 0.0
        %2156 = vmatprep.subr.mxu0 0.0
        %2157 = vmatpush1.msra.mxu0 0.0
        %2158 = vmatprep.subr.mxu0 0.0
        %2159 = vmatpush1.msra.mxu0 0.0
        %2160 = vmatprep.subr.mxu0 0.0
        %2161 = vmatpush1.msra.mxu0 0.0
        %2162 = vmatprep.subr.mxu0 0.0
        %2163 = vmatpush1.msra.mxu0 0.0
        %2164 = vmatprep.subr.mxu0 0.0
        %2165 = vmatpush1.msra.mxu0 0.0
        %2166 = vmatprep.subr.mxu0 0.0
        %2167 = vmatpush1.msra.mxu0 0.0
        %2168 = vmatprep.subr.mxu0 0.0
        %2169 = vmatpush1.msra.mxu0 0.0
        %2170 = vmatprep.subr.mxu0 0.0
        %2171 = vmatpush1.msra.mxu0 0.0
        %2172 = vmatprep.subr.mxu0 0.0
        %2173 = vmatpush1.msra.mxu0 0.0
        %2174 = vmatprep.subr.mxu0 0.0
        %2175 = vmatpush1.msra.mxu0 0.0
        %2176 = vmatprep.subr.mxu0 0.0
        %2177 = vmatpush1.msra.mxu0 0.0
        %2178 = vmatprep.subr.mxu0 0.0
        %2179 = vmatpush1.msra.mxu0 0.0
        %2180 = vmatprep.subr.mxu0 0.0
        %2181 = vmatpush1.msra.mxu0 0.0
        %2182 = vmatprep.subr.mxu0 0.0
        %2183 = vmatpush1.msra.mxu0 0.0
        %2184 = vmatprep.subr.mxu0 0.0
        %2185 = vmatpush1.msra.mxu0 0.0
        %2186 = vmatprep.subr.mxu0 0.0
        %2187 = vmatpush1.msra.mxu0 0.0
        %2188 = vmatprep.subr.mxu0 0.0
        %2189 = vmatpush1.msra.mxu0 0.0
        %2190 = vmatprep.subr.mxu0 0.0
        %2191 = vmatpush1.msra.mxu0 0.0
        %2192 = vmatprep.subr.mxu0 0.0
        %2193 = vmatpush1.msra.mxu0 0.0
        %2194 = vmatprep.subr.mxu0 0.0
        %2195 = vmatpush1.msra.mxu0 0.0
        %2196 = vmatprep.mubr.f32.mxu0 0.0
        %2197 = vmatmul.mubr.f32.gmra.mrb[0].mxu0 %v2055
        %v2198 = vpop.f32.mrb[0].mxu0
        %v2199 = vadd.f32 0.0, %v2198
        %v2200 = vpop.f32.mrb[0].mxu0
        %v2201 = vadd.f32 0.0, %v2200
        %2202 = vdwg.mxu0
        %2203 = vmatprep.subr.mxu0 %v1463
        %2204 = vmatpush1.msra.mxu0 %v1461
        %2205 = vmatprep.subr.mxu0 0.0
        %2206 = vmatpush1.msra.mxu0 0.0
        %2207 = vmatprep.subr.mxu0 0.0
        %2208 = vmatpush1.msra.mxu0 0.0
        %2209 = vmatprep.subr.mxu0 0.0
        %2210 = vmatpush1.msra.mxu0 0.0
        %2211 = vmatprep.subr.mxu0 0.0
        %2212 = vmatpush1.msra.mxu0 0.0
        %2213 = vmatprep.subr.mxu0 0.0
        %2214 = vmatpush1.msra.mxu0 0.0
        %2215 = vmatprep.subr.mxu0 0.0
        %2216 = vmatpush1.msra.mxu0 0.0
        %2217 = vmatprep.subr.mxu0 0.0
        %2218 = vmatpush1.msra.mxu0 0.0
        %2219 = vmatprep.subr.mxu0 0.0
        %2220 = vmatpush1.msra.mxu0 0.0
        %2221 = vmatprep.subr.mxu0 0.0
        %2222 = vmatpush1.msra.mxu0 0.0
        %2223 = vmatprep.subr.mxu0 0.0
        %2224 = vmatpush1.msra.mxu0 0.0
        %2225 = vmatprep.subr.mxu0 0.0
        %2226 = vmatpush1.msra.mxu0 0.0
        %2227 = vmatprep.subr.mxu0 0.0
        %2228 = vmatpush1.msra.mxu0 0.0
        %2229 = vmatprep.subr.mxu0 0.0
        %2230 = vmatpush1.msra.mxu0 0.0
        %2231 = vmatprep.subr.mxu0 0.0
        %2232 = vmatpush1.msra.mxu0 0.0
        %2233 = vmatprep.subr.mxu0 0.0
        %2234 = vmatpush1.msra.mxu0 0.0
        %2235 = vmatprep.subr.mxu0 0.0
        %2236 = vmatpush1.msra.mxu0 0.0
        %2237 = vmatprep.subr.mxu0 0.0
        %2238 = vmatpush1.msra.mxu0 0.0
        %2239 = vmatprep.subr.mxu0 0.0
        %2240 = vmatpush1.msra.mxu0 0.0
        %2241 = vmatprep.subr.mxu0 0.0
        %2242 = vmatpush1.msra.mxu0 0.0
        %2243 = vmatprep.subr.mxu0 0.0
        %2244 = vmatpush1.msra.mxu0 0.0
        %2245 = vmatprep.subr.mxu0 0.0
        %2246 = vmatpush1.msra.mxu0 0.0
        %2247 = vmatprep.subr.mxu0 0.0
        %2248 = vmatpush1.msra.mxu0 0.0
        %2249 = vmatprep.subr.mxu0 0.0
        %2250 = vmatpush1.msra.mxu0 0.0
        %2251 = vmatprep.subr.mxu0 0.0
        %2252 = vmatpush1.msra.mxu0 0.0
        %2253 = vmatprep.subr.mxu0 0.0
        %2254 = vmatpush1.msra.mxu0 0.0
        %2255 = vmatprep.subr.mxu0 0.0
        %2256 = vmatpush1.msra.mxu0 0.0
        %2257 = vmatprep.subr.mxu0 0.0
        %2258 = vmatpush1.msra.mxu0 0.0
        %2259 = vmatprep.subr.mxu0 0.0
        %2260 = vmatpush1.msra.mxu0 0.0
        %2261 = vmatprep.subr.mxu0 0.0
        %2262 = vmatpush1.msra.mxu0 0.0
        %2263 = vmatprep.subr.mxu0 0.0
        %2264 = vmatpush1.msra.mxu0 0.0
        %2265 = vmatprep.subr.mxu0 0.0
        %2266 = vmatpush1.msra.mxu0 0.0
        %2267 = vmatprep.mubr.f32.mxu0 0.0
        %2268 = vmatmul.mubr.f32.gmra.mrb[0].mxu0 %v2055
        %v2269 = vpop.f32.mrb[0].mxu0
        %v2270 = vadd.f32 0.0, %v2269
        %v2271 = vpop.f32.mrb[0].mxu0
        %v2272 = vadd.f32 0.0, %v2271
        %2273 = vdwg.mxu0
        %2274 = vmatprep.subr.mxu0 %v2059
        %2275 = vmatpush1.msra.mxu0 %v2057
        %2276 = vmatprep.subr.mxu0 0.0
        %2277 = vmatpush1.msra.mxu0 0.0
        %2278 = vmatprep.subr.mxu0 0.0
        %2279 = vmatpush1.msra.mxu0 0.0
        %2280 = vmatprep.subr.mxu0 0.0
        %2281 = vmatpush1.msra.mxu0 0.0
        %2282 = vmatprep.subr.mxu0 0.0
        %2283 = vmatpush1.msra.mxu0 0.0
        %2284 = vmatprep.subr.mxu0 0.0
        %2285 = vmatpush1.msra.mxu0 0.0
        %2286 = vmatprep.subr.mxu0 0.0
        %2287 = vmatpush1.msra.mxu0 0.0
        %2288 = vmatprep.subr.mxu0 0.0
        %2289 = vmatpush1.msra.mxu0 0.0
        %2290 = vmatprep.subr.mxu0 0.0
        %2291 = vmatpush1.msra.mxu0 0.0
        %2292 = vmatprep.subr.mxu0 0.0
        %2293 = vmatpush1.msra.mxu0 0.0
        %2294 = vmatprep.subr.mxu0 0.0
        %2295 = vmatpush1.msra.mxu0 0.0
        %2296 = vmatprep.subr.mxu0 0.0
        %2297 = vmatpush1.msra.mxu0 0.0
        %2298 = vmatprep.subr.mxu0 0.0
        %2299 = vmatpush1.msra.mxu0 0.0
        %2300 = vmatprep.subr.mxu0 0.0
        %2301 = vmatpush1.msra.mxu0 0.0
        %2302 = vmatprep.subr.mxu0 0.0
        %2303 = vmatpush1.msra.mxu0 0.0
        %2304 = vmatprep.subr.mxu0 0.0
        %2305 = vmatpush1.msra.mxu0 0.0
        %2306 = vmatprep.subr.mxu0 0.0
        %2307 = vmatpush1.msra.mxu0 0.0
        %2308 = vmatprep.subr.mxu0 0.0
        %2309 = vmatpush1.msra.mxu0 0.0
        %2310 = vmatprep.subr.mxu0 0.0
        %2311 = vmatpush1.msra.mxu0 0.0
        %2312 = vmatprep.subr.mxu0 0.0
        %2313 = vmatpush1.msra.mxu0 0.0
        %2314 = vmatprep.subr.mxu0 0.0
        %2315 = vmatpush1.msra.mxu0 0.0
        %2316 = vmatprep.subr.mxu0 0.0
        %2317 = vmatpush1.msra.mxu0 0.0
        %2318 = vmatprep.subr.mxu0 0.0
        %2319 = vmatpush1.msra.mxu0 0.0
        %2320 = vmatprep.subr.mxu0 0.0
        %2321 = vmatpush1.msra.mxu0 0.0
        %2322 = vmatprep.subr.mxu0 0.0
        %2323 = vmatpush1.msra.mxu0 0.0
        %2324 = vmatprep.subr.mxu0 0.0
        %2325 = vmatpush1.msra.mxu0 0.0
        %2326 = vmatprep.subr.mxu0 0.0
        %2327 = vmatpush1.msra.mxu0 0.0
        %2328 = vmatprep.subr.mxu0 0.0
        %2329 = vmatpush1.msra.mxu0 0.0
        %2330 = vmatprep.subr.mxu0 0.0
        %2331 = vmatpush1.msra.mxu0 0.0
        %2332 = vmatprep.subr.mxu0 0.0
        %2333 = vmatpush1.msra.mxu0 0.0
        %2334 = vmatprep.subr.mxu0 0.0
        %2335 = vmatpush1.msra.mxu0 0.0
        %2336 = vmatprep.subr.mxu0 0.0
        %2337 = vmatpush1.msra.mxu0 0.0
        %2338 = vmatprep.mubr.f32.mxu0 0.0
        %2339 = vmatmul.mubr.f32.gmra.mrb[0].mxu0 %v2055
        %v2340 = vpop.f32.mrb[0].mxu0
        %v2341 = vadd.f32 0.0, %v2340
        %v2342 = vpop.f32.mrb[0].mxu0
        %v2343 = vadd.f32 0.0, %v2342
        %2344 = vdwg.mxu0
        %v2345 = vadd.f32 %v1829, %v2128
        %v2346 = vadd.f32 %v1831, %v2130
        %v2347 = vadd.f32 %v1900, %v2199
        %v2348 = vadd.f32 %v1902, %v2201
        %v2349 = vadd.f32 %v1971, %v2270
        %v2350 = vadd.f32 %v1973, %v2272
        %v2351 = vadd.f32 %v2042, %v2341
        %v2352 = vadd.f32 %v2044, %v2343
        %v2353 = vlaneseq
        %v2354 = vshrl.u32 %v2353, 7
        %v2355 = vsub.s32 0, %v2354
        %v2356 = vrot.slane %v441, %v2355
        %v2357 = vlaneseq
        %v2358 = vshrl.u32 %v2357, 7
        %v2359 = vsub.s32 0, %v2358
        %v2360 = vrot.slane %v443, %v2359
        %v2361 = vmul.f32 %v2345, %v2356
        %v2362 = vmul.f32 %v2346, %v2360
        %v2363 = vmul.f32 %v2347, %v2356
        %v2364 = vmul.f32 %v2348, %v2360
        %v2365 = vmul.f32 %v2349, %v2356
        %v2366 = vmul.f32 %v2350, %v2360
        %v2367 = vmul.f32 %v2351, %v2356
        %v2368 = vmul.f32 %v2352, %v2360
        %v2369 = vadd.f32 %v1407, %v2361
        %v2370 = vadd.f32 %v1408, %v2362
        %v2371 = vadd.f32 %v1409, %v2363
        %v2372 = vadd.f32 %v1410, %v2364
        %v2373 = vadd.f32 %v1411, %v2365
        %v2374 = vadd.f32 %v1412, %v2366
        %v2375 = vadd.f32 %v1413, %v2367
        %v2376 = vadd.f32 %v1414, %v2368
        %s2377 = scalar_lea.vmem %s3, 8
        %v2378 = vld [vmem:[%s2377] sm:$0x7]
        %s2379 = scalar_lea.vmem %s3, 44
        %v2380 = vld [vmem:[%s2379] sm:$0x7]
        %2381 = vrot.lane.b32.xlu0 %v430, 15
        %v2382 = vpop.permute.xlu0 %2381
        %2383 = vrot.lane.b32.xlu0 %v413, 15
        %v2384 = vpop.permute.xlu0 %2383
        %2385 = vrot.lane.b32.xlu0 %v435, 15
        %v2386 = vpop.permute.xlu0 %2385
        %2387 = vrot.lane.b32.xlu0 %v414, 15
        %v2388 = vpop.permute.xlu0 %2387
        %2389 = vrot.lane.b32.xlu0 %v436, 15
        %v2390 = vpop.permute.xlu0 %2389
        %2391 = vrot.lane.b32.xlu0 %v415, 15
        %v2392 = vpop.permute.xlu0 %2391
        %2393 = vrot.lane.b32.xlu0 %v437, 15
        %v2394 = vpop.permute.xlu0 %2393
        %2395 = vrot.lane.b32.xlu0 %v416, 15
        %v2396 = vpop.permute.xlu0 %2395
        %2397 = vrot.lane.b32.xlu0 %v438, 15
        %v2398 = vpop.permute.xlu0 %2397
        %vm2399 = vcmask 121856
        %v2400 = vsel %vm2399, %v2382, %v2384
        %v2401 = vsel %vm2399, %v2384, %v2386
        %v2402 = vsel %vm2399, %v2386, %v2388
        %v2403 = vsel %vm2399, %v2388, %v2390
        %v2404 = vsel %vm2399, %v2390, %v2392
        %v2405 = vsel %vm2399, %v2392, %v2394
        %v2406 = vsel %vm2399, %v2394, %v2396
        %v2407 = vsel %vm2399, %v2396, %v2398
        %v2409 = vsel %vm475, %v2380, 0
        %v2411 = vsel %vm479, %v2400, 0
        %v2413 = vsel %vm479, %v2401, 0
        %v2415 = vsel %vm479, %v2402, 0
        %v2417 = vsel %vm479, %v2403, 0
        %v2419 = vsel %vm479, %v2404, 0
        %v2421 = vsel %vm479, %v2405, 0
        %v2423 = vsel %vm479, %v2406, 0
        %v2425 = vsel %vm479, %v2407, 0
        %2427 = vmatprep.subr.mxu0 %v2413
        %2428 = vmatpush1.msra.mxu0 %v2411
        %2429 = vmatprep.subr.mxu0 0.0
        %2430 = vmatpush1.msra.mxu0 0.0
        %2431 = vmatprep.subr.mxu0 0.0
        %2432 = vmatpush1.msra.mxu0 0.0
        %2433 = vmatprep.subr.mxu0 0.0
        %2434 = vmatpush1.msra.mxu0 0.0
        %2435 = vmatprep.subr.mxu0 0.0
        %2436 = vmatpush1.msra.mxu0 0.0
        %2437 = vmatprep.subr.mxu0 0.0
        %2438 = vmatpush1.msra.mxu0 0.0
        %2439 = vmatprep.subr.mxu0 0.0
        %2440 = vmatpush1.msra.mxu0 0.0
        %2441 = vmatprep.subr.mxu0 0.0
        %2442 = vmatpush1.msra.mxu0 0.0
        %2443 = vmatprep.subr.mxu0 0.0
        %2444 = vmatpush1.msra.mxu0 0.0
        %2445 = vmatprep.subr.mxu0 0.0
        %2446 = vmatpush1.msra.mxu0 0.0
        %2447 = vmatprep.subr.mxu0 0.0
        %2448 = vmatpush1.msra.mxu0 0.0
        %2449 = vmatprep.subr.mxu0 0.0
        %2450 = vmatpush1.msra.mxu0 0.0
        %2451 = vmatprep.subr.mxu0 0.0
        %2452 = vmatpush1.msra.mxu0 0.0
        %2453 = vmatprep.subr.mxu0 0.0
        %2454 = vmatpush1.msra.mxu0 0.0
        %2455 = vmatprep.subr.mxu0 0.0
        %2456 = vmatpush1.msra.mxu0 0.0
        %2457 = vmatprep.subr.mxu0 0.0
        %2458 = vmatpush1.msra.mxu0 0.0
        %2459 = vmatprep.subr.mxu0 0.0
        %2460 = vmatpush1.msra.mxu0 0.0
        %2461 = vmatprep.subr.mxu0 0.0
        %2462 = vmatpush1.msra.mxu0 0.0
        %2463 = vmatprep.subr.mxu0 0.0
        %2464 = vmatpush1.msra.mxu0 0.0
        %2465 = vmatprep.subr.mxu0 0.0
        %2466 = vmatpush1.msra.mxu0 0.0
        %2467 = vmatprep.subr.mxu0 0.0
        %2468 = vmatpush1.msra.mxu0 0.0
        %2469 = vmatprep.subr.mxu0 0.0
        %2470 = vmatpush1.msra.mxu0 0.0
        %2471 = vmatprep.subr.mxu0 0.0
        %2472 = vmatpush1.msra.mxu0 0.0
        %2473 = vmatprep.subr.mxu0 0.0
        %2474 = vmatpush1.msra.mxu0 0.0
        %2475 = vmatprep.subr.mxu0 0.0
        %2476 = vmatpush1.msra.mxu0 0.0
        %2477 = vmatprep.subr.mxu0 0.0
        %2478 = vmatpush1.msra.mxu0 0.0
        %2479 = vmatprep.subr.mxu0 0.0
        %2480 = vmatpush1.msra.mxu0 0.0
        %2481 = vmatprep.subr.mxu0 0.0
        %2482 = vmatpush1.msra.mxu0 0.0
        %2483 = vmatprep.subr.mxu0 0.0
        %2484 = vmatpush1.msra.mxu0 0.0
        %2485 = vmatprep.subr.mxu0 0.0
        %2486 = vmatpush1.msra.mxu0 0.0
        %2487 = vmatprep.subr.mxu0 0.0
        %2488 = vmatpush1.msra.mxu0 0.0
        %2489 = vmatprep.subr.mxu0 0.0
        %2490 = vmatpush1.msra.mxu0 0.0
        %2491 = vmatprep.mubr.f32.mxu0 0.0
        %2492 = vmatmul.mubr.f32.gmra.mrb[0].mxu0 %v2409
        %v2493 = vpop.f32.mrb[0].mxu0
        %v2494 = vadd.f32 0.0, %v2493
        %v2495 = vpop.f32.mrb[0].mxu0
        %v2496 = vadd.f32 0.0, %v2495
        %2497 = vdwg.mxu0
        %2498 = vmatprep.subr.mxu0 %v2417
        %2499 = vmatpush1.msra.mxu0 %v2415
        %2500 = vmatprep.subr.mxu0 0.0
        %2501 = vmatpush1.msra.mxu0 0.0
        %2502 = vmatprep.subr.mxu0 0.0
        %2503 = vmatpush1.msra.mxu0 0.0
        %2504 = vmatprep.subr.mxu0 0.0
        %2505 = vmatpush1.msra.mxu0 0.0
        %2506 = vmatprep.subr.mxu0 0.0
        %2507 = vmatpush1.msra.mxu0 0.0
        %2508 = vmatprep.subr.mxu0 0.0
        %2509 = vmatpush1.msra.mxu0 0.0
        %2510 = vmatprep.subr.mxu0 0.0
        %2511 = vmatpush1.msra.mxu0 0.0
        %2512 = vmatprep.subr.mxu0 0.0
        %2513 = vmatpush1.msra.mxu0 0.0
        %2514 = vmatprep.subr.mxu0 0.0
        %2515 = vmatpush1.msra.mxu0 0.0
        %2516 = vmatprep.subr.mxu0 0.0
        %2517 = vmatpush1.msra.mxu0 0.0
        %2518 = vmatprep.subr.mxu0 0.0
        %2519 = vmatpush1.msra.mxu0 0.0
        %2520 = vmatprep.subr.mxu0 0.0
        %2521 = vmatpush1.msra.mxu0 0.0
        %2522 = vmatprep.subr.mxu0 0.0
        %2523 = vmatpush1.msra.mxu0 0.0
        %2524 = vmatprep.subr.mxu0 0.0
        %2525 = vmatpush1.msra.mxu0 0.0
        %2526 = vmatprep.subr.mxu0 0.0
        %2527 = vmatpush1.msra.mxu0 0.0
        %2528 = vmatprep.subr.mxu0 0.0
        %2529 = vmatpush1.msra.mxu0 0.0
        %2530 = vmatprep.subr.mxu0 0.0
        %2531 = vmatpush1.msra.mxu0 0.0
        %2532 = vmatprep.subr.mxu0 0.0
        %2533 = vmatpush1.msra.mxu0 0.0
        %2534 = vmatprep.subr.mxu0 0.0
        %2535 = vmatpush1.msra.mxu0 0.0
        %2536 = vmatprep.subr.mxu0 0.0
        %2537 = vmatpush1.msra.mxu0 0.0
        %2538 = vmatprep.subr.mxu0 0.0
        %2539 = vmatpush1.msra.mxu0 0.0
        %2540 = vmatprep.subr.mxu0 0.0
        %2541 = vmatpush1.msra.mxu0 0.0
        %2542 = vmatprep.subr.mxu0 0.0
        %2543 = vmatpush1.msra.mxu0 0.0
        %2544 = vmatprep.subr.mxu0 0.0
        %2545 = vmatpush1.msra.mxu0 0.0
        %2546 = vmatprep.subr.mxu0 0.0
        %2547 = vmatpush1.msra.mxu0 0.0
        %2548 = vmatprep.subr.mxu0 0.0
        %2549 = vmatpush1.msra.mxu0 0.0
        %2550 = vmatprep.subr.mxu0 0.0
        %2551 = vmatpush1.msra.mxu0 0.0
        %2552 = vmatprep.subr.mxu0 0.0
        %2553 = vmatpush1.msra.mxu0 0.0
        %2554 = vmatprep.subr.mxu0 0.0
        %2555 = vmatpush1.msra.mxu0 0.0
        %2556 = vmatprep.subr.mxu0 0.0
        %2557 = vmatpush1.msra.mxu0 0.0
        %2558 = vmatprep.subr.mxu0 0.0
        %2559 = vmatpush1.msra.mxu0 0.0
        %2560 = vmatprep.subr.mxu0 0.0
        %2561 = vmatpush1.msra.mxu0 0.0
        %2562 = vmatprep.mubr.f32.mxu0 0.0
        %2563 = vmatmul.mubr.f32.gmra.mrb[0].mxu0 %v2409
        %v2564 = vpop.f32.mrb[0].mxu0
        %v2565 = vadd.f32 0.0, %v2564
        %v2566 = vpop.f32.mrb[0].mxu0
        %v2567 = vadd.f32 0.0, %v2566
        %2568 = vdwg.mxu0
        %2569 = vmatprep.subr.mxu0 %v2421
        %2570 = vmatpush1.msra.mxu0 %v2419
        %2571 = vmatprep.subr.mxu0 0.0
        %2572 = vmatpush1.msra.mxu0 0.0
        %2573 = vmatprep.subr.mxu0 0.0
        %2574 = vmatpush1.msra.mxu0 0.0
        %2575 = vmatprep.subr.mxu0 0.0
        %2576 = vmatpush1.msra.mxu0 0.0
        %2577 = vmatprep.subr.mxu0 0.0
        %2578 = vmatpush1.msra.mxu0 0.0
        %2579 = vmatprep.subr.mxu0 0.0
        %2580 = vmatpush1.msra.mxu0 0.0
        %2581 = vmatprep.subr.mxu0 0.0
        %2582 = vmatpush1.msra.mxu0 0.0
        %2583 = vmatprep.subr.mxu0 0.0
        %2584 = vmatpush1.msra.mxu0 0.0
        %2585 = vmatprep.subr.mxu0 0.0
        %2586 = vmatpush1.msra.mxu0 0.0
        %2587 = vmatprep.subr.mxu0 0.0
        %2588 = vmatpush1.msra.mxu0 0.0
        %2589 = vmatprep.subr.mxu0 0.0
        %2590 = vmatpush1.msra.mxu0 0.0
        %2591 = vmatprep.subr.mxu0 0.0
        %2592 = vmatpush1.msra.mxu0 0.0
        %2593 = vmatprep.subr.mxu0 0.0
        %2594 = vmatpush1.msra.mxu0 0.0
        %2595 = vmatprep.subr.mxu0 0.0
        %2596 = vmatpush1.msra.mxu0 0.0
        %2597 = vmatprep.subr.mxu0 0.0
        %2598 = vmatpush1.msra.mxu0 0.0
        %2599 = vmatprep.subr.mxu0 0.0
        %2600 = vmatpush1.msra.mxu0 0.0
        %2601 = vmatprep.subr.mxu0 0.0
        %2602 = vmatpush1.msra.mxu0 0.0
        %2603 = vmatprep.subr.mxu0 0.0
        %2604 = vmatpush1.msra.mxu0 0.0
        %2605 = vmatprep.subr.mxu0 0.0
        %2606 = vmatpush1.msra.mxu0 0.0
        %2607 = vmatprep.subr.mxu0 0.0
        %2608 = vmatpush1.msra.mxu0 0.0
        %2609 = vmatprep.subr.mxu0 0.0
        %2610 = vmatpush1.msra.mxu0 0.0
        %2611 = vmatprep.subr.mxu0 0.0
        %2612 = vmatpush1.msra.mxu0 0.0
        %2613 = vmatprep.subr.mxu0 0.0
        %2614 = vmatpush1.msra.mxu0 0.0
        %2615 = vmatprep.subr.mxu0 0.0
        %2616 = vmatpush1.msra.mxu0 0.0
        %2617 = vmatprep.subr.mxu0 0.0
        %2618 = vmatpush1.msra.mxu0 0.0
        %2619 = vmatprep.subr.mxu0 0.0
        %2620 = vmatpush1.msra.mxu0 0.0
        %2621 = vmatprep.subr.mxu0 0.0
        %2622 = vmatpush1.msra.mxu0 0.0
        %2623 = vmatprep.subr.mxu0 0.0
        %2624 = vmatpush1.msra.mxu0 0.0
        %2625 = vmatprep.subr.mxu0 0.0
        %2626 = vmatpush1.msra.mxu0 0.0
        %2627 = vmatprep.subr.mxu0 0.0
        %2628 = vmatpush1.msra.mxu0 0.0
        %2629 = vmatprep.subr.mxu0 0.0
        %2630 = vmatpush1.msra.mxu0 0.0
        %2631 = vmatprep.subr.mxu0 0.0
        %2632 = vmatpush1.msra.mxu0 0.0
        %2633 = vmatprep.mubr.f32.mxu0 0.0
        %2634 = vmatmul.mubr.f32.gmra.mrb[0].mxu0 %v2409
        %v2635 = vpop.f32.mrb[0].mxu0
        %v2636 = vadd.f32 0.0, %v2635
        %v2637 = vpop.f32.mrb[0].mxu0
        %v2638 = vadd.f32 0.0, %v2637
        %2639 = vdwg.mxu0
        %2640 = vmatprep.subr.mxu0 %v2425
        %2641 = vmatpush1.msra.mxu0 %v2423
        %2642 = vmatprep.subr.mxu0 0.0
        %2643 = vmatpush1.msra.mxu0 0.0
        %2644 = vmatprep.subr.mxu0 0.0
        %2645 = vmatpush1.msra.mxu0 0.0
        %2646 = vmatprep.subr.mxu0 0.0
        %2647 = vmatpush1.msra.mxu0 0.0
        %2648 = vmatprep.subr.mxu0 0.0
        %2649 = vmatpush1.msra.mxu0 0.0
        %2650 = vmatprep.subr.mxu0 0.0
        %2651 = vmatpush1.msra.mxu0 0.0
        %2652 = vmatprep.subr.mxu0 0.0
        %2653 = vmatpush1.msra.mxu0 0.0
        %2654 = vmatprep.subr.mxu0 0.0
        %2655 = vmatpush1.msra.mxu0 0.0
        %2656 = vmatprep.subr.mxu0 0.0
        %2657 = vmatpush1.msra.mxu0 0.0
        %2658 = vmatprep.subr.mxu0 0.0
        %2659 = vmatpush1.msra.mxu0 0.0
        %2660 = vmatprep.subr.mxu0 0.0
        %2661 = vmatpush1.msra.mxu0 0.0
        %2662 = vmatprep.subr.mxu0 0.0
        %2663 = vmatpush1.msra.mxu0 0.0
        %2664 = vmatprep.subr.mxu0 0.0
        %2665 = vmatpush1.msra.mxu0 0.0
        %2666 = vmatprep.subr.mxu0 0.0
        %2667 = vmatpush1.msra.mxu0 0.0
        %2668 = vmatprep.subr.mxu0 0.0
        %2669 = vmatpush1.msra.mxu0 0.0
        %2670 = vmatprep.subr.mxu0 0.0
        %2671 = vmatpush1.msra.mxu0 0.0
        %2672 = vmatprep.subr.mxu0 0.0
        %2673 = vmatpush1.msra.mxu0 0.0
        %2674 = vmatprep.subr.mxu0 0.0
        %2675 = vmatpush1.msra.mxu0 0.0
        %2676 = vmatprep.subr.mxu0 0.0
        %2677 = vmatpush1.msra.mxu0 0.0
        %2678 = vmatprep.subr.mxu0 0.0
        %2679 = vmatpush1.msra.mxu0 0.0
        %2680 = vmatprep.subr.mxu0 0.0
        %2681 = vmatpush1.msra.mxu0 0.0
        %2682 = vmatprep.subr.mxu0 0.0
        %2683 = vmatpush1.msra.mxu0 0.0
        %2684 = vmatprep.subr.mxu0 0.0
        %2685 = vmatpush1.msra.mxu0 0.0
        %2686 = vmatprep.subr.mxu0 0.0
        %2687 = vmatpush1.msra.mxu0 0.0
        %2688 = vmatprep.subr.mxu0 0.0
        %2689 = vmatpush1.msra.mxu0 0.0
        %2690 = vmatprep.subr.mxu0 0.0
        %2691 = vmatpush1.msra.mxu0 0.0
        %2692 = vmatprep.subr.mxu0 0.0
        %2693 = vmatpush1.msra.mxu0 0.0
        %2694 = vmatprep.subr.mxu0 0.0
        %2695 = vmatpush1.msra.mxu0 0.0
        %2696 = vmatprep.subr.mxu0 0.0
        %2697 = vmatpush1.msra.mxu0 0.0
        %2698 = vmatprep.subr.mxu0 0.0
        %2699 = vmatpush1.msra.mxu0 0.0
        %2700 = vmatprep.subr.mxu0 0.0
        %2701 = vmatpush1.msra.mxu0 0.0
        %2702 = vmatprep.subr.mxu0 0.0
        %2703 = vmatpush1.msra.mxu0 0.0
        %2704 = vmatprep.mubr.f32.mxu0 0.0
        %2705 = vmatmul.mubr.f32.gmra.mrb[0].mxu0 %v2409
        %v2706 = vpop.f32.mrb[0].mxu0
        %v2707 = vadd.f32 0.0, %v2706
        %v2708 = vpop.f32.mrb[0].mxu0
        %v2709 = vadd.f32 0.0, %v2708
        %2710 = vdwg.mxu0
        %2711 = vrot.lane.b32.xlu0 0.0, 15
        %v2712 = vpop.permute.xlu0 %2711
        %2713 = vrot.lane.b32.xlu0 %v423, 15
        %v2714 = vpop.permute.xlu0 %2713
        %v2715 = vsel %vm2399, %v2712, %v2714
        %v2716 = vsel %vm2399, %v2714, %v2382
        %v2718 = vsel %vm475, %v2378, 0
        %v2720 = vsel %vm479, %v2715, 0
        %v2722 = vsel %vm479, %v2716, 0
        %2724 = vmatprep.subr.mxu0 %v2722
        %2725 = vmatpush1.msra.mxu0 %v2720
        %2726 = vmatprep.subr.mxu0 0.0
        %2727 = vmatpush1.msra.mxu0 0.0
        %2728 = vmatprep.subr.mxu0 0.0
        %2729 = vmatpush1.msra.mxu0 0.0
        %2730 = vmatprep.subr.mxu0 0.0
        %2731 = vmatpush1.msra.mxu0 0.0
        %2732 = vmatprep.subr.mxu0 0.0
        %2733 = vmatpush1.msra.mxu0 0.0
        %2734 = vmatprep.subr.mxu0 0.0
        %2735 = vmatpush1.msra.mxu0 0.0
        %2736 = vmatprep.subr.mxu0 0.0
        %2737 = vmatpush1.msra.mxu0 0.0
        %2738 = vmatprep.subr.mxu0 0.0
        %2739 = vmatpush1.msra.mxu0 0.0
        %2740 = vmatprep.subr.mxu0 0.0
        %2741 = vmatpush1.msra.mxu0 0.0
        %2742 = vmatprep.subr.mxu0 0.0
        %2743 = vmatpush1.msra.mxu0 0.0
        %2744 = vmatprep.subr.mxu0 0.0
        %2745 = vmatpush1.msra.mxu0 0.0
        %2746 = vmatprep.subr.mxu0 0.0
        %2747 = vmatpush1.msra.mxu0 0.0
        %2748 = vmatprep.subr.mxu0 0.0
        %2749 = vmatpush1.msra.mxu0 0.0
        %2750 = vmatprep.subr.mxu0 0.0
        %2751 = vmatpush1.msra.mxu0 0.0
        %2752 = vmatprep.subr.mxu0 0.0
        %2753 = vmatpush1.msra.mxu0 0.0
        %2754 = vmatprep.subr.mxu0 0.0
        %2755 = vmatpush1.msra.mxu0 0.0
        %2756 = vmatprep.subr.mxu0 0.0
        %2757 = vmatpush1.msra.mxu0 0.0
        %2758 = vmatprep.subr.mxu0 0.0
        %2759 = vmatpush1.msra.mxu0 0.0
        %2760 = vmatprep.subr.mxu0 0.0
        %2761 = vmatpush1.msra.mxu0 0.0
        %2762 = vmatprep.subr.mxu0 0.0
        %2763 = vmatpush1.msra.mxu0 0.0
        %2764 = vmatprep.subr.mxu0 0.0
        %2765 = vmatpush1.msra.mxu0 0.0
        %2766 = vmatprep.subr.mxu0 0.0
        %2767 = vmatpush1.msra.mxu0 0.0
        %2768 = vmatprep.subr.mxu0 0.0
        %2769 = vmatpush1.msra.mxu0 0.0
        %2770 = vmatprep.subr.mxu0 0.0
        %2771 = vmatpush1.msra.mxu0 0.0
        %2772 = vmatprep.subr.mxu0 0.0
        %2773 = vmatpush1.msra.mxu0 0.0
        %2774 = vmatprep.subr.mxu0 0.0
        %2775 = vmatpush1.msra.mxu0 0.0
        %2776 = vmatprep.subr.mxu0 0.0
        %2777 = vmatpush1.msra.mxu0 0.0
        %2778 = vmatprep.subr.mxu0 0.0
        %2779 = vmatpush1.msra.mxu0 0.0
        %2780 = vmatprep.subr.mxu0 0.0
        %2781 = vmatpush1.msra.mxu0 0.0
        %2782 = vmatprep.subr.mxu0 0.0
        %2783 = vmatpush1.msra.mxu0 0.0
        %2784 = vmatprep.subr.mxu0 0.0
        %2785 = vmatpush1.msra.mxu0 0.0
        %2786 = vmatprep.subr.mxu0 0.0
        %2787 = vmatpush1.msra.mxu0 0.0
        %2788 = vmatprep.mubr.f32.mxu0 0.0
        %2789 = vmatmul.mubr.f32.gmra.mrb[0].mxu0 %v2718
        %v2790 = vpop.f32.mrb[0].mxu0
        %v2791 = vadd.f32 %v2494, %v2790
        %v2792 = vpop.f32.mrb[0].mxu0
        %v2793 = vadd.f32 %v2496, %v2792
        %2794 = vdwg.mxu0
        %2795 = vmatprep.subr.mxu0 %v2413
        %2796 = vmatpush1.msra.mxu0 %v2411
        %2797 = vmatprep.subr.mxu0 0.0
        %2798 = vmatpush1.msra.mxu0 0.0
        %2799 = vmatprep.subr.mxu0 0.0
        %2800 = vmatpush1.msra.mxu0 0.0
        %2801 = vmatprep.subr.mxu0 0.0
        %2802 = vmatpush1.msra.mxu0 0.0
        %2803 = vmatprep.subr.mxu0 0.0
        %2804 = vmatpush1.msra.mxu0 0.0
        %2805 = vmatprep.subr.mxu0 0.0
        %2806 = vmatpush1.msra.mxu0 0.0
        %2807 = vmatprep.subr.mxu0 0.0
        %2808 = vmatpush1.msra.mxu0 0.0
        %2809 = vmatprep.subr.mxu0 0.0
        %2810 = vmatpush1.msra.mxu0 0.0
        %2811 = vmatprep.subr.mxu0 0.0
        %2812 = vmatpush1.msra.mxu0 0.0
        %2813 = vmatprep.subr.mxu0 0.0
        %2814 = vmatpush1.msra.mxu0 0.0
        %2815 = vmatprep.subr.mxu0 0.0
        %2816 = vmatpush1.msra.mxu0 0.0
        %2817 = vmatprep.subr.mxu0 0.0
        %2818 = vmatpush1.msra.mxu0 0.0
        %2819 = vmatprep.subr.mxu0 0.0
        %2820 = vmatpush1.msra.mxu0 0.0
        %2821 = vmatprep.subr.mxu0 0.0
        %2822 = vmatpush1.msra.mxu0 0.0
        %2823 = vmatprep.subr.mxu0 0.0
        %2824 = vmatpush1.msra.mxu0 0.0
        %2825 = vmatprep.subr.mxu0 0.0
        %2826 = vmatpush1.msra.mxu0 0.0
        %2827 = vmatprep.subr.mxu0 0.0
        %2828 = vmatpush1.msra.mxu0 0.0
        %2829 = vmatprep.subr.mxu0 0.0
        %2830 = vmatpush1.msra.mxu0 0.0
        %2831 = vmatprep.subr.mxu0 0.0
        %2832 = vmatpush1.msra.mxu0 0.0
        %2833 = vmatprep.subr.mxu0 0.0
        %2834 = vmatpush1.msra.mxu0 0.0
        %2835 = vmatprep.subr.mxu0 0.0
        %2836 = vmatpush1.msra.mxu0 0.0
        %2837 = vmatprep.subr.mxu0 0.0
        %2838 = vmatpush1.msra.mxu0 0.0
        %2839 = vmatprep.subr.mxu0 0.0
        %2840 = vmatpush1.msra.mxu0 0.0
        %2841 = vmatprep.subr.mxu0 0.0
        %2842 = vmatpush1.msra.mxu0 0.0
        %2843 = vmatprep.subr.mxu0 0.0
        %2844 = vmatpush1.msra.mxu0 0.0
        %2845 = vmatprep.subr.mxu0 0.0
        %2846 = vmatpush1.msra.mxu0 0.0
        %2847 = vmatprep.subr.mxu0 0.0
        %2848 = vmatpush1.msra.mxu0 0.0
        %2849 = vmatprep.subr.mxu0 0.0
        %2850 = vmatpush1.msra.mxu0 0.0
        %2851 = vmatprep.subr.mxu0 0.0
        %2852 = vmatpush1.msra.mxu0 0.0
        %2853 = vmatprep.subr.mxu0 0.0
        %2854 = vmatpush1.msra.mxu0 0.0
        %2855 = vmatprep.subr.mxu0 0.0
        %2856 = vmatpush1.msra.mxu0 0.0
        %2857 = vmatprep.subr.mxu0 0.0
        %2858 = vmatpush1.msra.mxu0 0.0
        %2859 = vmatprep.mubr.f32.mxu0 0.0
        %2860 = vmatmul.mubr.f32.gmra.mrb[0].mxu0 %v2718
        %v2861 = vpop.f32.mrb[0].mxu0
        %v2862 = vadd.f32 %v2565, %v2861
        %v2863 = vpop.f32.mrb[0].mxu0
        %v2864 = vadd.f32 %v2567, %v2863
        %2865 = vdwg.mxu0
        %2866 = vmatprep.subr.mxu0 %v2417
        %2867 = vmatpush1.msra.mxu0 %v2415
        %2868 = vmatprep.subr.mxu0 0.0
        %2869 = vmatpush1.msra.mxu0 0.0
        %2870 = vmatprep.subr.mxu0 0.0
        %2871 = vmatpush1.msra.mxu0 0.0
        %2872 = vmatprep.subr.mxu0 0.0
        %2873 = vmatpush1.msra.mxu0 0.0
        %2874 = vmatprep.subr.mxu0 0.0
        %2875 = vmatpush1.msra.mxu0 0.0
        %2876 = vmatprep.subr.mxu0 0.0
        %2877 = vmatpush1.msra.mxu0 0.0
        %2878 = vmatprep.subr.mxu0 0.0
        %2879 = vmatpush1.msra.mxu0 0.0
        %2880 = vmatprep.subr.mxu0 0.0
        %2881 = vmatpush1.msra.mxu0 0.0
        %2882 = vmatprep.subr.mxu0 0.0
        %2883 = vmatpush1.msra.mxu0 0.0
        %2884 = vmatprep.subr.mxu0 0.0
        %2885 = vmatpush1.msra.mxu0 0.0
        %2886 = vmatprep.subr.mxu0 0.0
        %2887 = vmatpush1.msra.mxu0 0.0
        %2888 = vmatprep.subr.mxu0 0.0
        %2889 = vmatpush1.msra.mxu0 0.0
        %2890 = vmatprep.subr.mxu0 0.0
        %2891 = vmatpush1.msra.mxu0 0.0
        %2892 = vmatprep.subr.mxu0 0.0
        %2893 = vmatpush1.msra.mxu0 0.0
        %2894 = vmatprep.subr.mxu0 0.0
        %2895 = vmatpush1.msra.mxu0 0.0
        %2896 = vmatprep.subr.mxu0 0.0
        %2897 = vmatpush1.msra.mxu0 0.0
        %2898 = vmatprep.subr.mxu0 0.0
        %2899 = vmatpush1.msra.mxu0 0.0
        %2900 = vmatprep.subr.mxu0 0.0
        %2901 = vmatpush1.msra.mxu0 0.0
        %2902 = vmatprep.subr.mxu0 0.0
        %2903 = vmatpush1.msra.mxu0 0.0
        %2904 = vmatprep.subr.mxu0 0.0
        %2905 = vmatpush1.msra.mxu0 0.0
        %2906 = vmatprep.subr.mxu0 0.0
        %2907 = vmatpush1.msra.mxu0 0.0
        %2908 = vmatprep.subr.mxu0 0.0
        %2909 = vmatpush1.msra.mxu0 0.0
        %2910 = vmatprep.subr.mxu0 0.0
        %2911 = vmatpush1.msra.mxu0 0.0
        %2912 = vmatprep.subr.mxu0 0.0
        %2913 = vmatpush1.msra.mxu0 0.0
        %2914 = vmatprep.subr.mxu0 0.0
        %2915 = vmatpush1.msra.mxu0 0.0
        %2916 = vmatprep.subr.mxu0 0.0
        %2917 = vmatpush1.msra.mxu0 0.0
        %2918 = vmatprep.subr.mxu0 0.0
        %2919 = vmatpush1.msra.mxu0 0.0
        %2920 = vmatprep.subr.mxu0 0.0
        %2921 = vmatpush1.msra.mxu0 0.0
        %2922 = vmatprep.subr.mxu0 0.0
        %2923 = vmatpush1.msra.mxu0 0.0
        %2924 = vmatprep.subr.mxu0 0.0
        %2925 = vmatpush1.msra.mxu0 0.0
        %2926 = vmatprep.subr.mxu0 0.0
        %2927 = vmatpush1.msra.mxu0 0.0
        %2928 = vmatprep.subr.mxu0 0.0
        %2929 = vmatpush1.msra.mxu0 0.0
        %2930 = vmatprep.mubr.f32.mxu0 0.0
        %2931 = vmatmul.mubr.f32.gmra.mrb[0].mxu0 %v2718
        %v2932 = vpop.f32.mrb[0].mxu0
        %v2933 = vadd.f32 %v2636, %v2932
        %v2934 = vpop.f32.mrb[0].mxu0
        %v2935 = vadd.f32 %v2638, %v2934
        %2936 = vdwg.mxu0
        %2937 = vmatprep.subr.mxu0 %v2421
        %2938 = vmatpush1.msra.mxu0 %v2419
        %2939 = vmatprep.subr.mxu0 0.0
        %2940 = vmatpush1.msra.mxu0 0.0
        %2941 = vmatprep.subr.mxu0 0.0
        %2942 = vmatpush1.msra.mxu0 0.0
        %2943 = vmatprep.subr.mxu0 0.0
        %2944 = vmatpush1.msra.mxu0 0.0
        %2945 = vmatprep.subr.mxu0 0.0
        %2946 = vmatpush1.msra.mxu0 0.0
        %2947 = vmatprep.subr.mxu0 0.0
        %2948 = vmatpush1.msra.mxu0 0.0
        %2949 = vmatprep.subr.mxu0 0.0
        %2950 = vmatpush1.msra.mxu0 0.0
        %2951 = vmatprep.subr.mxu0 0.0
        %2952 = vmatpush1.msra.mxu0 0.0
        %2953 = vmatprep.subr.mxu0 0.0
        %2954 = vmatpush1.msra.mxu0 0.0
        %2955 = vmatprep.subr.mxu0 0.0
        %2956 = vmatpush1.msra.mxu0 0.0
        %2957 = vmatprep.subr.mxu0 0.0
        %2958 = vmatpush1.msra.mxu0 0.0
        %2959 = vmatprep.subr.mxu0 0.0
        %2960 = vmatpush1.msra.mxu0 0.0
        %2961 = vmatprep.subr.mxu0 0.0
        %2962 = vmatpush1.msra.mxu0 0.0
        %2963 = vmatprep.subr.mxu0 0.0
        %2964 = vmatpush1.msra.mxu0 0.0
        %2965 = vmatprep.subr.mxu0 0.0
        %2966 = vmatpush1.msra.mxu0 0.0
        %2967 = vmatprep.subr.mxu0 0.0
        %2968 = vmatpush1.msra.mxu0 0.0
        %2969 = vmatprep.subr.mxu0 0.0
        %2970 = vmatpush1.msra.mxu0 0.0
        %2971 = vmatprep.subr.mxu0 0.0
        %2972 = vmatpush1.msra.mxu0 0.0
        %2973 = vmatprep.subr.mxu0 0.0
        %2974 = vmatpush1.msra.mxu0 0.0
        %2975 = vmatprep.subr.mxu0 0.0
        %2976 = vmatpush1.msra.mxu0 0.0
        %2977 = vmatprep.subr.mxu0 0.0
        %2978 = vmatpush1.msra.mxu0 0.0
        %2979 = vmatprep.subr.mxu0 0.0
        %2980 = vmatpush1.msra.mxu0 0.0
        %2981 = vmatprep.subr.mxu0 0.0
        %2982 = vmatpush1.msra.mxu0 0.0
        %2983 = vmatprep.subr.mxu0 0.0
        %2984 = vmatpush1.msra.mxu0 0.0
        %2985 = vmatprep.subr.mxu0 0.0
        %2986 = vmatpush1.msra.mxu0 0.0
        %2987 = vmatprep.subr.mxu0 0.0
        %2988 = vmatpush1.msra.mxu0 0.0
        %2989 = vmatprep.subr.mxu0 0.0
        %2990 = vmatpush1.msra.mxu0 0.0
        %2991 = vmatprep.subr.mxu0 0.0
        %2992 = vmatpush1.msra.mxu0 0.0
        %2993 = vmatprep.subr.mxu0 0.0
        %2994 = vmatpush1.msra.mxu0 0.0
        %2995 = vmatprep.subr.mxu0 0.0
        %2996 = vmatpush1.msra.mxu0 0.0
        %2997 = vmatprep.subr.mxu0 0.0
        %2998 = vmatpush1.msra.mxu0 0.0
        %2999 = vmatprep.subr.mxu0 0.0
        %3000 = vmatpush1.msra.mxu0 0.0
        %3001 = vmatprep.mubr.f32.mxu0 0.0
        %3002 = vmatmul.mubr.f32.gmra.mrb[0].mxu0 %v2718
        %v3003 = vpop.f32.mrb[0].mxu0
        %v3004 = vadd.f32 %v2707, %v3003
        %v3005 = vpop.f32.mrb[0].mxu0
        %v3006 = vadd.f32 %v2709, %v3005
        %3007 = vdwg.mxu0
        %s3008 = scalar_lea.vmem %s3, 80
        %v3009 = vld [vmem:[%s3008] sm:$0x7]
        %3010 = vrot.lane.b32.xlu0 %v428, 15
        %v3011 = vpop.permute.xlu0 %3010
        %3012 = vrot.lane.b32.xlu0 %v440, 15
        %v3013 = vpop.permute.xlu0 %3012
        %v3014 = vsel %vm2399, %v2398, %v3011
        %v3015 = vsel %vm2399, %v3011, %v3013
        %v3017 = vsel %vm475, %v3009, 0
        %v3019 = vsel %vm479, %v3014, 0
        %v3021 = vsel %vm479, %v3015, 0
        %3023 = vmatprep.subr.mxu0 %v2417
        %3024 = vmatpush1.msra.mxu0 %v2415
        %3025 = vmatprep.subr.mxu0 0.0
        %3026 = vmatpush1.msra.mxu0 0.0
        %3027 = vmatprep.subr.mxu0 0.0
        %3028 = vmatpush1.msra.mxu0 0.0
        %3029 = vmatprep.subr.mxu0 0.0
        %3030 = vmatpush1.msra.mxu0 0.0
        %3031 = vmatprep.subr.mxu0 0.0
        %3032 = vmatpush1.msra.mxu0 0.0
        %3033 = vmatprep.subr.mxu0 0.0
        %3034 = vmatpush1.msra.mxu0 0.0
        %3035 = vmatprep.subr.mxu0 0.0
        %3036 = vmatpush1.msra.mxu0 0.0
        %3037 = vmatprep.subr.mxu0 0.0
        %3038 = vmatpush1.msra.mxu0 0.0
        %3039 = vmatprep.subr.mxu0 0.0
        %3040 = vmatpush1.msra.mxu0 0.0
        %3041 = vmatprep.subr.mxu0 0.0
        %3042 = vmatpush1.msra.mxu0 0.0
        %3043 = vmatprep.subr.mxu0 0.0
        %3044 = vmatpush1.msra.mxu0 0.0
        %3045 = vmatprep.subr.mxu0 0.0
        %3046 = vmatpush1.msra.mxu0 0.0
        %3047 = vmatprep.subr.mxu0 0.0
        %3048 = vmatpush1.msra.mxu0 0.0
        %3049 = vmatprep.subr.mxu0 0.0
        %3050 = vmatpush1.msra.mxu0 0.0
        %3051 = vmatprep.subr.mxu0 0.0
        %3052 = vmatpush1.msra.mxu0 0.0
        %3053 = vmatprep.subr.mxu0 0.0
        %3054 = vmatpush1.msra.mxu0 0.0
        %3055 = vmatprep.subr.mxu0 0.0
        %3056 = vmatpush1.msra.mxu0 0.0
        %3057 = vmatprep.subr.mxu0 0.0
        %3058 = vmatpush1.msra.mxu0 0.0
        %3059 = vmatprep.subr.mxu0 0.0
        %3060 = vmatpush1.msra.mxu0 0.0
        %3061 = vmatprep.subr.mxu0 0.0
        %3062 = vmatpush1.msra.mxu0 0.0
        %3063 = vmatprep.subr.mxu0 0.0
        %3064 = vmatpush1.msra.mxu0 0.0
        %3065 = vmatprep.subr.mxu0 0.0
        %3066 = vmatpush1.msra.mxu0 0.0
        %3067 = vmatprep.subr.mxu0 0.0
        %3068 = vmatpush1.msra.mxu0 0.0
        %3069 = vmatprep.subr.mxu0 0.0
        %3070 = vmatpush1.msra.mxu0 0.0
        %3071 = vmatprep.subr.mxu0 0.0
        %3072 = vmatpush1.msra.mxu0 0.0
        %3073 = vmatprep.subr.mxu0 0.0
        %3074 = vmatpush1.msra.mxu0 0.0
        %3075 = vmatprep.subr.mxu0 0.0
        %3076 = vmatpush1.msra.mxu0 0.0
        %3077 = vmatprep.subr.mxu0 0.0
        %3078 = vmatpush1.msra.mxu0 0.0
        %3079 = vmatprep.subr.mxu0 0.0
        %3080 = vmatpush1.msra.mxu0 0.0
        %3081 = vmatprep.subr.mxu0 0.0
        %3082 = vmatpush1.msra.mxu0 0.0
        %3083 = vmatprep.subr.mxu0 0.0
        %3084 = vmatpush1.msra.mxu0 0.0
        %3085 = vmatprep.subr.mxu0 0.0
        %3086 = vmatpush1.msra.mxu0 0.0
        %3087 = vmatprep.mubr.f32.mxu0 0.0
        %3088 = vmatmul.mubr.f32.gmra.mrb[0].mxu0 %v3017
        %v3089 = vpop.f32.mrb[0].mxu0
        %v3090 = vadd.f32 0.0, %v3089
        %v3091 = vpop.f32.mrb[0].mxu0
        %v3092 = vadd.f32 0.0, %v3091
        %3093 = vdwg.mxu0
        %3094 = vmatprep.subr.mxu0 %v2421
        %3095 = vmatpush1.msra.mxu0 %v2419
        %3096 = vmatprep.subr.mxu0 0.0
        %3097 = vmatpush1.msra.mxu0 0.0
        %3098 = vmatprep.subr.mxu0 0.0
        %3099 = vmatpush1.msra.mxu0 0.0
        %3100 = vmatprep.subr.mxu0 0.0
        %3101 = vmatpush1.msra.mxu0 0.0
        %3102 = vmatprep.subr.mxu0 0.0
        %3103 = vmatpush1.msra.mxu0 0.0
        %3104 = vmatprep.subr.mxu0 0.0
        %3105 = vmatpush1.msra.mxu0 0.0
        %3106 = vmatprep.subr.mxu0 0.0
        %3107 = vmatpush1.msra.mxu0 0.0
        %3108 = vmatprep.subr.mxu0 0.0
        %3109 = vmatpush1.msra.mxu0 0.0
        %3110 = vmatprep.subr.mxu0 0.0
        %3111 = vmatpush1.msra.mxu0 0.0
        %3112 = vmatprep.subr.mxu0 0.0
        %3113 = vmatpush1.msra.mxu0 0.0
        %3114 = vmatprep.subr.mxu0 0.0
        %3115 = vmatpush1.msra.mxu0 0.0
        %3116 = vmatprep.subr.mxu0 0.0
        %3117 = vmatpush1.msra.mxu0 0.0
        %3118 = vmatprep.subr.mxu0 0.0
        %3119 = vmatpush1.msra.mxu0 0.0
        %3120 = vmatprep.subr.mxu0 0.0
        %3121 = vmatpush1.msra.mxu0 0.0
        %3122 = vmatprep.subr.mxu0 0.0
        %3123 = vmatpush1.msra.mxu0 0.0
        %3124 = vmatprep.subr.mxu0 0.0
        %3125 = vmatpush1.msra.mxu0 0.0
        %3126 = vmatprep.subr.mxu0 0.0
        %3127 = vmatpush1.msra.mxu0 0.0
        %3128 = vmatprep.subr.mxu0 0.0
        %3129 = vmatpush1.msra.mxu0 0.0
        %3130 = vmatprep.subr.mxu0 0.0
        %3131 = vmatpush1.msra.mxu0 0.0
        %3132 = vmatprep.subr.mxu0 0.0
        %3133 = vmatpush1.msra.mxu0 0.0
        %3134 = vmatprep.subr.mxu0 0.0
        %3135 = vmatpush1.msra.mxu0 0.0
        %3136 = vmatprep.subr.mxu0 0.0
        %3137 = vmatpush1.msra.mxu0 0.0
        %3138 = vmatprep.subr.mxu0 0.0
        %3139 = vmatpush1.msra.mxu0 0.0
        %3140 = vmatprep.subr.mxu0 0.0
        %3141 = vmatpush1.msra.mxu0 0.0
        %3142 = vmatprep.subr.mxu0 0.0
        %3143 = vmatpush1.msra.mxu0 0.0
        %3144 = vmatprep.subr.mxu0 0.0
        %3145 = vmatpush1.msra.mxu0 0.0
        %3146 = vmatprep.subr.mxu0 0.0
        %3147 = vmatpush1.msra.mxu0 0.0
        %3148 = vmatprep.subr.mxu0 0.0
        %3149 = vmatpush1.msra.mxu0 0.0
        %3150 = vmatprep.subr.mxu0 0.0
        %3151 = vmatpush1.msra.mxu0 0.0
        %3152 = vmatprep.subr.mxu0 0.0
        %3153 = vmatpush1.msra.mxu0 0.0
        %3154 = vmatprep.subr.mxu0 0.0
        %3155 = vmatpush1.msra.mxu0 0.0
        %3156 = vmatprep.subr.mxu0 0.0
        %3157 = vmatpush1.msra.mxu0 0.0
        %3158 = vmatprep.mubr.f32.mxu0 0.0
        %3159 = vmatmul.mubr.f32.gmra.mrb[0].mxu0 %v3017
        %v3160 = vpop.f32.mrb[0].mxu0
        %v3161 = vadd.f32 0.0, %v3160
        %v3162 = vpop.f32.mrb[0].mxu0
        %v3163 = vadd.f32 0.0, %v3162
        %3164 = vdwg.mxu0
        %3165 = vmatprep.subr.mxu0 %v2425
        %3166 = vmatpush1.msra.mxu0 %v2423
        %3167 = vmatprep.subr.mxu0 0.0
        %3168 = vmatpush1.msra.mxu0 0.0
        %3169 = vmatprep.subr.mxu0 0.0
        %3170 = vmatpush1.msra.mxu0 0.0
        %3171 = vmatprep.subr.mxu0 0.0
        %3172 = vmatpush1.msra.mxu0 0.0
        %3173 = vmatprep.subr.mxu0 0.0
        %3174 = vmatpush1.msra.mxu0 0.0
        %3175 = vmatprep.subr.mxu0 0.0
        %3176 = vmatpush1.msra.mxu0 0.0
        %3177 = vmatprep.subr.mxu0 0.0
        %3178 = vmatpush1.msra.mxu0 0.0
        %3179 = vmatprep.subr.mxu0 0.0
        %3180 = vmatpush1.msra.mxu0 0.0
        %3181 = vmatprep.subr.mxu0 0.0
        %3182 = vmatpush1.msra.mxu0 0.0
        %3183 = vmatprep.subr.mxu0 0.0
        %3184 = vmatpush1.msra.mxu0 0.0
        %3185 = vmatprep.subr.mxu0 0.0
        %3186 = vmatpush1.msra.mxu0 0.0
        %3187 = vmatprep.subr.mxu0 0.0
        %3188 = vmatpush1.msra.mxu0 0.0
        %3189 = vmatprep.subr.mxu0 0.0
        %3190 = vmatpush1.msra.mxu0 0.0
        %3191 = vmatprep.subr.mxu0 0.0
        %3192 = vmatpush1.msra.mxu0 0.0
        %3193 = vmatprep.subr.mxu0 0.0
        %3194 = vmatpush1.msra.mxu0 0.0
        %3195 = vmatprep.subr.mxu0 0.0
        %3196 = vmatpush1.msra.mxu0 0.0
        %3197 = vmatprep.subr.mxu0 0.0
        %3198 = vmatpush1.msra.mxu0 0.0
        %3199 = vmatprep.subr.mxu0 0.0
        %3200 = vmatpush1.msra.mxu0 0.0
        %3201 = vmatprep.subr.mxu0 0.0
        %3202 = vmatpush1.msra.mxu0 0.0
        %3203 = vmatprep.subr.mxu0 0.0
        %3204 = vmatpush1.msra.mxu0 0.0
        %3205 = vmatprep.subr.mxu0 0.0
        %3206 = vmatpush1.msra.mxu0 0.0
        %3207 = vmatprep.subr.mxu0 0.0
        %3208 = vmatpush1.msra.mxu0 0.0
        %3209 = vmatprep.subr.mxu0 0.0
        %3210 = vmatpush1.msra.mxu0 0.0
        %3211 = vmatprep.subr.mxu0 0.0
        %3212 = vmatpush1.msra.mxu0 0.0
        %3213 = vmatprep.subr.mxu0 0.0
        %3214 = vmatpush1.msra.mxu0 0.0
        %3215 = vmatprep.subr.mxu0 0.0
        %3216 = vmatpush1.msra.mxu0 0.0
        %3217 = vmatprep.subr.mxu0 0.0
        %3218 = vmatpush1.msra.mxu0 0.0
        %3219 = vmatprep.subr.mxu0 0.0
        %3220 = vmatpush1.msra.mxu0 0.0
        %3221 = vmatprep.subr.mxu0 0.0
        %3222 = vmatpush1.msra.mxu0 0.0
        %3223 = vmatprep.subr.mxu0 0.0
        %3224 = vmatpush1.msra.mxu0 0.0
        %3225 = vmatprep.subr.mxu0 0.0
        %3226 = vmatpush1.msra.mxu0 0.0
        %3227 = vmatprep.subr.mxu0 0.0
        %3228 = vmatpush1.msra.mxu0 0.0
        %3229 = vmatprep.mubr.f32.mxu0 0.0
        %3230 = vmatmul.mubr.f32.gmra.mrb[0].mxu0 %v3017
        %v3231 = vpop.f32.mrb[0].mxu0
        %v3232 = vadd.f32 0.0, %v3231
        %v3233 = vpop.f32.mrb[0].mxu0
        %v3234 = vadd.f32 0.0, %v3233
        %3235 = vdwg.mxu0
        %3236 = vmatprep.subr.mxu0 %v3021
        %3237 = vmatpush1.msra.mxu0 %v3019
        %3238 = vmatprep.subr.mxu0 0.0
        %3239 = vmatpush1.msra.mxu0 0.0
        %3240 = vmatprep.subr.mxu0 0.0
        %3241 = vmatpush1.msra.mxu0 0.0
        %3242 = vmatprep.subr.mxu0 0.0
        %3243 = vmatpush1.msra.mxu0 0.0
        %3244 = vmatprep.subr.mxu0 0.0
        %3245 = vmatpush1.msra.mxu0 0.0
        %3246 = vmatprep.subr.mxu0 0.0
        %3247 = vmatpush1.msra.mxu0 0.0
        %3248 = vmatprep.subr.mxu0 0.0
        %3249 = vmatpush1.msra.mxu0 0.0
        %3250 = vmatprep.subr.mxu0 0.0
        %3251 = vmatpush1.msra.mxu0 0.0
        %3252 = vmatprep.subr.mxu0 0.0
        %3253 = vmatpush1.msra.mxu0 0.0
        %3254 = vmatprep.subr.mxu0 0.0
        %3255 = vmatpush1.msra.mxu0 0.0
        %3256 = vmatprep.subr.mxu0 0.0
        %3257 = vmatpush1.msra.mxu0 0.0
        %3258 = vmatprep.subr.mxu0 0.0
        %3259 = vmatpush1.msra.mxu0 0.0
        %3260 = vmatprep.subr.mxu0 0.0
        %3261 = vmatpush1.msra.mxu0 0.0
        %3262 = vmatprep.subr.mxu0 0.0
        %3263 = vmatpush1.msra.mxu0 0.0
        %3264 = vmatprep.subr.mxu0 0.0
        %3265 = vmatpush1.msra.mxu0 0.0
        %3266 = vmatprep.subr.mxu0 0.0
        %3267 = vmatpush1.msra.mxu0 0.0
        %3268 = vmatprep.subr.mxu0 0.0
        %3269 = vmatpush1.msra.mxu0 0.0
        %3270 = vmatprep.subr.mxu0 0.0
        %3271 = vmatpush1.msra.mxu0 0.0
        %3272 = vmatprep.subr.mxu0 0.0
        %3273 = vmatpush1.msra.mxu0 0.0
        %3274 = vmatprep.subr.mxu0 0.0
        %3275 = vmatpush1.msra.mxu0 0.0
        %3276 = vmatprep.subr.mxu0 0.0
        %3277 = vmatpush1.msra.mxu0 0.0
        %3278 = vmatprep.subr.mxu0 0.0
        %3279 = vmatpush1.msra.mxu0 0.0
        %3280 = vmatprep.subr.mxu0 0.0
        %3281 = vmatpush1.msra.mxu0 0.0
        %3282 = vmatprep.subr.mxu0 0.0
        %3283 = vmatpush1.msra.mxu0 0.0
        %3284 = vmatprep.subr.mxu0 0.0
        %3285 = vmatpush1.msra.mxu0 0.0
        %3286 = vmatprep.subr.mxu0 0.0
        %3287 = vmatpush1.msra.mxu0 0.0
        %3288 = vmatprep.subr.mxu0 0.0
        %3289 = vmatpush1.msra.mxu0 0.0
        %3290 = vmatprep.subr.mxu0 0.0
        %3291 = vmatpush1.msra.mxu0 0.0
        %3292 = vmatprep.subr.mxu0 0.0
        %3293 = vmatpush1.msra.mxu0 0.0
        %3294 = vmatprep.subr.mxu0 0.0
        %3295 = vmatpush1.msra.mxu0 0.0
        %3296 = vmatprep.subr.mxu0 0.0
        %3297 = vmatpush1.msra.mxu0 0.0
        %3298 = vmatprep.subr.mxu0 0.0
        %3299 = vmatpush1.msra.mxu0 0.0
        %3300 = vmatprep.mubr.f32.mxu0 0.0
        %3301 = vmatmul.mubr.f32.gmra.mrb[0].mxu0 %v3017
        %v3302 = vpop.f32.mrb[0].mxu0
        %v3303 = vadd.f32 0.0, %v3302
        %v3304 = vpop.f32.mrb[0].mxu0
        %v3305 = vadd.f32 0.0, %v3304
        %3306 = vdwg.mxu0
        %v3307 = vadd.f32 %v2791, %v3090
        %v3308 = vadd.f32 %v2793, %v3092
        %v3309 = vadd.f32 %v2862, %v3161
        %v3310 = vadd.f32 %v2864, %v3163
        %v3311 = vadd.f32 %v2933, %v3232
        %v3312 = vadd.f32 %v2935, %v3234
        %v3313 = vadd.f32 %v3004, %v3303
        %v3314 = vadd.f32 %v3006, %v3305
        %v3315 = vrot.slane %v441, 3
        %v3316 = vrot.slane %v443, 3
        %v3319 = vmul.f32 %v441, %v3315
        %v3320 = vmul.f32 %v443, %v3316
        %v3321 = vlaneseq
        %v3322 = vshrl.u32 %v3321, 7
        %v3323 = vsub.s32 0, %v3322
        %v3324 = vrot.slane %v3319, %v3323
        %v3325 = vlaneseq
        %v3326 = vshrl.u32 %v3325, 7
        %v3327 = vsub.s32 0, %v3326
        %v3328 = vrot.slane %v3320, %v3327
        %v3329 = vmul.f32 %v3307, %v3324
        %v3330 = vmul.f32 %v3308, %v3328
        %v3331 = vmul.f32 %v3309, %v3324
        %v3332 = vmul.f32 %v3310, %v3328
        %v3333 = vmul.f32 %v3311, %v3324
        %v3334 = vmul.f32 %v3312, %v3328
        %v3335 = vmul.f32 %v3313, %v3324
        %v3336 = vmul.f32 %v3314, %v3328
        %v3337 = vadd.f32 %v2369, %v3329
        %v3338 = vadd.f32 %v2370, %v3330
        %v3339 = vadd.f32 %v2371, %v3331
        %v3340 = vadd.f32 %v2372, %v3332
        %v3341 = vadd.f32 %v2373, %v3333
        %v3342 = vadd.f32 %v2374, %v3334
        %v3343 = vadd.f32 %v2375, %v3335
        %v3344 = vadd.f32 %v2376, %v3336
        %s3345 = scalar_lea.vmem %s3, 12
        %v3346 = vld [vmem:[%s3345] sm:$0x7]
        %s3347 = scalar_lea.vmem %s3, 48
        %v3348 = vld [vmem:[%s3347] sm:$0x7]
        %3349 = vrot.lane.b32.xlu0 %v430, 1
        %v3350 = vpop.permute.xlu0 %3349
        %3351 = vrot.lane.b32.xlu0 %v413, 1
        %v3352 = vpop.permute.xlu0 %3351
        %3353 = vrot.lane.b32.xlu0 %v435, 1
        %v3354 = vpop.permute.xlu0 %3353
        %3355 = vrot.lane.b32.xlu0 %v414, 1
        %v3356 = vpop.permute.xlu0 %3355
        %3357 = vrot.lane.b32.xlu0 %v436, 1
        %v3358 = vpop.permute.xlu0 %3357
        %3359 = vrot.lane.b32.xlu0 %v415, 1
        %v3360 = vpop.permute.xlu0 %3359
        %3361 = vrot.lane.b32.xlu0 %v437, 1
        %v3362 = vpop.permute.xlu0 %3361
        %3363 = vrot.lane.b32.xlu0 %v416, 1
        %v3364 = vpop.permute.xlu0 %3363
        %3365 = vrot.lane.b32.xlu0 %v438, 1
        %v3366 = vpop.permute.xlu0 %3365
        %vm3367 = vcmask 7168
        %v3368 = vsel %vm3367, %v3350, %v3352
        %v3369 = vsel %vm3367, %v3352, %v3354
        %v3370 = vsel %vm3367, %v3354, %v3356
        %v3371 = vsel %vm3367, %v3356, %v3358
        %v3372 = vsel %vm3367, %v3358, %v3360
        %v3373 = vsel %vm3367, %v3360, %v3362
        %v3374 = vsel %vm3367, %v3362, %v3364
        %v3375 = vsel %vm3367, %v3364, %v3366
        %v3377 = vsel %vm475, %v3348, 0
        %v3379 = vsel %vm479, %v3368, 0
        %v3381 = vsel %vm479, %v3369, 0
        %v3383 = vsel %vm479, %v3370, 0
        %v3385 = vsel %vm479, %v3371, 0
        %v3387 = vsel %vm479, %v3372, 0
        %v3389 = vsel %vm479, %v3373, 0
        %v3391 = vsel %vm479, %v3374, 0
        %v3393 = vsel %vm479, %v3375, 0
        %3395 = vmatprep.subr.mxu0 %v3381
        %3396 = vmatpush1.msra.mxu0 %v3379
        %3397 = vmatprep.subr.mxu0 0.0
        %3398 = vmatpush1.msra.mxu0 0.0
        %3399 = vmatprep.subr.mxu0 0.0
        %3400 = vmatpush1.msra.mxu0 0.0
        %3401 = vmatprep.subr.mxu0 0.0
        %3402 = vmatpush1.msra.mxu0 0.0
        %3403 = vmatprep.subr.mxu0 0.0
        %3404 = vmatpush1.msra.mxu0 0.0
        %3405 = vmatprep.subr.mxu0 0.0
        %3406 = vmatpush1.msra.mxu0 0.0
        %3407 = vmatprep.subr.mxu0 0.0
        %3408 = vmatpush1.msra.mxu0 0.0
        %3409 = vmatprep.subr.mxu0 0.0
        %3410 = vmatpush1.msra.mxu0 0.0
        %3411 = vmatprep.subr.mxu0 0.0
        %3412 = vmatpush1.msra.mxu0 0.0
        %3413 = vmatprep.subr.mxu0 0.0
        %3414 = vmatpush1.msra.mxu0 0.0
        %3415 = vmatprep.subr.mxu0 0.0
        %3416 = vmatpush1.msra.mxu0 0.0
        %3417 = vmatprep.subr.mxu0 0.0
        %3418 = vmatpush1.msra.mxu0 0.0
        %3419 = vmatprep.subr.mxu0 0.0
        %3420 = vmatpush1.msra.mxu0 0.0
        %3421 = vmatprep.subr.mxu0 0.0
        %3422 = vmatpush1.msra.mxu0 0.0
        %3423 = vmatprep.subr.mxu0 0.0
        %3424 = vmatpush1.msra.mxu0 0.0
        %3425 = vmatprep.subr.mxu0 0.0
        %3426 = vmatpush1.msra.mxu0 0.0
        %3427 = vmatprep.subr.mxu0 0.0
        %3428 = vmatpush1.msra.mxu0 0.0
        %3429 = vmatprep.subr.mxu0 0.0
        %3430 = vmatpush1.msra.mxu0 0.0
        %3431 = vmatprep.subr.mxu0 0.0
        %3432 = vmatpush1.msra.mxu0 0.0
        %3433 = vmatprep.subr.mxu0 0.0
        %3434 = vmatpush1.msra.mxu0 0.0
        %3435 = vmatprep.subr.mxu0 0.0
        %3436 = vmatpush1.msra.mxu0 0.0
        %3437 = vmatprep.subr.mxu0 0.0
        %3438 = vmatpush1.msra.mxu0 0.0
        %3439 = vmatprep.subr.mxu0 0.0
        %3440 = vmatpush1.msra.mxu0 0.0
        %3441 = vmatprep.subr.mxu0 0.0
        %3442 = vmatpush1.msra.mxu0 0.0
        %3443 = vmatprep.subr.mxu0 0.0
        %3444 = vmatpush1.msra.mxu0 0.0
        %3445 = vmatprep.subr.mxu0 0.0
        %3446 = vmatpush1.msra.mxu0 0.0
        %3447 = vmatprep.subr.mxu0 0.0
        %3448 = vmatpush1.msra.mxu0 0.0
        %3449 = vmatprep.subr.mxu0 0.0
        %3450 = vmatpush1.msra.mxu0 0.0
        %3451 = vmatprep.subr.mxu0 0.0
        %3452 = vmatpush1.msra.mxu0 0.0
        %3453 = vmatprep.subr.mxu0 0.0
        %3454 = vmatpush1.msra.mxu0 0.0
        %3455 = vmatprep.subr.mxu0 0.0
        %3456 = vmatpush1.msra.mxu0 0.0
        %3457 = vmatprep.subr.mxu0 0.0
        %3458 = vmatpush1.msra.mxu0 0.0
        %3459 = vmatprep.mubr.f32.mxu0 0.0
        %3460 = vmatmul.mubr.f32.gmra.mrb[0].mxu0 %v3377
        %v3461 = vpop.f32.mrb[0].mxu0
        %v3462 = vadd.f32 0.0, %v3461
        %v3463 = vpop.f32.mrb[0].mxu0
        %v3464 = vadd.f32 0.0, %v3463
        %3465 = vdwg.mxu0
        %3466 = vmatprep.subr.mxu0 %v3385
        %3467 = vmatpush1.msra.mxu0 %v3383
        %3468 = vmatprep.subr.mxu0 0.0
        %3469 = vmatpush1.msra.mxu0 0.0
        %3470 = vmatprep.subr.mxu0 0.0
        %3471 = vmatpush1.msra.mxu0 0.0
        %3472 = vmatprep.subr.mxu0 0.0
        %3473 = vmatpush1.msra.mxu0 0.0
        %3474 = vmatprep.subr.mxu0 0.0
        %3475 = vmatpush1.msra.mxu0 0.0
        %3476 = vmatprep.subr.mxu0 0.0
        %3477 = vmatpush1.msra.mxu0 0.0
        %3478 = vmatprep.subr.mxu0 0.0
        %3479 = vmatpush1.msra.mxu0 0.0
        %3480 = vmatprep.subr.mxu0 0.0
        %3481 = vmatpush1.msra.mxu0 0.0
        %3482 = vmatprep.subr.mxu0 0.0
        %3483 = vmatpush1.msra.mxu0 0.0
        %3484 = vmatprep.subr.mxu0 0.0
        %3485 = vmatpush1.msra.mxu0 0.0
        %3486 = vmatprep.subr.mxu0 0.0
        %3487 = vmatpush1.msra.mxu0 0.0
        %3488 = vmatprep.subr.mxu0 0.0
        %3489 = vmatpush1.msra.mxu0 0.0
        %3490 = vmatprep.subr.mxu0 0.0
        %3491 = vmatpush1.msra.mxu0 0.0
        %3492 = vmatprep.subr.mxu0 0.0
        %3493 = vmatpush1.msra.mxu0 0.0
        %3494 = vmatprep.subr.mxu0 0.0
        %3495 = vmatpush1.msra.mxu0 0.0
        %3496 = vmatprep.subr.mxu0 0.0
        %3497 = vmatpush1.msra.mxu0 0.0
        %3498 = vmatprep.subr.mxu0 0.0
        %3499 = vmatpush1.msra.mxu0 0.0
        %3500 = vmatprep.subr.mxu0 0.0
        %3501 = vmatpush1.msra.mxu0 0.0
        %3502 = vmatprep.subr.mxu0 0.0
        %3503 = vmatpush1.msra.mxu0 0.0
        %3504 = vmatprep.subr.mxu0 0.0
        %3505 = vmatpush1.msra.mxu0 0.0
        %3506 = vmatprep.subr.mxu0 0.0
        %3507 = vmatpush1.msra.mxu0 0.0
        %3508 = vmatprep.subr.mxu0 0.0
        %3509 = vmatpush1.msra.mxu0 0.0
        %3510 = vmatprep.subr.mxu0 0.0
        %3511 = vmatpush1.msra.mxu0 0.0
        %3512 = vmatprep.subr.mxu0 0.0
        %3513 = vmatpush1.msra.mxu0 0.0
        %3514 = vmatprep.subr.mxu0 0.0
        %3515 = vmatpush1.msra.mxu0 0.0
        %3516 = vmatprep.subr.mxu0 0.0
        %3517 = vmatpush1.msra.mxu0 0.0
        %3518 = vmatprep.subr.mxu0 0.0
        %3519 = vmatpush1.msra.mxu0 0.0
        %3520 = vmatprep.subr.mxu0 0.0
        %3521 = vmatpush1.msra.mxu0 0.0
        %3522 = vmatprep.subr.mxu0 0.0
        %3523 = vmatpush1.msra.mxu0 0.0
        %3524 = vmatprep.subr.mxu0 0.0
        %3525 = vmatpush1.msra.mxu0 0.0
        %3526 = vmatprep.subr.mxu0 0.0
        %3527 = vmatpush1.msra.mxu0 0.0
        %3528 = vmatprep.subr.mxu0 0.0
        %3529 = vmatpush1.msra.mxu0 0.0
        %3530 = vmatprep.mubr.f32.mxu0 0.0
        %3531 = vmatmul.mubr.f32.gmra.mrb[0].mxu0 %v3377
        %v3532 = vpop.f32.mrb[0].mxu0
        %v3533 = vadd.f32 0.0, %v3532
        %v3534 = vpop.f32.mrb[0].mxu0
        %v3535 = vadd.f32 0.0, %v3534
        %3536 = vdwg.mxu0
        %3537 = vmatprep.subr.mxu0 %v3389
        %3538 = vmatpush1.msra.mxu0 %v3387
        %3539 = vmatprep.subr.mxu0 0.0
        %3540 = vmatpush1.msra.mxu0 0.0
        %3541 = vmatprep.subr.mxu0 0.0
        %3542 = vmatpush1.msra.mxu0 0.0
        %3543 = vmatprep.subr.mxu0 0.0
        %3544 = vmatpush1.msra.mxu0 0.0
        %3545 = vmatprep.subr.mxu0 0.0
        %3546 = vmatpush1.msra.mxu0 0.0
        %3547 = vmatprep.subr.mxu0 0.0
        %3548 = vmatpush1.msra.mxu0 0.0
        %3549 = vmatprep.subr.mxu0 0.0
        %3550 = vmatpush1.msra.mxu0 0.0
        %3551 = vmatprep.subr.mxu0 0.0
        %3552 = vmatpush1.msra.mxu0 0.0
        %3553 = vmatprep.subr.mxu0 0.0
        %3554 = vmatpush1.msra.mxu0 0.0
        %3555 = vmatprep.subr.mxu0 0.0
        %3556 = vmatpush1.msra.mxu0 0.0
        %3557 = vmatprep.subr.mxu0 0.0
        %3558 = vmatpush1.msra.mxu0 0.0
        %3559 = vmatprep.subr.mxu0 0.0
        %3560 = vmatpush1.msra.mxu0 0.0
        %3561 = vmatprep.subr.mxu0 0.0
        %3562 = vmatpush1.msra.mxu0 0.0
        %3563 = vmatprep.subr.mxu0 0.0
        %3564 = vmatpush1.msra.mxu0 0.0
        %3565 = vmatprep.subr.mxu0 0.0
        %3566 = vmatpush1.msra.mxu0 0.0
        %3567 = vmatprep.subr.mxu0 0.0
        %3568 = vmatpush1.msra.mxu0 0.0
        %3569 = vmatprep.subr.mxu0 0.0
        %3570 = vmatpush1.msra.mxu0 0.0
        %3571 = vmatprep.subr.mxu0 0.0
        %3572 = vmatpush1.msra.mxu0 0.0
        %3573 = vmatprep.subr.mxu0 0.0
        %3574 = vmatpush1.msra.mxu0 0.0
        %3575 = vmatprep.subr.mxu0 0.0
        %3576 = vmatpush1.msra.mxu0 0.0
        %3577 = vmatprep.subr.mxu0 0.0
        %3578 = vmatpush1.msra.mxu0 0.0
        %3579 = vmatprep.subr.mxu0 0.0
        %3580 = vmatpush1.msra.mxu0 0.0
        %3581 = vmatprep.subr.mxu0 0.0
        %3582 = vmatpush1.msra.mxu0 0.0
        %3583 = vmatprep.subr.mxu0 0.0
        %3584 = vmatpush1.msra.mxu0 0.0
        %3585 = vmatprep.subr.mxu0 0.0
        %3586 = vmatpush1.msra.mxu0 0.0
        %3587 = vmatprep.subr.mxu0 0.0
        %3588 = vmatpush1.msra.mxu0 0.0
        %3589 = vmatprep.subr.mxu0 0.0
        %3590 = vmatpush1.msra.mxu0 0.0
        %3591 = vmatprep.subr.mxu0 0.0
        %3592 = vmatpush1.msra.mxu0 0.0
        %3593 = vmatprep.subr.mxu0 0.0
        %3594 = vmatpush1.msra.mxu0 0.0
        %3595 = vmatprep.subr.mxu0 0.0
        %3596 = vmatpush1.msra.mxu0 0.0
        %3597 = vmatprep.subr.mxu0 0.0
        %3598 = vmatpush1.msra.mxu0 0.0
        %3599 = vmatprep.subr.mxu0 0.0
        %3600 = vmatpush1.msra.mxu0 0.0
        %3601 = vmatprep.mubr.f32.mxu0 0.0
        %3602 = vmatmul.mubr.f32.gmra.mrb[0].mxu0 %v3377
        %v3603 = vpop.f32.mrb[0].mxu0
        %v3604 = vadd.f32 0.0, %v3603
        %v3605 = vpop.f32.mrb[0].mxu0
        %v3606 = vadd.f32 0.0, %v3605
        %3607 = vdwg.mxu0
        %3608 = vmatprep.subr.mxu0 %v3393
        %3609 = vmatpush1.msra.mxu0 %v3391
        %3610 = vmatprep.subr.mxu0 0.0
        %3611 = vmatpush1.msra.mxu0 0.0
        %3612 = vmatprep.subr.mxu0 0.0
        %3613 = vmatpush1.msra.mxu0 0.0
        %3614 = vmatprep.subr.mxu0 0.0
        %3615 = vmatpush1.msra.mxu0 0.0
        %3616 = vmatprep.subr.mxu0 0.0
        %3617 = vmatpush1.msra.mxu0 0.0
        %3618 = vmatprep.subr.mxu0 0.0
        %3619 = vmatpush1.msra.mxu0 0.0
        %3620 = vmatprep.subr.mxu0 0.0
        %3621 = vmatpush1.msra.mxu0 0.0
        %3622 = vmatprep.subr.mxu0 0.0
        %3623 = vmatpush1.msra.mxu0 0.0
        %3624 = vmatprep.subr.mxu0 0.0
        %3625 = vmatpush1.msra.mxu0 0.0
        %3626 = vmatprep.subr.mxu0 0.0
        %3627 = vmatpush1.msra.mxu0 0.0
        %3628 = vmatprep.subr.mxu0 0.0
        %3629 = vmatpush1.msra.mxu0 0.0
        %3630 = vmatprep.subr.mxu0 0.0
        %3631 = vmatpush1.msra.mxu0 0.0
        %3632 = vmatprep.subr.mxu0 0.0
        %3633 = vmatpush1.msra.mxu0 0.0
        %3634 = vmatprep.subr.mxu0 0.0
        %3635 = vmatpush1.msra.mxu0 0.0
        %3636 = vmatprep.subr.mxu0 0.0
        %3637 = vmatpush1.msra.mxu0 0.0
        %3638 = vmatprep.subr.mxu0 0.0
        %3639 = vmatpush1.msra.mxu0 0.0
        %3640 = vmatprep.subr.mxu0 0.0
        %3641 = vmatpush1.msra.mxu0 0.0
        %3642 = vmatprep.subr.mxu0 0.0
        %3643 = vmatpush1.msra.mxu0 0.0
        %3644 = vmatprep.subr.mxu0 0.0
        %3645 = vmatpush1.msra.mxu0 0.0
        %3646 = vmatprep.subr.mxu0 0.0
        %3647 = vmatpush1.msra.mxu0 0.0
        %3648 = vmatprep.subr.mxu0 0.0
        %3649 = vmatpush1.msra.mxu0 0.0
        %3650 = vmatprep.subr.mxu0 0.0
        %3651 = vmatpush1.msra.mxu0 0.0
        %3652 = vmatprep.subr.mxu0 0.0
        %3653 = vmatpush1.msra.mxu0 0.0
        %3654 = vmatprep.subr.mxu0 0.0
        %3655 = vmatpush1.msra.mxu0 0.0
        %3656 = vmatprep.subr.mxu0 0.0
        %3657 = vmatpush1.msra.mxu0 0.0
        %3658 = vmatprep.subr.mxu0 0.0
        %3659 = vmatpush1.msra.mxu0 0.0
        %3660 = vmatprep.subr.mxu0 0.0
        %3661 = vmatpush1.msra.mxu0 0.0
        %3662 = vmatprep.subr.mxu0 0.0
        %3663 = vmatpush1.msra.mxu0 0.0
        %3664 = vmatprep.subr.mxu0 0.0
        %3665 = vmatpush1.msra.mxu0 0.0
        %3666 = vmatprep.subr.mxu0 0.0
        %3667 = vmatpush1.msra.mxu0 0.0
        %3668 = vmatprep.subr.mxu0 0.0
        %3669 = vmatpush1.msra.mxu0 0.0
        %3670 = vmatprep.subr.mxu0 0.0
        %3671 = vmatpush1.msra.mxu0 0.0
        %3672 = vmatprep.mubr.f32.mxu0 0.0
        %3673 = vmatmul.mubr.f32.gmra.mrb[0].mxu0 %v3377
        %v3674 = vpop.f32.mrb[0].mxu0
        %v3675 = vadd.f32 0.0, %v3674
        %v3676 = vpop.f32.mrb[0].mxu0
        %v3677 = vadd.f32 0.0, %v3676
        %3678 = vdwg.mxu0
        %3679 = vrot.lane.b32.xlu0 0.0, 1
        %v3680 = vpop.permute.xlu0 %3679
        %3681 = vrot.lane.b32.xlu0 %v423, 1
        %v3682 = vpop.permute.xlu0 %3681
        %v3683 = vsel %vm3367, %v3680, %v3682
        %v3684 = vsel %vm3367, %v3682, %v3350
        %v3686 = vsel %vm475, %v3346, 0
        %v3688 = vsel %vm479, %v3683, 0
        %v3690 = vsel %vm479, %v3684, 0
        %3692 = vmatprep.subr.mxu0 %v3690
        %3693 = vmatpush1.msra.mxu0 %v3688
        %3694 = vmatprep.subr.mxu0 0.0
        %3695 = vmatpush1.msra.mxu0 0.0
        %3696 = vmatprep.subr.mxu0 0.0
        %3697 = vmatpush1.msra.mxu0 0.0
        %3698 = vmatprep.subr.mxu0 0.0
        %3699 = vmatpush1.msra.mxu0 0.0
        %3700 = vmatprep.subr.mxu0 0.0
        %3701 = vmatpush1.msra.mxu0 0.0
        %3702 = vmatprep.subr.mxu0 0.0
        %3703 = vmatpush1.msra.mxu0 0.0
        %3704 = vmatprep.subr.mxu0 0.0
        %3705 = vmatpush1.msra.mxu0 0.0
        %3706 = vmatprep.subr.mxu0 0.0
        %3707 = vmatpush1.msra.mxu0 0.0
        %3708 = vmatprep.subr.mxu0 0.0
        %3709 = vmatpush1.msra.mxu0 0.0
        %3710 = vmatprep.subr.mxu0 0.0
        %3711 = vmatpush1.msra.mxu0 0.0
        %3712 = vmatprep.subr.mxu0 0.0
        %3713 = vmatpush1.msra.mxu0 0.0
        %3714 = vmatprep.subr.mxu0 0.0
        %3715 = vmatpush1.msra.mxu0 0.0
        %3716 = vmatprep.subr.mxu0 0.0
        %3717 = vmatpush1.msra.mxu0 0.0
        %3718 = vmatprep.subr.mxu0 0.0
        %3719 = vmatpush1.msra.mxu0 0.0
        %3720 = vmatprep.subr.mxu0 0.0
        %3721 = vmatpush1.msra.mxu0 0.0
        %3722 = vmatprep.subr.mxu0 0.0
        %3723 = vmatpush1.msra.mxu0 0.0
        %3724 = vmatprep.subr.mxu0 0.0
        %3725 = vmatpush1.msra.mxu0 0.0
        %3726 = vmatprep.subr.mxu0 0.0
        %3727 = vmatpush1.msra.mxu0 0.0
        %3728 = vmatprep.subr.mxu0 0.0
        %3729 = vmatpush1.msra.mxu0 0.0
        %3730 = vmatprep.subr.mxu0 0.0
        %3731 = vmatpush1.msra.mxu0 0.0
        %3732 = vmatprep.subr.mxu0 0.0
        %3733 = vmatpush1.msra.mxu0 0.0
        %3734 = vmatprep.subr.mxu0 0.0
        %3735 = vmatpush1.msra.mxu0 0.0
        %3736 = vmatprep.subr.mxu0 0.0
        %3737 = vmatpush1.msra.mxu0 0.0
        %3738 = vmatprep.subr.mxu0 0.0
        %3739 = vmatpush1.msra.mxu0 0.0
        %3740 = vmatprep.subr.mxu0 0.0
        %3741 = vmatpush1.msra.mxu0 0.0
        %3742 = vmatprep.subr.mxu0 0.0
        %3743 = vmatpush1.msra.mxu0 0.0
        %3744 = vmatprep.subr.mxu0 0.0
        %3745 = vmatpush1.msra.mxu0 0.0
        %3746 = vmatprep.subr.mxu0 0.0
        %3747 = vmatpush1.msra.mxu0 0.0
        %3748 = vmatprep.subr.mxu0 0.0
        %3749 = vmatpush1.msra.mxu0 0.0
        %3750 = vmatprep.subr.mxu0 0.0
        %3751 = vmatpush1.msra.mxu0 0.0
        %3752 = vmatprep.subr.mxu0 0.0
        %3753 = vmatpush1.msra.mxu0 0.0
        %3754 = vmatprep.subr.mxu0 0.0
        %3755 = vmatpush1.msra.mxu0 0.0
        %3756 = vmatprep.mubr.f32.mxu0 0.0
        %3757 = vmatmul.mubr.f32.gmra.mrb[0].mxu0 %v3686
        %v3758 = vpop.f32.mrb[0].mxu0
        %v3759 = vadd.f32 %v3462, %v3758
        %v3760 = vpop.f32.mrb[0].mxu0
        %v3761 = vadd.f32 %v3464, %v3760
        %3762 = vdwg.mxu0
        %3763 = vmatprep.subr.mxu0 %v3381
        %3764 = vmatpush1.msra.mxu0 %v3379
        %3765 = vmatprep.subr.mxu0 0.0
        %3766 = vmatpush1.msra.mxu0 0.0
        %3767 = vmatprep.subr.mxu0 0.0
        %3768 = vmatpush1.msra.mxu0 0.0
        %3769 = vmatprep.subr.mxu0 0.0
        %3770 = vmatpush1.msra.mxu0 0.0
        %3771 = vmatprep.subr.mxu0 0.0
        %3772 = vmatpush1.msra.mxu0 0.0
        %3773 = vmatprep.subr.mxu0 0.0
        %3774 = vmatpush1.msra.mxu0 0.0
        %3775 = vmatprep.subr.mxu0 0.0
        %3776 = vmatpush1.msra.mxu0 0.0
        %3777 = vmatprep.subr.mxu0 0.0
        %3778 = vmatpush1.msra.mxu0 0.0
        %3779 = vmatprep.subr.mxu0 0.0
        %3780 = vmatpush1.msra.mxu0 0.0
        %3781 = vmatprep.subr.mxu0 0.0
        %3782 = vmatpush1.msra.mxu0 0.0
        %3783 = vmatprep.subr.mxu0 0.0
        %3784 = vmatpush1.msra.mxu0 0.0
        %3785 = vmatprep.subr.mxu0 0.0
        %3786 = vmatpush1.msra.mxu0 0.0
        %3787 = vmatprep.subr.mxu0 0.0
        %3788 = vmatpush1.msra.mxu0 0.0
        %3789 = vmatprep.subr.mxu0 0.0
        %3790 = vmatpush1.msra.mxu0 0.0
        %3791 = vmatprep.subr.mxu0 0.0
        %3792 = vmatpush1.msra.mxu0 0.0
        %3793 = vmatprep.subr.mxu0 0.0
        %3794 = vmatpush1.msra.mxu0 0.0
        %3795 = vmatprep.subr.mxu0 0.0
        %3796 = vmatpush1.msra.mxu0 0.0
        %3797 = vmatprep.subr.mxu0 0.0
        %3798 = vmatpush1.msra.mxu0 0.0
        %3799 = vmatprep.subr.mxu0 0.0
        %3800 = vmatpush1.msra.mxu0 0.0
        %3801 = vmatprep.subr.mxu0 0.0
        %3802 = vmatpush1.msra.mxu0 0.0
        %3803 = vmatprep.subr.mxu0 0.0
        %3804 = vmatpush1.msra.mxu0 0.0
        %3805 = vmatprep.subr.mxu0 0.0
        %3806 = vmatpush1.msra.mxu0 0.0
        %3807 = vmatprep.subr.mxu0 0.0
        %3808 = vmatpush1.msra.mxu0 0.0
        %3809 = vmatprep.subr.mxu0 0.0
        %3810 = vmatpush1.msra.mxu0 0.0
        %3811 = vmatprep.subr.mxu0 0.0
        %3812 = vmatpush1.msra.mxu0 0.0
        %3813 = vmatprep.subr.mxu0 0.0
        %3814 = vmatpush1.msra.mxu0 0.0
        %3815 = vmatprep.subr.mxu0 0.0
        %3816 = vmatpush1.msra.mxu0 0.0
        %3817 = vmatprep.subr.mxu0 0.0
        %3818 = vmatpush1.msra.mxu0 0.0
        %3819 = vmatprep.subr.mxu0 0.0
        %3820 = vmatpush1.msra.mxu0 0.0
        %3821 = vmatprep.subr.mxu0 0.0
        %3822 = vmatpush1.msra.mxu0 0.0
        %3823 = vmatprep.subr.mxu0 0.0
        %3824 = vmatpush1.msra.mxu0 0.0
        %3825 = vmatprep.subr.mxu0 0.0
        %3826 = vmatpush1.msra.mxu0 0.0
        %3827 = vmatprep.mubr.f32.mxu0 0.0
        %3828 = vmatmul.mubr.f32.gmra.mrb[0].mxu0 %v3686
        %v3829 = vpop.f32.mrb[0].mxu0
        %v3830 = vadd.f32 %v3533, %v3829
        %v3831 = vpop.f32.mrb[0].mxu0
        %v3832 = vadd.f32 %v3535, %v3831
        %3833 = vdwg.mxu0
        %3834 = vmatprep.subr.mxu0 %v3385
        %3835 = vmatpush1.msra.mxu0 %v3383
        %3836 = vmatprep.subr.mxu0 0.0
        %3837 = vmatpush1.msra.mxu0 0.0
        %3838 = vmatprep.subr.mxu0 0.0
        %3839 = vmatpush1.msra.mxu0 0.0
        %3840 = vmatprep.subr.mxu0 0.0
        %3841 = vmatpush1.msra.mxu0 0.0
        %3842 = vmatprep.subr.mxu0 0.0
        %3843 = vmatpush1.msra.mxu0 0.0
        %3844 = vmatprep.subr.mxu0 0.0
        %3845 = vmatpush1.msra.mxu0 0.0
        %3846 = vmatprep.subr.mxu0 0.0
        %3847 = vmatpush1.msra.mxu0 0.0
        %3848 = vmatprep.subr.mxu0 0.0
        %3849 = vmatpush1.msra.mxu0 0.0
        %3850 = vmatprep.subr.mxu0 0.0
        %3851 = vmatpush1.msra.mxu0 0.0
        %3852 = vmatprep.subr.mxu0 0.0
        %3853 = vmatpush1.msra.mxu0 0.0
        %3854 = vmatprep.subr.mxu0 0.0
        %3855 = vmatpush1.msra.mxu0 0.0
        %3856 = vmatprep.subr.mxu0 0.0
        %3857 = vmatpush1.msra.mxu0 0.0
        %3858 = vmatprep.subr.mxu0 0.0
        %3859 = vmatpush1.msra.mxu0 0.0
        %3860 = vmatprep.subr.mxu0 0.0
        %3861 = vmatpush1.msra.mxu0 0.0
        %3862 = vmatprep.subr.mxu0 0.0
        %3863 = vmatpush1.msra.mxu0 0.0
        %3864 = vmatprep.subr.mxu0 0.0
        %3865 = vmatpush1.msra.mxu0 0.0
        %3866 = vmatprep.subr.mxu0 0.0
        %3867 = vmatpush1.msra.mxu0 0.0
        %3868 = vmatprep.subr.mxu0 0.0
        %3869 = vmatpush1.msra.mxu0 0.0
        %3870 = vmatprep.subr.mxu0 0.0
        %3871 = vmatpush1.msra.mxu0 0.0
        %3872 = vmatprep.subr.mxu0 0.0
        %3873 = vmatpush1.msra.mxu0 0.0
        %3874 = vmatprep.subr.mxu0 0.0
        %3875 = vmatpush1.msra.mxu0 0.0
        %3876 = vmatprep.subr.mxu0 0.0
        %3877 = vmatpush1.msra.mxu0 0.0
        %3878 = vmatprep.subr.mxu0 0.0
        %3879 = vmatpush1.msra.mxu0 0.0
        %3880 = vmatprep.subr.mxu0 0.0
        %3881 = vmatpush1.msra.mxu0 0.0
        %3882 = vmatprep.subr.mxu0 0.0
        %3883 = vmatpush1.msra.mxu0 0.0
        %3884 = vmatprep.subr.mxu0 0.0
        %3885 = vmatpush1.msra.mxu0 0.0
        %3886 = vmatprep.subr.mxu0 0.0
        %3887 = vmatpush1.msra.mxu0 0.0
        %3888 = vmatprep.subr.mxu0 0.0
        %3889 = vmatpush1.msra.mxu0 0.0
        %3890 = vmatprep.subr.mxu0 0.0
        %3891 = vmatpush1.msra.mxu0 0.0
        %3892 = vmatprep.subr.mxu0 0.0
        %3893 = vmatpush1.msra.mxu0 0.0
        %3894 = vmatprep.subr.mxu0 0.0
        %3895 = vmatpush1.msra.mxu0 0.0
        %3896 = vmatprep.subr.mxu0 0.0
        %3897 = vmatpush1.msra.mxu0 0.0
        %3898 = vmatprep.mubr.f32.mxu0 0.0
        %3899 = vmatmul.mubr.f32.gmra.mrb[0].mxu0 %v3686
        %v3900 = vpop.f32.mrb[0].mxu0
        %v3901 = vadd.f32 %v3604, %v3900
        %v3902 = vpop.f32.mrb[0].mxu0
        %v3903 = vadd.f32 %v3606, %v3902
        %3904 = vdwg.mxu0
        %3905 = vmatprep.subr.mxu0 %v3389
        %3906 = vmatpush1.msra.mxu0 %v3387
        %3907 = vmatprep.subr.mxu0 0.0
        %3908 = vmatpush1.msra.mxu0 0.0
        %3909 = vmatprep.subr.mxu0 0.0
        %3910 = vmatpush1.msra.mxu0 0.0
        %3911 = vmatprep.subr.mxu0 0.0
        %3912 = vmatpush1.msra.mxu0 0.0
        %3913 = vmatprep.subr.mxu0 0.0
        %3914 = vmatpush1.msra.mxu0 0.0
        %3915 = vmatprep.subr.mxu0 0.0
        %3916 = vmatpush1.msra.mxu0 0.0
        %3917 = vmatprep.subr.mxu0 0.0
        %3918 = vmatpush1.msra.mxu0 0.0
        %3919 = vmatprep.subr.mxu0 0.0
        %3920 = vmatpush1.msra.mxu0 0.0
        %3921 = vmatprep.subr.mxu0 0.0
        %3922 = vmatpush1.msra.mxu0 0.0
        %3923 = vmatprep.subr.mxu0 0.0
        %3924 = vmatpush1.msra.mxu0 0.0
        %3925 = vmatprep.subr.mxu0 0.0
        %3926 = vmatpush1.msra.mxu0 0.0
        %3927 = vmatprep.subr.mxu0 0.0
        %3928 = vmatpush1.msra.mxu0 0.0
        %3929 = vmatprep.subr.mxu0 0.0
        %3930 = vmatpush1.msra.mxu0 0.0
        %3931 = vmatprep.subr.mxu0 0.0
        %3932 = vmatpush1.msra.mxu0 0.0
        %3933 = vmatprep.subr.mxu0 0.0
        %3934 = vmatpush1.msra.mxu0 0.0
        %3935 = vmatprep.subr.mxu0 0.0
        %3936 = vmatpush1.msra.mxu0 0.0
        %3937 = vmatprep.subr.mxu0 0.0
        %3938 = vmatpush1.msra.mxu0 0.0
        %3939 = vmatprep.subr.mxu0 0.0
        %3940 = vmatpush1.msra.mxu0 0.0
        %3941 = vmatprep.subr.mxu0 0.0
        %3942 = vmatpush1.msra.mxu0 0.0
        %3943 = vmatprep.subr.mxu0 0.0
        %3944 = vmatpush1.msra.mxu0 0.0
        %3945 = vmatprep.subr.mxu0 0.0
        %3946 = vmatpush1.msra.mxu0 0.0
        %3947 = vmatprep.subr.mxu0 0.0
        %3948 = vmatpush1.msra.mxu0 0.0
        %3949 = vmatprep.subr.mxu0 0.0
        %3950 = vmatpush1.msra.mxu0 0.0
        %3951 = vmatprep.subr.mxu0 0.0
        %3952 = vmatpush1.msra.mxu0 0.0
        %3953 = vmatprep.subr.mxu0 0.0
        %3954 = vmatpush1.msra.mxu0 0.0
        %3955 = vmatprep.subr.mxu0 0.0
        %3956 = vmatpush1.msra.mxu0 0.0
        %3957 = vmatprep.subr.mxu0 0.0
        %3958 = vmatpush1.msra.mxu0 0.0
        %3959 = vmatprep.subr.mxu0 0.0
        %3960 = vmatpush1.msra.mxu0 0.0
        %3961 = vmatprep.subr.mxu0 0.0
        %3962 = vmatpush1.msra.mxu0 0.0
        %3963 = vmatprep.subr.mxu0 0.0
        %3964 = vmatpush1.msra.mxu0 0.0
        %3965 = vmatprep.subr.mxu0 0.0
        %3966 = vmatpush1.msra.mxu0 0.0
        %3967 = vmatprep.subr.mxu0 0.0
        %3968 = vmatpush1.msra.mxu0 0.0
        %3969 = vmatprep.mubr.f32.mxu0 0.0
        %3970 = vmatmul.mubr.f32.gmra.mrb[0].mxu0 %v3686
        %v3971 = vpop.f32.mrb[0].mxu0
        %v3972 = vadd.f32 %v3675, %v3971
        %v3973 = vpop.f32.mrb[0].mxu0
        %v3974 = vadd.f32 %v3677, %v3973
        %3975 = vdwg.mxu0
        %s3976 = scalar_lea.vmem %s3, 84
        %v3977 = vld [vmem:[%s3976] sm:$0x7]
        %3978 = vrot.lane.b32.xlu0 %v428, 1
        %v3979 = vpop.permute.xlu0 %3978
        %3980 = vrot.lane.b32.xlu0 %v440, 1
        %v3981 = vpop.permute.xlu0 %3980
        %v3982 = vsel %vm3367, %v3366, %v3979
        %v3983 = vsel %vm3367, %v3979, %v3981
        %v3985 = vsel %vm475, %v3977, 0
        %v3987 = vsel %vm479, %v3982, 0
        %v3989 = vsel %vm479, %v3983, 0
        %3991 = vmatprep.subr.mxu0 %v3385
        %3992 = vmatpush1.msra.mxu0 %v3383
        %3993 = vmatprep.subr.mxu0 0.0
        %3994 = vmatpush1.msra.mxu0 0.0
        %3995 = vmatprep.subr.mxu0 0.0
        %3996 = vmatpush1.msra.mxu0 0.0
        %3997 = vmatprep.subr.mxu0 0.0
        %3998 = vmatpush1.msra.mxu0 0.0
        %3999 = vmatprep.subr.mxu0 0.0
        %4000 = vmatpush1.msra.mxu0 0.0
        %4001 = vmatprep.subr.mxu0 0.0
        %4002 = vmatpush1.msra.mxu0 0.0
        %4003 = vmatprep.subr.mxu0 0.0
        %4004 = vmatpush1.msra.mxu0 0.0
        %4005 = vmatprep.subr.mxu0 0.0
        %4006 = vmatpush1.msra.mxu0 0.0
        %4007 = vmatprep.subr.mxu0 0.0
        %4008 = vmatpush1.msra.mxu0 0.0
        %4009 = vmatprep.subr.mxu0 0.0
        %4010 = vmatpush1.msra.mxu0 0.0
        %4011 = vmatprep.subr.mxu0 0.0
        %4012 = vmatpush1.msra.mxu0 0.0
        %4013 = vmatprep.subr.mxu0 0.0
        %4014 = vmatpush1.msra.mxu0 0.0
        %4015 = vmatprep.subr.mxu0 0.0
        %4016 = vmatpush1.msra.mxu0 0.0
        %4017 = vmatprep.subr.mxu0 0.0
        %4018 = vmatpush1.msra.mxu0 0.0
        %4019 = vmatprep.subr.mxu0 0.0
        %4020 = vmatpush1.msra.mxu0 0.0
        %4021 = vmatprep.subr.mxu0 0.0
        %4022 = vmatpush1.msra.mxu0 0.0
        %4023 = vmatprep.subr.mxu0 0.0
        %4024 = vmatpush1.msra.mxu0 0.0
        %4025 = vmatprep.subr.mxu0 0.0
        %4026 = vmatpush1.msra.mxu0 0.0
        %4027 = vmatprep.subr.mxu0 0.0
        %4028 = vmatpush1.msra.mxu0 0.0
        %4029 = vmatprep.subr.mxu0 0.0
        %4030 = vmatpush1.msra.mxu0 0.0
        %4031 = vmatprep.subr.mxu0 0.0
        %4032 = vmatpush1.msra.mxu0 0.0
        %4033 = vmatprep.subr.mxu0 0.0
        %4034 = vmatpush1.msra.mxu0 0.0
        %4035 = vmatprep.subr.mxu0 0.0
        %4036 = vmatpush1.msra.mxu0 0.0
        %4037 = vmatprep.subr.mxu0 0.0
        %4038 = vmatpush1.msra.mxu0 0.0
        %4039 = vmatprep.subr.mxu0 0.0
        %4040 = vmatpush1.msra.mxu0 0.0
        %4041 = vmatprep.subr.mxu0 0.0
        %4042 = vmatpush1.msra.mxu0 0.0
        %4043 = vmatprep.subr.mxu0 0.0
        %4044 = vmatpush1.msra.mxu0 0.0
        %4045 = vmatprep.subr.mxu0 0.0
        %4046 = vmatpush1.msra.mxu0 0.0
        %4047 = vmatprep.subr.mxu0 0.0
        %4048 = vmatpush1.msra.mxu0 0.0
        %4049 = vmatprep.subr.mxu0 0.0
        %4050 = vmatpush1.msra.mxu0 0.0
        %4051 = vmatprep.subr.mxu0 0.0
        %4052 = vmatpush1.msra.mxu0 0.0
        %4053 = vmatprep.subr.mxu0 0.0
        %4054 = vmatpush1.msra.mxu0 0.0
        %4055 = vmatprep.mubr.f32.mxu0 0.0
        %4056 = vmatmul.mubr.f32.gmra.mrb[0].mxu0 %v3985
        %v4057 = vpop.f32.mrb[0].mxu0
        %v4058 = vadd.f32 0.0, %v4057
        %v4059 = vpop.f32.mrb[0].mxu0
        %v4060 = vadd.f32 0.0, %v4059
        %4061 = vdwg.mxu0
        %4062 = vmatprep.subr.mxu0 %v3389
        %4063 = vmatpush1.msra.mxu0 %v3387
        %4064 = vmatprep.subr.mxu0 0.0
        %4065 = vmatpush1.msra.mxu0 0.0
        %4066 = vmatprep.subr.mxu0 0.0
        %4067 = vmatpush1.msra.mxu0 0.0
        %4068 = vmatprep.subr.mxu0 0.0
        %4069 = vmatpush1.msra.mxu0 0.0
        %4070 = vmatprep.subr.mxu0 0.0
        %4071 = vmatpush1.msra.mxu0 0.0
        %4072 = vmatprep.subr.mxu0 0.0
        %4073 = vmatpush1.msra.mxu0 0.0
        %4074 = vmatprep.subr.mxu0 0.0
        %4075 = vmatpush1.msra.mxu0 0.0
        %4076 = vmatprep.subr.mxu0 0.0
        %4077 = vmatpush1.msra.mxu0 0.0
        %4078 = vmatprep.subr.mxu0 0.0
        %4079 = vmatpush1.msra.mxu0 0.0
        %4080 = vmatprep.subr.mxu0 0.0
        %4081 = vmatpush1.msra.mxu0 0.0
        %4082 = vmatprep.subr.mxu0 0.0
        %4083 = vmatpush1.msra.mxu0 0.0
        %4084 = vmatprep.subr.mxu0 0.0
        %4085 = vmatpush1.msra.mxu0 0.0
        %4086 = vmatprep.subr.mxu0 0.0
        %4087 = vmatpush1.msra.mxu0 0.0
        %4088 = vmatprep.subr.mxu0 0.0
        %4089 = vmatpush1.msra.mxu0 0.0
        %4090 = vmatprep.subr.mxu0 0.0
        %4091 = vmatpush1.msra.mxu0 0.0
        %4092 = vmatprep.subr.mxu0 0.0
        %4093 = vmatpush1.msra.mxu0 0.0
        %4094 = vmatprep.subr.mxu0 0.0
        %4095 = vmatpush1.msra.mxu0 0.0
        %4096 = vmatprep.subr.mxu0 0.0
        %4097 = vmatpush1.msra.mxu0 0.0
        %4098 = vmatprep.subr.mxu0 0.0
        %4099 = vmatpush1.msra.mxu0 0.0
        %4100 = vmatprep.subr.mxu0 0.0
        %4101 = vmatpush1.msra.mxu0 0.0
        %4102 = vmatprep.subr.mxu0 0.0
        %4103 = vmatpush1.msra.mxu0 0.0
        %4104 = vmatprep.subr.mxu0 0.0
        %4105 = vmatpush1.msra.mxu0 0.0
        %4106 = vmatprep.subr.mxu0 0.0
        %4107 = vmatpush1.msra.mxu0 0.0
        %4108 = vmatprep.subr.mxu0 0.0
        %4109 = vmatpush1.msra.mxu0 0.0
        %4110 = vmatprep.subr.mxu0 0.0
        %4111 = vmatpush1.msra.mxu0 0.0
        %4112 = vmatprep.subr.mxu0 0.0
        %4113 = vmatpush1.msra.mxu0 0.0
        %4114 = vmatprep.subr.mxu0 0.0
        %4115 = vmatpush1.msra.mxu0 0.0
        %4116 = vmatprep.subr.mxu0 0.0
        %4117 = vmatpush1.msra.mxu0 0.0
        %4118 = vmatprep.subr.mxu0 0.0
        %4119 = vmatpush1.msra.mxu0 0.0
        %4120 = vmatprep.subr.mxu0 0.0
        %4121 = vmatpush1.msra.mxu0 0.0
        %4122 = vmatprep.subr.mxu0 0.0
        %4123 = vmatpush1.msra.mxu0 0.0
        %4124 = vmatprep.subr.mxu0 0.0
        %4125 = vmatpush1.msra.mxu0 0.0
        %4126 = vmatprep.mubr.f32.mxu0 0.0
        %4127 = vmatmul.mubr.f32.gmra.mrb[0].mxu0 %v3985
        %v4128 = vpop.f32.mrb[0].mxu0
        %v4129 = vadd.f32 0.0, %v4128
        %v4130 = vpop.f32.mrb[0].mxu0
        %v4131 = vadd.f32 0.0, %v4130
        %4132 = vdwg.mxu0
        %4133 = vmatprep.subr.mxu0 %v3393
        %4134 = vmatpush1.msra.mxu0 %v3391
        %4135 = vmatprep.subr.mxu0 0.0
        %4136 = vmatpush1.msra.mxu0 0.0
        %4137 = vmatprep.subr.mxu0 0.0
        %4138 = vmatpush1.msra.mxu0 0.0
        %4139 = vmatprep.subr.mxu0 0.0
        %4140 = vmatpush1.msra.mxu0 0.0
        %4141 = vmatprep.subr.mxu0 0.0
        %4142 = vmatpush1.msra.mxu0 0.0
        %4143 = vmatprep.subr.mxu0 0.0
        %4144 = vmatpush1.msra.mxu0 0.0
        %4145 = vmatprep.subr.mxu0 0.0
        %4146 = vmatpush1.msra.mxu0 0.0
        %4147 = vmatprep.subr.mxu0 0.0
        %4148 = vmatpush1.msra.mxu0 0.0
        %4149 = vmatprep.subr.mxu0 0.0
        %4150 = vmatpush1.msra.mxu0 0.0
        %4151 = vmatprep.subr.mxu0 0.0
        %4152 = vmatpush1.msra.mxu0 0.0
        %4153 = vmatprep.subr.mxu0 0.0
        %4154 = vmatpush1.msra.mxu0 0.0
        %4155 = vmatprep.subr.mxu0 0.0
        %4156 = vmatpush1.msra.mxu0 0.0
        %4157 = vmatprep.subr.mxu0 0.0
        %4158 = vmatpush1.msra.mxu0 0.0
        %4159 = vmatprep.subr.mxu0 0.0
        %4160 = vmatpush1.msra.mxu0 0.0
        %4161 = vmatprep.subr.mxu0 0.0
        %4162 = vmatpush1.msra.mxu0 0.0
        %4163 = vmatprep.subr.mxu0 0.0
        %4164 = vmatpush1.msra.mxu0 0.0
        %4165 = vmatprep.subr.mxu0 0.0
        %4166 = vmatpush1.msra.mxu0 0.0
        %4167 = vmatprep.subr.mxu0 0.0
        %4168 = vmatpush1.msra.mxu0 0.0
        %4169 = vmatprep.subr.mxu0 0.0
        %4170 = vmatpush1.msra.mxu0 0.0
        %4171 = vmatprep.subr.mxu0 0.0
        %4172 = vmatpush1.msra.mxu0 0.0
        %4173 = vmatprep.subr.mxu0 0.0
        %4174 = vmatpush1.msra.mxu0 0.0
        %4175 = vmatprep.subr.mxu0 0.0
        %4176 = vmatpush1.msra.mxu0 0.0
        %4177 = vmatprep.subr.mxu0 0.0
        %4178 = vmatpush1.msra.mxu0 0.0
        %4179 = vmatprep.subr.mxu0 0.0
        %4180 = vmatpush1.msra.mxu0 0.0
        %4181 = vmatprep.subr.mxu0 0.0
        %4182 = vmatpush1.msra.mxu0 0.0
        %4183 = vmatprep.subr.mxu0 0.0
        %4184 = vmatpush1.msra.mxu0 0.0
        %4185 = vmatprep.subr.mxu0 0.0
        %4186 = vmatpush1.msra.mxu0 0.0
        %4187 = vmatprep.subr.mxu0 0.0
        %4188 = vmatpush1.msra.mxu0 0.0
        %4189 = vmatprep.subr.mxu0 0.0
        %4190 = vmatpush1.msra.mxu0 0.0
        %4191 = vmatprep.subr.mxu0 0.0
        %4192 = vmatpush1.msra.mxu0 0.0
        %4193 = vmatprep.subr.mxu0 0.0
        %4194 = vmatpush1.msra.mxu0 0.0
        %4195 = vmatprep.subr.mxu0 0.0
        %4196 = vmatpush1.msra.mxu0 0.0
        %4197 = vmatprep.mubr.f32.mxu0 0.0
        %4198 = vmatmul.mubr.f32.gmra.mrb[0].mxu0 %v3985
        %v4199 = vpop.f32.mrb[0].mxu0
        %v4200 = vadd.f32 0.0, %v4199
        %v4201 = vpop.f32.mrb[0].mxu0
        %v4202 = vadd.f32 0.0, %v4201
        %4203 = vdwg.mxu0
        %4204 = vmatprep.subr.mxu0 %v3989
        %4205 = vmatpush1.msra.mxu0 %v3987
        %4206 = vmatprep.subr.mxu0 0.0
        %4207 = vmatpush1.msra.mxu0 0.0
        %4208 = vmatprep.subr.mxu0 0.0
        %4209 = vmatpush1.msra.mxu0 0.0
        %4210 = vmatprep.subr.mxu0 0.0
        %4211 = vmatpush1.msra.mxu0 0.0
        %4212 = vmatprep.subr.mxu0 0.0
        %4213 = vmatpush1.msra.mxu0 0.0
        %4214 = vmatprep.subr.mxu0 0.0
        %4215 = vmatpush1.msra.mxu0 0.0
        %4216 = vmatprep.subr.mxu0 0.0
        %4217 = vmatpush1.msra.mxu0 0.0
        %4218 = vmatprep.subr.mxu0 0.0
        %4219 = vmatpush1.msra.mxu0 0.0
        %4220 = vmatprep.subr.mxu0 0.0
        %4221 = vmatpush1.msra.mxu0 0.0
        %4222 = vmatprep.subr.mxu0 0.0
        %4223 = vmatpush1.msra.mxu0 0.0
        %4224 = vmatprep.subr.mxu0 0.0
        %4225 = vmatpush1.msra.mxu0 0.0
        %4226 = vmatprep.subr.mxu0 0.0
        %4227 = vmatpush1.msra.mxu0 0.0
        %4228 = vmatprep.subr.mxu0 0.0
        %4229 = vmatpush1.msra.mxu0 0.0
        %4230 = vmatprep.subr.mxu0 0.0
        %4231 = vmatpush1.msra.mxu0 0.0
        %4232 = vmatprep.subr.mxu0 0.0
        %4233 = vmatpush1.msra.mxu0 0.0
        %4234 = vmatprep.subr.mxu0 0.0
        %4235 = vmatpush1.msra.mxu0 0.0
        %4236 = vmatprep.subr.mxu0 0.0
        %4237 = vmatpush1.msra.mxu0 0.0
        %4238 = vmatprep.subr.mxu0 0.0
        %4239 = vmatpush1.msra.mxu0 0.0
        %4240 = vmatprep.subr.mxu0 0.0
        %4241 = vmatpush1.msra.mxu0 0.0
        %4242 = vmatprep.subr.mxu0 0.0
        %4243 = vmatpush1.msra.mxu0 0.0
        %4244 = vmatprep.subr.mxu0 0.0
        %4245 = vmatpush1.msra.mxu0 0.0
        %4246 = vmatprep.subr.mxu0 0.0
        %4247 = vmatpush1.msra.mxu0 0.0
        %4248 = vmatprep.subr.mxu0 0.0
        %4249 = vmatpush1.msra.mxu0 0.0
        %4250 = vmatprep.subr.mxu0 0.0
        %4251 = vmatpush1.msra.mxu0 0.0
        %4252 = vmatprep.subr.mxu0 0.0
        %4253 = vmatpush1.msra.mxu0 0.0
        %4254 = vmatprep.subr.mxu0 0.0
        %4255 = vmatpush1.msra.mxu0 0.0
        %4256 = vmatprep.subr.mxu0 0.0
        %4257 = vmatpush1.msra.mxu0 0.0
        %4258 = vmatprep.subr.mxu0 0.0
        %4259 = vmatpush1.msra.mxu0 0.0
        %4260 = vmatprep.subr.mxu0 0.0
        %4261 = vmatpush1.msra.mxu0 0.0
        %4262 = vmatprep.subr.mxu0 0.0
        %4263 = vmatpush1.msra.mxu0 0.0
        %4264 = vmatprep.subr.mxu0 0.0
        %4265 = vmatpush1.msra.mxu0 0.0
        %4266 = vmatprep.subr.mxu0 0.0
        %4267 = vmatpush1.msra.mxu0 0.0
        %4268 = vmatprep.mubr.f32.mxu0 0.0
        %4269 = vmatmul.mubr.f32.gmra.mrb[0].mxu0 %v3985
        %v4270 = vpop.f32.mrb[0].mxu0
        %v4271 = vadd.f32 0.0, %v4270
        %v4272 = vpop.f32.mrb[0].mxu0
        %v4273 = vadd.f32 0.0, %v4272
        %4274 = vdwg.mxu0
        %v4275 = vadd.f32 %v3759, %v4058
        %v4276 = vadd.f32 %v3761, %v4060
        %v4277 = vadd.f32 %v3830, %v4129
        %v4278 = vadd.f32 %v3832, %v4131
        %v4279 = vadd.f32 %v3901, %v4200
        %v4280 = vadd.f32 %v3903, %v4202
        %v4281 = vadd.f32 %v3972, %v4271
        %v4282 = vadd.f32 %v3974, %v4273
        %v4283 = vlaneseq
        %v4284 = vshrl.u32 %v4283, 7
        %v4285 = vsub.s32 2, %v4284
        %v4286 = vrot.slane %v441, %v4285
        %v4287 = vlaneseq
        %v4288 = vshrl.u32 %v4287, 7
        %v4289 = vsub.s32 2, %v4288
        %v4290 = vrot.slane %v443, %v4289
        %v4291 = vmul.f32 %v4275, %v4286
        %v4292 = vmul.f32 %v4276, %v4290
        %v4293 = vmul.f32 %v4277, %v4286
        %v4294 = vmul.f32 %v4278, %v4290
        %v4295 = vmul.f32 %v4279, %v4286
        %v4296 = vmul.f32 %v4280, %v4290
        %v4297 = vmul.f32 %v4281, %v4286
        %v4298 = vmul.f32 %v4282, %v4290
        %v4299 = vadd.f32 %v3337, %v4291
        %v4300 = vadd.f32 %v3338, %v4292
        %v4301 = vadd.f32 %v3339, %v4293
        %v4302 = vadd.f32 %v3340, %v4294
        %v4303 = vadd.f32 %v3341, %v4295
        %v4304 = vadd.f32 %v3342, %v4296
        %v4305 = vadd.f32 %v3343, %v4297
        %v4306 = vadd.f32 %v3344, %v4298
        %s4307 = scalar_lea.vmem %s3, 16
        %v4308 = vld [vmem:[%s4307] sm:$0x7]
        %s4309 = scalar_lea.vmem %s3, 52
        %v4310 = vld [vmem:[%s4309] sm:$0x7]
        %v4312 = vsel %vm475, %v4310, 0
        %v4314 = vsel %vm479, %v413, 0
        %v4316 = vsel %vm479, %v435, 0
        %v4318 = vsel %vm479, %v414, 0
        %v4320 = vsel %vm479, %v436, 0
        %v4322 = vsel %vm479, %v415, 0
        %v4324 = vsel %vm479, %v437, 0
        %v4326 = vsel %vm479, %v416, 0
        %v4328 = vsel %vm479, %v438, 0
        %4330 = vmatprep.subr.mxu0 %v4316
        %4331 = vmatpush1.msra.mxu0 %v4314
        %4332 = vmatprep.subr.mxu0 0.0
        %4333 = vmatpush1.msra.mxu0 0.0
        %4334 = vmatprep.subr.mxu0 0.0
        %4335 = vmatpush1.msra.mxu0 0.0
        %4336 = vmatprep.subr.mxu0 0.0
        %4337 = vmatpush1.msra.mxu0 0.0
        %4338 = vmatprep.subr.mxu0 0.0
        %4339 = vmatpush1.msra.mxu0 0.0
        %4340 = vmatprep.subr.mxu0 0.0
        %4341 = vmatpush1.msra.mxu0 0.0
        %4342 = vmatprep.subr.mxu0 0.0
        %4343 = vmatpush1.msra.mxu0 0.0
        %4344 = vmatprep.subr.mxu0 0.0
        %4345 = vmatpush1.msra.mxu0 0.0
        %4346 = vmatprep.subr.mxu0 0.0
        %4347 = vmatpush1.msra.mxu0 0.0
        %4348 = vmatprep.subr.mxu0 0.0
        %4349 = vmatpush1.msra.mxu0 0.0
        %4350 = vmatprep.subr.mxu0 0.0
        %4351 = vmatpush1.msra.mxu0 0.0
        %4352 = vmatprep.subr.mxu0 0.0
        %4353 = vmatpush1.msra.mxu0 0.0
        %4354 = vmatprep.subr.mxu0 0.0
        %4355 = vmatpush1.msra.mxu0 0.0
        %4356 = vmatprep.subr.mxu0 0.0
        %4357 = vmatpush1.msra.mxu0 0.0
        %4358 = vmatprep.subr.mxu0 0.0
        %4359 = vmatpush1.msra.mxu0 0.0
        %4360 = vmatprep.subr.mxu0 0.0
        %4361 = vmatpush1.msra.mxu0 0.0
        %4362 = vmatprep.subr.mxu0 0.0
        %4363 = vmatpush1.msra.mxu0 0.0
        %4364 = vmatprep.subr.mxu0 0.0
        %4365 = vmatpush1.msra.mxu0 0.0
        %4366 = vmatprep.subr.mxu0 0.0
        %4367 = vmatpush1.msra.mxu0 0.0
        %4368 = vmatprep.subr.mxu0 0.0
        %4369 = vmatpush1.msra.mxu0 0.0
        %4370 = vmatprep.subr.mxu0 0.0
        %4371 = vmatpush1.msra.mxu0 0.0
        %4372 = vmatprep.subr.mxu0 0.0
        %4373 = vmatpush1.msra.mxu0 0.0
        %4374 = vmatprep.subr.mxu0 0.0
        %4375 = vmatpush1.msra.mxu0 0.0
        %4376 = vmatprep.subr.mxu0 0.0
        %4377 = vmatpush1.msra.mxu0 0.0
        %4378 = vmatprep.subr.mxu0 0.0
        %4379 = vmatpush1.msra.mxu0 0.0
        %4380 = vmatprep.subr.mxu0 0.0
        %4381 = vmatpush1.msra.mxu0 0.0
        %4382 = vmatprep.subr.mxu0 0.0
        %4383 = vmatpush1.msra.mxu0 0.0
        %4384 = vmatprep.subr.mxu0 0.0
        %4385 = vmatpush1.msra.mxu0 0.0
        %4386 = vmatprep.subr.mxu0 0.0
        %4387 = vmatpush1.msra.mxu0 0.0
        %4388 = vmatprep.subr.mxu0 0.0
        %4389 = vmatpush1.msra.mxu0 0.0
        %4390 = vmatprep.subr.mxu0 0.0
        %4391 = vmatpush1.msra.mxu0 0.0
        %4392 = vmatprep.subr.mxu0 0.0
        %4393 = vmatpush1.msra.mxu0 0.0
        %4394 = vmatprep.mubr.f32.mxu0 0.0
        %4395 = vmatmul.mubr.f32.gmra.mrb[0].mxu0 %v4312
        %v4396 = vpop.f32.mrb[0].mxu0
        %v4397 = vadd.f32 0.0, %v4396
        %v4398 = vpop.f32.mrb[0].mxu0
        %v4399 = vadd.f32 0.0, %v4398
        %4400 = vdwg.mxu0
        %4401 = vmatprep.subr.mxu0 %v4320
        %4402 = vmatpush1.msra.mxu0 %v4318
        %4403 = vmatprep.subr.mxu0 0.0
        %4404 = vmatpush1.msra.mxu0 0.0
        %4405 = vmatprep.subr.mxu0 0.0
        %4406 = vmatpush1.msra.mxu0 0.0
        %4407 = vmatprep.subr.mxu0 0.0
        %4408 = vmatpush1.msra.mxu0 0.0
        %4409 = vmatprep.subr.mxu0 0.0
        %4410 = vmatpush1.msra.mxu0 0.0
        %4411 = vmatprep.subr.mxu0 0.0
        %4412 = vmatpush1.msra.mxu0 0.0
        %4413 = vmatprep.subr.mxu0 0.0
        %4414 = vmatpush1.msra.mxu0 0.0
        %4415 = vmatprep.subr.mxu0 0.0
        %4416 = vmatpush1.msra.mxu0 0.0
        %4417 = vmatprep.subr.mxu0 0.0
        %4418 = vmatpush1.msra.mxu0 0.0
        %4419 = vmatprep.subr.mxu0 0.0
        %4420 = vmatpush1.msra.mxu0 0.0
        %4421 = vmatprep.subr.mxu0 0.0
        %4422 = vmatpush1.msra.mxu0 0.0
        %4423 = vmatprep.subr.mxu0 0.0
        %4424 = vmatpush1.msra.mxu0 0.0
        %4425 = vmatprep.subr.mxu0 0.0
        %4426 = vmatpush1.msra.mxu0 0.0
        %4427 = vmatprep.subr.mxu0 0.0
        %4428 = vmatpush1.msra.mxu0 0.0
        %4429 = vmatprep.subr.mxu0 0.0
        %4430 = vmatpush1.msra.mxu0 0.0
        %4431 = vmatprep.subr.mxu0 0.0
        %4432 = vmatpush1.msra.mxu0 0.0
        %4433 = vmatprep.subr.mxu0 0.0
        %4434 = vmatpush1.msra.mxu0 0.0
        %4435 = vmatprep.subr.mxu0 0.0
        %4436 = vmatpush1.msra.mxu0 0.0
        %4437 = vmatprep.subr.mxu0 0.0
        %4438 = vmatpush1.msra.mxu0 0.0
        %4439 = vmatprep.subr.mxu0 0.0
        %4440 = vmatpush1.msra.mxu0 0.0
        %4441 = vmatprep.subr.mxu0 0.0
        %4442 = vmatpush1.msra.mxu0 0.0
        %4443 = vmatprep.subr.mxu0 0.0
        %4444 = vmatpush1.msra.mxu0 0.0
        %4445 = vmatprep.subr.mxu0 0.0
        %4446 = vmatpush1.msra.mxu0 0.0
        %4447 = vmatprep.subr.mxu0 0.0
        %4448 = vmatpush1.msra.mxu0 0.0
        %4449 = vmatprep.subr.mxu0 0.0
        %4450 = vmatpush1.msra.mxu0 0.0
        %4451 = vmatprep.subr.mxu0 0.0
        %4452 = vmatpush1.msra.mxu0 0.0
        %4453 = vmatprep.subr.mxu0 0.0
        %4454 = vmatpush1.msra.mxu0 0.0
        %4455 = vmatprep.subr.mxu0 0.0
        %4456 = vmatpush1.msra.mxu0 0.0
        %4457 = vmatprep.subr.mxu0 0.0
        %4458 = vmatpush1.msra.mxu0 0.0
        %4459 = vmatprep.subr.mxu0 0.0
        %4460 = vmatpush1.msra.mxu0 0.0
        %4461 = vmatprep.subr.mxu0 0.0
        %4462 = vmatpush1.msra.mxu0 0.0
        %4463 = vmatprep.subr.mxu0 0.0
        %4464 = vmatpush1.msra.mxu0 0.0
        %4465 = vmatprep.mubr.f32.mxu0 0.0
        %4466 = vmatmul.mubr.f32.gmra.mrb[0].mxu0 %v4312
        %v4467 = vpop.f32.mrb[0].mxu0
        %v4468 = vadd.f32 0.0, %v4467
        %v4469 = vpop.f32.mrb[0].mxu0
        %v4470 = vadd.f32 0.0, %v4469
        %4471 = vdwg.mxu0
        %4472 = vmatprep.subr.mxu0 %v4324
        %4473 = vmatpush1.msra.mxu0 %v4322
        %4474 = vmatprep.subr.mxu0 0.0
        %4475 = vmatpush1.msra.mxu0 0.0
        %4476 = vmatprep.subr.mxu0 0.0
        %4477 = vmatpush1.msra.mxu0 0.0
        %4478 = vmatprep.subr.mxu0 0.0
        %4479 = vmatpush1.msra.mxu0 0.0
        %4480 = vmatprep.subr.mxu0 0.0
        %4481 = vmatpush1.msra.mxu0 0.0
        %4482 = vmatprep.subr.mxu0 0.0
        %4483 = vmatpush1.msra.mxu0 0.0
        %4484 = vmatprep.subr.mxu0 0.0
        %4485 = vmatpush1.msra.mxu0 0.0
        %4486 = vmatprep.subr.mxu0 0.0
        %4487 = vmatpush1.msra.mxu0 0.0
        %4488 = vmatprep.subr.mxu0 0.0
        %4489 = vmatpush1.msra.mxu0 0.0
        %4490 = vmatprep.subr.mxu0 0.0
        %4491 = vmatpush1.msra.mxu0 0.0
        %4492 = vmatprep.subr.mxu0 0.0
        %4493 = vmatpush1.msra.mxu0 0.0
        %4494 = vmatprep.subr.mxu0 0.0
        %4495 = vmatpush1.msra.mxu0 0.0
        %4496 = vmatprep.subr.mxu0 0.0
        %4497 = vmatpush1.msra.mxu0 0.0
        %4498 = vmatprep.subr.mxu0 0.0
        %4499 = vmatpush1.msra.mxu0 0.0
        %4500 = vmatprep.subr.mxu0 0.0
        %4501 = vmatpush1.msra.mxu0 0.0
        %4502 = vmatprep.subr.mxu0 0.0
        %4503 = vmatpush1.msra.mxu0 0.0
        %4504 = vmatprep.subr.mxu0 0.0
        %4505 = vmatpush1.msra.mxu0 0.0
        %4506 = vmatprep.subr.mxu0 0.0
        %4507 = vmatpush1.msra.mxu0 0.0
        %4508 = vmatprep.subr.mxu0 0.0
        %4509 = vmatpush1.msra.mxu0 0.0
        %4510 = vmatprep.subr.mxu0 0.0
        %4511 = vmatpush1.msra.mxu0 0.0
        %4512 = vmatprep.subr.mxu0 0.0
        %4513 = vmatpush1.msra.mxu0 0.0
        %4514 = vmatprep.subr.mxu0 0.0
        %4515 = vmatpush1.msra.mxu0 0.0
        %4516 = vmatprep.subr.mxu0 0.0
        %4517 = vmatpush1.msra.mxu0 0.0
        %4518 = vmatprep.subr.mxu0 0.0
        %4519 = vmatpush1.msra.mxu0 0.0
        %4520 = vmatprep.subr.mxu0 0.0
        %4521 = vmatpush1.msra.mxu0 0.0
        %4522 = vmatprep.subr.mxu0 0.0
        %4523 = vmatpush1.msra.mxu0 0.0
        %4524 = vmatprep.subr.mxu0 0.0
        %4525 = vmatpush1.msra.mxu0 0.0
        %4526 = vmatprep.subr.mxu0 0.0
        %4527 = vmatpush1.msra.mxu0 0.0
        %4528 = vmatprep.subr.mxu0 0.0
        %4529 = vmatpush1.msra.mxu0 0.0
        %4530 = vmatprep.subr.mxu0 0.0
        %4531 = vmatpush1.msra.mxu0 0.0
        %4532 = vmatprep.subr.mxu0 0.0
        %4533 = vmatpush1.msra.mxu0 0.0
        %4534 = vmatprep.subr.mxu0 0.0
        %4535 = vmatpush1.msra.mxu0 0.0
        %4536 = vmatprep.mubr.f32.mxu0 0.0
        %4537 = vmatmul.mubr.f32.gmra.mrb[0].mxu0 %v4312
        %v4538 = vpop.f32.mrb[0].mxu0
        %v4539 = vadd.f32 0.0, %v4538
        %v4540 = vpop.f32.mrb[0].mxu0
        %v4541 = vadd.f32 0.0, %v4540
        %4542 = vdwg.mxu0
        %4543 = vmatprep.subr.mxu0 %v4328
        %4544 = vmatpush1.msra.mxu0 %v4326
        %4545 = vmatprep.subr.mxu0 0.0
        %4546 = vmatpush1.msra.mxu0 0.0
        %4547 = vmatprep.subr.mxu0 0.0
        %4548 = vmatpush1.msra.mxu0 0.0
        %4549 = vmatprep.subr.mxu0 0.0
        %4550 = vmatpush1.msra.mxu0 0.0
        %4551 = vmatprep.subr.mxu0 0.0
        %4552 = vmatpush1.msra.mxu0 0.0
        %4553 = vmatprep.subr.mxu0 0.0
        %4554 = vmatpush1.msra.mxu0 0.0
        %4555 = vmatprep.subr.mxu0 0.0
        %4556 = vmatpush1.msra.mxu0 0.0
        %4557 = vmatprep.subr.mxu0 0.0
        %4558 = vmatpush1.msra.mxu0 0.0
        %4559 = vmatprep.subr.mxu0 0.0
        %4560 = vmatpush1.msra.mxu0 0.0
        %4561 = vmatprep.subr.mxu0 0.0
        %4562 = vmatpush1.msra.mxu0 0.0
        %4563 = vmatprep.subr.mxu0 0.0
        %4564 = vmatpush1.msra.mxu0 0.0
        %4565 = vmatprep.subr.mxu0 0.0
        %4566 = vmatpush1.msra.mxu0 0.0
        %4567 = vmatprep.subr.mxu0 0.0
        %4568 = vmatpush1.msra.mxu0 0.0
        %4569 = vmatprep.subr.mxu0 0.0
        %4570 = vmatpush1.msra.mxu0 0.0
        %4571 = vmatprep.subr.mxu0 0.0
        %4572 = vmatpush1.msra.mxu0 0.0
        %4573 = vmatprep.subr.mxu0 0.0
        %4574 = vmatpush1.msra.mxu0 0.0
        %4575 = vmatprep.subr.mxu0 0.0
        %4576 = vmatpush1.msra.mxu0 0.0
        %4577 = vmatprep.subr.mxu0 0.0
        %4578 = vmatpush1.msra.mxu0 0.0
        %4579 = vmatprep.subr.mxu0 0.0
        %4580 = vmatpush1.msra.mxu0 0.0
        %4581 = vmatprep.subr.mxu0 0.0
        %4582 = vmatpush1.msra.mxu0 0.0
        %4583 = vmatprep.subr.mxu0 0.0
        %4584 = vmatpush1.msra.mxu0 0.0
        %4585 = vmatprep.subr.mxu0 0.0
        %4586 = vmatpush1.msra.mxu0 0.0
        %4587 = vmatprep.subr.mxu0 0.0
        %4588 = vmatpush1.msra.mxu0 0.0
        %4589 = vmatprep.subr.mxu0 0.0
        %4590 = vmatpush1.msra.mxu0 0.0
        %4591 = vmatprep.subr.mxu0 0.0
        %4592 = vmatpush1.msra.mxu0 0.0
        %4593 = vmatprep.subr.mxu0 0.0
        %4594 = vmatpush1.msra.mxu0 0.0
        %4595 = vmatprep.subr.mxu0 0.0
        %4596 = vmatpush1.msra.mxu0 0.0
        %4597 = vmatprep.subr.mxu0 0.0
        %4598 = vmatpush1.msra.mxu0 0.0
        %4599 = vmatprep.subr.mxu0 0.0
        %4600 = vmatpush1.msra.mxu0 0.0
        %4601 = vmatprep.subr.mxu0 0.0
        %4602 = vmatpush1.msra.mxu0 0.0
        %4603 = vmatprep.subr.mxu0 0.0
        %4604 = vmatpush1.msra.mxu0 0.0
        %4605 = vmatprep.subr.mxu0 0.0
        %4606 = vmatpush1.msra.mxu0 0.0
        %4607 = vmatprep.mubr.f32.mxu0 0.0
        %4608 = vmatmul.mubr.f32.gmra.mrb[0].mxu0 %v4312
        %v4609 = vpop.f32.mrb[0].mxu0
        %v4610 = vadd.f32 0.0, %v4609
        %v4611 = vpop.f32.mrb[0].mxu0
        %v4612 = vadd.f32 0.0, %v4611
        %4613 = vdwg.mxu0
        %v4615 = vsel %vm475, %v4308, 0
        %v4617 = vsel %vm479, %v423, 0
        %v4619 = vsel %vm479, %v430, 0
        %4621 = vmatprep.subr.mxu0 %v4619
        %4622 = vmatpush1.msra.mxu0 %v4617
        %4623 = vmatprep.subr.mxu0 0.0
        %4624 = vmatpush1.msra.mxu0 0.0
        %4625 = vmatprep.subr.mxu0 0.0
        %4626 = vmatpush1.msra.mxu0 0.0
        %4627 = vmatprep.subr.mxu0 0.0
        %4628 = vmatpush1.msra.mxu0 0.0
        %4629 = vmatprep.subr.mxu0 0.0
        %4630 = vmatpush1.msra.mxu0 0.0
        %4631 = vmatprep.subr.mxu0 0.0
        %4632 = vmatpush1.msra.mxu0 0.0
        %4633 = vmatprep.subr.mxu0 0.0
        %4634 = vmatpush1.msra.mxu0 0.0
        %4635 = vmatprep.subr.mxu0 0.0
        %4636 = vmatpush1.msra.mxu0 0.0
        %4637 = vmatprep.subr.mxu0 0.0
        %4638 = vmatpush1.msra.mxu0 0.0
        %4639 = vmatprep.subr.mxu0 0.0
        %4640 = vmatpush1.msra.mxu0 0.0
        %4641 = vmatprep.subr.mxu0 0.0
        %4642 = vmatpush1.msra.mxu0 0.0
        %4643 = vmatprep.subr.mxu0 0.0
        %4644 = vmatpush1.msra.mxu0 0.0
        %4645 = vmatprep.subr.mxu0 0.0
        %4646 = vmatpush1.msra.mxu0 0.0
        %4647 = vmatprep.subr.mxu0 0.0
        %4648 = vmatpush1.msra.mxu0 0.0
        %4649 = vmatprep.subr.mxu0 0.0
        %4650 = vmatpush1.msra.mxu0 0.0
        %4651 = vmatprep.subr.mxu0 0.0
        %4652 = vmatpush1.msra.mxu0 0.0
        %4653 = vmatprep.subr.mxu0 0.0
        %4654 = vmatpush1.msra.mxu0 0.0
        %4655 = vmatprep.subr.mxu0 0.0
        %4656 = vmatpush1.msra.mxu0 0.0
        %4657 = vmatprep.subr.mxu0 0.0
        %4658 = vmatpush1.msra.mxu0 0.0
        %4659 = vmatprep.subr.mxu0 0.0
        %4660 = vmatpush1.msra.mxu0 0.0
        %4661 = vmatprep.subr.mxu0 0.0
        %4662 = vmatpush1.msra.mxu0 0.0
        %4663 = vmatprep.subr.mxu0 0.0
        %4664 = vmatpush1.msra.mxu0 0.0
        %4665 = vmatprep.subr.mxu0 0.0
        %4666 = vmatpush1.msra.mxu0 0.0
        %4667 = vmatprep.subr.mxu0 0.0
        %4668 = vmatpush1.msra.mxu0 0.0
        %4669 = vmatprep.subr.mxu0 0.0
        %4670 = vmatpush1.msra.mxu0 0.0
        %4671 = vmatprep.subr.mxu0 0.0
        %4672 = vmatpush1.msra.mxu0 0.0
        %4673 = vmatprep.subr.mxu0 0.0
        %4674 = vmatpush1.msra.mxu0 0.0
        %4675 = vmatprep.subr.mxu0 0.0
        %4676 = vmatpush1.msra.mxu0 0.0
        %4677 = vmatprep.subr.mxu0 0.0
        %4678 = vmatpush1.msra.mxu0 0.0
        %4679 = vmatprep.subr.mxu0 0.0
        %4680 = vmatpush1.msra.mxu0 0.0
        %4681 = vmatprep.subr.mxu0 0.0
        %4682 = vmatpush1.msra.mxu0 0.0
        %4683 = vmatprep.subr.mxu0 0.0
        %4684 = vmatpush1.msra.mxu0 0.0
        %4685 = vmatprep.mubr.f32.mxu0 0.0
        %4686 = vmatmul.mubr.f32.gmra.mrb[0].mxu0 %v4615
        %v4687 = vpop.f32.mrb[0].mxu0
        %v4688 = vadd.f32 %v4397, %v4687
        %v4689 = vpop.f32.mrb[0].mxu0
        %v4690 = vadd.f32 %v4399, %v4689
        %4691 = vdwg.mxu0
        %4692 = vmatprep.subr.mxu0 %v4316
        %4693 = vmatpush1.msra.mxu0 %v4314
        %4694 = vmatprep.subr.mxu0 0.0
        %4695 = vmatpush1.msra.mxu0 0.0
        %4696 = vmatprep.subr.mxu0 0.0
        %4697 = vmatpush1.msra.mxu0 0.0
        %4698 = vmatprep.subr.mxu0 0.0
        %4699 = vmatpush1.msra.mxu0 0.0
        %4700 = vmatprep.subr.mxu0 0.0
        %4701 = vmatpush1.msra.mxu0 0.0
        %4702 = vmatprep.subr.mxu0 0.0
        %4703 = vmatpush1.msra.mxu0 0.0
        %4704 = vmatprep.subr.mxu0 0.0
        %4705 = vmatpush1.msra.mxu0 0.0
        %4706 = vmatprep.subr.mxu0 0.0
        %4707 = vmatpush1.msra.mxu0 0.0
        %4708 = vmatprep.subr.mxu0 0.0
        %4709 = vmatpush1.msra.mxu0 0.0
        %4710 = vmatprep.subr.mxu0 0.0
        %4711 = vmatpush1.msra.mxu0 0.0
        %4712 = vmatprep.subr.mxu0 0.0
        %4713 = vmatpush1.msra.mxu0 0.0
        %4714 = vmatprep.subr.mxu0 0.0
        %4715 = vmatpush1.msra.mxu0 0.0
        %4716 = vmatprep.subr.mxu0 0.0
        %4717 = vmatpush1.msra.mxu0 0.0
        %4718 = vmatprep.subr.mxu0 0.0
        %4719 = vmatpush1.msra.mxu0 0.0
        %4720 = vmatprep.subr.mxu0 0.0
        %4721 = vmatpush1.msra.mxu0 0.0
        %4722 = vmatprep.subr.mxu0 0.0
        %4723 = vmatpush1.msra.mxu0 0.0
        %4724 = vmatprep.subr.mxu0 0.0
        %4725 = vmatpush1.msra.mxu0 0.0
        %4726 = vmatprep.subr.mxu0 0.0
        %4727 = vmatpush1.msra.mxu0 0.0
        %4728 = vmatprep.subr.mxu0 0.0
        %4729 = vmatpush1.msra.mxu0 0.0
        %4730 = vmatprep.subr.mxu0 0.0
        %4731 = vmatpush1.msra.mxu0 0.0
        %4732 = vmatprep.subr.mxu0 0.0
        %4733 = vmatpush1.msra.mxu0 0.0
        %4734 = vmatprep.subr.mxu0 0.0
        %4735 = vmatpush1.msra.mxu0 0.0
        %4736 = vmatprep.subr.mxu0 0.0
        %4737 = vmatpush1.msra.mxu0 0.0
        %4738 = vmatprep.subr.mxu0 0.0
        %4739 = vmatpush1.msra.mxu0 0.0
        %4740 = vmatprep.subr.mxu0 0.0
        %4741 = vmatpush1.msra.mxu0 0.0
        %4742 = vmatprep.subr.mxu0 0.0
        %4743 = vmatpush1.msra.mxu0 0.0
        %4744 = vmatprep.subr.mxu0 0.0
        %4745 = vmatpush1.msra.mxu0 0.0
        %4746 = vmatprep.subr.mxu0 0.0
        %4747 = vmatpush1.msra.mxu0 0.0
        %4748 = vmatprep.subr.mxu0 0.0
        %4749 = vmatpush1.msra.mxu0 0.0
        %4750 = vmatprep.subr.mxu0 0.0
        %4751 = vmatpush1.msra.mxu0 0.0
        %4752 = vmatprep.subr.mxu0 0.0
        %4753 = vmatpush1.msra.mxu0 0.0
        %4754 = vmatprep.subr.mxu0 0.0
        %4755 = vmatpush1.msra.mxu0 0.0
        %4756 = vmatprep.mubr.f32.mxu0 0.0
        %4757 = vmatmul.mubr.f32.gmra.mrb[0].mxu0 %v4615
        %v4758 = vpop.f32.mrb[0].mxu0
        %v4759 = vadd.f32 %v4468, %v4758
        %v4760 = vpop.f32.mrb[0].mxu0
        %v4761 = vadd.f32 %v4470, %v4760
        %4762 = vdwg.mxu0
        %4763 = vmatprep.subr.mxu0 %v4320
        %4764 = vmatpush1.msra.mxu0 %v4318
        %4765 = vmatprep.subr.mxu0 0.0
        %4766 = vmatpush1.msra.mxu0 0.0
        %4767 = vmatprep.subr.mxu0 0.0
        %4768 = vmatpush1.msra.mxu0 0.0
        %4769 = vmatprep.subr.mxu0 0.0
        %4770 = vmatpush1.msra.mxu0 0.0
        %4771 = vmatprep.subr.mxu0 0.0
        %4772 = vmatpush1.msra.mxu0 0.0
        %4773 = vmatprep.subr.mxu0 0.0
        %4774 = vmatpush1.msra.mxu0 0.0
        %4775 = vmatprep.subr.mxu0 0.0
        %4776 = vmatpush1.msra.mxu0 0.0
        %4777 = vmatprep.subr.mxu0 0.0
        %4778 = vmatpush1.msra.mxu0 0.0
        %4779 = vmatprep.subr.mxu0 0.0
        %4780 = vmatpush1.msra.mxu0 0.0
        %4781 = vmatprep.subr.mxu0 0.0
        %4782 = vmatpush1.msra.mxu0 0.0
        %4783 = vmatprep.subr.mxu0 0.0
        %4784 = vmatpush1.msra.mxu0 0.0
        %4785 = vmatprep.subr.mxu0 0.0
        %4786 = vmatpush1.msra.mxu0 0.0
        %4787 = vmatprep.subr.mxu0 0.0
        %4788 = vmatpush1.msra.mxu0 0.0
        %4789 = vmatprep.subr.mxu0 0.0
        %4790 = vmatpush1.msra.mxu0 0.0
        %4791 = vmatprep.subr.mxu0 0.0
        %4792 = vmatpush1.msra.mxu0 0.0
        %4793 = vmatprep.subr.mxu0 0.0
        %4794 = vmatpush1.msra.mxu0 0.0
        %4795 = vmatprep.subr.mxu0 0.0
        %4796 = vmatpush1.msra.mxu0 0.0
        %4797 = vmatprep.subr.mxu0 0.0
        %4798 = vmatpush1.msra.mxu0 0.0
        %4799 = vmatprep.subr.mxu0 0.0
        %4800 = vmatpush1.msra.mxu0 0.0
        %4801 = vmatprep.subr.mxu0 0.0
        %4802 = vmatpush1.msra.mxu0 0.0
        %4803 = vmatprep.subr.mxu0 0.0
        %4804 = vmatpush1.msra.mxu0 0.0
        %4805 = vmatprep.subr.mxu0 0.0
        %4806 = vmatpush1.msra.mxu0 0.0
        %4807 = vmatprep.subr.mxu0 0.0
        %4808 = vmatpush1.msra.mxu0 0.0
        %4809 = vmatprep.subr.mxu0 0.0
        %4810 = vmatpush1.msra.mxu0 0.0
        %4811 = vmatprep.subr.mxu0 0.0
        %4812 = vmatpush1.msra.mxu0 0.0
        %4813 = vmatprep.subr.mxu0 0.0
        %4814 = vmatpush1.msra.mxu0 0.0
        %4815 = vmatprep.subr.mxu0 0.0
        %4816 = vmatpush1.msra.mxu0 0.0
        %4817 = vmatprep.subr.mxu0 0.0
        %4818 = vmatpush1.msra.mxu0 0.0
        %4819 = vmatprep.subr.mxu0 0.0
        %4820 = vmatpush1.msra.mxu0 0.0
        %4821 = vmatprep.subr.mxu0 0.0
        %4822 = vmatpush1.msra.mxu0 0.0
        %4823 = vmatprep.subr.mxu0 0.0
        %4824 = vmatpush1.msra.mxu0 0.0
        %4825 = vmatprep.subr.mxu0 0.0
        %4826 = vmatpush1.msra.mxu0 0.0
        %4827 = vmatprep.mubr.f32.mxu0 0.0
        %4828 = vmatmul.mubr.f32.gmra.mrb[0].mxu0 %v4615
        %v4829 = vpop.f32.mrb[0].mxu0
        %v4830 = vadd.f32 %v4539, %v4829
        %v4831 = vpop.f32.mrb[0].mxu0
        %v4832 = vadd.f32 %v4541, %v4831
        %4833 = vdwg.mxu0
        %4834 = vmatprep.subr.mxu0 %v4324
        %4835 = vmatpush1.msra.mxu0 %v4322
        %4836 = vmatprep.subr.mxu0 0.0
        %4837 = vmatpush1.msra.mxu0 0.0
        %4838 = vmatprep.subr.mxu0 0.0
        %4839 = vmatpush1.msra.mxu0 0.0
        %4840 = vmatprep.subr.mxu0 0.0
        %4841 = vmatpush1.msra.mxu0 0.0
        %4842 = vmatprep.subr.mxu0 0.0
        %4843 = vmatpush1.msra.mxu0 0.0
        %4844 = vmatprep.subr.mxu0 0.0
        %4845 = vmatpush1.msra.mxu0 0.0
        %4846 = vmatprep.subr.mxu0 0.0
        %4847 = vmatpush1.msra.mxu0 0.0
        %4848 = vmatprep.subr.mxu0 0.0
        %4849 = vmatpush1.msra.mxu0 0.0
        %4850 = vmatprep.subr.mxu0 0.0
        %4851 = vmatpush1.msra.mxu0 0.0
        %4852 = vmatprep.subr.mxu0 0.0
        %4853 = vmatpush1.msra.mxu0 0.0
        %4854 = vmatprep.subr.mxu0 0.0
        %4855 = vmatpush1.msra.mxu0 0.0
        %4856 = vmatprep.subr.mxu0 0.0
        %4857 = vmatpush1.msra.mxu0 0.0
        %4858 = vmatprep.subr.mxu0 0.0
        %4859 = vmatpush1.msra.mxu0 0.0
        %4860 = vmatprep.subr.mxu0 0.0
        %4861 = vmatpush1.msra.mxu0 0.0
        %4862 = vmatprep.subr.mxu0 0.0
        %4863 = vmatpush1.msra.mxu0 0.0
        %4864 = vmatprep.subr.mxu0 0.0
        %4865 = vmatpush1.msra.mxu0 0.0
        %4866 = vmatprep.subr.mxu0 0.0
        %4867 = vmatpush1.msra.mxu0 0.0
        %4868 = vmatprep.subr.mxu0 0.0
        %4869 = vmatpush1.msra.mxu0 0.0
        %4870 = vmatprep.subr.mxu0 0.0
        %4871 = vmatpush1.msra.mxu0 0.0
        %4872 = vmatprep.subr.mxu0 0.0
        %4873 = vmatpush1.msra.mxu0 0.0
        %4874 = vmatprep.subr.mxu0 0.0
        %4875 = vmatpush1.msra.mxu0 0.0
        %4876 = vmatprep.subr.mxu0 0.0
        %4877 = vmatpush1.msra.mxu0 0.0
        %4878 = vmatprep.subr.mxu0 0.0
        %4879 = vmatpush1.msra.mxu0 0.0
        %4880 = vmatprep.subr.mxu0 0.0
        %4881 = vmatpush1.msra.mxu0 0.0
        %4882 = vmatprep.subr.mxu0 0.0
        %4883 = vmatpush1.msra.mxu0 0.0
        %4884 = vmatprep.subr.mxu0 0.0
        %4885 = vmatpush1.msra.mxu0 0.0
        %4886 = vmatprep.subr.mxu0 0.0
        %4887 = vmatpush1.msra.mxu0 0.0
        %4888 = vmatprep.subr.mxu0 0.0
        %4889 = vmatpush1.msra.mxu0 0.0
        %4890 = vmatprep.subr.mxu0 0.0
        %4891 = vmatpush1.msra.mxu0 0.0
        %4892 = vmatprep.subr.mxu0 0.0
        %4893 = vmatpush1.msra.mxu0 0.0
        %4894 = vmatprep.subr.mxu0 0.0
        %4895 = vmatpush1.msra.mxu0 0.0
        %4896 = vmatprep.subr.mxu0 0.0
        %4897 = vmatpush1.msra.mxu0 0.0
        %4898 = vmatprep.mubr.f32.mxu0 0.0
        %4899 = vmatmul.mubr.f32.gmra.mrb[0].mxu0 %v4615
        %v4900 = vpop.f32.mrb[0].mxu0
        %v4901 = vadd.f32 %v4610, %v4900
        %v4902 = vpop.f32.mrb[0].mxu0
        %v4903 = vadd.f32 %v4612, %v4902
        %4904 = vdwg.mxu0
        %s4905 = scalar_lea.vmem %s3, 88
        %v4906 = vld [vmem:[%s4905] sm:$0x7]
        %v4908 = vsel %vm475, %v4906, 0
        %v4910 = vsel %vm479, %v428, 0
        %v4912 = vsel %vm479, %v440, 0
        %4914 = vmatprep.subr.mxu0 %v4320
        %4915 = vmatpush1.msra.mxu0 %v4318
        %4916 = vmatprep.subr.mxu0 0.0
        %4917 = vmatpush1.msra.mxu0 0.0
        %4918 = vmatprep.subr.mxu0 0.0
        %4919 = vmatpush1.msra.mxu0 0.0
        %4920 = vmatprep.subr.mxu0 0.0
        %4921 = vmatpush1.msra.mxu0 0.0
        %4922 = vmatprep.subr.mxu0 0.0
        %4923 = vmatpush1.msra.mxu0 0.0
        %4924 = vmatprep.subr.mxu0 0.0
        %4925 = vmatpush1.msra.mxu0 0.0
        %4926 = vmatprep.subr.mxu0 0.0
        %4927 = vmatpush1.msra.mxu0 0.0
        %4928 = vmatprep.subr.mxu0 0.0
        %4929 = vmatpush1.msra.mxu0 0.0
        %4930 = vmatprep.subr.mxu0 0.0
        %4931 = vmatpush1.msra.mxu0 0.0
        %4932 = vmatprep.subr.mxu0 0.0
        %4933 = vmatpush1.msra.mxu0 0.0
        %4934 = vmatprep.subr.mxu0 0.0
        %4935 = vmatpush1.msra.mxu0 0.0
        %4936 = vmatprep.subr.mxu0 0.0
        %4937 = vmatpush1.msra.mxu0 0.0
        %4938 = vmatprep.subr.mxu0 0.0
        %4939 = vmatpush1.msra.mxu0 0.0
        %4940 = vmatprep.subr.mxu0 0.0
        %4941 = vmatpush1.msra.mxu0 0.0
        %4942 = vmatprep.subr.mxu0 0.0
        %4943 = vmatpush1.msra.mxu0 0.0
        %4944 = vmatprep.subr.mxu0 0.0
        %4945 = vmatpush1.msra.mxu0 0.0
        %4946 = vmatprep.subr.mxu0 0.0
        %4947 = vmatpush1.msra.mxu0 0.0
        %4948 = vmatprep.subr.mxu0 0.0
        %4949 = vmatpush1.msra.mxu0 0.0
        %4950 = vmatprep.subr.mxu0 0.0
        %4951 = vmatpush1.msra.mxu0 0.0
        %4952 = vmatprep.subr.mxu0 0.0
        %4953 = vmatpush1.msra.mxu0 0.0
        %4954 = vmatprep.subr.mxu0 0.0
        %4955 = vmatpush1.msra.mxu0 0.0
        %4956 = vmatprep.subr.mxu0 0.0
        %4957 = vmatpush1.msra.mxu0 0.0
        %4958 = vmatprep.subr.mxu0 0.0
        %4959 = vmatpush1.msra.mxu0 0.0
        %4960 = vmatprep.subr.mxu0 0.0
        %4961 = vmatpush1.msra.mxu0 0.0
        %4962 = vmatprep.subr.mxu0 0.0
        %4963 = vmatpush1.msra.mxu0 0.0
        %4964 = vmatprep.subr.mxu0 0.0
        %4965 = vmatpush1.msra.mxu0 0.0
        %4966 = vmatprep.subr.mxu0 0.0
        %4967 = vmatpush1.msra.mxu0 0.0
        %4968 = vmatprep.subr.mxu0 0.0
        %4969 = vmatpush1.msra.mxu0 0.0
        %4970 = vmatprep.subr.mxu0 0.0
        %4971 = vmatpush1.msra.mxu0 0.0
        %4972 = vmatprep.subr.mxu0 0.0
        %4973 = vmatpush1.msra.mxu0 0.0
        %4974 = vmatprep.subr.mxu0 0.0
        %4975 = vmatpush1.msra.mxu0 0.0
        %4976 = vmatprep.subr.mxu0 0.0
        %4977 = vmatpush1.msra.mxu0 0.0
        %4978 = vmatprep.mubr.f32.mxu0 0.0
        %4979 = vmatmul.mubr.f32.gmra.mrb[0].mxu0 %v4908
        %v4980 = vpop.f32.mrb[0].mxu0
        %v4981 = vadd.f32 0.0, %v4980
        %v4982 = vpop.f32.mrb[0].mxu0
        %v4983 = vadd.f32 0.0, %v4982
        %4984 = vdwg.mxu0
        %4985 = vmatprep.subr.mxu0 %v4324
        %4986 = vmatpush1.msra.mxu0 %v4322
        %4987 = vmatprep.subr.mxu0 0.0
        %4988 = vmatpush1.msra.mxu0 0.0
        %4989 = vmatprep.subr.mxu0 0.0
        %4990 = vmatpush1.msra.mxu0 0.0
        %4991 = vmatprep.subr.mxu0 0.0
        %4992 = vmatpush1.msra.mxu0 0.0
        %4993 = vmatprep.subr.mxu0 0.0
        %4994 = vmatpush1.msra.mxu0 0.0
        %4995 = vmatprep.subr.mxu0 0.0
        %4996 = vmatpush1.msra.mxu0 0.0
        %4997 = vmatprep.subr.mxu0 0.0
        %4998 = vmatpush1.msra.mxu0 0.0
        %4999 = vmatprep.subr.mxu0 0.0
        %5000 = vmatpush1.msra.mxu0 0.0
        %5001 = vmatprep.subr.mxu0 0.0
        %5002 = vmatpush1.msra.mxu0 0.0
        %5003 = vmatprep.subr.mxu0 0.0
        %5004 = vmatpush1.msra.mxu0 0.0
        %5005 = vmatprep.subr.mxu0 0.0
        %5006 = vmatpush1.msra.mxu0 0.0
        %5007 = vmatprep.subr.mxu0 0.0
        %5008 = vmatpush1.msra.mxu0 0.0
        %5009 = vmatprep.subr.mxu0 0.0
        %5010 = vmatpush1.msra.mxu0 0.0
        %5011 = vmatprep.subr.mxu0 0.0
        %5012 = vmatpush1.msra.mxu0 0.0
        %5013 = vmatprep.subr.mxu0 0.0
        %5014 = vmatpush1.msra.mxu0 0.0
        %5015 = vmatprep.subr.mxu0 0.0
        %5016 = vmatpush1.msra.mxu0 0.0
        %5017 = vmatprep.subr.mxu0 0.0
        %5018 = vmatpush1.msra.mxu0 0.0
        %5019 = vmatprep.subr.mxu0 0.0
        %5020 = vmatpush1.msra.mxu0 0.0
        %5021 = vmatprep.subr.mxu0 0.0
        %5022 = vmatpush1.msra.mxu0 0.0
        %5023 = vmatprep.subr.mxu0 0.0
        %5024 = vmatpush1.msra.mxu0 0.0
        %5025 = vmatprep.subr.mxu0 0.0
        %5026 = vmatpush1.msra.mxu0 0.0
        %5027 = vmatprep.subr.mxu0 0.0
        %5028 = vmatpush1.msra.mxu0 0.0
        %5029 = vmatprep.subr.mxu0 0.0
        %5030 = vmatpush1.msra.mxu0 0.0
        %5031 = vmatprep.subr.mxu0 0.0
        %5032 = vmatpush1.msra.mxu0 0.0
        %5033 = vmatprep.subr.mxu0 0.0
        %5034 = vmatpush1.msra.mxu0 0.0
        %5035 = vmatprep.subr.mxu0 0.0
        %5036 = vmatpush1.msra.mxu0 0.0
        %5037 = vmatprep.subr.mxu0 0.0
        %5038 = vmatpush1.msra.mxu0 0.0
        %5039 = vmatprep.subr.mxu0 0.0
        %5040 = vmatpush1.msra.mxu0 0.0
        %5041 = vmatprep.subr.mxu0 0.0
        %5042 = vmatpush1.msra.mxu0 0.0
        %5043 = vmatprep.subr.mxu0 0.0
        %5044 = vmatpush1.msra.mxu0 0.0
        %5045 = vmatprep.subr.mxu0 0.0
        %5046 = vmatpush1.msra.mxu0 0.0
        %5047 = vmatprep.subr.mxu0 0.0
        %5048 = vmatpush1.msra.mxu0 0.0
        %5049 = vmatprep.mubr.f32.mxu0 0.0
        %5050 = vmatmul.mubr.f32.gmra.mrb[0].mxu0 %v4908
        %v5051 = vpop.f32.mrb[0].mxu0
        %v5052 = vadd.f32 0.0, %v5051
        %v5053 = vpop.f32.mrb[0].mxu0
        %v5054 = vadd.f32 0.0, %v5053
        %5055 = vdwg.mxu0
        %5056 = vmatprep.subr.mxu0 %v4328
        %5057 = vmatpush1.msra.mxu0 %v4326
        %5058 = vmatprep.subr.mxu0 0.0
        %5059 = vmatpush1.msra.mxu0 0.0
        %5060 = vmatprep.subr.mxu0 0.0
        %5061 = vmatpush1.msra.mxu0 0.0
        %5062 = vmatprep.subr.mxu0 0.0
        %5063 = vmatpush1.msra.mxu0 0.0
        %5064 = vmatprep.subr.mxu0 0.0
        %5065 = vmatpush1.msra.mxu0 0.0
        %5066 = vmatprep.subr.mxu0 0.0
        %5067 = vmatpush1.msra.mxu0 0.0
        %5068 = vmatprep.subr.mxu0 0.0
        %5069 = vmatpush1.msra.mxu0 0.0
        %5070 = vmatprep.subr.mxu0 0.0
        %5071 = vmatpush1.msra.mxu0 0.0
        %5072 = vmatprep.subr.mxu0 0.0
        %5073 = vmatpush1.msra.mxu0 0.0
        %5074 = vmatprep.subr.mxu0 0.0
        %5075 = vmatpush1.msra.mxu0 0.0
        %5076 = vmatprep.subr.mxu0 0.0
        %5077 = vmatpush1.msra.mxu0 0.0
        %5078 = vmatprep.subr.mxu0 0.0
        %5079 = vmatpush1.msra.mxu0 0.0
        %5080 = vmatprep.subr.mxu0 0.0
        %5081 = vmatpush1.msra.mxu0 0.0
        %5082 = vmatprep.subr.mxu0 0.0
        %5083 = vmatpush1.msra.mxu0 0.0
        %5084 = vmatprep.subr.mxu0 0.0
        %5085 = vmatpush1.msra.mxu0 0.0
        %5086 = vmatprep.subr.mxu0 0.0
        %5087 = vmatpush1.msra.mxu0 0.0
        %5088 = vmatprep.subr.mxu0 0.0
        %5089 = vmatpush1.msra.mxu0 0.0
        %5090 = vmatprep.subr.mxu0 0.0
        %5091 = vmatpush1.msra.mxu0 0.0
        %5092 = vmatprep.subr.mxu0 0.0
        %5093 = vmatpush1.msra.mxu0 0.0
        %5094 = vmatprep.subr.mxu0 0.0
        %5095 = vmatpush1.msra.mxu0 0.0
        %5096 = vmatprep.subr.mxu0 0.0
        %5097 = vmatpush1.msra.mxu0 0.0
        %5098 = vmatprep.subr.mxu0 0.0
        %5099 = vmatpush1.msra.mxu0 0.0
        %5100 = vmatprep.subr.mxu0 0.0
        %5101 = vmatpush1.msra.mxu0 0.0
        %5102 = vmatprep.subr.mxu0 0.0
        %5103 = vmatpush1.msra.mxu0 0.0
        %5104 = vmatprep.subr.mxu0 0.0
        %5105 = vmatpush1.msra.mxu0 0.0
        %5106 = vmatprep.subr.mxu0 0.0
        %5107 = vmatpush1.msra.mxu0 0.0
        %5108 = vmatprep.subr.mxu0 0.0
        %5109 = vmatpush1.msra.mxu0 0.0
        %5110 = vmatprep.subr.mxu0 0.0
        %5111 = vmatpush1.msra.mxu0 0.0
        %5112 = vmatprep.subr.mxu0 0.0
        %5113 = vmatpush1.msra.mxu0 0.0
        %5114 = vmatprep.subr.mxu0 0.0
        %5115 = vmatpush1.msra.mxu0 0.0
        %5116 = vmatprep.subr.mxu0 0.0
        %5117 = vmatpush1.msra.mxu0 0.0
        %5118 = vmatprep.subr.mxu0 0.0
        %5119 = vmatpush1.msra.mxu0 0.0
        %5120 = vmatprep.mubr.f32.mxu0 0.0
        %5121 = vmatmul.mubr.f32.gmra.mrb[0].mxu0 %v4908
        %v5122 = vpop.f32.mrb[0].mxu0
        %v5123 = vadd.f32 0.0, %v5122
        %v5124 = vpop.f32.mrb[0].mxu0
        %v5125 = vadd.f32 0.0, %v5124
        %5126 = vdwg.mxu0
        %5127 = vmatprep.subr.mxu0 %v4912
        %5128 = vmatpush1.msra.mxu0 %v4910
        %5129 = vmatprep.subr.mxu0 0.0
        %5130 = vmatpush1.msra.mxu0 0.0
        %5131 = vmatprep.subr.mxu0 0.0
        %5132 = vmatpush1.msra.mxu0 0.0
        %5133 = vmatprep.subr.mxu0 0.0
        %5134 = vmatpush1.msra.mxu0 0.0
        %5135 = vmatprep.subr.mxu0 0.0
        %5136 = vmatpush1.msra.mxu0 0.0
        %5137 = vmatprep.subr.mxu0 0.0
        %5138 = vmatpush1.msra.mxu0 0.0
        %5139 = vmatprep.subr.mxu0 0.0
        %5140 = vmatpush1.msra.mxu0 0.0
        %5141 = vmatprep.subr.mxu0 0.0
        %5142 = vmatpush1.msra.mxu0 0.0
        %5143 = vmatprep.subr.mxu0 0.0
        %5144 = vmatpush1.msra.mxu0 0.0
        %5145 = vmatprep.subr.mxu0 0.0
        %5146 = vmatpush1.msra.mxu0 0.0
        %5147 = vmatprep.subr.mxu0 0.0
        %5148 = vmatpush1.msra.mxu0 0.0
        %5149 = vmatprep.subr.mxu0 0.0
        %5150 = vmatpush1.msra.mxu0 0.0
        %5151 = vmatprep.subr.mxu0 0.0
        %5152 = vmatpush1.msra.mxu0 0.0
        %5153 = vmatprep.subr.mxu0 0.0
        %5154 = vmatpush1.msra.mxu0 0.0
        %5155 = vmatprep.subr.mxu0 0.0
        %5156 = vmatpush1.msra.mxu0 0.0
        %5157 = vmatprep.subr.mxu0 0.0
        %5158 = vmatpush1.msra.mxu0 0.0
        %5159 = vmatprep.subr.mxu0 0.0
        %5160 = vmatpush1.msra.mxu0 0.0
        %5161 = vmatprep.subr.mxu0 0.0
        %5162 = vmatpush1.msra.mxu0 0.0
        %5163 = vmatprep.subr.mxu0 0.0
        %5164 = vmatpush1.msra.mxu0 0.0
        %5165 = vmatprep.subr.mxu0 0.0
        %5166 = vmatpush1.msra.mxu0 0.0
        %5167 = vmatprep.subr.mxu0 0.0
        %5168 = vmatpush1.msra.mxu0 0.0
        %5169 = vmatprep.subr.mxu0 0.0
        %5170 = vmatpush1.msra.mxu0 0.0
        %5171 = vmatprep.subr.mxu0 0.0
        %5172 = vmatpush1.msra.mxu0 0.0
        %5173 = vmatprep.subr.mxu0 0.0
        %5174 = vmatpush1.msra.mxu0 0.0
        %5175 = vmatprep.subr.mxu0 0.0
        %5176 = vmatpush1.msra.mxu0 0.0
        %5177 = vmatprep.subr.mxu0 0.0
        %5178 = vmatpush1.msra.mxu0 0.0
        %5179 = vmatprep.subr.mxu0 0.0
        %5180 = vmatpush1.msra.mxu0 0.0
        %5181 = vmatprep.subr.mxu0 0.0
        %5182 = vmatpush1.msra.mxu0 0.0
        %5183 = vmatprep.subr.mxu0 0.0
        %5184 = vmatpush1.msra.mxu0 0.0
        %5185 = vmatprep.subr.mxu0 0.0
        %5186 = vmatpush1.msra.mxu0 0.0
        %5187 = vmatprep.subr.mxu0 0.0
        %5188 = vmatpush1.msra.mxu0 0.0
        %5189 = vmatprep.subr.mxu0 0.0
        %5190 = vmatpush1.msra.mxu0 0.0
        %5191 = vmatprep.mubr.f32.mxu0 0.0
        %5192 = vmatmul.mubr.f32.gmra.mrb[0].mxu0 %v4908
        %v5193 = vpop.f32.mrb[0].mxu0
        %v5194 = vadd.f32 0.0, %v5193
        %v5195 = vpop.f32.mrb[0].mxu0
        %v5196 = vadd.f32 0.0, %v5195
        %5197 = vdwg.mxu0
        %v5198 = vadd.f32 %v4688, %v4981
        %v5199 = vadd.f32 %v4690, %v4983
        %v5200 = vadd.f32 %v4759, %v5052
        %v5201 = vadd.f32 %v4761, %v5054
        %v5202 = vadd.f32 %v4830, %v5123
        %v5203 = vadd.f32 %v4832, %v5125
        %v5204 = vadd.f32 %v4901, %v5194
        %v5205 = vadd.f32 %v4903, %v5196
        %v5206 = vadd.f32 %v4299, %v5198
        %v5207 = vadd.f32 %v4300, %v5199
        %v5208 = vadd.f32 %v4301, %v5200
        %v5209 = vadd.f32 %v4302, %v5201
        %v5210 = vadd.f32 %v4303, %v5202
        %v5211 = vadd.f32 %v4304, %v5203
        %v5212 = vadd.f32 %v4305, %v5204
        %v5213 = vadd.f32 %v4306, %v5205
        %s5214 = scalar_lea.vmem %s3, 20
        %v5215 = vld [vmem:[%s5214] sm:$0x7]
        %s5216 = scalar_lea.vmem %s3, 56
        %v5217 = vld [vmem:[%s5216] sm:$0x7]
        %5218 = vrot.lane.b32.xlu0 %v413, 127
        %v5219 = vpop.permute.xlu0 %5218
        %5220 = vrot.lane.b32.xlu0 %v435, 127
        %v5221 = vpop.permute.xlu0 %5220
        %5222 = vrot.lane.b32.xlu0 %v414, 127
        %v5223 = vpop.permute.xlu0 %5222
        %5224 = vrot.lane.b32.xlu0 %v436, 127
        %v5225 = vpop.permute.xlu0 %5224
        %5226 = vrot.lane.b32.xlu0 %v415, 127
        %v5227 = vpop.permute.xlu0 %5226
        %5228 = vrot.lane.b32.xlu0 %v437, 127
        %v5229 = vpop.permute.xlu0 %5228
        %5230 = vrot.lane.b32.xlu0 %v416, 127
        %v5231 = vpop.permute.xlu0 %5230
        %5232 = vrot.lane.b32.xlu0 %v438, 127
        %v5233 = vpop.permute.xlu0 %5232
        %5234 = vrot.lane.b32.xlu0 %v428, 127
        %v5235 = vpop.permute.xlu0 %5234
        %vm5236 = vcmask 1039360
        %v5237 = vsel %vm5236, %v5219, %v5221
        %v5238 = vsel %vm5236, %v5221, %v5223
        %v5239 = vsel %vm5236, %v5223, %v5225
        %v5240 = vsel %vm5236, %v5225, %v5227
        %v5241 = vsel %vm5236, %v5227, %v5229
        %v5242 = vsel %vm5236, %v5229, %v5231
        %v5243 = vsel %vm5236, %v5231, %v5233
        %v5244 = vsel %vm5236, %v5233, %v5235
        %v5246 = vsel %vm475, %v5217, 0
        %v5248 = vsel %vm479, %v5237, 0
        %v5250 = vsel %vm479, %v5238, 0
        %v5252 = vsel %vm479, %v5239, 0
        %v5254 = vsel %vm479, %v5240, 0
        %v5256 = vsel %vm479, %v5241, 0
        %v5258 = vsel %vm479, %v5242, 0
        %v5260 = vsel %vm479, %v5243, 0
        %v5262 = vsel %vm479, %v5244, 0
        %5264 = vmatprep.subr.mxu0 %v5250
        %5265 = vmatpush1.msra.mxu0 %v5248
        %5266 = vmatprep.subr.mxu0 0.0
        %5267 = vmatpush1.msra.mxu0 0.0
        %5268 = vmatprep.subr.mxu0 0.0
        %5269 = vmatpush1.msra.mxu0 0.0
        %5270 = vmatprep.subr.mxu0 0.0
        %5271 = vmatpush1.msra.mxu0 0.0
        %5272 = vmatprep.subr.mxu0 0.0
        %5273 = vmatpush1.msra.mxu0 0.0
        %5274 = vmatprep.subr.mxu0 0.0
        %5275 = vmatpush1.msra.mxu0 0.0
        %5276 = vmatprep.subr.mxu0 0.0
        %5277 = vmatpush1.msra.mxu0 0.0
        %5278 = vmatprep.subr.mxu0 0.0
        %5279 = vmatpush1.msra.mxu0 0.0
        %5280 = vmatprep.subr.mxu0 0.0
        %5281 = vmatpush1.msra.mxu0 0.0
        %5282 = vmatprep.subr.mxu0 0.0
        %5283 = vmatpush1.msra.mxu0 0.0
        %5284 = vmatprep.subr.mxu0 0.0
        %5285 = vmatpush1.msra.mxu0 0.0
        %5286 = vmatprep.subr.mxu0 0.0
        %5287 = vmatpush1.msra.mxu0 0.0
        %5288 = vmatprep.subr.mxu0 0.0
        %5289 = vmatpush1.msra.mxu0 0.0
        %5290 = vmatprep.subr.mxu0 0.0
        %5291 = vmatpush1.msra.mxu0 0.0
        %5292 = vmatprep.subr.mxu0 0.0
        %5293 = vmatpush1.msra.mxu0 0.0
        %5294 = vmatprep.subr.mxu0 0.0
        %5295 = vmatpush1.msra.mxu0 0.0
        %5296 = vmatprep.subr.mxu0 0.0
        %5297 = vmatpush1.msra.mxu0 0.0
        %5298 = vmatprep.subr.mxu0 0.0
        %5299 = vmatpush1.msra.mxu0 0.0
        %5300 = vmatprep.subr.mxu0 0.0
        %5301 = vmatpush1.msra.mxu0 0.0
        %5302 = vmatprep.subr.mxu0 0.0
        %5303 = vmatpush1.msra.mxu0 0.0
        %5304 = vmatprep.subr.mxu0 0.0
        %5305 = vmatpush1.msra.mxu0 0.0
        %5306 = vmatprep.subr.mxu0 0.0
        %5307 = vmatpush1.msra.mxu0 0.0
        %5308 = vmatprep.subr.mxu0 0.0
        %5309 = vmatpush1.msra.mxu0 0.0
        %5310 = vmatprep.subr.mxu0 0.0
        %5311 = vmatpush1.msra.mxu0 0.0
        %5312 = vmatprep.subr.mxu0 0.0
        %5313 = vmatpush1.msra.mxu0 0.0
        %5314 = vmatprep.subr.mxu0 0.0
        %5315 = vmatpush1.msra.mxu0 0.0
        %5316 = vmatprep.subr.mxu0 0.0
        %5317 = vmatpush1.msra.mxu0 0.0
        %5318 = vmatprep.subr.mxu0 0.0
        %5319 = vmatpush1.msra.mxu0 0.0
        %5320 = vmatprep.subr.mxu0 0.0
        %5321 = vmatpush1.msra.mxu0 0.0
        %5322 = vmatprep.subr.mxu0 0.0
        %5323 = vmatpush1.msra.mxu0 0.0
        %5324 = vmatprep.subr.mxu0 0.0
        %5325 = vmatpush1.msra.mxu0 0.0
        %5326 = vmatprep.subr.mxu0 0.0
        %5327 = vmatpush1.msra.mxu0 0.0
        %5328 = vmatprep.mubr.f32.mxu0 0.0
        %5329 = vmatmul.mubr.f32.gmra.mrb[0].mxu0 %v5246
        %v5330 = vpop.f32.mrb[0].mxu0
        %v5331 = vadd.f32 0.0, %v5330
        %v5332 = vpop.f32.mrb[0].mxu0
        %v5333 = vadd.f32 0.0, %v5332
        %5334 = vdwg.mxu0
        %5335 = vmatprep.subr.mxu0 %v5254
        %5336 = vmatpush1.msra.mxu0 %v5252
        %5337 = vmatprep.subr.mxu0 0.0
        %5338 = vmatpush1.msra.mxu0 0.0
        %5339 = vmatprep.subr.mxu0 0.0
        %5340 = vmatpush1.msra.mxu0 0.0
        %5341 = vmatprep.subr.mxu0 0.0
        %5342 = vmatpush1.msra.mxu0 0.0
        %5343 = vmatprep.subr.mxu0 0.0
        %5344 = vmatpush1.msra.mxu0 0.0
        %5345 = vmatprep.subr.mxu0 0.0
        %5346 = vmatpush1.msra.mxu0 0.0
        %5347 = vmatprep.subr.mxu0 0.0
        %5348 = vmatpush1.msra.mxu0 0.0
        %5349 = vmatprep.subr.mxu0 0.0
        %5350 = vmatpush1.msra.mxu0 0.0
        %5351 = vmatprep.subr.mxu0 0.0
        %5352 = vmatpush1.msra.mxu0 0.0
        %5353 = vmatprep.subr.mxu0 0.0
        %5354 = vmatpush1.msra.mxu0 0.0
        %5355 = vmatprep.subr.mxu0 0.0
        %5356 = vmatpush1.msra.mxu0 0.0
        %5357 = vmatprep.subr.mxu0 0.0
        %5358 = vmatpush1.msra.mxu0 0.0
        %5359 = vmatprep.subr.mxu0 0.0
        %5360 = vmatpush1.msra.mxu0 0.0
        %5361 = vmatprep.subr.mxu0 0.0
        %5362 = vmatpush1.msra.mxu0 0.0
        %5363 = vmatprep.subr.mxu0 0.0
        %5364 = vmatpush1.msra.mxu0 0.0
        %5365 = vmatprep.subr.mxu0 0.0
        %5366 = vmatpush1.msra.mxu0 0.0
        %5367 = vmatprep.subr.mxu0 0.0
        %5368 = vmatpush1.msra.mxu0 0.0
        %5369 = vmatprep.subr.mxu0 0.0
        %5370 = vmatpush1.msra.mxu0 0.0
        %5371 = vmatprep.subr.mxu0 0.0
        %5372 = vmatpush1.msra.mxu0 0.0
        %5373 = vmatprep.subr.mxu0 0.0
        %5374 = vmatpush1.msra.mxu0 0.0
        %5375 = vmatprep.subr.mxu0 0.0
        %5376 = vmatpush1.msra.mxu0 0.0
        %5377 = vmatprep.subr.mxu0 0.0
        %5378 = vmatpush1.msra.mxu0 0.0
        %5379 = vmatprep.subr.mxu0 0.0
        %5380 = vmatpush1.msra.mxu0 0.0
        %5381 = vmatprep.subr.mxu0 0.0
        %5382 = vmatpush1.msra.mxu0 0.0
        %5383 = vmatprep.subr.mxu0 0.0
        %5384 = vmatpush1.msra.mxu0 0.0
        %5385 = vmatprep.subr.mxu0 0.0
        %5386 = vmatpush1.msra.mxu0 0.0
        %5387 = vmatprep.subr.mxu0 0.0
        %5388 = vmatpush1.msra.mxu0 0.0
        %5389 = vmatprep.subr.mxu0 0.0
        %5390 = vmatpush1.msra.mxu0 0.0
        %5391 = vmatprep.subr.mxu0 0.0
        %5392 = vmatpush1.msra.mxu0 0.0
        %5393 = vmatprep.subr.mxu0 0.0
        %5394 = vmatpush1.msra.mxu0 0.0
        %5395 = vmatprep.subr.mxu0 0.0
        %5396 = vmatpush1.msra.mxu0 0.0
        %5397 = vmatprep.subr.mxu0 0.0
        %5398 = vmatpush1.msra.mxu0 0.0
        %5399 = vmatprep.mubr.f32.mxu0 0.0
        %5400 = vmatmul.mubr.f32.gmra.mrb[0].mxu0 %v5246
        %v5401 = vpop.f32.mrb[0].mxu0
        %v5402 = vadd.f32 0.0, %v5401
        %v5403 = vpop.f32.mrb[0].mxu0
        %v5404 = vadd.f32 0.0, %v5403
        %5405 = vdwg.mxu0
        %5406 = vmatprep.subr.mxu0 %v5258
        %5407 = vmatpush1.msra.mxu0 %v5256
        %5408 = vmatprep.subr.mxu0 0.0
        %5409 = vmatpush1.msra.mxu0 0.0
        %5410 = vmatprep.subr.mxu0 0.0
        %5411 = vmatpush1.msra.mxu0 0.0
        %5412 = vmatprep.subr.mxu0 0.0
        %5413 = vmatpush1.msra.mxu0 0.0
        %5414 = vmatprep.subr.mxu0 0.0
        %5415 = vmatpush1.msra.mxu0 0.0
        %5416 = vmatprep.subr.mxu0 0.0
        %5417 = vmatpush1.msra.mxu0 0.0
        %5418 = vmatprep.subr.mxu0 0.0
        %5419 = vmatpush1.msra.mxu0 0.0
        %5420 = vmatprep.subr.mxu0 0.0
        %5421 = vmatpush1.msra.mxu0 0.0
        %5422 = vmatprep.subr.mxu0 0.0
        %5423 = vmatpush1.msra.mxu0 0.0
        %5424 = vmatprep.subr.mxu0 0.0
        %5425 = vmatpush1.msra.mxu0 0.0
        %5426 = vmatprep.subr.mxu0 0.0
        %5427 = vmatpush1.msra.mxu0 0.0
        %5428 = vmatprep.subr.mxu0 0.0
        %5429 = vmatpush1.msra.mxu0 0.0
        %5430 = vmatprep.subr.mxu0 0.0
        %5431 = vmatpush1.msra.mxu0 0.0
        %5432 = vmatprep.subr.mxu0 0.0
        %5433 = vmatpush1.msra.mxu0 0.0
        %5434 = vmatprep.subr.mxu0 0.0
        %5435 = vmatpush1.msra.mxu0 0.0
        %5436 = vmatprep.subr.mxu0 0.0
        %5437 = vmatpush1.msra.mxu0 0.0
        %5438 = vmatprep.subr.mxu0 0.0
        %5439 = vmatpush1.msra.mxu0 0.0
        %5440 = vmatprep.subr.mxu0 0.0
        %5441 = vmatpush1.msra.mxu0 0.0
        %5442 = vmatprep.subr.mxu0 0.0
        %5443 = vmatpush1.msra.mxu0 0.0
        %5444 = vmatprep.subr.mxu0 0.0
        %5445 = vmatpush1.msra.mxu0 0.0
        %5446 = vmatprep.subr.mxu0 0.0
        %5447 = vmatpush1.msra.mxu0 0.0
        %5448 = vmatprep.subr.mxu0 0.0
        %5449 = vmatpush1.msra.mxu0 0.0
        %5450 = vmatprep.subr.mxu0 0.0
        %5451 = vmatpush1.msra.mxu0 0.0
        %5452 = vmatprep.subr.mxu0 0.0
        %5453 = vmatpush1.msra.mxu0 0.0
        %5454 = vmatprep.subr.mxu0 0.0
        %5455 = vmatpush1.msra.mxu0 0.0
        %5456 = vmatprep.subr.mxu0 0.0
        %5457 = vmatpush1.msra.mxu0 0.0
        %5458 = vmatprep.subr.mxu0 0.0
        %5459 = vmatpush1.msra.mxu0 0.0
        %5460 = vmatprep.subr.mxu0 0.0
        %5461 = vmatpush1.msra.mxu0 0.0
        %5462 = vmatprep.subr.mxu0 0.0
        %5463 = vmatpush1.msra.mxu0 0.0
        %5464 = vmatprep.subr.mxu0 0.0
        %5465 = vmatpush1.msra.mxu0 0.0
        %5466 = vmatprep.subr.mxu0 0.0
        %5467 = vmatpush1.msra.mxu0 0.0
        %5468 = vmatprep.subr.mxu0 0.0
        %5469 = vmatpush1.msra.mxu0 0.0
        %5470 = vmatprep.mubr.f32.mxu0 0.0
        %5471 = vmatmul.mubr.f32.gmra.mrb[0].mxu0 %v5246
        %v5472 = vpop.f32.mrb[0].mxu0
        %v5473 = vadd.f32 0.0, %v5472
        %v5474 = vpop.f32.mrb[0].mxu0
        %v5475 = vadd.f32 0.0, %v5474
        %5476 = vdwg.mxu0
        %5477 = vmatprep.subr.mxu0 %v5262
        %5478 = vmatpush1.msra.mxu0 %v5260
        %5479 = vmatprep.subr.mxu0 0.0
        %5480 = vmatpush1.msra.mxu0 0.0
        %5481 = vmatprep.subr.mxu0 0.0
        %5482 = vmatpush1.msra.mxu0 0.0
        %5483 = vmatprep.subr.mxu0 0.0
        %5484 = vmatpush1.msra.mxu0 0.0
        %5485 = vmatprep.subr.mxu0 0.0
        %5486 = vmatpush1.msra.mxu0 0.0
        %5487 = vmatprep.subr.mxu0 0.0
        %5488 = vmatpush1.msra.mxu0 0.0
        %5489 = vmatprep.subr.mxu0 0.0
        %5490 = vmatpush1.msra.mxu0 0.0
        %5491 = vmatprep.subr.mxu0 0.0
        %5492 = vmatpush1.msra.mxu0 0.0
        %5493 = vmatprep.subr.mxu0 0.0
        %5494 = vmatpush1.msra.mxu0 0.0
        %5495 = vmatprep.subr.mxu0 0.0
        %5496 = vmatpush1.msra.mxu0 0.0
        %5497 = vmatprep.subr.mxu0 0.0
        %5498 = vmatpush1.msra.mxu0 0.0
        %5499 = vmatprep.subr.mxu0 0.0
        %5500 = vmatpush1.msra.mxu0 0.0
        %5501 = vmatprep.subr.mxu0 0.0
        %5502 = vmatpush1.msra.mxu0 0.0
        %5503 = vmatprep.subr.mxu0 0.0
        %5504 = vmatpush1.msra.mxu0 0.0
        %5505 = vmatprep.subr.mxu0 0.0
        %5506 = vmatpush1.msra.mxu0 0.0
        %5507 = vmatprep.subr.mxu0 0.0
        %5508 = vmatpush1.msra.mxu0 0.0
        %5509 = vmatprep.subr.mxu0 0.0
        %5510 = vmatpush1.msra.mxu0 0.0
        %5511 = vmatprep.subr.mxu0 0.0
        %5512 = vmatpush1.msra.mxu0 0.0
        %5513 = vmatprep.subr.mxu0 0.0
        %5514 = vmatpush1.msra.mxu0 0.0
        %5515 = vmatprep.subr.mxu0 0.0
        %5516 = vmatpush1.msra.mxu0 0.0
        %5517 = vmatprep.subr.mxu0 0.0
        %5518 = vmatpush1.msra.mxu0 0.0
        %5519 = vmatprep.subr.mxu0 0.0
        %5520 = vmatpush1.msra.mxu0 0.0
        %5521 = vmatprep.subr.mxu0 0.0
        %5522 = vmatpush1.msra.mxu0 0.0
        %5523 = vmatprep.subr.mxu0 0.0
        %5524 = vmatpush1.msra.mxu0 0.0
        %5525 = vmatprep.subr.mxu0 0.0
        %5526 = vmatpush1.msra.mxu0 0.0
        %5527 = vmatprep.subr.mxu0 0.0
        %5528 = vmatpush1.msra.mxu0 0.0
        %5529 = vmatprep.subr.mxu0 0.0
        %5530 = vmatpush1.msra.mxu0 0.0
        %5531 = vmatprep.subr.mxu0 0.0
        %5532 = vmatpush1.msra.mxu0 0.0
        %5533 = vmatprep.subr.mxu0 0.0
        %5534 = vmatpush1.msra.mxu0 0.0
        %5535 = vmatprep.subr.mxu0 0.0
        %5536 = vmatpush1.msra.mxu0 0.0
        %5537 = vmatprep.subr.mxu0 0.0
        %5538 = vmatpush1.msra.mxu0 0.0
        %5539 = vmatprep.subr.mxu0 0.0
        %5540 = vmatpush1.msra.mxu0 0.0
        %5541 = vmatprep.mubr.f32.mxu0 0.0
        %5542 = vmatmul.mubr.f32.gmra.mrb[0].mxu0 %v5246
        %v5543 = vpop.f32.mrb[0].mxu0
        %v5544 = vadd.f32 0.0, %v5543
        %v5545 = vpop.f32.mrb[0].mxu0
        %v5546 = vadd.f32 0.0, %v5545
        %5547 = vdwg.mxu0
        %5548 = vrot.lane.b32.xlu0 %v423, 127
        %v5549 = vpop.permute.xlu0 %5548
        %5550 = vrot.lane.b32.xlu0 %v430, 127
        %v5551 = vpop.permute.xlu0 %5550
        %v5552 = vsel %vm5236, %v5549, %v5551
        %v5553 = vsel %vm5236, %v5551, %v5219
        %v5555 = vsel %vm475, %v5215, 0
        %v5557 = vsel %vm479, %v5552, 0
        %v5559 = vsel %vm479, %v5553, 0
        %5561 = vmatprep.subr.mxu0 %v5559
        %5562 = vmatpush1.msra.mxu0 %v5557
        %5563 = vmatprep.subr.mxu0 0.0
        %5564 = vmatpush1.msra.mxu0 0.0
        %5565 = vmatprep.subr.mxu0 0.0
        %5566 = vmatpush1.msra.mxu0 0.0
        %5567 = vmatprep.subr.mxu0 0.0
        %5568 = vmatpush1.msra.mxu0 0.0
        %5569 = vmatprep.subr.mxu0 0.0
        %5570 = vmatpush1.msra.mxu0 0.0
        %5571 = vmatprep.subr.mxu0 0.0
        %5572 = vmatpush1.msra.mxu0 0.0
        %5573 = vmatprep.subr.mxu0 0.0
        %5574 = vmatpush1.msra.mxu0 0.0
        %5575 = vmatprep.subr.mxu0 0.0
        %5576 = vmatpush1.msra.mxu0 0.0
        %5577 = vmatprep.subr.mxu0 0.0
        %5578 = vmatpush1.msra.mxu0 0.0
        %5579 = vmatprep.subr.mxu0 0.0
        %5580 = vmatpush1.msra.mxu0 0.0
        %5581 = vmatprep.subr.mxu0 0.0
        %5582 = vmatpush1.msra.mxu0 0.0
        %5583 = vmatprep.subr.mxu0 0.0
        %5584 = vmatpush1.msra.mxu0 0.0
        %5585 = vmatprep.subr.mxu0 0.0
        %5586 = vmatpush1.msra.mxu0 0.0
        %5587 = vmatprep.subr.mxu0 0.0
        %5588 = vmatpush1.msra.mxu0 0.0
        %5589 = vmatprep.subr.mxu0 0.0
        %5590 = vmatpush1.msra.mxu0 0.0
        %5591 = vmatprep.subr.mxu0 0.0
        %5592 = vmatpush1.msra.mxu0 0.0
        %5593 = vmatprep.subr.mxu0 0.0
        %5594 = vmatpush1.msra.mxu0 0.0
        %5595 = vmatprep.subr.mxu0 0.0
        %5596 = vmatpush1.msra.mxu0 0.0
        %5597 = vmatprep.subr.mxu0 0.0
        %5598 = vmatpush1.msra.mxu0 0.0
        %5599 = vmatprep.subr.mxu0 0.0
        %5600 = vmatpush1.msra.mxu0 0.0
        %5601 = vmatprep.subr.mxu0 0.0
        %5602 = vmatpush1.msra.mxu0 0.0
        %5603 = vmatprep.subr.mxu0 0.0
        %5604 = vmatpush1.msra.mxu0 0.0
        %5605 = vmatprep.subr.mxu0 0.0
        %5606 = vmatpush1.msra.mxu0 0.0
        %5607 = vmatprep.subr.mxu0 0.0
        %5608 = vmatpush1.msra.mxu0 0.0
        %5609 = vmatprep.subr.mxu0 0.0
        %5610 = vmatpush1.msra.mxu0 0.0
        %5611 = vmatprep.subr.mxu0 0.0
        %5612 = vmatpush1.msra.mxu0 0.0
        %5613 = vmatprep.subr.mxu0 0.0
        %5614 = vmatpush1.msra.mxu0 0.0
        %5615 = vmatprep.subr.mxu0 0.0
        %5616 = vmatpush1.msra.mxu0 0.0
        %5617 = vmatprep.subr.mxu0 0.0
        %5618 = vmatpush1.msra.mxu0 0.0
        %5619 = vmatprep.subr.mxu0 0.0
        %5620 = vmatpush1.msra.mxu0 0.0
        %5621 = vmatprep.subr.mxu0 0.0
        %5622 = vmatpush1.msra.mxu0 0.0
        %5623 = vmatprep.subr.mxu0 0.0
        %5624 = vmatpush1.msra.mxu0 0.0
        %5625 = vmatprep.mubr.f32.mxu0 0.0
        %5626 = vmatmul.mubr.f32.gmra.mrb[0].mxu0 %v5555
        %v5627 = vpop.f32.mrb[0].mxu0
        %v5628 = vadd.f32 %v5331, %v5627
        %v5629 = vpop.f32.mrb[0].mxu0
        %v5630 = vadd.f32 %v5333, %v5629
        %5631 = vdwg.mxu0
        %5632 = vmatprep.subr.mxu0 %v5250
        %5633 = vmatpush1.msra.mxu0 %v5248
        %5634 = vmatprep.subr.mxu0 0.0
        %5635 = vmatpush1.msra.mxu0 0.0
        %5636 = vmatprep.subr.mxu0 0.0
        %5637 = vmatpush1.msra.mxu0 0.0
        %5638 = vmatprep.subr.mxu0 0.0
        %5639 = vmatpush1.msra.mxu0 0.0
        %5640 = vmatprep.subr.mxu0 0.0
        %5641 = vmatpush1.msra.mxu0 0.0
        %5642 = vmatprep.subr.mxu0 0.0
        %5643 = vmatpush1.msra.mxu0 0.0
        %5644 = vmatprep.subr.mxu0 0.0
        %5645 = vmatpush1.msra.mxu0 0.0
        %5646 = vmatprep.subr.mxu0 0.0
        %5647 = vmatpush1.msra.mxu0 0.0
        %5648 = vmatprep.subr.mxu0 0.0
        %5649 = vmatpush1.msra.mxu0 0.0
        %5650 = vmatprep.subr.mxu0 0.0
        %5651 = vmatpush1.msra.mxu0 0.0
        %5652 = vmatprep.subr.mxu0 0.0
        %5653 = vmatpush1.msra.mxu0 0.0
        %5654 = vmatprep.subr.mxu0 0.0
        %5655 = vmatpush1.msra.mxu0 0.0
        %5656 = vmatprep.subr.mxu0 0.0
        %5657 = vmatpush1.msra.mxu0 0.0
        %5658 = vmatprep.subr.mxu0 0.0
        %5659 = vmatpush1.msra.mxu0 0.0
        %5660 = vmatprep.subr.mxu0 0.0
        %5661 = vmatpush1.msra.mxu0 0.0
        %5662 = vmatprep.subr.mxu0 0.0
        %5663 = vmatpush1.msra.mxu0 0.0
        %5664 = vmatprep.subr.mxu0 0.0
        %5665 = vmatpush1.msra.mxu0 0.0
        %5666 = vmatprep.subr.mxu0 0.0
        %5667 = vmatpush1.msra.mxu0 0.0
        %5668 = vmatprep.subr.mxu0 0.0
        %5669 = vmatpush1.msra.mxu0 0.0
        %5670 = vmatprep.subr.mxu0 0.0
        %5671 = vmatpush1.msra.mxu0 0.0
        %5672 = vmatprep.subr.mxu0 0.0
        %5673 = vmatpush1.msra.mxu0 0.0
        %5674 = vmatprep.subr.mxu0 0.0
        %5675 = vmatpush1.msra.mxu0 0.0
        %5676 = vmatprep.subr.mxu0 0.0
        %5677 = vmatpush1.msra.mxu0 0.0
        %5678 = vmatprep.subr.mxu0 0.0
        %5679 = vmatpush1.msra.mxu0 0.0
        %5680 = vmatprep.subr.mxu0 0.0
        %5681 = vmatpush1.msra.mxu0 0.0
        %5682 = vmatprep.subr.mxu0 0.0
        %5683 = vmatpush1.msra.mxu0 0.0
        %5684 = vmatprep.subr.mxu0 0.0
        %5685 = vmatpush1.msra.mxu0 0.0
        %5686 = vmatprep.subr.mxu0 0.0
        %5687 = vmatpush1.msra.mxu0 0.0
        %5688 = vmatprep.subr.mxu0 0.0
        %5689 = vmatpush1.msra.mxu0 0.0
        %5690 = vmatprep.subr.mxu0 0.0
        %5691 = vmatpush1.msra.mxu0 0.0
        %5692 = vmatprep.subr.mxu0 0.0
        %5693 = vmatpush1.msra.mxu0 0.0
        %5694 = vmatprep.subr.mxu0 0.0
        %5695 = vmatpush1.msra.mxu0 0.0
        %5696 = vmatprep.mubr.f32.mxu0 0.0
        %5697 = vmatmul.mubr.f32.gmra.mrb[0].mxu0 %v5555
        %v5698 = vpop.f32.mrb[0].mxu0
        %v5699 = vadd.f32 %v5402, %v5698
        %v5700 = vpop.f32.mrb[0].mxu0
        %v5701 = vadd.f32 %v5404, %v5700
        %5702 = vdwg.mxu0
        %5703 = vmatprep.subr.mxu0 %v5254
        %5704 = vmatpush1.msra.mxu0 %v5252
        %5705 = vmatprep.subr.mxu0 0.0
        %5706 = vmatpush1.msra.mxu0 0.0
        %5707 = vmatprep.subr.mxu0 0.0
        %5708 = vmatpush1.msra.mxu0 0.0
        %5709 = vmatprep.subr.mxu0 0.0
        %5710 = vmatpush1.msra.mxu0 0.0
        %5711 = vmatprep.subr.mxu0 0.0
        %5712 = vmatpush1.msra.mxu0 0.0
        %5713 = vmatprep.subr.mxu0 0.0
        %5714 = vmatpush1.msra.mxu0 0.0
        %5715 = vmatprep.subr.mxu0 0.0
        %5716 = vmatpush1.msra.mxu0 0.0
        %5717 = vmatprep.subr.mxu0 0.0
        %5718 = vmatpush1.msra.mxu0 0.0
        %5719 = vmatprep.subr.mxu0 0.0
        %5720 = vmatpush1.msra.mxu0 0.0
        %5721 = vmatprep.subr.mxu0 0.0
        %5722 = vmatpush1.msra.mxu0 0.0
        %5723 = vmatprep.subr.mxu0 0.0
        %5724 = vmatpush1.msra.mxu0 0.0
        %5725 = vmatprep.subr.mxu0 0.0
        %5726 = vmatpush1.msra.mxu0 0.0
        %5727 = vmatprep.subr.mxu0 0.0
        %5728 = vmatpush1.msra.mxu0 0.0
        %5729 = vmatprep.subr.mxu0 0.0
        %5730 = vmatpush1.msra.mxu0 0.0
        %5731 = vmatprep.subr.mxu0 0.0
        %5732 = vmatpush1.msra.mxu0 0.0
        %5733 = vmatprep.subr.mxu0 0.0
        %5734 = vmatpush1.msra.mxu0 0.0
        %5735 = vmatprep.subr.mxu0 0.0
        %5736 = vmatpush1.msra.mxu0 0.0
        %5737 = vmatprep.subr.mxu0 0.0
        %5738 = vmatpush1.msra.mxu0 0.0
        %5739 = vmatprep.subr.mxu0 0.0
        %5740 = vmatpush1.msra.mxu0 0.0
        %5741 = vmatprep.subr.mxu0 0.0
        %5742 = vmatpush1.msra.mxu0 0.0
        %5743 = vmatprep.subr.mxu0 0.0
        %5744 = vmatpush1.msra.mxu0 0.0
        %5745 = vmatprep.subr.mxu0 0.0
        %5746 = vmatpush1.msra.mxu0 0.0
        %5747 = vmatprep.subr.mxu0 0.0
        %5748 = vmatpush1.msra.mxu0 0.0
        %5749 = vmatprep.subr.mxu0 0.0
        %5750 = vmatpush1.msra.mxu0 0.0
        %5751 = vmatprep.subr.mxu0 0.0
        %5752 = vmatpush1.msra.mxu0 0.0
        %5753 = vmatprep.subr.mxu0 0.0
        %5754 = vmatpush1.msra.mxu0 0.0
        %5755 = vmatprep.subr.mxu0 0.0
        %5756 = vmatpush1.msra.mxu0 0.0
        %5757 = vmatprep.subr.mxu0 0.0
        %5758 = vmatpush1.msra.mxu0 0.0
        %5759 = vmatprep.subr.mxu0 0.0
        %5760 = vmatpush1.msra.mxu0 0.0
        %5761 = vmatprep.subr.mxu0 0.0
        %5762 = vmatpush1.msra.mxu0 0.0
        %5763 = vmatprep.subr.mxu0 0.0
        %5764 = vmatpush1.msra.mxu0 0.0
        %5765 = vmatprep.subr.mxu0 0.0
        %5766 = vmatpush1.msra.mxu0 0.0
        %5767 = vmatprep.mubr.f32.mxu0 0.0
        %5768 = vmatmul.mubr.f32.gmra.mrb[0].mxu0 %v5555
        %v5769 = vpop.f32.mrb[0].mxu0
        %v5770 = vadd.f32 %v5473, %v5769
        %v5771 = vpop.f32.mrb[0].mxu0
        %v5772 = vadd.f32 %v5475, %v5771
        %5773 = vdwg.mxu0
        %5774 = vmatprep.subr.mxu0 %v5258
        %5775 = vmatpush1.msra.mxu0 %v5256
        %5776 = vmatprep.subr.mxu0 0.0
        %5777 = vmatpush1.msra.mxu0 0.0
        %5778 = vmatprep.subr.mxu0 0.0
        %5779 = vmatpush1.msra.mxu0 0.0
        %5780 = vmatprep.subr.mxu0 0.0
        %5781 = vmatpush1.msra.mxu0 0.0
        %5782 = vmatprep.subr.mxu0 0.0
        %5783 = vmatpush1.msra.mxu0 0.0
        %5784 = vmatprep.subr.mxu0 0.0
        %5785 = vmatpush1.msra.mxu0 0.0
        %5786 = vmatprep.subr.mxu0 0.0
        %5787 = vmatpush1.msra.mxu0 0.0
        %5788 = vmatprep.subr.mxu0 0.0
        %5789 = vmatpush1.msra.mxu0 0.0
        %5790 = vmatprep.subr.mxu0 0.0
        %5791 = vmatpush1.msra.mxu0 0.0
        %5792 = vmatprep.subr.mxu0 0.0
        %5793 = vmatpush1.msra.mxu0 0.0
        %5794 = vmatprep.subr.mxu0 0.0
        %5795 = vmatpush1.msra.mxu0 0.0
        %5796 = vmatprep.subr.mxu0 0.0
        %5797 = vmatpush1.msra.mxu0 0.0
        %5798 = vmatprep.subr.mxu0 0.0
        %5799 = vmatpush1.msra.mxu0 0.0
        %5800 = vmatprep.subr.mxu0 0.0
        %5801 = vmatpush1.msra.mxu0 0.0
        %5802 = vmatprep.subr.mxu0 0.0
        %5803 = vmatpush1.msra.mxu0 0.0
        %5804 = vmatprep.subr.mxu0 0.0
        %5805 = vmatpush1.msra.mxu0 0.0
        %5806 = vmatprep.subr.mxu0 0.0
        %5807 = vmatpush1.msra.mxu0 0.0
        %5808 = vmatprep.subr.mxu0 0.0
        %5809 = vmatpush1.msra.mxu0 0.0
        %5810 = vmatprep.subr.mxu0 0.0
        %5811 = vmatpush1.msra.mxu0 0.0
        %5812 = vmatprep.subr.mxu0 0.0
        %5813 = vmatpush1.msra.mxu0 0.0
        %5814 = vmatprep.subr.mxu0 0.0
        %5815 = vmatpush1.msra.mxu0 0.0
        %5816 = vmatprep.subr.mxu0 0.0
        %5817 = vmatpush1.msra.mxu0 0.0
        %5818 = vmatprep.subr.mxu0 0.0
        %5819 = vmatpush1.msra.mxu0 0.0
        %5820 = vmatprep.subr.mxu0 0.0
        %5821 = vmatpush1.msra.mxu0 0.0
        %5822 = vmatprep.subr.mxu0 0.0
        %5823 = vmatpush1.msra.mxu0 0.0
        %5824 = vmatprep.subr.mxu0 0.0
        %5825 = vmatpush1.msra.mxu0 0.0
        %5826 = vmatprep.subr.mxu0 0.0
        %5827 = vmatpush1.msra.mxu0 0.0
        %5828 = vmatprep.subr.mxu0 0.0
        %5829 = vmatpush1.msra.mxu0 0.0
        %5830 = vmatprep.subr.mxu0 0.0
        %5831 = vmatpush1.msra.mxu0 0.0
        %5832 = vmatprep.subr.mxu0 0.0
        %5833 = vmatpush1.msra.mxu0 0.0
        %5834 = vmatprep.subr.mxu0 0.0
        %5835 = vmatpush1.msra.mxu0 0.0
        %5836 = vmatprep.subr.mxu0 0.0
        %5837 = vmatpush1.msra.mxu0 0.0
        %5838 = vmatprep.mubr.f32.mxu0 0.0
        %5839 = vmatmul.mubr.f32.gmra.mrb[0].mxu0 %v5555
        %v5840 = vpop.f32.mrb[0].mxu0
        %v5841 = vadd.f32 %v5544, %v5840
        %v5842 = vpop.f32.mrb[0].mxu0
        %v5843 = vadd.f32 %v5546, %v5842
        %5844 = vdwg.mxu0
        %s5845 = scalar_lea.vmem %s3, 92
        %v5846 = vld [vmem:[%s5845] sm:$0x7]
        %5847 = vrot.lane.b32.xlu0 %v440, 127
        %v5848 = vpop.permute.xlu0 %5847
        %5849 = vrot.lane.b32.xlu0 0.0, 127
        %v5850 = vpop.permute.xlu0 %5849
        %v5851 = vsel %vm5236, %v5235, %v5848
        %v5852 = vsel %vm5236, %v5848, %v5850
        %v5854 = vsel %vm475, %v5846, 0
        %v5856 = vsel %vm479, %v5851, 0
        %v5858 = vsel %vm479, %v5852, 0
        %5860 = vmatprep.subr.mxu0 %v5254
        %5861 = vmatpush1.msra.mxu0 %v5252
        %5862 = vmatprep.subr.mxu0 0.0
        %5863 = vmatpush1.msra.mxu0 0.0
        %5864 = vmatprep.subr.mxu0 0.0
        %5865 = vmatpush1.msra.mxu0 0.0
        %5866 = vmatprep.subr.mxu0 0.0
        %5867 = vmatpush1.msra.mxu0 0.0
        %5868 = vmatprep.subr.mxu0 0.0
        %5869 = vmatpush1.msra.mxu0 0.0
        %5870 = vmatprep.subr.mxu0 0.0
        %5871 = vmatpush1.msra.mxu0 0.0
        %5872 = vmatprep.subr.mxu0 0.0
        %5873 = vmatpush1.msra.mxu0 0.0
        %5874 = vmatprep.subr.mxu0 0.0
        %5875 = vmatpush1.msra.mxu0 0.0
        %5876 = vmatprep.subr.mxu0 0.0
        %5877 = vmatpush1.msra.mxu0 0.0
        %5878 = vmatprep.subr.mxu0 0.0
        %5879 = vmatpush1.msra.mxu0 0.0
        %5880 = vmatprep.subr.mxu0 0.0
        %5881 = vmatpush1.msra.mxu0 0.0
        %5882 = vmatprep.subr.mxu0 0.0
        %5883 = vmatpush1.msra.mxu0 0.0
        %5884 = vmatprep.subr.mxu0 0.0
        %5885 = vmatpush1.msra.mxu0 0.0
        %5886 = vmatprep.subr.mxu0 0.0
        %5887 = vmatpush1.msra.mxu0 0.0
        %5888 = vmatprep.subr.mxu0 0.0
        %5889 = vmatpush1.msra.mxu0 0.0
        %5890 = vmatprep.subr.mxu0 0.0
        %5891 = vmatpush1.msra.mxu0 0.0
        %5892 = vmatprep.subr.mxu0 0.0
        %5893 = vmatpush1.msra.mxu0 0.0
        %5894 = vmatprep.subr.mxu0 0.0
        %5895 = vmatpush1.msra.mxu0 0.0
        %5896 = vmatprep.subr.mxu0 0.0
        %5897 = vmatpush1.msra.mxu0 0.0
        %5898 = vmatprep.subr.mxu0 0.0
        %5899 = vmatpush1.msra.mxu0 0.0
        %5900 = vmatprep.subr.mxu0 0.0
        %5901 = vmatpush1.msra.mxu0 0.0
        %5902 = vmatprep.subr.mxu0 0.0
        %5903 = vmatpush1.msra.mxu0 0.0
        %5904 = vmatprep.subr.mxu0 0.0
        %5905 = vmatpush1.msra.mxu0 0.0
        %5906 = vmatprep.subr.mxu0 0.0
        %5907 = vmatpush1.msra.mxu0 0.0
        %5908 = vmatprep.subr.mxu0 0.0
        %5909 = vmatpush1.msra.mxu0 0.0
        %5910 = vmatprep.subr.mxu0 0.0
        %5911 = vmatpush1.msra.mxu0 0.0
        %5912 = vmatprep.subr.mxu0 0.0
        %5913 = vmatpush1.msra.mxu0 0.0
        %5914 = vmatprep.subr.mxu0 0.0
        %5915 = vmatpush1.msra.mxu0 0.0
        %5916 = vmatprep.subr.mxu0 0.0
        %5917 = vmatpush1.msra.mxu0 0.0
        %5918 = vmatprep.subr.mxu0 0.0
        %5919 = vmatpush1.msra.mxu0 0.0
        %5920 = vmatprep.subr.mxu0 0.0
        %5921 = vmatpush1.msra.mxu0 0.0
        %5922 = vmatprep.subr.mxu0 0.0
        %5923 = vmatpush1.msra.mxu0 0.0
        %5924 = vmatprep.mubr.f32.mxu0 0.0
        %5925 = vmatmul.mubr.f32.gmra.mrb[0].mxu0 %v5854
        %v5926 = vpop.f32.mrb[0].mxu0
        %v5927 = vadd.f32 0.0, %v5926
        %v5928 = vpop.f32.mrb[0].mxu0
        %v5929 = vadd.f32 0.0, %v5928
        %5930 = vdwg.mxu0
        %5931 = vmatprep.subr.mxu0 %v5258
        %5932 = vmatpush1.msra.mxu0 %v5256
        %5933 = vmatprep.subr.mxu0 0.0
        %5934 = vmatpush1.msra.mxu0 0.0
        %5935 = vmatprep.subr.mxu0 0.0
        %5936 = vmatpush1.msra.mxu0 0.0
        %5937 = vmatprep.subr.mxu0 0.0
        %5938 = vmatpush1.msra.mxu0 0.0
        %5939 = vmatprep.subr.mxu0 0.0
        %5940 = vmatpush1.msra.mxu0 0.0
        %5941 = vmatprep.subr.mxu0 0.0
        %5942 = vmatpush1.msra.mxu0 0.0
        %5943 = vmatprep.subr.mxu0 0.0
        %5944 = vmatpush1.msra.mxu0 0.0
        %5945 = vmatprep.subr.mxu0 0.0
        %5946 = vmatpush1.msra.mxu0 0.0
        %5947 = vmatprep.subr.mxu0 0.0
        %5948 = vmatpush1.msra.mxu0 0.0
        %5949 = vmatprep.subr.mxu0 0.0
        %5950 = vmatpush1.msra.mxu0 0.0
        %5951 = vmatprep.subr.mxu0 0.0
        %5952 = vmatpush1.msra.mxu0 0.0
        %5953 = vmatprep.subr.mxu0 0.0
        %5954 = vmatpush1.msra.mxu0 0.0
        %5955 = vmatprep.subr.mxu0 0.0
        %5956 = vmatpush1.msra.mxu0 0.0
        %5957 = vmatprep.subr.mxu0 0.0
        %5958 = vmatpush1.msra.mxu0 0.0
        %5959 = vmatprep.subr.mxu0 0.0
        %5960 = vmatpush1.msra.mxu0 0.0
        %5961 = vmatprep.subr.mxu0 0.0
        %5962 = vmatpush1.msra.mxu0 0.0
        %5963 = vmatprep.subr.mxu0 0.0
        %5964 = vmatpush1.msra.mxu0 0.0
        %5965 = vmatprep.subr.mxu0 0.0
        %5966 = vmatpush1.msra.mxu0 0.0
        %5967 = vmatprep.subr.mxu0 0.0
        %5968 = vmatpush1.msra.mxu0 0.0
        %5969 = vmatprep.subr.mxu0 0.0
        %5970 = vmatpush1.msra.mxu0 0.0
        %5971 = vmatprep.subr.mxu0 0.0
        %5972 = vmatpush1.msra.mxu0 0.0
        %5973 = vmatprep.subr.mxu0 0.0
        %5974 = vmatpush1.msra.mxu0 0.0
        %5975 = vmatprep.subr.mxu0 0.0
        %5976 = vmatpush1.msra.mxu0 0.0
        %5977 = vmatprep.subr.mxu0 0.0
        %5978 = vmatpush1.msra.mxu0 0.0
        %5979 = vmatprep.subr.mxu0 0.0
        %5980 = vmatpush1.msra.mxu0 0.0
        %5981 = vmatprep.subr.mxu0 0.0
        %5982 = vmatpush1.msra.mxu0 0.0
        %5983 = vmatprep.subr.mxu0 0.0
        %5984 = vmatpush1.msra.mxu0 0.0
        %5985 = vmatprep.subr.mxu0 0.0
        %5986 = vmatpush1.msra.mxu0 0.0
        %5987 = vmatprep.subr.mxu0 0.0
        %5988 = vmatpush1.msra.mxu0 0.0
        %5989 = vmatprep.subr.mxu0 0.0
        %5990 = vmatpush1.msra.mxu0 0.0
        %5991 = vmatprep.subr.mxu0 0.0
        %5992 = vmatpush1.msra.mxu0 0.0
        %5993 = vmatprep.subr.mxu0 0.0
        %5994 = vmatpush1.msra.mxu0 0.0
        %5995 = vmatprep.mubr.f32.mxu0 0.0
        %5996 = vmatmul.mubr.f32.gmra.mrb[0].mxu0 %v5854
        %v5997 = vpop.f32.mrb[0].mxu0
        %v5998 = vadd.f32 0.0, %v5997
        %v5999 = vpop.f32.mrb[0].mxu0
        %v6000 = vadd.f32 0.0, %v5999
        %6001 = vdwg.mxu0
        %6002 = vmatprep.subr.mxu0 %v5262
        %6003 = vmatpush1.msra.mxu0 %v5260
        %6004 = vmatprep.subr.mxu0 0.0
        %6005 = vmatpush1.msra.mxu0 0.0
        %6006 = vmatprep.subr.mxu0 0.0
        %6007 = vmatpush1.msra.mxu0 0.0
        %6008 = vmatprep.subr.mxu0 0.0
        %6009 = vmatpush1.msra.mxu0 0.0
        %6010 = vmatprep.subr.mxu0 0.0
        %6011 = vmatpush1.msra.mxu0 0.0
        %6012 = vmatprep.subr.mxu0 0.0
        %6013 = vmatpush1.msra.mxu0 0.0
        %6014 = vmatprep.subr.mxu0 0.0
        %6015 = vmatpush1.msra.mxu0 0.0
        %6016 = vmatprep.subr.mxu0 0.0
        %6017 = vmatpush1.msra.mxu0 0.0
        %6018 = vmatprep.subr.mxu0 0.0
        %6019 = vmatpush1.msra.mxu0 0.0
        %6020 = vmatprep.subr.mxu0 0.0
        %6021 = vmatpush1.msra.mxu0 0.0
        %6022 = vmatprep.subr.mxu0 0.0
        %6023 = vmatpush1.msra.mxu0 0.0
        %6024 = vmatprep.subr.mxu0 0.0
        %6025 = vmatpush1.msra.mxu0 0.0
        %6026 = vmatprep.subr.mxu0 0.0
        %6027 = vmatpush1.msra.mxu0 0.0
        %6028 = vmatprep.subr.mxu0 0.0
        %6029 = vmatpush1.msra.mxu0 0.0
        %6030 = vmatprep.subr.mxu0 0.0
        %6031 = vmatpush1.msra.mxu0 0.0
        %6032 = vmatprep.subr.mxu0 0.0
        %6033 = vmatpush1.msra.mxu0 0.0
        %6034 = vmatprep.subr.mxu0 0.0
        %6035 = vmatpush1.msra.mxu0 0.0
        %6036 = vmatprep.subr.mxu0 0.0
        %6037 = vmatpush1.msra.mxu0 0.0
        %6038 = vmatprep.subr.mxu0 0.0
        %6039 = vmatpush1.msra.mxu0 0.0
        %6040 = vmatprep.subr.mxu0 0.0
        %6041 = vmatpush1.msra.mxu0 0.0
        %6042 = vmatprep.subr.mxu0 0.0
        %6043 = vmatpush1.msra.mxu0 0.0
        %6044 = vmatprep.subr.mxu0 0.0
        %6045 = vmatpush1.msra.mxu0 0.0
        %6046 = vmatprep.subr.mxu0 0.0
        %6047 = vmatpush1.msra.mxu0 0.0
        %6048 = vmatprep.subr.mxu0 0.0
        %6049 = vmatpush1.msra.mxu0 0.0
        %6050 = vmatprep.subr.mxu0 0.0
        %6051 = vmatpush1.msra.mxu0 0.0
        %6052 = vmatprep.subr.mxu0 0.0
        %6053 = vmatpush1.msra.mxu0 0.0
        %6054 = vmatprep.subr.mxu0 0.0
        %6055 = vmatpush1.msra.mxu0 0.0
        %6056 = vmatprep.subr.mxu0 0.0
        %6057 = vmatpush1.msra.mxu0 0.0
        %6058 = vmatprep.subr.mxu0 0.0
        %6059 = vmatpush1.msra.mxu0 0.0
        %6060 = vmatprep.subr.mxu0 0.0
        %6061 = vmatpush1.msra.mxu0 0.0
        %6062 = vmatprep.subr.mxu0 0.0
        %6063 = vmatpush1.msra.mxu0 0.0
        %6064 = vmatprep.subr.mxu0 0.0
        %6065 = vmatpush1.msra.mxu0 0.0
        %6066 = vmatprep.mubr.f32.mxu0 0.0
        %6067 = vmatmul.mubr.f32.gmra.mrb[0].mxu0 %v5854
        %v6068 = vpop.f32.mrb[0].mxu0
        %v6069 = vadd.f32 0.0, %v6068
        %v6070 = vpop.f32.mrb[0].mxu0
        %v6071 = vadd.f32 0.0, %v6070
        %6072 = vdwg.mxu0
        %6073 = vmatprep.subr.mxu0 %v5858
        %6074 = vmatpush1.msra.mxu0 %v5856
        %6075 = vmatprep.subr.mxu0 0.0
        %6076 = vmatpush1.msra.mxu0 0.0
        %6077 = vmatprep.subr.mxu0 0.0
        %6078 = vmatpush1.msra.mxu0 0.0
        %6079 = vmatprep.subr.mxu0 0.0
        %6080 = vmatpush1.msra.mxu0 0.0
        %6081 = vmatprep.subr.mxu0 0.0
        %6082 = vmatpush1.msra.mxu0 0.0
        %6083 = vmatprep.subr.mxu0 0.0
        %6084 = vmatpush1.msra.mxu0 0.0
        %6085 = vmatprep.subr.mxu0 0.0
        %6086 = vmatpush1.msra.mxu0 0.0
        %6087 = vmatprep.subr.mxu0 0.0
        %6088 = vmatpush1.msra.mxu0 0.0
        %6089 = vmatprep.subr.mxu0 0.0
        %6090 = vmatpush1.msra.mxu0 0.0
        %6091 = vmatprep.subr.mxu0 0.0
        %6092 = vmatpush1.msra.mxu0 0.0
        %6093 = vmatprep.subr.mxu0 0.0
        %6094 = vmatpush1.msra.mxu0 0.0
        %6095 = vmatprep.subr.mxu0 0.0
        %6096 = vmatpush1.msra.mxu0 0.0
        %6097 = vmatprep.subr.mxu0 0.0
        %6098 = vmatpush1.msra.mxu0 0.0
        %6099 = vmatprep.subr.mxu0 0.0
        %6100 = vmatpush1.msra.mxu0 0.0
        %6101 = vmatprep.subr.mxu0 0.0
        %6102 = vmatpush1.msra.mxu0 0.0
        %6103 = vmatprep.subr.mxu0 0.0
        %6104 = vmatpush1.msra.mxu0 0.0
        %6105 = vmatprep.subr.mxu0 0.0
        %6106 = vmatpush1.msra.mxu0 0.0
        %6107 = vmatprep.subr.mxu0 0.0
        %6108 = vmatpush1.msra.mxu0 0.0
        %6109 = vmatprep.subr.mxu0 0.0
        %6110 = vmatpush1.msra.mxu0 0.0
        %6111 = vmatprep.subr.mxu0 0.0
        %6112 = vmatpush1.msra.mxu0 0.0
        %6113 = vmatprep.subr.mxu0 0.0
        %6114 = vmatpush1.msra.mxu0 0.0
        %6115 = vmatprep.subr.mxu0 0.0
        %6116 = vmatpush1.msra.mxu0 0.0
        %6117 = vmatprep.subr.mxu0 0.0
        %6118 = vmatpush1.msra.mxu0 0.0
        %6119 = vmatprep.subr.mxu0 0.0
        %6120 = vmatpush1.msra.mxu0 0.0
        %6121 = vmatprep.subr.mxu0 0.0
        %6122 = vmatpush1.msra.mxu0 0.0
        %6123 = vmatprep.subr.mxu0 0.0
        %6124 = vmatpush1.msra.mxu0 0.0
        %6125 = vmatprep.subr.mxu0 0.0
        %6126 = vmatpush1.msra.mxu0 0.0
        %6127 = vmatprep.subr.mxu0 0.0
        %6128 = vmatpush1.msra.mxu0 0.0
        %6129 = vmatprep.subr.mxu0 0.0
        %6130 = vmatpush1.msra.mxu0 0.0
        %6131 = vmatprep.subr.mxu0 0.0
        %6132 = vmatpush1.msra.mxu0 0.0
        %6133 = vmatprep.subr.mxu0 0.0
        %6134 = vmatpush1.msra.mxu0 0.0
        %6135 = vmatprep.subr.mxu0 0.0
        %6136 = vmatpush1.msra.mxu0 0.0
        %6137 = vmatprep.mubr.f32.mxu0 0.0
        %6138 = vmatmul.mubr.f32.gmra.mrb[0].mxu0 %v5854
        %v6139 = vpop.f32.mrb[0].mxu0
        %v6140 = vadd.f32 0.0, %v6139
        %v6141 = vpop.f32.mrb[0].mxu0
        %v6142 = vadd.f32 0.0, %v6141
        %6143 = vdwg.mxu0
        %v6144 = vadd.f32 %v5628, %v5927
        %v6145 = vadd.f32 %v5630, %v5929
        %v6146 = vadd.f32 %v5699, %v5998
        %v6147 = vadd.f32 %v5701, %v6000
        %v6148 = vadd.f32 %v5770, %v6069
        %v6149 = vadd.f32 %v5772, %v6071
        %v6150 = vadd.f32 %v5841, %v6140
        %v6151 = vadd.f32 %v5843, %v6142
        %v6152 = vlaneseq
        %v6153 = vshrl.u32 %v6152, 7
        %v6154 = vsub.s32 3, %v6153
        %v6155 = vrot.slane %v441, %v6154
        %v6156 = vlaneseq
        %v6157 = vshrl.u32 %v6156, 7
        %v6158 = vsub.s32 3, %v6157
        %v6159 = vrot.slane %v443, %v6158
        %v6160 = vmul.f32 %v6144, %v6155
        %v6161 = vmul.f32 %v6145, %v6159
        %v6162 = vmul.f32 %v6146, %v6155
        %v6163 = vmul.f32 %v6147, %v6159
        %v6164 = vmul.f32 %v6148, %v6155
        %v6165 = vmul.f32 %v6149, %v6159
        %v6166 = vmul.f32 %v6150, %v6155
        %v6167 = vmul.f32 %v6151, %v6159
        %v6168 = vadd.f32 %v5206, %v6160
        %v6169 = vadd.f32 %v5207, %v6161
        %v6170 = vadd.f32 %v5208, %v6162
        %v6171 = vadd.f32 %v5209, %v6163
        %v6172 = vadd.f32 %v5210, %v6164
        %v6173 = vadd.f32 %v5211, %v6165
        %v6174 = vadd.f32 %v5212, %v6166
        %v6175 = vadd.f32 %v5213, %v6167
        %s6176 = scalar_lea.vmem %s3, 24
        %v6177 = vld [vmem:[%s6176] sm:$0x7]
        %s6178 = scalar_lea.vmem %s3, 60
        %v6179 = vld [vmem:[%s6178] sm:$0x7]
        %6180 = vrot.lane.b32.xlu0 %v413, 113
        %v6181 = vpop.permute.xlu0 %6180
        %6182 = vrot.lane.b32.xlu0 %v435, 113
        %v6183 = vpop.permute.xlu0 %6182
        %6184 = vrot.lane.b32.xlu0 %v414, 113
        %v6185 = vpop.permute.xlu0 %6184
        %6186 = vrot.lane.b32.xlu0 %v436, 113
        %v6187 = vpop.permute.xlu0 %6186
        %6188 = vrot.lane.b32.xlu0 %v415, 113
        %v6189 = vpop.permute.xlu0 %6188
        %6190 = vrot.lane.b32.xlu0 %v437, 113
        %v6191 = vpop.permute.xlu0 %6190
        %6192 = vrot.lane.b32.xlu0 %v416, 113
        %v6193 = vpop.permute.xlu0 %6192
        %6194 = vrot.lane.b32.xlu0 %v438, 113
        %v6195 = vpop.permute.xlu0 %6194
        %6196 = vrot.lane.b32.xlu0 %v428, 113
        %v6197 = vpop.permute.xlu0 %6196
        %vm6198 = vcmask 924672
        %v6199 = vsel %vm6198, %v6181, %v6183
        %v6200 = vsel %vm6198, %v6183, %v6185
        %v6201 = vsel %vm6198, %v6185, %v6187
        %v6202 = vsel %vm6198, %v6187, %v6189
        %v6203 = vsel %vm6198, %v6189, %v6191
        %v6204 = vsel %vm6198, %v6191, %v6193
        %v6205 = vsel %vm6198, %v6193, %v6195
        %v6206 = vsel %vm6198, %v6195, %v6197
        %v6208 = vsel %vm475, %v6179, 0
        %v6210 = vsel %vm479, %v6199, 0
        %v6212 = vsel %vm479, %v6200, 0
        %v6214 = vsel %vm479, %v6201, 0
        %v6216 = vsel %vm479, %v6202, 0
        %v6218 = vsel %vm479, %v6203, 0
        %v6220 = vsel %vm479, %v6204, 0
        %v6222 = vsel %vm479, %v6205, 0
        %v6224 = vsel %vm479, %v6206, 0
        %6226 = vmatprep.subr.mxu0 %v6212
        %6227 = vmatpush1.msra.mxu0 %v6210
        %6228 = vmatprep.subr.mxu0 0.0
        %6229 = vmatpush1.msra.mxu0 0.0
        %6230 = vmatprep.subr.mxu0 0.0
        %6231 = vmatpush1.msra.mxu0 0.0
        %6232 = vmatprep.subr.mxu0 0.0
        %6233 = vmatpush1.msra.mxu0 0.0
        %6234 = vmatprep.subr.mxu0 0.0
        %6235 = vmatpush1.msra.mxu0 0.0
        %6236 = vmatprep.subr.mxu0 0.0
        %6237 = vmatpush1.msra.mxu0 0.0
        %6238 = vmatprep.subr.mxu0 0.0
        %6239 = vmatpush1.msra.mxu0 0.0
        %6240 = vmatprep.subr.mxu0 0.0
        %6241 = vmatpush1.msra.mxu0 0.0
        %6242 = vmatprep.subr.mxu0 0.0
        %6243 = vmatpush1.msra.mxu0 0.0
        %6244 = vmatprep.subr.mxu0 0.0
        %6245 = vmatpush1.msra.mxu0 0.0
        %6246 = vmatprep.subr.mxu0 0.0
        %6247 = vmatpush1.msra.mxu0 0.0
        %6248 = vmatprep.subr.mxu0 0.0
        %6249 = vmatpush1.msra.mxu0 0.0
        %6250 = vmatprep.subr.mxu0 0.0
        %6251 = vmatpush1.msra.mxu0 0.0
        %6252 = vmatprep.subr.mxu0 0.0
        %6253 = vmatpush1.msra.mxu0 0.0
        %6254 = vmatprep.subr.mxu0 0.0
        %6255 = vmatpush1.msra.mxu0 0.0
        %6256 = vmatprep.subr.mxu0 0.0
        %6257 = vmatpush1.msra.mxu0 0.0
        %6258 = vmatprep.subr.mxu0 0.0
        %6259 = vmatpush1.msra.mxu0 0.0
        %6260 = vmatprep.subr.mxu0 0.0
        %6261 = vmatpush1.msra.mxu0 0.0
        %6262 = vmatprep.subr.mxu0 0.0
        %6263 = vmatpush1.msra.mxu0 0.0
        %6264 = vmatprep.subr.mxu0 0.0
        %6265 = vmatpush1.msra.mxu0 0.0
        %6266 = vmatprep.subr.mxu0 0.0
        %6267 = vmatpush1.msra.mxu0 0.0
        %6268 = vmatprep.subr.mxu0 0.0
        %6269 = vmatpush1.msra.mxu0 0.0
        %6270 = vmatprep.subr.mxu0 0.0
        %6271 = vmatpush1.msra.mxu0 0.0
        %6272 = vmatprep.subr.mxu0 0.0
        %6273 = vmatpush1.msra.mxu0 0.0
        %6274 = vmatprep.subr.mxu0 0.0
        %6275 = vmatpush1.msra.mxu0 0.0
        %6276 = vmatprep.subr.mxu0 0.0
        %6277 = vmatpush1.msra.mxu0 0.0
        %6278 = vmatprep.subr.mxu0 0.0
        %6279 = vmatpush1.msra.mxu0 0.0
        %6280 = vmatprep.subr.mxu0 0.0
        %6281 = vmatpush1.msra.mxu0 0.0
        %6282 = vmatprep.subr.mxu0 0.0
        %6283 = vmatpush1.msra.mxu0 0.0
        %6284 = vmatprep.subr.mxu0 0.0
        %6285 = vmatpush1.msra.mxu0 0.0
        %6286 = vmatprep.subr.mxu0 0.0
        %6287 = vmatpush1.msra.mxu0 0.0
        %6288 = vmatprep.subr.mxu0 0.0
        %6289 = vmatpush1.msra.mxu0 0.0
        %6290 = vmatprep.mubr.f32.mxu0 0.0
        %6291 = vmatmul.mubr.f32.gmra.mrb[0].mxu0 %v6208
        %v6292 = vpop.f32.mrb[0].mxu0
        %v6293 = vadd.f32 0.0, %v6292
        %v6294 = vpop.f32.mrb[0].mxu0
        %v6295 = vadd.f32 0.0, %v6294
        %6296 = vdwg.mxu0
        %6297 = vmatprep.subr.mxu0 %v6216
        %6298 = vmatpush1.msra.mxu0 %v6214
        %6299 = vmatprep.subr.mxu0 0.0
        %6300 = vmatpush1.msra.mxu0 0.0
        %6301 = vmatprep.subr.mxu0 0.0
        %6302 = vmatpush1.msra.mxu0 0.0
        %6303 = vmatprep.subr.mxu0 0.0
        %6304 = vmatpush1.msra.mxu0 0.0
        %6305 = vmatprep.subr.mxu0 0.0
        %6306 = vmatpush1.msra.mxu0 0.0
        %6307 = vmatprep.subr.mxu0 0.0
        %6308 = vmatpush1.msra.mxu0 0.0
        %6309 = vmatprep.subr.mxu0 0.0
        %6310 = vmatpush1.msra.mxu0 0.0
        %6311 = vmatprep.subr.mxu0 0.0
        %6312 = vmatpush1.msra.mxu0 0.0
        %6313 = vmatprep.subr.mxu0 0.0
        %6314 = vmatpush1.msra.mxu0 0.0
        %6315 = vmatprep.subr.mxu0 0.0
        %6316 = vmatpush1.msra.mxu0 0.0
        %6317 = vmatprep.subr.mxu0 0.0
        %6318 = vmatpush1.msra.mxu0 0.0
        %6319 = vmatprep.subr.mxu0 0.0
        %6320 = vmatpush1.msra.mxu0 0.0
        %6321 = vmatprep.subr.mxu0 0.0
        %6322 = vmatpush1.msra.mxu0 0.0
        %6323 = vmatprep.subr.mxu0 0.0
        %6324 = vmatpush1.msra.mxu0 0.0
        %6325 = vmatprep.subr.mxu0 0.0
        %6326 = vmatpush1.msra.mxu0 0.0
        %6327 = vmatprep.subr.mxu0 0.0
        %6328 = vmatpush1.msra.mxu0 0.0
        %6329 = vmatprep.subr.mxu0 0.0
        %6330 = vmatpush1.msra.mxu0 0.0
        %6331 = vmatprep.subr.mxu0 0.0
        %6332 = vmatpush1.msra.mxu0 0.0
        %6333 = vmatprep.subr.mxu0 0.0
        %6334 = vmatpush1.msra.mxu0 0.0
        %6335 = vmatprep.subr.mxu0 0.0
        %6336 = vmatpush1.msra.mxu0 0.0
        %6337 = vmatprep.subr.mxu0 0.0
        %6338 = vmatpush1.msra.mxu0 0.0
        %6339 = vmatprep.subr.mxu0 0.0
        %6340 = vmatpush1.msra.mxu0 0.0
        %6341 = vmatprep.subr.mxu0 0.0
        %6342 = vmatpush1.msra.mxu0 0.0
        %6343 = vmatprep.subr.mxu0 0.0
        %6344 = vmatpush1.msra.mxu0 0.0
        %6345 = vmatprep.subr.mxu0 0.0
        %6346 = vmatpush1.msra.mxu0 0.0
        %6347 = vmatprep.subr.mxu0 0.0
        %6348 = vmatpush1.msra.mxu0 0.0
        %6349 = vmatprep.subr.mxu0 0.0
        %6350 = vmatpush1.msra.mxu0 0.0
        %6351 = vmatprep.subr.mxu0 0.0
        %6352 = vmatpush1.msra.mxu0 0.0
        %6353 = vmatprep.subr.mxu0 0.0
        %6354 = vmatpush1.msra.mxu0 0.0
        %6355 = vmatprep.subr.mxu0 0.0
        %6356 = vmatpush1.msra.mxu0 0.0
        %6357 = vmatprep.subr.mxu0 0.0
        %6358 = vmatpush1.msra.mxu0 0.0
        %6359 = vmatprep.subr.mxu0 0.0
        %6360 = vmatpush1.msra.mxu0 0.0
        %6361 = vmatprep.mubr.f32.mxu0 0.0
        %6362 = vmatmul.mubr.f32.gmra.mrb[0].mxu0 %v6208
        %v6363 = vpop.f32.mrb[0].mxu0
        %v6364 = vadd.f32 0.0, %v6363
        %v6365 = vpop.f32.mrb[0].mxu0
        %v6366 = vadd.f32 0.0, %v6365
        %6367 = vdwg.mxu0
        %6368 = vmatprep.subr.mxu0 %v6220
        %6369 = vmatpush1.msra.mxu0 %v6218
        %6370 = vmatprep.subr.mxu0 0.0
        %6371 = vmatpush1.msra.mxu0 0.0
        %6372 = vmatprep.subr.mxu0 0.0
        %6373 = vmatpush1.msra.mxu0 0.0
        %6374 = vmatprep.subr.mxu0 0.0
        %6375 = vmatpush1.msra.mxu0 0.0
        %6376 = vmatprep.subr.mxu0 0.0
        %6377 = vmatpush1.msra.mxu0 0.0
        %6378 = vmatprep.subr.mxu0 0.0
        %6379 = vmatpush1.msra.mxu0 0.0
        %6380 = vmatprep.subr.mxu0 0.0
        %6381 = vmatpush1.msra.mxu0 0.0
        %6382 = vmatprep.subr.mxu0 0.0
        %6383 = vmatpush1.msra.mxu0 0.0
        %6384 = vmatprep.subr.mxu0 0.0
        %6385 = vmatpush1.msra.mxu0 0.0
        %6386 = vmatprep.subr.mxu0 0.0
        %6387 = vmatpush1.msra.mxu0 0.0
        %6388 = vmatprep.subr.mxu0 0.0
        %6389 = vmatpush1.msra.mxu0 0.0
        %6390 = vmatprep.subr.mxu0 0.0
        %6391 = vmatpush1.msra.mxu0 0.0
        %6392 = vmatprep.subr.mxu0 0.0
        %6393 = vmatpush1.msra.mxu0 0.0
        %6394 = vmatprep.subr.mxu0 0.0
        %6395 = vmatpush1.msra.mxu0 0.0
        %6396 = vmatprep.subr.mxu0 0.0
        %6397 = vmatpush1.msra.mxu0 0.0
        %6398 = vmatprep.subr.mxu0 0.0
        %6399 = vmatpush1.msra.mxu0 0.0
        %6400 = vmatprep.subr.mxu0 0.0
        %6401 = vmatpush1.msra.mxu0 0.0
        %6402 = vmatprep.subr.mxu0 0.0
        %6403 = vmatpush1.msra.mxu0 0.0
        %6404 = vmatprep.subr.mxu0 0.0
        %6405 = vmatpush1.msra.mxu0 0.0
        %6406 = vmatprep.subr.mxu0 0.0
        %6407 = vmatpush1.msra.mxu0 0.0
        %6408 = vmatprep.subr.mxu0 0.0
        %6409 = vmatpush1.msra.mxu0 0.0
        %6410 = vmatprep.subr.mxu0 0.0
        %6411 = vmatpush1.msra.mxu0 0.0
        %6412 = vmatprep.subr.mxu0 0.0
        %6413 = vmatpush1.msra.mxu0 0.0
        %6414 = vmatprep.subr.mxu0 0.0
        %6415 = vmatpush1.msra.mxu0 0.0
        %6416 = vmatprep.subr.mxu0 0.0
        %6417 = vmatpush1.msra.mxu0 0.0
        %6418 = vmatprep.subr.mxu0 0.0
        %6419 = vmatpush1.msra.mxu0 0.0
        %6420 = vmatprep.subr.mxu0 0.0
        %6421 = vmatpush1.msra.mxu0 0.0
        %6422 = vmatprep.subr.mxu0 0.0
        %6423 = vmatpush1.msra.mxu0 0.0
        %6424 = vmatprep.subr.mxu0 0.0
        %6425 = vmatpush1.msra.mxu0 0.0
        %6426 = vmatprep.subr.mxu0 0.0
        %6427 = vmatpush1.msra.mxu0 0.0
        %6428 = vmatprep.subr.mxu0 0.0
        %6429 = vmatpush1.msra.mxu0 0.0
        %6430 = vmatprep.subr.mxu0 0.0
        %6431 = vmatpush1.msra.mxu0 0.0
        %6432 = vmatprep.mubr.f32.mxu0 0.0
        %6433 = vmatmul.mubr.f32.gmra.mrb[0].mxu0 %v6208
        %v6434 = vpop.f32.mrb[0].mxu0
        %v6435 = vadd.f32 0.0, %v6434
        %v6436 = vpop.f32.mrb[0].mxu0
        %v6437 = vadd.f32 0.0, %v6436
        %6438 = vdwg.mxu0
        %6439 = vmatprep.subr.mxu0 %v6224
        %6440 = vmatpush1.msra.mxu0 %v6222
        %6441 = vmatprep.subr.mxu0 0.0
        %6442 = vmatpush1.msra.mxu0 0.0
        %6443 = vmatprep.subr.mxu0 0.0
        %6444 = vmatpush1.msra.mxu0 0.0
        %6445 = vmatprep.subr.mxu0 0.0
        %6446 = vmatpush1.msra.mxu0 0.0
        %6447 = vmatprep.subr.mxu0 0.0
        %6448 = vmatpush1.msra.mxu0 0.0
        %6449 = vmatprep.subr.mxu0 0.0
        %6450 = vmatpush1.msra.mxu0 0.0
        %6451 = vmatprep.subr.mxu0 0.0
        %6452 = vmatpush1.msra.mxu0 0.0
        %6453 = vmatprep.subr.mxu0 0.0
        %6454 = vmatpush1.msra.mxu0 0.0
        %6455 = vmatprep.subr.mxu0 0.0
        %6456 = vmatpush1.msra.mxu0 0.0
        %6457 = vmatprep.subr.mxu0 0.0
        %6458 = vmatpush1.msra.mxu0 0.0
        %6459 = vmatprep.subr.mxu0 0.0
        %6460 = vmatpush1.msra.mxu0 0.0
        %6461 = vmatprep.subr.mxu0 0.0
        %6462 = vmatpush1.msra.mxu0 0.0
        %6463 = vmatprep.subr.mxu0 0.0
        %6464 = vmatpush1.msra.mxu0 0.0
        %6465 = vmatprep.subr.mxu0 0.0
        %6466 = vmatpush1.msra.mxu0 0.0
        %6467 = vmatprep.subr.mxu0 0.0
        %6468 = vmatpush1.msra.mxu0 0.0
        %6469 = vmatprep.subr.mxu0 0.0
        %6470 = vmatpush1.msra.mxu0 0.0
        %6471 = vmatprep.subr.mxu0 0.0
        %6472 = vmatpush1.msra.mxu0 0.0
        %6473 = vmatprep.subr.mxu0 0.0
        %6474 = vmatpush1.msra.mxu0 0.0
        %6475 = vmatprep.subr.mxu0 0.0
        %6476 = vmatpush1.msra.mxu0 0.0
        %6477 = vmatprep.subr.mxu0 0.0
        %6478 = vmatpush1.msra.mxu0 0.0
        %6479 = vmatprep.subr.mxu0 0.0
        %6480 = vmatpush1.msra.mxu0 0.0
        %6481 = vmatprep.subr.mxu0 0.0
        %6482 = vmatpush1.msra.mxu0 0.0
        %6483 = vmatprep.subr.mxu0 0.0
        %6484 = vmatpush1.msra.mxu0 0.0
        %6485 = vmatprep.subr.mxu0 0.0
        %6486 = vmatpush1.msra.mxu0 0.0
        %6487 = vmatprep.subr.mxu0 0.0
        %6488 = vmatpush1.msra.mxu0 0.0
        %6489 = vmatprep.subr.mxu0 0.0
        %6490 = vmatpush1.msra.mxu0 0.0
        %6491 = vmatprep.subr.mxu0 0.0
        %6492 = vmatpush1.msra.mxu0 0.0
        %6493 = vmatprep.subr.mxu0 0.0
        %6494 = vmatpush1.msra.mxu0 0.0
        %6495 = vmatprep.subr.mxu0 0.0
        %6496 = vmatpush1.msra.mxu0 0.0
        %6497 = vmatprep.subr.mxu0 0.0
        %6498 = vmatpush1.msra.mxu0 0.0
        %6499 = vmatprep.subr.mxu0 0.0
        %6500 = vmatpush1.msra.mxu0 0.0
        %6501 = vmatprep.subr.mxu0 0.0
        %6502 = vmatpush1.msra.mxu0 0.0
        %6503 = vmatprep.mubr.f32.mxu0 0.0
        %6504 = vmatmul.mubr.f32.gmra.mrb[0].mxu0 %v6208
        %v6505 = vpop.f32.mrb[0].mxu0
        %v6506 = vadd.f32 0.0, %v6505
        %v6507 = vpop.f32.mrb[0].mxu0
        %v6508 = vadd.f32 0.0, %v6507
        %6509 = vdwg.mxu0
        %6510 = vrot.lane.b32.xlu0 %v423, 113
        %v6511 = vpop.permute.xlu0 %6510
        %6512 = vrot.lane.b32.xlu0 %v430, 113
        %v6513 = vpop.permute.xlu0 %6512
        %v6514 = vsel %vm6198, %v6511, %v6513
        %v6515 = vsel %vm6198, %v6513, %v6181
        %v6517 = vsel %vm475, %v6177, 0
        %v6519 = vsel %vm479, %v6514, 0
        %v6521 = vsel %vm479, %v6515, 0
        %6523 = vmatprep.subr.mxu0 %v6521
        %6524 = vmatpush1.msra.mxu0 %v6519
        %6525 = vmatprep.subr.mxu0 0.0
        %6526 = vmatpush1.msra.mxu0 0.0
        %6527 = vmatprep.subr.mxu0 0.0
        %6528 = vmatpush1.msra.mxu0 0.0
        %6529 = vmatprep.subr.mxu0 0.0
        %6530 = vmatpush1.msra.mxu0 0.0
        %6531 = vmatprep.subr.mxu0 0.0
        %6532 = vmatpush1.msra.mxu0 0.0
        %6533 = vmatprep.subr.mxu0 0.0
        %6534 = vmatpush1.msra.mxu0 0.0
        %6535 = vmatprep.subr.mxu0 0.0
        %6536 = vmatpush1.msra.mxu0 0.0
        %6537 = vmatprep.subr.mxu0 0.0
        %6538 = vmatpush1.msra.mxu0 0.0
        %6539 = vmatprep.subr.mxu0 0.0
        %6540 = vmatpush1.msra.mxu0 0.0
        %6541 = vmatprep.subr.mxu0 0.0
        %6542 = vmatpush1.msra.mxu0 0.0
        %6543 = vmatprep.subr.mxu0 0.0
        %6544 = vmatpush1.msra.mxu0 0.0
        %6545 = vmatprep.subr.mxu0 0.0
        %6546 = vmatpush1.msra.mxu0 0.0
        %6547 = vmatprep.subr.mxu0 0.0
        %6548 = vmatpush1.msra.mxu0 0.0
        %6549 = vmatprep.subr.mxu0 0.0
        %6550 = vmatpush1.msra.mxu0 0.0
        %6551 = vmatprep.subr.mxu0 0.0
        %6552 = vmatpush1.msra.mxu0 0.0
        %6553 = vmatprep.subr.mxu0 0.0
        %6554 = vmatpush1.msra.mxu0 0.0
        %6555 = vmatprep.subr.mxu0 0.0
        %6556 = vmatpush1.msra.mxu0 0.0
        %6557 = vmatprep.subr.mxu0 0.0
        %6558 = vmatpush1.msra.mxu0 0.0
        %6559 = vmatprep.subr.mxu0 0.0
        %6560 = vmatpush1.msra.mxu0 0.0
        %6561 = vmatprep.subr.mxu0 0.0
        %6562 = vmatpush1.msra.mxu0 0.0
        %6563 = vmatprep.subr.mxu0 0.0
        %6564 = vmatpush1.msra.mxu0 0.0
        %6565 = vmatprep.subr.mxu0 0.0
        %6566 = vmatpush1.msra.mxu0 0.0
        %6567 = vmatprep.subr.mxu0 0.0
        %6568 = vmatpush1.msra.mxu0 0.0
        %6569 = vmatprep.subr.mxu0 0.0
        %6570 = vmatpush1.msra.mxu0 0.0
        %6571 = vmatprep.subr.mxu0 0.0
        %6572 = vmatpush1.msra.mxu0 0.0
        %6573 = vmatprep.subr.mxu0 0.0
        %6574 = vmatpush1.msra.mxu0 0.0
        %6575 = vmatprep.subr.mxu0 0.0
        %6576 = vmatpush1.msra.mxu0 0.0
        %6577 = vmatprep.subr.mxu0 0.0
        %6578 = vmatpush1.msra.mxu0 0.0
        %6579 = vmatprep.subr.mxu0 0.0
        %6580 = vmatpush1.msra.mxu0 0.0
        %6581 = vmatprep.subr.mxu0 0.0
        %6582 = vmatpush1.msra.mxu0 0.0
        %6583 = vmatprep.subr.mxu0 0.0
        %6584 = vmatpush1.msra.mxu0 0.0
        %6585 = vmatprep.subr.mxu0 0.0
        %6586 = vmatpush1.msra.mxu0 0.0
        %6587 = vmatprep.mubr.f32.mxu0 0.0
        %6588 = vmatmul.mubr.f32.gmra.mrb[0].mxu0 %v6517
        %v6589 = vpop.f32.mrb[0].mxu0
        %v6590 = vadd.f32 %v6293, %v6589
        %v6591 = vpop.f32.mrb[0].mxu0
        %v6592 = vadd.f32 %v6295, %v6591
        %6593 = vdwg.mxu0
        %6594 = vmatprep.subr.mxu0 %v6212
        %6595 = vmatpush1.msra.mxu0 %v6210
        %6596 = vmatprep.subr.mxu0 0.0
        %6597 = vmatpush1.msra.mxu0 0.0
        %6598 = vmatprep.subr.mxu0 0.0
        %6599 = vmatpush1.msra.mxu0 0.0
        %6600 = vmatprep.subr.mxu0 0.0
        %6601 = vmatpush1.msra.mxu0 0.0
        %6602 = vmatprep.subr.mxu0 0.0
        %6603 = vmatpush1.msra.mxu0 0.0
        %6604 = vmatprep.subr.mxu0 0.0
        %6605 = vmatpush1.msra.mxu0 0.0
        %6606 = vmatprep.subr.mxu0 0.0
        %6607 = vmatpush1.msra.mxu0 0.0
        %6608 = vmatprep.subr.mxu0 0.0
        %6609 = vmatpush1.msra.mxu0 0.0
        %6610 = vmatprep.subr.mxu0 0.0
        %6611 = vmatpush1.msra.mxu0 0.0
        %6612 = vmatprep.subr.mxu0 0.0
        %6613 = vmatpush1.msra.mxu0 0.0
        %6614 = vmatprep.subr.mxu0 0.0
        %6615 = vmatpush1.msra.mxu0 0.0
        %6616 = vmatprep.subr.mxu0 0.0
        %6617 = vmatpush1.msra.mxu0 0.0
        %6618 = vmatprep.subr.mxu0 0.0
        %6619 = vmatpush1.msra.mxu0 0.0
        %6620 = vmatprep.subr.mxu0 0.0
        %6621 = vmatpush1.msra.mxu0 0.0
        %6622 = vmatprep.subr.mxu0 0.0
        %6623 = vmatpush1.msra.mxu0 0.0
        %6624 = vmatprep.subr.mxu0 0.0
        %6625 = vmatpush1.msra.mxu0 0.0
        %6626 = vmatprep.subr.mxu0 0.0
        %6627 = vmatpush1.msra.mxu0 0.0
        %6628 = vmatprep.subr.mxu0 0.0
        %6629 = vmatpush1.msra.mxu0 0.0
        %6630 = vmatprep.subr.mxu0 0.0
        %6631 = vmatpush1.msra.mxu0 0.0
        %6632 = vmatprep.subr.mxu0 0.0
        %6633 = vmatpush1.msra.mxu0 0.0
        %6634 = vmatprep.subr.mxu0 0.0
        %6635 = vmatpush1.msra.mxu0 0.0
        %6636 = vmatprep.subr.mxu0 0.0
        %6637 = vmatpush1.msra.mxu0 0.0
        %6638 = vmatprep.subr.mxu0 0.0
        %6639 = vmatpush1.msra.mxu0 0.0
        %6640 = vmatprep.subr.mxu0 0.0
        %6641 = vmatpush1.msra.mxu0 0.0
        %6642 = vmatprep.subr.mxu0 0.0
        %6643 = vmatpush1.msra.mxu0 0.0
        %6644 = vmatprep.subr.mxu0 0.0
        %6645 = vmatpush1.msra.mxu0 0.0
        %6646 = vmatprep.subr.mxu0 0.0
        %6647 = vmatpush1.msra.mxu0 0.0
        %6648 = vmatprep.subr.mxu0 0.0
        %6649 = vmatpush1.msra.mxu0 0.0
        %6650 = vmatprep.subr.mxu0 0.0
        %6651 = vmatpush1.msra.mxu0 0.0
        %6652 = vmatprep.subr.mxu0 0.0
        %6653 = vmatpush1.msra.mxu0 0.0
        %6654 = vmatprep.subr.mxu0 0.0
        %6655 = vmatpush1.msra.mxu0 0.0
        %6656 = vmatprep.subr.mxu0 0.0
        %6657 = vmatpush1.msra.mxu0 0.0
        %6658 = vmatprep.mubr.f32.mxu0 0.0
        %6659 = vmatmul.mubr.f32.gmra.mrb[0].mxu0 %v6517
        %v6660 = vpop.f32.mrb[0].mxu0
        %v6661 = vadd.f32 %v6364, %v6660
        %v6662 = vpop.f32.mrb[0].mxu0
        %v6663 = vadd.f32 %v6366, %v6662
        %6664 = vdwg.mxu0
        %6665 = vmatprep.subr.mxu0 %v6216
        %6666 = vmatpush1.msra.mxu0 %v6214
        %6667 = vmatprep.subr.mxu0 0.0
        %6668 = vmatpush1.msra.mxu0 0.0
        %6669 = vmatprep.subr.mxu0 0.0
        %6670 = vmatpush1.msra.mxu0 0.0
        %6671 = vmatprep.subr.mxu0 0.0
        %6672 = vmatpush1.msra.mxu0 0.0
        %6673 = vmatprep.subr.mxu0 0.0
        %6674 = vmatpush1.msra.mxu0 0.0
        %6675 = vmatprep.subr.mxu0 0.0
        %6676 = vmatpush1.msra.mxu0 0.0
        %6677 = vmatprep.subr.mxu0 0.0
        %6678 = vmatpush1.msra.mxu0 0.0
        %6679 = vmatprep.subr.mxu0 0.0
        %6680 = vmatpush1.msra.mxu0 0.0
        %6681 = vmatprep.subr.mxu0 0.0
        %6682 = vmatpush1.msra.mxu0 0.0
        %6683 = vmatprep.subr.mxu0 0.0
        %6684 = vmatpush1.msra.mxu0 0.0
        %6685 = vmatprep.subr.mxu0 0.0
        %6686 = vmatpush1.msra.mxu0 0.0
        %6687 = vmatprep.subr.mxu0 0.0
        %6688 = vmatpush1.msra.mxu0 0.0
        %6689 = vmatprep.subr.mxu0 0.0
        %6690 = vmatpush1.msra.mxu0 0.0
        %6691 = vmatprep.subr.mxu0 0.0
        %6692 = vmatpush1.msra.mxu0 0.0
        %6693 = vmatprep.subr.mxu0 0.0
        %6694 = vmatpush1.msra.mxu0 0.0
        %6695 = vmatprep.subr.mxu0 0.0
        %6696 = vmatpush1.msra.mxu0 0.0
        %6697 = vmatprep.subr.mxu0 0.0
        %6698 = vmatpush1.msra.mxu0 0.0
        %6699 = vmatprep.subr.mxu0 0.0
        %6700 = vmatpush1.msra.mxu0 0.0
        %6701 = vmatprep.subr.mxu0 0.0
        %6702 = vmatpush1.msra.mxu0 0.0
        %6703 = vmatprep.subr.mxu0 0.0
        %6704 = vmatpush1.msra.mxu0 0.0
        %6705 = vmatprep.subr.mxu0 0.0
        %6706 = vmatpush1.msra.mxu0 0.0
        %6707 = vmatprep.subr.mxu0 0.0
        %6708 = vmatpush1.msra.mxu0 0.0
        %6709 = vmatprep.subr.mxu0 0.0
        %6710 = vmatpush1.msra.mxu0 0.0
        %6711 = vmatprep.subr.mxu0 0.0
        %6712 = vmatpush1.msra.mxu0 0.0
        %6713 = vmatprep.subr.mxu0 0.0
        %6714 = vmatpush1.msra.mxu0 0.0
        %6715 = vmatprep.subr.mxu0 0.0
        %6716 = vmatpush1.msra.mxu0 0.0
        %6717 = vmatprep.subr.mxu0 0.0
        %6718 = vmatpush1.msra.mxu0 0.0
        %6719 = vmatprep.subr.mxu0 0.0
        %6720 = vmatpush1.msra.mxu0 0.0
        %6721 = vmatprep.subr.mxu0 0.0
        %6722 = vmatpush1.msra.mxu0 0.0
        %6723 = vmatprep.subr.mxu0 0.0
        %6724 = vmatpush1.msra.mxu0 0.0
        %6725 = vmatprep.subr.mxu0 0.0
        %6726 = vmatpush1.msra.mxu0 0.0
        %6727 = vmatprep.subr.mxu0 0.0
        %6728 = vmatpush1.msra.mxu0 0.0
        %6729 = vmatprep.mubr.f32.mxu0 0.0
        %6730 = vmatmul.mubr.f32.gmra.mrb[0].mxu0 %v6517
        %v6731 = vpop.f32.mrb[0].mxu0
        %v6732 = vadd.f32 %v6435, %v6731
        %v6733 = vpop.f32.mrb[0].mxu0
        %v6734 = vadd.f32 %v6437, %v6733
        %6735 = vdwg.mxu0
        %6736 = vmatprep.subr.mxu0 %v6220
        %6737 = vmatpush1.msra.mxu0 %v6218
        %6738 = vmatprep.subr.mxu0 0.0
        %6739 = vmatpush1.msra.mxu0 0.0
        %6740 = vmatprep.subr.mxu0 0.0
        %6741 = vmatpush1.msra.mxu0 0.0
        %6742 = vmatprep.subr.mxu0 0.0
        %6743 = vmatpush1.msra.mxu0 0.0
        %6744 = vmatprep.subr.mxu0 0.0
        %6745 = vmatpush1.msra.mxu0 0.0
        %6746 = vmatprep.subr.mxu0 0.0
        %6747 = vmatpush1.msra.mxu0 0.0
        %6748 = vmatprep.subr.mxu0 0.0
        %6749 = vmatpush1.msra.mxu0 0.0
        %6750 = vmatprep.subr.mxu0 0.0
        %6751 = vmatpush1.msra.mxu0 0.0
        %6752 = vmatprep.subr.mxu0 0.0
        %6753 = vmatpush1.msra.mxu0 0.0
        %6754 = vmatprep.subr.mxu0 0.0
        %6755 = vmatpush1.msra.mxu0 0.0
        %6756 = vmatprep.subr.mxu0 0.0
        %6757 = vmatpush1.msra.mxu0 0.0
        %6758 = vmatprep.subr.mxu0 0.0
        %6759 = vmatpush1.msra.mxu0 0.0
        %6760 = vmatprep.subr.mxu0 0.0
        %6761 = vmatpush1.msra.mxu0 0.0
        %6762 = vmatprep.subr.mxu0 0.0
        %6763 = vmatpush1.msra.mxu0 0.0
        %6764 = vmatprep.subr.mxu0 0.0
        %6765 = vmatpush1.msra.mxu0 0.0
        %6766 = vmatprep.subr.mxu0 0.0
        %6767 = vmatpush1.msra.mxu0 0.0
        %6768 = vmatprep.subr.mxu0 0.0
        %6769 = vmatpush1.msra.mxu0 0.0
        %6770 = vmatprep.subr.mxu0 0.0
        %6771 = vmatpush1.msra.mxu0 0.0
        %6772 = vmatprep.subr.mxu0 0.0
        %6773 = vmatpush1.msra.mxu0 0.0
        %6774 = vmatprep.subr.mxu0 0.0
        %6775 = vmatpush1.msra.mxu0 0.0
        %6776 = vmatprep.subr.mxu0 0.0
        %6777 = vmatpush1.msra.mxu0 0.0
        %6778 = vmatprep.subr.mxu0 0.0
        %6779 = vmatpush1.msra.mxu0 0.0
        %6780 = vmatprep.subr.mxu0 0.0
        %6781 = vmatpush1.msra.mxu0 0.0
        %6782 = vmatprep.subr.mxu0 0.0
        %6783 = vmatpush1.msra.mxu0 0.0
        %6784 = vmatprep.subr.mxu0 0.0
        %6785 = vmatpush1.msra.mxu0 0.0
        %6786 = vmatprep.subr.mxu0 0.0
        %6787 = vmatpush1.msra.mxu0 0.0
        %6788 = vmatprep.subr.mxu0 0.0
        %6789 = vmatpush1.msra.mxu0 0.0
        %6790 = vmatprep.subr.mxu0 0.0
        %6791 = vmatpush1.msra.mxu0 0.0
        %6792 = vmatprep.subr.mxu0 0.0
        %6793 = vmatpush1.msra.mxu0 0.0
        %6794 = vmatprep.subr.mxu0 0.0
        %6795 = vmatpush1.msra.mxu0 0.0
        %6796 = vmatprep.subr.mxu0 0.0
        %6797 = vmatpush1.msra.mxu0 0.0
        %6798 = vmatprep.subr.mxu0 0.0
        %6799 = vmatpush1.msra.mxu0 0.0
        %6800 = vmatprep.mubr.f32.mxu0 0.0
        %6801 = vmatmul.mubr.f32.gmra.mrb[0].mxu0 %v6517
        %v6802 = vpop.f32.mrb[0].mxu0
        %v6803 = vadd.f32 %v6506, %v6802
        %v6804 = vpop.f32.mrb[0].mxu0
        %v6805 = vadd.f32 %v6508, %v6804
        %6806 = vdwg.mxu0
        %s6807 = scalar_lea.vmem %s3, 96
        %v6808 = vld [vmem:[%s6807] sm:$0x7]
        %6809 = vrot.lane.b32.xlu0 %v440, 113
        %v6810 = vpop.permute.xlu0 %6809
        %6811 = vrot.lane.b32.xlu0 0.0, 113
        %v6812 = vpop.permute.xlu0 %6811
        %v6813 = vsel %vm6198, %v6197, %v6810
        %v6814 = vsel %vm6198, %v6810, %v6812
        %v6816 = vsel %vm475, %v6808, 0
        %v6818 = vsel %vm479, %v6813, 0
        %v6820 = vsel %vm479, %v6814, 0
        %6822 = vmatprep.subr.mxu0 %v6216
        %6823 = vmatpush1.msra.mxu0 %v6214
        %6824 = vmatprep.subr.mxu0 0.0
        %6825 = vmatpush1.msra.mxu0 0.0
        %6826 = vmatprep.subr.mxu0 0.0
        %6827 = vmatpush1.msra.mxu0 0.0
        %6828 = vmatprep.subr.mxu0 0.0
        %6829 = vmatpush1.msra.mxu0 0.0
        %6830 = vmatprep.subr.mxu0 0.0
        %6831 = vmatpush1.msra.mxu0 0.0
        %6832 = vmatprep.subr.mxu0 0.0
        %6833 = vmatpush1.msra.mxu0 0.0
        %6834 = vmatprep.subr.mxu0 0.0
        %6835 = vmatpush1.msra.mxu0 0.0
        %6836 = vmatprep.subr.mxu0 0.0
        %6837 = vmatpush1.msra.mxu0 0.0
        %6838 = vmatprep.subr.mxu0 0.0
        %6839 = vmatpush1.msra.mxu0 0.0
        %6840 = vmatprep.subr.mxu0 0.0
        %6841 = vmatpush1.msra.mxu0 0.0
        %6842 = vmatprep.subr.mxu0 0.0
        %6843 = vmatpush1.msra.mxu0 0.0
        %6844 = vmatprep.subr.mxu0 0.0
        %6845 = vmatpush1.msra.mxu0 0.0
        %6846 = vmatprep.subr.mxu0 0.0
        %6847 = vmatpush1.msra.mxu0 0.0
        %6848 = vmatprep.subr.mxu0 0.0
        %6849 = vmatpush1.msra.mxu0 0.0
        %6850 = vmatprep.subr.mxu0 0.0
        %6851 = vmatpush1.msra.mxu0 0.0
        %6852 = vmatprep.subr.mxu0 0.0
        %6853 = vmatpush1.msra.mxu0 0.0
        %6854 = vmatprep.subr.mxu0 0.0
        %6855 = vmatpush1.msra.mxu0 0.0
        %6856 = vmatprep.subr.mxu0 0.0
        %6857 = vmatpush1.msra.mxu0 0.0
        %6858 = vmatprep.subr.mxu0 0.0
        %6859 = vmatpush1.msra.mxu0 0.0
        %6860 = vmatprep.subr.mxu0 0.0
        %6861 = vmatpush1.msra.mxu0 0.0
        %6862 = vmatprep.subr.mxu0 0.0
        %6863 = vmatpush1.msra.mxu0 0.0
        %6864 = vmatprep.subr.mxu0 0.0
        %6865 = vmatpush1.msra.mxu0 0.0
        %6866 = vmatprep.subr.mxu0 0.0
        %6867 = vmatpush1.msra.mxu0 0.0
        %6868 = vmatprep.subr.mxu0 0.0
        %6869 = vmatpush1.msra.mxu0 0.0
        %6870 = vmatprep.subr.mxu0 0.0
        %6871 = vmatpush1.msra.mxu0 0.0
        %6872 = vmatprep.subr.mxu0 0.0
        %6873 = vmatpush1.msra.mxu0 0.0
        %6874 = vmatprep.subr.mxu0 0.0
        %6875 = vmatpush1.msra.mxu0 0.0
        %6876 = vmatprep.subr.mxu0 0.0
        %6877 = vmatpush1.msra.mxu0 0.0
        %6878 = vmatprep.subr.mxu0 0.0
        %6879 = vmatpush1.msra.mxu0 0.0
        %6880 = vmatprep.subr.mxu0 0.0
        %6881 = vmatpush1.msra.mxu0 0.0
        %6882 = vmatprep.subr.mxu0 0.0
        %6883 = vmatpush1.msra.mxu0 0.0
        %6884 = vmatprep.subr.mxu0 0.0
        %6885 = vmatpush1.msra.mxu0 0.0
        %6886 = vmatprep.mubr.f32.mxu0 0.0
        %6887 = vmatmul.mubr.f32.gmra.mrb[0].mxu0 %v6816
        %v6888 = vpop.f32.mrb[0].mxu0
        %v6889 = vadd.f32 0.0, %v6888
        %v6890 = vpop.f32.mrb[0].mxu0
        %v6891 = vadd.f32 0.0, %v6890
        %6892 = vdwg.mxu0
        %6893 = vmatprep.subr.mxu0 %v6220
        %6894 = vmatpush1.msra.mxu0 %v6218
        %6895 = vmatprep.subr.mxu0 0.0
        %6896 = vmatpush1.msra.mxu0 0.0
        %6897 = vmatprep.subr.mxu0 0.0
        %6898 = vmatpush1.msra.mxu0 0.0
        %6899 = vmatprep.subr.mxu0 0.0
        %6900 = vmatpush1.msra.mxu0 0.0
        %6901 = vmatprep.subr.mxu0 0.0
        %6902 = vmatpush1.msra.mxu0 0.0
        %6903 = vmatprep.subr.mxu0 0.0
        %6904 = vmatpush1.msra.mxu0 0.0
        %6905 = vmatprep.subr.mxu0 0.0
        %6906 = vmatpush1.msra.mxu0 0.0
        %6907 = vmatprep.subr.mxu0 0.0
        %6908 = vmatpush1.msra.mxu0 0.0
        %6909 = vmatprep.subr.mxu0 0.0
        %6910 = vmatpush1.msra.mxu0 0.0
        %6911 = vmatprep.subr.mxu0 0.0
        %6912 = vmatpush1.msra.mxu0 0.0
        %6913 = vmatprep.subr.mxu0 0.0
        %6914 = vmatpush1.msra.mxu0 0.0
        %6915 = vmatprep.subr.mxu0 0.0
        %6916 = vmatpush1.msra.mxu0 0.0
        %6917 = vmatprep.subr.mxu0 0.0
        %6918 = vmatpush1.msra.mxu0 0.0
        %6919 = vmatprep.subr.mxu0 0.0
        %6920 = vmatpush1.msra.mxu0 0.0
        %6921 = vmatprep.subr.mxu0 0.0
        %6922 = vmatpush1.msra.mxu0 0.0
        %6923 = vmatprep.subr.mxu0 0.0
        %6924 = vmatpush1.msra.mxu0 0.0
        %6925 = vmatprep.subr.mxu0 0.0
        %6926 = vmatpush1.msra.mxu0 0.0
        %6927 = vmatprep.subr.mxu0 0.0
        %6928 = vmatpush1.msra.mxu0 0.0
        %6929 = vmatprep.subr.mxu0 0.0
        %6930 = vmatpush1.msra.mxu0 0.0
        %6931 = vmatprep.subr.mxu0 0.0
        %6932 = vmatpush1.msra.mxu0 0.0
        %6933 = vmatprep.subr.mxu0 0.0
        %6934 = vmatpush1.msra.mxu0 0.0
        %6935 = vmatprep.subr.mxu0 0.0
        %6936 = vmatpush1.msra.mxu0 0.0
        %6937 = vmatprep.subr.mxu0 0.0
        %6938 = vmatpush1.msra.mxu0 0.0
        %6939 = vmatprep.subr.mxu0 0.0
        %6940 = vmatpush1.msra.mxu0 0.0
        %6941 = vmatprep.subr.mxu0 0.0
        %6942 = vmatpush1.msra.mxu0 0.0
        %6943 = vmatprep.subr.mxu0 0.0
        %6944 = vmatpush1.msra.mxu0 0.0
        %6945 = vmatprep.subr.mxu0 0.0
        %6946 = vmatpush1.msra.mxu0 0.0
        %6947 = vmatprep.subr.mxu0 0.0
        %6948 = vmatpush1.msra.mxu0 0.0
        %6949 = vmatprep.subr.mxu0 0.0
        %6950 = vmatpush1.msra.mxu0 0.0
        %6951 = vmatprep.subr.mxu0 0.0
        %6952 = vmatpush1.msra.mxu0 0.0
        %6953 = vmatprep.subr.mxu0 0.0
        %6954 = vmatpush1.msra.mxu0 0.0
        %6955 = vmatprep.subr.mxu0 0.0
        %6956 = vmatpush1.msra.mxu0 0.0
        %6957 = vmatprep.mubr.f32.mxu0 0.0
        %6958 = vmatmul.mubr.f32.gmra.mrb[0].mxu0 %v6816
        %v6959 = vpop.f32.mrb[0].mxu0
        %v6960 = vadd.f32 0.0, %v6959
        %v6961 = vpop.f32.mrb[0].mxu0
        %v6962 = vadd.f32 0.0, %v6961
        %6963 = vdwg.mxu0
        %6964 = vmatprep.subr.mxu0 %v6224
        %6965 = vmatpush1.msra.mxu0 %v6222
        %6966 = vmatprep.subr.mxu0 0.0
        %6967 = vmatpush1.msra.mxu0 0.0
        %6968 = vmatprep.subr.mxu0 0.0
        %6969 = vmatpush1.msra.mxu0 0.0
        %6970 = vmatprep.subr.mxu0 0.0
        %6971 = vmatpush1.msra.mxu0 0.0
        %6972 = vmatprep.subr.mxu0 0.0
        %6973 = vmatpush1.msra.mxu0 0.0
        %6974 = vmatprep.subr.mxu0 0.0
        %6975 = vmatpush1.msra.mxu0 0.0
        %6976 = vmatprep.subr.mxu0 0.0
        %6977 = vmatpush1.msra.mxu0 0.0
        %6978 = vmatprep.subr.mxu0 0.0
        %6979 = vmatpush1.msra.mxu0 0.0
        %6980 = vmatprep.subr.mxu0 0.0
        %6981 = vmatpush1.msra.mxu0 0.0
        %6982 = vmatprep.subr.mxu0 0.0
        %6983 = vmatpush1.msra.mxu0 0.0
        %6984 = vmatprep.subr.mxu0 0.0
        %6985 = vmatpush1.msra.mxu0 0.0
        %6986 = vmatprep.subr.mxu0 0.0
        %6987 = vmatpush1.msra.mxu0 0.0
        %6988 = vmatprep.subr.mxu0 0.0
        %6989 = vmatpush1.msra.mxu0 0.0
        %6990 = vmatprep.subr.mxu0 0.0
        %6991 = vmatpush1.msra.mxu0 0.0
        %6992 = vmatprep.subr.mxu0 0.0
        %6993 = vmatpush1.msra.mxu0 0.0
        %6994 = vmatprep.subr.mxu0 0.0
        %6995 = vmatpush1.msra.mxu0 0.0
        %6996 = vmatprep.subr.mxu0 0.0
        %6997 = vmatpush1.msra.mxu0 0.0
        %6998 = vmatprep.subr.mxu0 0.0
        %6999 = vmatpush1.msra.mxu0 0.0
        %7000 = vmatprep.subr.mxu0 0.0
        %7001 = vmatpush1.msra.mxu0 0.0
        %7002 = vmatprep.subr.mxu0 0.0
        %7003 = vmatpush1.msra.mxu0 0.0
        %7004 = vmatprep.subr.mxu0 0.0
        %7005 = vmatpush1.msra.mxu0 0.0
        %7006 = vmatprep.subr.mxu0 0.0
        %7007 = vmatpush1.msra.mxu0 0.0
        %7008 = vmatprep.subr.mxu0 0.0
        %7009 = vmatpush1.msra.mxu0 0.0
        %7010 = vmatprep.subr.mxu0 0.0
        %7011 = vmatpush1.msra.mxu0 0.0
        %7012 = vmatprep.subr.mxu0 0.0
        %7013 = vmatpush1.msra.mxu0 0.0
        %7014 = vmatprep.subr.mxu0 0.0
        %7015 = vmatpush1.msra.mxu0 0.0
        %7016 = vmatprep.subr.mxu0 0.0
        %7017 = vmatpush1.msra.mxu0 0.0
        %7018 = vmatprep.subr.mxu0 0.0
        %7019 = vmatpush1.msra.mxu0 0.0
        %7020 = vmatprep.subr.mxu0 0.0
        %7021 = vmatpush1.msra.mxu0 0.0
        %7022 = vmatprep.subr.mxu0 0.0
        %7023 = vmatpush1.msra.mxu0 0.0
        %7024 = vmatprep.subr.mxu0 0.0
        %7025 = vmatpush1.msra.mxu0 0.0
        %7026 = vmatprep.subr.mxu0 0.0
        %7027 = vmatpush1.msra.mxu0 0.0
        %7028 = vmatprep.mubr.f32.mxu0 0.0
        %7029 = vmatmul.mubr.f32.gmra.mrb[0].mxu0 %v6816
        %v7030 = vpop.f32.mrb[0].mxu0
        %v7031 = vadd.f32 0.0, %v7030
        %v7032 = vpop.f32.mrb[0].mxu0
        %v7033 = vadd.f32 0.0, %v7032
        %7034 = vdwg.mxu0
        %7035 = vmatprep.subr.mxu0 %v6820
        %7036 = vmatpush1.msra.mxu0 %v6818
        %7037 = vmatprep.subr.mxu0 0.0
        %7038 = vmatpush1.msra.mxu0 0.0
        %7039 = vmatprep.subr.mxu0 0.0
        %7040 = vmatpush1.msra.mxu0 0.0
        %7041 = vmatprep.subr.mxu0 0.0
        %7042 = vmatpush1.msra.mxu0 0.0
        %7043 = vmatprep.subr.mxu0 0.0
        %7044 = vmatpush1.msra.mxu0 0.0
        %7045 = vmatprep.subr.mxu0 0.0
        %7046 = vmatpush1.msra.mxu0 0.0
        %7047 = vmatprep.subr.mxu0 0.0
        %7048 = vmatpush1.msra.mxu0 0.0
        %7049 = vmatprep.subr.mxu0 0.0
        %7050 = vmatpush1.msra.mxu0 0.0
        %7051 = vmatprep.subr.mxu0 0.0
        %7052 = vmatpush1.msra.mxu0 0.0
        %7053 = vmatprep.subr.mxu0 0.0
        %7054 = vmatpush1.msra.mxu0 0.0
        %7055 = vmatprep.subr.mxu0 0.0
        %7056 = vmatpush1.msra.mxu0 0.0
        %7057 = vmatprep.subr.mxu0 0.0
        %7058 = vmatpush1.msra.mxu0 0.0
        %7059 = vmatprep.subr.mxu0 0.0
        %7060 = vmatpush1.msra.mxu0 0.0
        %7061 = vmatprep.subr.mxu0 0.0
        %7062 = vmatpush1.msra.mxu0 0.0
        %7063 = vmatprep.subr.mxu0 0.0
        %7064 = vmatpush1.msra.mxu0 0.0
        %7065 = vmatprep.subr.mxu0 0.0
        %7066 = vmatpush1.msra.mxu0 0.0
        %7067 = vmatprep.subr.mxu0 0.0
        %7068 = vmatpush1.msra.mxu0 0.0
        %7069 = vmatprep.subr.mxu0 0.0
        %7070 = vmatpush1.msra.mxu0 0.0
        %7071 = vmatprep.subr.mxu0 0.0
        %7072 = vmatpush1.msra.mxu0 0.0
        %7073 = vmatprep.subr.mxu0 0.0
        %7074 = vmatpush1.msra.mxu0 0.0
        %7075 = vmatprep.subr.mxu0 0.0
        %7076 = vmatpush1.msra.mxu0 0.0
        %7077 = vmatprep.subr.mxu0 0.0
        %7078 = vmatpush1.msra.mxu0 0.0
        %7079 = vmatprep.subr.mxu0 0.0
        %7080 = vmatpush1.msra.mxu0 0.0
        %7081 = vmatprep.subr.mxu0 0.0
        %7082 = vmatpush1.msra.mxu0 0.0
        %7083 = vmatprep.subr.mxu0 0.0
        %7084 = vmatpush1.msra.mxu0 0.0
        %7085 = vmatprep.subr.mxu0 0.0
        %7086 = vmatpush1.msra.mxu0 0.0
        %7087 = vmatprep.subr.mxu0 0.0
        %7088 = vmatpush1.msra.mxu0 0.0
        %7089 = vmatprep.subr.mxu0 0.0
        %7090 = vmatpush1.msra.mxu0 0.0
        %7091 = vmatprep.subr.mxu0 0.0
        %7092 = vmatpush1.msra.mxu0 0.0
        %7093 = vmatprep.subr.mxu0 0.0
        %7094 = vmatpush1.msra.mxu0 0.0
        %7095 = vmatprep.subr.mxu0 0.0
        %7096 = vmatpush1.msra.mxu0 0.0
        %7097 = vmatprep.subr.mxu0 0.0
        %7098 = vmatpush1.msra.mxu0 0.0
        %7099 = vmatprep.mubr.f32.mxu0 0.0
        %7100 = vmatmul.mubr.f32.gmra.mrb[0].mxu0 %v6816
        %v7101 = vpop.f32.mrb[0].mxu0
        %v7102 = vadd.f32 0.0, %v7101
        %v7103 = vpop.f32.mrb[0].mxu0
        %v7104 = vadd.f32 0.0, %v7103
        %7105 = vdwg.mxu0
        %v7106 = vadd.f32 %v6590, %v6889
        %v7107 = vadd.f32 %v6592, %v6891
        %v7108 = vadd.f32 %v6661, %v6960
        %v7109 = vadd.f32 %v6663, %v6962
        %v7110 = vadd.f32 %v6732, %v7031
        %v7111 = vadd.f32 %v6734, %v7033
        %v7112 = vadd.f32 %v6803, %v7102
        %v7113 = vadd.f32 %v6805, %v7104
        %v7114 = vrot.slane %v441, 1
        %v7115 = vrot.slane %v443, 1
        %v7118 = vmul.f32 %v441, %v7114
        %v7119 = vmul.f32 %v443, %v7115
        %v7120 = vlaneseq
        %v7121 = vshrl.u32 %v7120, 7
        %v7122 = vsub.s32 1, %v7121
        %v7123 = vrot.slane %v7118, %v7122
        %v7124 = vlaneseq
        %v7125 = vshrl.u32 %v7124, 7
        %v7126 = vsub.s32 1, %v7125
        %v7127 = vrot.slane %v7119, %v7126
        %v7128 = vmul.f32 %v7106, %v7123
        %v7129 = vmul.f32 %v7107, %v7127
        %v7130 = vmul.f32 %v7108, %v7123
        %v7131 = vmul.f32 %v7109, %v7127
        %v7132 = vmul.f32 %v7110, %v7123
        %v7133 = vmul.f32 %v7111, %v7127
        %v7134 = vmul.f32 %v7112, %v7123
        %v7135 = vmul.f32 %v7113, %v7127
        %v7136 = vadd.f32 %v6168, %v7128
        %v7137 = vadd.f32 %v6169, %v7129
        %v7138 = vadd.f32 %v6170, %v7130
        %v7139 = vadd.f32 %v6171, %v7131
        %v7140 = vadd.f32 %v6172, %v7132
        %v7141 = vadd.f32 %v6173, %v7133
        %v7142 = vadd.f32 %v6174, %v7134
        %v7143 = vadd.f32 %v6175, %v7135
        %s7144 = scalar_lea.vmem %s3, 28
        %v7145 = vld [vmem:[%s7144] sm:$0x7]
        %s7146 = scalar_lea.vmem %s3, 64
        %v7147 = vld [vmem:[%s7146] sm:$0x7]
        %7148 = vrot.lane.b32.xlu0 %v413, 112
        %v7149 = vpop.permute.xlu0 %7148
        %7150 = vrot.lane.b32.xlu0 %v435, 112
        %v7151 = vpop.permute.xlu0 %7150
        %7152 = vrot.lane.b32.xlu0 %v414, 112
        %v7153 = vpop.permute.xlu0 %7152
        %7154 = vrot.lane.b32.xlu0 %v436, 112
        %v7155 = vpop.permute.xlu0 %7154
        %7156 = vrot.lane.b32.xlu0 %v415, 112
        %v7157 = vpop.permute.xlu0 %7156
        %7158 = vrot.lane.b32.xlu0 %v437, 112
        %v7159 = vpop.permute.xlu0 %7158
        %7160 = vrot.lane.b32.xlu0 %v416, 112
        %v7161 = vpop.permute.xlu0 %7160
        %7162 = vrot.lane.b32.xlu0 %v438, 112
        %v7163 = vpop.permute.xlu0 %7162
        %7164 = vrot.lane.b32.xlu0 %v428, 112
        %v7165 = vpop.permute.xlu0 %7164
        %vm7166 = vcmask 916480
        %v7167 = vsel %vm7166, %v7149, %v7151
        %v7168 = vsel %vm7166, %v7151, %v7153
        %v7169 = vsel %vm7166, %v7153, %v7155
        %v7170 = vsel %vm7166, %v7155, %v7157
        %v7171 = vsel %vm7166, %v7157, %v7159
        %v7172 = vsel %vm7166, %v7159, %v7161
        %v7173 = vsel %vm7166, %v7161, %v7163
        %v7174 = vsel %vm7166, %v7163, %v7165
        %v7176 = vsel %vm475, %v7147, 0
        %v7178 = vsel %vm479, %v7167, 0
        %v7180 = vsel %vm479, %v7168, 0
        %v7182 = vsel %vm479, %v7169, 0
        %v7184 = vsel %vm479, %v7170, 0
        %v7186 = vsel %vm479, %v7171, 0
        %v7188 = vsel %vm479, %v7172, 0
        %v7190 = vsel %vm479, %v7173, 0
        %v7192 = vsel %vm479, %v7174, 0
        %7194 = vmatprep.subr.mxu0 %v7180
        %7195 = vmatpush1.msra.mxu0 %v7178
        %7196 = vmatprep.subr.mxu0 0.0
        %7197 = vmatpush1.msra.mxu0 0.0
        %7198 = vmatprep.subr.mxu0 0.0
        %7199 = vmatpush1.msra.mxu0 0.0
        %7200 = vmatprep.subr.mxu0 0.0
        %7201 = vmatpush1.msra.mxu0 0.0
        %7202 = vmatprep.subr.mxu0 0.0
        %7203 = vmatpush1.msra.mxu0 0.0
        %7204 = vmatprep.subr.mxu0 0.0
        %7205 = vmatpush1.msra.mxu0 0.0
        %7206 = vmatprep.subr.mxu0 0.0
        %7207 = vmatpush1.msra.mxu0 0.0
        %7208 = vmatprep.subr.mxu0 0.0
        %7209 = vmatpush1.msra.mxu0 0.0
        %7210 = vmatprep.subr.mxu0 0.0
        %7211 = vmatpush1.msra.mxu0 0.0
        %7212 = vmatprep.subr.mxu0 0.0
        %7213 = vmatpush1.msra.mxu0 0.0
        %7214 = vmatprep.subr.mxu0 0.0
        %7215 = vmatpush1.msra.mxu0 0.0
        %7216 = vmatprep.subr.mxu0 0.0
        %7217 = vmatpush1.msra.mxu0 0.0
        %7218 = vmatprep.subr.mxu0 0.0
        %7219 = vmatpush1.msra.mxu0 0.0
        %7220 = vmatprep.subr.mxu0 0.0
        %7221 = vmatpush1.msra.mxu0 0.0
        %7222 = vmatprep.subr.mxu0 0.0
        %7223 = vmatpush1.msra.mxu0 0.0
        %7224 = vmatprep.subr.mxu0 0.0
        %7225 = vmatpush1.msra.mxu0 0.0
        %7226 = vmatprep.subr.mxu0 0.0
        %7227 = vmatpush1.msra.mxu0 0.0
        %7228 = vmatprep.subr.mxu0 0.0
        %7229 = vmatpush1.msra.mxu0 0.0
        %7230 = vmatprep.subr.mxu0 0.0
        %7231 = vmatpush1.msra.mxu0 0.0
        %7232 = vmatprep.subr.mxu0 0.0
        %7233 = vmatpush1.msra.mxu0 0.0
        %7234 = vmatprep.subr.mxu0 0.0
        %7235 = vmatpush1.msra.mxu0 0.0
        %7236 = vmatprep.subr.mxu0 0.0
        %7237 = vmatpush1.msra.mxu0 0.0
        %7238 = vmatprep.subr.mxu0 0.0
        %7239 = vmatpush1.msra.mxu0 0.0
        %7240 = vmatprep.subr.mxu0 0.0
        %7241 = vmatpush1.msra.mxu0 0.0
        %7242 = vmatprep.subr.mxu0 0.0
        %7243 = vmatpush1.msra.mxu0 0.0
        %7244 = vmatprep.subr.mxu0 0.0
        %7245 = vmatpush1.msra.mxu0 0.0
        %7246 = vmatprep.subr.mxu0 0.0
        %7247 = vmatpush1.msra.mxu0 0.0
        %7248 = vmatprep.subr.mxu0 0.0
        %7249 = vmatpush1.msra.mxu0 0.0
        %7250 = vmatprep.subr.mxu0 0.0
        %7251 = vmatpush1.msra.mxu0 0.0
        %7252 = vmatprep.subr.mxu0 0.0
        %7253 = vmatpush1.msra.mxu0 0.0
        %7254 = vmatprep.subr.mxu0 0.0
        %7255 = vmatpush1.msra.mxu0 0.0
        %7256 = vmatprep.subr.mxu0 0.0
        %7257 = vmatpush1.msra.mxu0 0.0
        %7258 = vmatprep.mubr.f32.mxu0 0.0
        %7259 = vmatmul.mubr.f32.gmra.mrb[0].mxu0 %v7176
        %v7260 = vpop.f32.mrb[0].mxu0
        %v7261 = vadd.f32 0.0, %v7260
        %v7262 = vpop.f32.mrb[0].mxu0
        %v7263 = vadd.f32 0.0, %v7262
        %7264 = vdwg.mxu0
        %7265 = vmatprep.subr.mxu0 %v7184
        %7266 = vmatpush1.msra.mxu0 %v7182
        %7267 = vmatprep.subr.mxu0 0.0
        %7268 = vmatpush1.msra.mxu0 0.0
        %7269 = vmatprep.subr.mxu0 0.0
        %7270 = vmatpush1.msra.mxu0 0.0
        %7271 = vmatprep.subr.mxu0 0.0
        %7272 = vmatpush1.msra.mxu0 0.0
        %7273 = vmatprep.subr.mxu0 0.0
        %7274 = vmatpush1.msra.mxu0 0.0
        %7275 = vmatprep.subr.mxu0 0.0
        %7276 = vmatpush1.msra.mxu0 0.0
        %7277 = vmatprep.subr.mxu0 0.0
        %7278 = vmatpush1.msra.mxu0 0.0
        %7279 = vmatprep.subr.mxu0 0.0
        %7280 = vmatpush1.msra.mxu0 0.0
        %7281 = vmatprep.subr.mxu0 0.0
        %7282 = vmatpush1.msra.mxu0 0.0
        %7283 = vmatprep.subr.mxu0 0.0
        %7284 = vmatpush1.msra.mxu0 0.0
        %7285 = vmatprep.subr.mxu0 0.0
        %7286 = vmatpush1.msra.mxu0 0.0
        %7287 = vmatprep.subr.mxu0 0.0
        %7288 = vmatpush1.msra.mxu0 0.0
        %7289 = vmatprep.subr.mxu0 0.0
        %7290 = vmatpush1.msra.mxu0 0.0
        %7291 = vmatprep.subr.mxu0 0.0
        %7292 = vmatpush1.msra.mxu0 0.0
        %7293 = vmatprep.subr.mxu0 0.0
        %7294 = vmatpush1.msra.mxu0 0.0
        %7295 = vmatprep.subr.mxu0 0.0
        %7296 = vmatpush1.msra.mxu0 0.0
        %7297 = vmatprep.subr.mxu0 0.0
        %7298 = vmatpush1.msra.mxu0 0.0
        %7299 = vmatprep.subr.mxu0 0.0
        %7300 = vmatpush1.msra.mxu0 0.0
        %7301 = vmatprep.subr.mxu0 0.0
        %7302 = vmatpush1.msra.mxu0 0.0
        %7303 = vmatprep.subr.mxu0 0.0
        %7304 = vmatpush1.msra.mxu0 0.0
        %7305 = vmatprep.subr.mxu0 0.0
        %7306 = vmatpush1.msra.mxu0 0.0
        %7307 = vmatprep.subr.mxu0 0.0
        %7308 = vmatpush1.msra.mxu0 0.0
        %7309 = vmatprep.subr.mxu0 0.0
        %7310 = vmatpush1.msra.mxu0 0.0
        %7311 = vmatprep.subr.mxu0 0.0
        %7312 = vmatpush1.msra.mxu0 0.0
        %7313 = vmatprep.subr.mxu0 0.0
        %7314 = vmatpush1.msra.mxu0 0.0
        %7315 = vmatprep.subr.mxu0 0.0
        %7316 = vmatpush1.msra.mxu0 0.0
        %7317 = vmatprep.subr.mxu0 0.0
        %7318 = vmatpush1.msra.mxu0 0.0
        %7319 = vmatprep.subr.mxu0 0.0
        %7320 = vmatpush1.msra.mxu0 0.0
        %7321 = vmatprep.subr.mxu0 0.0
        %7322 = vmatpush1.msra.mxu0 0.0
        %7323 = vmatprep.subr.mxu0 0.0
        %7324 = vmatpush1.msra.mxu0 0.0
        %7325 = vmatprep.subr.mxu0 0.0
        %7326 = vmatpush1.msra.mxu0 0.0
        %7327 = vmatprep.subr.mxu0 0.0
        %7328 = vmatpush1.msra.mxu0 0.0
        %7329 = vmatprep.mubr.f32.mxu0 0.0
        %7330 = vmatmul.mubr.f32.gmra.mrb[0].mxu0 %v7176
        %v7331 = vpop.f32.mrb[0].mxu0
        %v7332 = vadd.f32 0.0, %v7331
        %v7333 = vpop.f32.mrb[0].mxu0
        %v7334 = vadd.f32 0.0, %v7333
        %7335 = vdwg.mxu0
        %7336 = vmatprep.subr.mxu0 %v7188
        %7337 = vmatpush1.msra.mxu0 %v7186
        %7338 = vmatprep.subr.mxu0 0.0
        %7339 = vmatpush1.msra.mxu0 0.0
        %7340 = vmatprep.subr.mxu0 0.0
        %7341 = vmatpush1.msra.mxu0 0.0
        %7342 = vmatprep.subr.mxu0 0.0
        %7343 = vmatpush1.msra.mxu0 0.0
        %7344 = vmatprep.subr.mxu0 0.0
        %7345 = vmatpush1.msra.mxu0 0.0
        %7346 = vmatprep.subr.mxu0 0.0
        %7347 = vmatpush1.msra.mxu0 0.0
        %7348 = vmatprep.subr.mxu0 0.0
        %7349 = vmatpush1.msra.mxu0 0.0
        %7350 = vmatprep.subr.mxu0 0.0
        %7351 = vmatpush1.msra.mxu0 0.0
        %7352 = vmatprep.subr.mxu0 0.0
        %7353 = vmatpush1.msra.mxu0 0.0
        %7354 = vmatprep.subr.mxu0 0.0
        %7355 = vmatpush1.msra.mxu0 0.0
        %7356 = vmatprep.subr.mxu0 0.0
        %7357 = vmatpush1.msra.mxu0 0.0
        %7358 = vmatprep.subr.mxu0 0.0
        %7359 = vmatpush1.msra.mxu0 0.0
        %7360 = vmatprep.subr.mxu0 0.0
        %7361 = vmatpush1.msra.mxu0 0.0
        %7362 = vmatprep.subr.mxu0 0.0
        %7363 = vmatpush1.msra.mxu0 0.0
        %7364 = vmatprep.subr.mxu0 0.0
        %7365 = vmatpush1.msra.mxu0 0.0
        %7366 = vmatprep.subr.mxu0 0.0
        %7367 = vmatpush1.msra.mxu0 0.0
        %7368 = vmatprep.subr.mxu0 0.0
        %7369 = vmatpush1.msra.mxu0 0.0
        %7370 = vmatprep.subr.mxu0 0.0
        %7371 = vmatpush1.msra.mxu0 0.0
        %7372 = vmatprep.subr.mxu0 0.0
        %7373 = vmatpush1.msra.mxu0 0.0
        %7374 = vmatprep.subr.mxu0 0.0
        %7375 = vmatpush1.msra.mxu0 0.0
        %7376 = vmatprep.subr.mxu0 0.0
        %7377 = vmatpush1.msra.mxu0 0.0
        %7378 = vmatprep.subr.mxu0 0.0
        %7379 = vmatpush1.msra.mxu0 0.0
        %7380 = vmatprep.subr.mxu0 0.0
        %7381 = vmatpush1.msra.mxu0 0.0
        %7382 = vmatprep.subr.mxu0 0.0
        %7383 = vmatpush1.msra.mxu0 0.0
        %7384 = vmatprep.subr.mxu0 0.0
        %7385 = vmatpush1.msra.mxu0 0.0
        %7386 = vmatprep.subr.mxu0 0.0
        %7387 = vmatpush1.msra.mxu0 0.0
        %7388 = vmatprep.subr.mxu0 0.0
        %7389 = vmatpush1.msra.mxu0 0.0
        %7390 = vmatprep.subr.mxu0 0.0
        %7391 = vmatpush1.msra.mxu0 0.0
        %7392 = vmatprep.subr.mxu0 0.0
        %7393 = vmatpush1.msra.mxu0 0.0
        %7394 = vmatprep.subr.mxu0 0.0
        %7395 = vmatpush1.msra.mxu0 0.0
        %7396 = vmatprep.subr.mxu0 0.0
        %7397 = vmatpush1.msra.mxu0 0.0
        %7398 = vmatprep.subr.mxu0 0.0
        %7399 = vmatpush1.msra.mxu0 0.0
        %7400 = vmatprep.mubr.f32.mxu0 0.0
        %7401 = vmatmul.mubr.f32.gmra.mrb[0].mxu0 %v7176
        %v7402 = vpop.f32.mrb[0].mxu0
        %v7403 = vadd.f32 0.0, %v7402
        %v7404 = vpop.f32.mrb[0].mxu0
        %v7405 = vadd.f32 0.0, %v7404
        %7406 = vdwg.mxu0
        %7407 = vmatprep.subr.mxu0 %v7192
        %7408 = vmatpush1.msra.mxu0 %v7190
        %7409 = vmatprep.subr.mxu0 0.0
        %7410 = vmatpush1.msra.mxu0 0.0
        %7411 = vmatprep.subr.mxu0 0.0
        %7412 = vmatpush1.msra.mxu0 0.0
        %7413 = vmatprep.subr.mxu0 0.0
        %7414 = vmatpush1.msra.mxu0 0.0
        %7415 = vmatprep.subr.mxu0 0.0
        %7416 = vmatpush1.msra.mxu0 0.0
        %7417 = vmatprep.subr.mxu0 0.0
        %7418 = vmatpush1.msra.mxu0 0.0
        %7419 = vmatprep.subr.mxu0 0.0
        %7420 = vmatpush1.msra.mxu0 0.0
        %7421 = vmatprep.subr.mxu0 0.0
        %7422 = vmatpush1.msra.mxu0 0.0
        %7423 = vmatprep.subr.mxu0 0.0
        %7424 = vmatpush1.msra.mxu0 0.0
        %7425 = vmatprep.subr.mxu0 0.0
        %7426 = vmatpush1.msra.mxu0 0.0
        %7427 = vmatprep.subr.mxu0 0.0
        %7428 = vmatpush1.msra.mxu0 0.0
        %7429 = vmatprep.subr.mxu0 0.0
        %7430 = vmatpush1.msra.mxu0 0.0
        %7431 = vmatprep.subr.mxu0 0.0
        %7432 = vmatpush1.msra.mxu0 0.0
        %7433 = vmatprep.subr.mxu0 0.0
        %7434 = vmatpush1.msra.mxu0 0.0
        %7435 = vmatprep.subr.mxu0 0.0
        %7436 = vmatpush1.msra.mxu0 0.0
        %7437 = vmatprep.subr.mxu0 0.0
        %7438 = vmatpush1.msra.mxu0 0.0
        %7439 = vmatprep.subr.mxu0 0.0
        %7440 = vmatpush1.msra.mxu0 0.0
        %7441 = vmatprep.subr.mxu0 0.0
        %7442 = vmatpush1.msra.mxu0 0.0
        %7443 = vmatprep.subr.mxu0 0.0
        %7444 = vmatpush1.msra.mxu0 0.0
        %7445 = vmatprep.subr.mxu0 0.0
        %7446 = vmatpush1.msra.mxu0 0.0
        %7447 = vmatprep.subr.mxu0 0.0
        %7448 = vmatpush1.msra.mxu0 0.0
        %7449 = vmatprep.subr.mxu0 0.0
        %7450 = vmatpush1.msra.mxu0 0.0
        %7451 = vmatprep.subr.mxu0 0.0
        %7452 = vmatpush1.msra.mxu0 0.0
        %7453 = vmatprep.subr.mxu0 0.0
        %7454 = vmatpush1.msra.mxu0 0.0
        %7455 = vmatprep.subr.mxu0 0.0
        %7456 = vmatpush1.msra.mxu0 0.0
        %7457 = vmatprep.subr.mxu0 0.0
        %7458 = vmatpush1.msra.mxu0 0.0
        %7459 = vmatprep.subr.mxu0 0.0
        %7460 = vmatpush1.msra.mxu0 0.0
        %7461 = vmatprep.subr.mxu0 0.0
        %7462 = vmatpush1.msra.mxu0 0.0
        %7463 = vmatprep.subr.mxu0 0.0
        %7464 = vmatpush1.msra.mxu0 0.0
        %7465 = vmatprep.subr.mxu0 0.0
        %7466 = vmatpush1.msra.mxu0 0.0
        %7467 = vmatprep.subr.mxu0 0.0
        %7468 = vmatpush1.msra.mxu0 0.0
        %7469 = vmatprep.subr.mxu0 0.0
        %7470 = vmatpush1.msra.mxu0 0.0
        %7471 = vmatprep.mubr.f32.mxu0 0.0
        %7472 = vmatmul.mubr.f32.gmra.mrb[0].mxu0 %v7176
        %v7473 = vpop.f32.mrb[0].mxu0
        %v7474 = vadd.f32 0.0, %v7473
        %v7475 = vpop.f32.mrb[0].mxu0
        %v7476 = vadd.f32 0.0, %v7475
        %7477 = vdwg.mxu0
        %7478 = vrot.lane.b32.xlu0 %v423, 112
        %v7479 = vpop.permute.xlu0 %7478
        %7480 = vrot.lane.b32.xlu0 %v430, 112
        %v7481 = vpop.permute.xlu0 %7480
        %v7482 = vsel %vm7166, %v7479, %v7481
        %v7483 = vsel %vm7166, %v7481, %v7149
        %v7485 = vsel %vm475, %v7145, 0
        %v7487 = vsel %vm479, %v7482, 0
        %v7489 = vsel %vm479, %v7483, 0
        %7491 = vmatprep.subr.mxu0 %v7489
        %7492 = vmatpush1.msra.mxu0 %v7487
        %7493 = vmatprep.subr.mxu0 0.0
        %7494 = vmatpush1.msra.mxu0 0.0
        %7495 = vmatprep.subr.mxu0 0.0
        %7496 = vmatpush1.msra.mxu0 0.0
        %7497 = vmatprep.subr.mxu0 0.0
        %7498 = vmatpush1.msra.mxu0 0.0
        %7499 = vmatprep.subr.mxu0 0.0
        %7500 = vmatpush1.msra.mxu0 0.0
        %7501 = vmatprep.subr.mxu0 0.0
        %7502 = vmatpush1.msra.mxu0 0.0
        %7503 = vmatprep.subr.mxu0 0.0
        %7504 = vmatpush1.msra.mxu0 0.0
        %7505 = vmatprep.subr.mxu0 0.0
        %7506 = vmatpush1.msra.mxu0 0.0
        %7507 = vmatprep.subr.mxu0 0.0
        %7508 = vmatpush1.msra.mxu0 0.0
        %7509 = vmatprep.subr.mxu0 0.0
        %7510 = vmatpush1.msra.mxu0 0.0
        %7511 = vmatprep.subr.mxu0 0.0
        %7512 = vmatpush1.msra.mxu0 0.0
        %7513 = vmatprep.subr.mxu0 0.0
        %7514 = vmatpush1.msra.mxu0 0.0
        %7515 = vmatprep.subr.mxu0 0.0
        %7516 = vmatpush1.msra.mxu0 0.0
        %7517 = vmatprep.subr.mxu0 0.0
        %7518 = vmatpush1.msra.mxu0 0.0
        %7519 = vmatprep.subr.mxu0 0.0
        %7520 = vmatpush1.msra.mxu0 0.0
        %7521 = vmatprep.subr.mxu0 0.0
        %7522 = vmatpush1.msra.mxu0 0.0
        %7523 = vmatprep.subr.mxu0 0.0
        %7524 = vmatpush1.msra.mxu0 0.0
        %7525 = vmatprep.subr.mxu0 0.0
        %7526 = vmatpush1.msra.mxu0 0.0
        %7527 = vmatprep.subr.mxu0 0.0
        %7528 = vmatpush1.msra.mxu0 0.0
        %7529 = vmatprep.subr.mxu0 0.0
        %7530 = vmatpush1.msra.mxu0 0.0
        %7531 = vmatprep.subr.mxu0 0.0
        %7532 = vmatpush1.msra.mxu0 0.0
        %7533 = vmatprep.subr.mxu0 0.0
        %7534 = vmatpush1.msra.mxu0 0.0
        %7535 = vmatprep.subr.mxu0 0.0
        %7536 = vmatpush1.msra.mxu0 0.0
        %7537 = vmatprep.subr.mxu0 0.0
        %7538 = vmatpush1.msra.mxu0 0.0
        %7539 = vmatprep.subr.mxu0 0.0
        %7540 = vmatpush1.msra.mxu0 0.0
        %7541 = vmatprep.subr.mxu0 0.0
        %7542 = vmatpush1.msra.mxu0 0.0
        %7543 = vmatprep.subr.mxu0 0.0
        %7544 = vmatpush1.msra.mxu0 0.0
        %7545 = vmatprep.subr.mxu0 0.0
        %7546 = vmatpush1.msra.mxu0 0.0
        %7547 = vmatprep.subr.mxu0 0.0
        %7548 = vmatpush1.msra.mxu0 0.0
        %7549 = vmatprep.subr.mxu0 0.0
        %7550 = vmatpush1.msra.mxu0 0.0
        %7551 = vmatprep.subr.mxu0 0.0
        %7552 = vmatpush1.msra.mxu0 0.0
        %7553 = vmatprep.subr.mxu0 0.0
        %7554 = vmatpush1.msra.mxu0 0.0
        %7555 = vmatprep.mubr.f32.mxu0 0.0
        %7556 = vmatmul.mubr.f32.gmra.mrb[0].mxu0 %v7485
        %v7557 = vpop.f32.mrb[0].mxu0
        %v7558 = vadd.f32 %v7261, %v7557
        %v7559 = vpop.f32.mrb[0].mxu0
        %v7560 = vadd.f32 %v7263, %v7559
        %7561 = vdwg.mxu0
        %7562 = vmatprep.subr.mxu0 %v7180
        %7563 = vmatpush1.msra.mxu0 %v7178
        %7564 = vmatprep.subr.mxu0 0.0
        %7565 = vmatpush1.msra.mxu0 0.0
        %7566 = vmatprep.subr.mxu0 0.0
        %7567 = vmatpush1.msra.mxu0 0.0
        %7568 = vmatprep.subr.mxu0 0.0
        %7569 = vmatpush1.msra.mxu0 0.0
        %7570 = vmatprep.subr.mxu0 0.0
        %7571 = vmatpush1.msra.mxu0 0.0
        %7572 = vmatprep.subr.mxu0 0.0
        %7573 = vmatpush1.msra.mxu0 0.0
        %7574 = vmatprep.subr.mxu0 0.0
        %7575 = vmatpush1.msra.mxu0 0.0
        %7576 = vmatprep.subr.mxu0 0.0
        %7577 = vmatpush1.msra.mxu0 0.0
        %7578 = vmatprep.subr.mxu0 0.0
        %7579 = vmatpush1.msra.mxu0 0.0
        %7580 = vmatprep.subr.mxu0 0.0
        %7581 = vmatpush1.msra.mxu0 0.0
        %7582 = vmatprep.subr.mxu0 0.0
        %7583 = vmatpush1.msra.mxu0 0.0
        %7584 = vmatprep.subr.mxu0 0.0
        %7585 = vmatpush1.msra.mxu0 0.0
        %7586 = vmatprep.subr.mxu0 0.0
        %7587 = vmatpush1.msra.mxu0 0.0
        %7588 = vmatprep.subr.mxu0 0.0
        %7589 = vmatpush1.msra.mxu0 0.0
        %7590 = vmatprep.subr.mxu0 0.0
        %7591 = vmatpush1.msra.mxu0 0.0
        %7592 = vmatprep.subr.mxu0 0.0
        %7593 = vmatpush1.msra.mxu0 0.0
        %7594 = vmatprep.subr.mxu0 0.0
        %7595 = vmatpush1.msra.mxu0 0.0
        %7596 = vmatprep.subr.mxu0 0.0
        %7597 = vmatpush1.msra.mxu0 0.0
        %7598 = vmatprep.subr.mxu0 0.0
        %7599 = vmatpush1.msra.mxu0 0.0
        %7600 = vmatprep.subr.mxu0 0.0
        %7601 = vmatpush1.msra.mxu0 0.0
        %7602 = vmatprep.subr.mxu0 0.0
        %7603 = vmatpush1.msra.mxu0 0.0
        %7604 = vmatprep.subr.mxu0 0.0
        %7605 = vmatpush1.msra.mxu0 0.0
        %7606 = vmatprep.subr.mxu0 0.0
        %7607 = vmatpush1.msra.mxu0 0.0
        %7608 = vmatprep.subr.mxu0 0.0
        %7609 = vmatpush1.msra.mxu0 0.0
        %7610 = vmatprep.subr.mxu0 0.0
        %7611 = vmatpush1.msra.mxu0 0.0
        %7612 = vmatprep.subr.mxu0 0.0
        %7613 = vmatpush1.msra.mxu0 0.0
        %7614 = vmatprep.subr.mxu0 0.0
        %7615 = vmatpush1.msra.mxu0 0.0
        %7616 = vmatprep.subr.mxu0 0.0
        %7617 = vmatpush1.msra.mxu0 0.0
        %7618 = vmatprep.subr.mxu0 0.0
        %7619 = vmatpush1.msra.mxu0 0.0
        %7620 = vmatprep.subr.mxu0 0.0
        %7621 = vmatpush1.msra.mxu0 0.0
        %7622 = vmatprep.subr.mxu0 0.0
        %7623 = vmatpush1.msra.mxu0 0.0
        %7624 = vmatprep.subr.mxu0 0.0
        %7625 = vmatpush1.msra.mxu0 0.0
        %7626 = vmatprep.mubr.f32.mxu0 0.0
        %7627 = vmatmul.mubr.f32.gmra.mrb[0].mxu0 %v7485
        %v7628 = vpop.f32.mrb[0].mxu0
        %v7629 = vadd.f32 %v7332, %v7628
        %v7630 = vpop.f32.mrb[0].mxu0
        %v7631 = vadd.f32 %v7334, %v7630
        %7632 = vdwg.mxu0
        %7633 = vmatprep.subr.mxu0 %v7184
        %7634 = vmatpush1.msra.mxu0 %v7182
        %7635 = vmatprep.subr.mxu0 0.0
        %7636 = vmatpush1.msra.mxu0 0.0
        %7637 = vmatprep.subr.mxu0 0.0
        %7638 = vmatpush1.msra.mxu0 0.0
        %7639 = vmatprep.subr.mxu0 0.0
        %7640 = vmatpush1.msra.mxu0 0.0
        %7641 = vmatprep.subr.mxu0 0.0
        %7642 = vmatpush1.msra.mxu0 0.0
        %7643 = vmatprep.subr.mxu0 0.0
        %7644 = vmatpush1.msra.mxu0 0.0
        %7645 = vmatprep.subr.mxu0 0.0
        %7646 = vmatpush1.msra.mxu0 0.0
        %7647 = vmatprep.subr.mxu0 0.0
        %7648 = vmatpush1.msra.mxu0 0.0
        %7649 = vmatprep.subr.mxu0 0.0
        %7650 = vmatpush1.msra.mxu0 0.0
        %7651 = vmatprep.subr.mxu0 0.0
        %7652 = vmatpush1.msra.mxu0 0.0
        %7653 = vmatprep.subr.mxu0 0.0
        %7654 = vmatpush1.msra.mxu0 0.0
        %7655 = vmatprep.subr.mxu0 0.0
        %7656 = vmatpush1.msra.mxu0 0.0
        %7657 = vmatprep.subr.mxu0 0.0
        %7658 = vmatpush1.msra.mxu0 0.0
        %7659 = vmatprep.subr.mxu0 0.0
        %7660 = vmatpush1.msra.mxu0 0.0
        %7661 = vmatprep.subr.mxu0 0.0
        %7662 = vmatpush1.msra.mxu0 0.0
        %7663 = vmatprep.subr.mxu0 0.0
        %7664 = vmatpush1.msra.mxu0 0.0
        %7665 = vmatprep.subr.mxu0 0.0
        %7666 = vmatpush1.msra.mxu0 0.0
        %7667 = vmatprep.subr.mxu0 0.0
        %7668 = vmatpush1.msra.mxu0 0.0
        %7669 = vmatprep.subr.mxu0 0.0
        %7670 = vmatpush1.msra.mxu0 0.0
        %7671 = vmatprep.subr.mxu0 0.0
        %7672 = vmatpush1.msra.mxu0 0.0
        %7673 = vmatprep.subr.mxu0 0.0
        %7674 = vmatpush1.msra.mxu0 0.0
        %7675 = vmatprep.subr.mxu0 0.0
        %7676 = vmatpush1.msra.mxu0 0.0
        %7677 = vmatprep.subr.mxu0 0.0
        %7678 = vmatpush1.msra.mxu0 0.0
        %7679 = vmatprep.subr.mxu0 0.0
        %7680 = vmatpush1.msra.mxu0 0.0
        %7681 = vmatprep.subr.mxu0 0.0
        %7682 = vmatpush1.msra.mxu0 0.0
        %7683 = vmatprep.subr.mxu0 0.0
        %7684 = vmatpush1.msra.mxu0 0.0
        %7685 = vmatprep.subr.mxu0 0.0
        %7686 = vmatpush1.msra.mxu0 0.0
        %7687 = vmatprep.subr.mxu0 0.0
        %7688 = vmatpush1.msra.mxu0 0.0
        %7689 = vmatprep.subr.mxu0 0.0
        %7690 = vmatpush1.msra.mxu0 0.0
        %7691 = vmatprep.subr.mxu0 0.0
        %7692 = vmatpush1.msra.mxu0 0.0
        %7693 = vmatprep.subr.mxu0 0.0
        %7694 = vmatpush1.msra.mxu0 0.0
        %7695 = vmatprep.subr.mxu0 0.0
        %7696 = vmatpush1.msra.mxu0 0.0
        %7697 = vmatprep.mubr.f32.mxu0 0.0
        %7698 = vmatmul.mubr.f32.gmra.mrb[0].mxu0 %v7485
        %v7699 = vpop.f32.mrb[0].mxu0
        %v7700 = vadd.f32 %v7403, %v7699
        %v7701 = vpop.f32.mrb[0].mxu0
        %v7702 = vadd.f32 %v7405, %v7701
        %7703 = vdwg.mxu0
        %7704 = vmatprep.subr.mxu0 %v7188
        %7705 = vmatpush1.msra.mxu0 %v7186
        %7706 = vmatprep.subr.mxu0 0.0
        %7707 = vmatpush1.msra.mxu0 0.0
        %7708 = vmatprep.subr.mxu0 0.0
        %7709 = vmatpush1.msra.mxu0 0.0
        %7710 = vmatprep.subr.mxu0 0.0
        %7711 = vmatpush1.msra.mxu0 0.0
        %7712 = vmatprep.subr.mxu0 0.0
        %7713 = vmatpush1.msra.mxu0 0.0
        %7714 = vmatprep.subr.mxu0 0.0
        %7715 = vmatpush1.msra.mxu0 0.0
        %7716 = vmatprep.subr.mxu0 0.0
        %7717 = vmatpush1.msra.mxu0 0.0
        %7718 = vmatprep.subr.mxu0 0.0
        %7719 = vmatpush1.msra.mxu0 0.0
        %7720 = vmatprep.subr.mxu0 0.0
        %7721 = vmatpush1.msra.mxu0 0.0
        %7722 = vmatprep.subr.mxu0 0.0
        %7723 = vmatpush1.msra.mxu0 0.0
        %7724 = vmatprep.subr.mxu0 0.0
        %7725 = vmatpush1.msra.mxu0 0.0
        %7726 = vmatprep.subr.mxu0 0.0
        %7727 = vmatpush1.msra.mxu0 0.0
        %7728 = vmatprep.subr.mxu0 0.0
        %7729 = vmatpush1.msra.mxu0 0.0
        %7730 = vmatprep.subr.mxu0 0.0
        %7731 = vmatpush1.msra.mxu0 0.0
        %7732 = vmatprep.subr.mxu0 0.0
        %7733 = vmatpush1.msra.mxu0 0.0
        %7734 = vmatprep.subr.mxu0 0.0
        %7735 = vmatpush1.msra.mxu0 0.0
        %7736 = vmatprep.subr.mxu0 0.0
        %7737 = vmatpush1.msra.mxu0 0.0
        %7738 = vmatprep.subr.mxu0 0.0
        %7739 = vmatpush1.msra.mxu0 0.0
        %7740 = vmatprep.subr.mxu0 0.0
        %7741 = vmatpush1.msra.mxu0 0.0
        %7742 = vmatprep.subr.mxu0 0.0
        %7743 = vmatpush1.msra.mxu0 0.0
        %7744 = vmatprep.subr.mxu0 0.0
        %7745 = vmatpush1.msra.mxu0 0.0
        %7746 = vmatprep.subr.mxu0 0.0
        %7747 = vmatpush1.msra.mxu0 0.0
        %7748 = vmatprep.subr.mxu0 0.0
        %7749 = vmatpush1.msra.mxu0 0.0
        %7750 = vmatprep.subr.mxu0 0.0
        %7751 = vmatpush1.msra.mxu0 0.0
        %7752 = vmatprep.subr.mxu0 0.0
        %7753 = vmatpush1.msra.mxu0 0.0
        %7754 = vmatprep.subr.mxu0 0.0
        %7755 = vmatpush1.msra.mxu0 0.0
        %7756 = vmatprep.subr.mxu0 0.0
        %7757 = vmatpush1.msra.mxu0 0.0
        %7758 = vmatprep.subr.mxu0 0.0
        %7759 = vmatpush1.msra.mxu0 0.0
        %7760 = vmatprep.subr.mxu0 0.0
        %7761 = vmatpush1.msra.mxu0 0.0
        %7762 = vmatprep.subr.mxu0 0.0
        %7763 = vmatpush1.msra.mxu0 0.0
        %7764 = vmatprep.subr.mxu0 0.0
        %7765 = vmatpush1.msra.mxu0 0.0
        %7766 = vmatprep.subr.mxu0 0.0
        %7767 = vmatpush1.msra.mxu0 0.0
        %7768 = vmatprep.mubr.f32.mxu0 0.0
        %7769 = vmatmul.mubr.f32.gmra.mrb[0].mxu0 %v7485
        %v7770 = vpop.f32.mrb[0].mxu0
        %v7771 = vadd.f32 %v7474, %v7770
        %v7772 = vpop.f32.mrb[0].mxu0
        %v7773 = vadd.f32 %v7476, %v7772
        %7774 = vdwg.mxu0
        %s7775 = scalar_lea.vmem %s3, 100
        %v7776 = vld [vmem:[%s7775] sm:$0x7]
        %7777 = vrot.lane.b32.xlu0 %v440, 112
        %v7778 = vpop.permute.xlu0 %7777
        %7779 = vrot.lane.b32.xlu0 0.0, 112
        %v7780 = vpop.permute.xlu0 %7779
        %v7781 = vsel %vm7166, %v7165, %v7778
        %v7782 = vsel %vm7166, %v7778, %v7780
        %v7784 = vsel %vm475, %v7776, 0
        %v7786 = vsel %vm479, %v7781, 0
        %v7788 = vsel %vm479, %v7782, 0
        %7790 = vmatprep.subr.mxu0 %v7184
        %7791 = vmatpush1.msra.mxu0 %v7182
        %7792 = vmatprep.subr.mxu0 0.0
        %7793 = vmatpush1.msra.mxu0 0.0
        %7794 = vmatprep.subr.mxu0 0.0
        %7795 = vmatpush1.msra.mxu0 0.0
        %7796 = vmatprep.subr.mxu0 0.0
        %7797 = vmatpush1.msra.mxu0 0.0
        %7798 = vmatprep.subr.mxu0 0.0
        %7799 = vmatpush1.msra.mxu0 0.0
        %7800 = vmatprep.subr.mxu0 0.0
        %7801 = vmatpush1.msra.mxu0 0.0
        %7802 = vmatprep.subr.mxu0 0.0
        %7803 = vmatpush1.msra.mxu0 0.0
        %7804 = vmatprep.subr.mxu0 0.0
        %7805 = vmatpush1.msra.mxu0 0.0
        %7806 = vmatprep.subr.mxu0 0.0
        %7807 = vmatpush1.msra.mxu0 0.0
        %7808 = vmatprep.subr.mxu0 0.0
        %7809 = vmatpush1.msra.mxu0 0.0
        %7810 = vmatprep.subr.mxu0 0.0
        %7811 = vmatpush1.msra.mxu0 0.0
        %7812 = vmatprep.subr.mxu0 0.0
        %7813 = vmatpush1.msra.mxu0 0.0
        %7814 = vmatprep.subr.mxu0 0.0
        %7815 = vmatpush1.msra.mxu0 0.0
        %7816 = vmatprep.subr.mxu0 0.0
        %7817 = vmatpush1.msra.mxu0 0.0
        %7818 = vmatprep.subr.mxu0 0.0
        %7819 = vmatpush1.msra.mxu0 0.0
        %7820 = vmatprep.subr.mxu0 0.0
        %7821 = vmatpush1.msra.mxu0 0.0
        %7822 = vmatprep.subr.mxu0 0.0
        %7823 = vmatpush1.msra.mxu0 0.0
        %7824 = vmatprep.subr.mxu0 0.0
        %7825 = vmatpush1.msra.mxu0 0.0
        %7826 = vmatprep.subr.mxu0 0.0
        %7827 = vmatpush1.msra.mxu0 0.0
        %7828 = vmatprep.subr.mxu0 0.0
        %7829 = vmatpush1.msra.mxu0 0.0
        %7830 = vmatprep.subr.mxu0 0.0
        %7831 = vmatpush1.msra.mxu0 0.0
        %7832 = vmatprep.subr.mxu0 0.0
        %7833 = vmatpush1.msra.mxu0 0.0
        %7834 = vmatprep.subr.mxu0 0.0
        %7835 = vmatpush1.msra.mxu0 0.0
        %7836 = vmatprep.subr.mxu0 0.0
        %7837 = vmatpush1.msra.mxu0 0.0
        %7838 = vmatprep.subr.mxu0 0.0
        %7839 = vmatpush1.msra.mxu0 0.0
        %7840 = vmatprep.subr.mxu0 0.0
        %7841 = vmatpush1.msra.mxu0 0.0
        %7842 = vmatprep.subr.mxu0 0.0
        %7843 = vmatpush1.msra.mxu0 0.0
        %7844 = vmatprep.subr.mxu0 0.0
        %7845 = vmatpush1.msra.mxu0 0.0
        %7846 = vmatprep.subr.mxu0 0.0
        %7847 = vmatpush1.msra.mxu0 0.0
        %7848 = vmatprep.subr.mxu0 0.0
        %7849 = vmatpush1.msra.mxu0 0.0
        %7850 = vmatprep.subr.mxu0 0.0
        %7851 = vmatpush1.msra.mxu0 0.0
        %7852 = vmatprep.subr.mxu0 0.0
        %7853 = vmatpush1.msra.mxu0 0.0
        %7854 = vmatprep.mubr.f32.mxu0 0.0
        %7855 = vmatmul.mubr.f32.gmra.mrb[0].mxu0 %v7784
        %v7856 = vpop.f32.mrb[0].mxu0
        %v7857 = vadd.f32 0.0, %v7856
        %v7858 = vpop.f32.mrb[0].mxu0
        %v7859 = vadd.f32 0.0, %v7858
        %7860 = vdwg.mxu0
        %7861 = vmatprep.subr.mxu0 %v7188
        %7862 = vmatpush1.msra.mxu0 %v7186
        %7863 = vmatprep.subr.mxu0 0.0
        %7864 = vmatpush1.msra.mxu0 0.0
        %7865 = vmatprep.subr.mxu0 0.0
        %7866 = vmatpush1.msra.mxu0 0.0
        %7867 = vmatprep.subr.mxu0 0.0
        %7868 = vmatpush1.msra.mxu0 0.0
        %7869 = vmatprep.subr.mxu0 0.0
        %7870 = vmatpush1.msra.mxu0 0.0
        %7871 = vmatprep.subr.mxu0 0.0
        %7872 = vmatpush1.msra.mxu0 0.0
        %7873 = vmatprep.subr.mxu0 0.0
        %7874 = vmatpush1.msra.mxu0 0.0
        %7875 = vmatprep.subr.mxu0 0.0
        %7876 = vmatpush1.msra.mxu0 0.0
        %7877 = vmatprep.subr.mxu0 0.0
        %7878 = vmatpush1.msra.mxu0 0.0
        %7879 = vmatprep.subr.mxu0 0.0
        %7880 = vmatpush1.msra.mxu0 0.0
        %7881 = vmatprep.subr.mxu0 0.0
        %7882 = vmatpush1.msra.mxu0 0.0
        %7883 = vmatprep.subr.mxu0 0.0
        %7884 = vmatpush1.msra.mxu0 0.0
        %7885 = vmatprep.subr.mxu0 0.0
        %7886 = vmatpush1.msra.mxu0 0.0
        %7887 = vmatprep.subr.mxu0 0.0
        %7888 = vmatpush1.msra.mxu0 0.0
        %7889 = vmatprep.subr.mxu0 0.0
        %7890 = vmatpush1.msra.mxu0 0.0
        %7891 = vmatprep.subr.mxu0 0.0
        %7892 = vmatpush1.msra.mxu0 0.0
        %7893 = vmatprep.subr.mxu0 0.0
        %7894 = vmatpush1.msra.mxu0 0.0
        %7895 = vmatprep.subr.mxu0 0.0
        %7896 = vmatpush1.msra.mxu0 0.0
        %7897 = vmatprep.subr.mxu0 0.0
        %7898 = vmatpush1.msra.mxu0 0.0
        %7899 = vmatprep.subr.mxu0 0.0
        %7900 = vmatpush1.msra.mxu0 0.0
        %7901 = vmatprep.subr.mxu0 0.0
        %7902 = vmatpush1.msra.mxu0 0.0
        %7903 = vmatprep.subr.mxu0 0.0
        %7904 = vmatpush1.msra.mxu0 0.0
        %7905 = vmatprep.subr.mxu0 0.0
        %7906 = vmatpush1.msra.mxu0 0.0
        %7907 = vmatprep.subr.mxu0 0.0
        %7908 = vmatpush1.msra.mxu0 0.0
        %7909 = vmatprep.subr.mxu0 0.0
        %7910 = vmatpush1.msra.mxu0 0.0
        %7911 = vmatprep.subr.mxu0 0.0
        %7912 = vmatpush1.msra.mxu0 0.0
        %7913 = vmatprep.subr.mxu0 0.0
        %7914 = vmatpush1.msra.mxu0 0.0
        %7915 = vmatprep.subr.mxu0 0.0
        %7916 = vmatpush1.msra.mxu0 0.0
        %7917 = vmatprep.subr.mxu0 0.0
        %7918 = vmatpush1.msra.mxu0 0.0
        %7919 = vmatprep.subr.mxu0 0.0
        %7920 = vmatpush1.msra.mxu0 0.0
        %7921 = vmatprep.subr.mxu0 0.0
        %7922 = vmatpush1.msra.mxu0 0.0
        %7923 = vmatprep.subr.mxu0 0.0
        %7924 = vmatpush1.msra.mxu0 0.0
        %7925 = vmatprep.mubr.f32.mxu0 0.0
        %7926 = vmatmul.mubr.f32.gmra.mrb[0].mxu0 %v7784
        %v7927 = vpop.f32.mrb[0].mxu0
        %v7928 = vadd.f32 0.0, %v7927
        %v7929 = vpop.f32.mrb[0].mxu0
        %v7930 = vadd.f32 0.0, %v7929
        %7931 = vdwg.mxu0
        %7932 = vmatprep.subr.mxu0 %v7192
        %7933 = vmatpush1.msra.mxu0 %v7190
        %7934 = vmatprep.subr.mxu0 0.0
        %7935 = vmatpush1.msra.mxu0 0.0
        %7936 = vmatprep.subr.mxu0 0.0
        %7937 = vmatpush1.msra.mxu0 0.0
        %7938 = vmatprep.subr.mxu0 0.0
        %7939 = vmatpush1.msra.mxu0 0.0
        %7940 = vmatprep.subr.mxu0 0.0
        %7941 = vmatpush1.msra.mxu0 0.0
        %7942 = vmatprep.subr.mxu0 0.0
        %7943 = vmatpush1.msra.mxu0 0.0
        %7944 = vmatprep.subr.mxu0 0.0
        %7945 = vmatpush1.msra.mxu0 0.0
        %7946 = vmatprep.subr.mxu0 0.0
        %7947 = vmatpush1.msra.mxu0 0.0
        %7948 = vmatprep.subr.mxu0 0.0
        %7949 = vmatpush1.msra.mxu0 0.0
        %7950 = vmatprep.subr.mxu0 0.0
        %7951 = vmatpush1.msra.mxu0 0.0
        %7952 = vmatprep.subr.mxu0 0.0
        %7953 = vmatpush1.msra.mxu0 0.0
        %7954 = vmatprep.subr.mxu0 0.0
        %7955 = vmatpush1.msra.mxu0 0.0
        %7956 = vmatprep.subr.mxu0 0.0
        %7957 = vmatpush1.msra.mxu0 0.0
        %7958 = vmatprep.subr.mxu0 0.0
        %7959 = vmatpush1.msra.mxu0 0.0
        %7960 = vmatprep.subr.mxu0 0.0
        %7961 = vmatpush1.msra.mxu0 0.0
        %7962 = vmatprep.subr.mxu0 0.0
        %7963 = vmatpush1.msra.mxu0 0.0
        %7964 = vmatprep.subr.mxu0 0.0
        %7965 = vmatpush1.msra.mxu0 0.0
        %7966 = vmatprep.subr.mxu0 0.0
        %7967 = vmatpush1.msra.mxu0 0.0
        %7968 = vmatprep.subr.mxu0 0.0
        %7969 = vmatpush1.msra.mxu0 0.0
        %7970 = vmatprep.subr.mxu0 0.0
        %7971 = vmatpush1.msra.mxu0 0.0
        %7972 = vmatprep.subr.mxu0 0.0
        %7973 = vmatpush1.msra.mxu0 0.0
        %7974 = vmatprep.subr.mxu0 0.0
        %7975 = vmatpush1.msra.mxu0 0.0
        %7976 = vmatprep.subr.mxu0 0.0
        %7977 = vmatpush1.msra.mxu0 0.0
        %7978 = vmatprep.subr.mxu0 0.0
        %7979 = vmatpush1.msra.mxu0 0.0
        %7980 = vmatprep.subr.mxu0 0.0
        %7981 = vmatpush1.msra.mxu0 0.0
        %7982 = vmatprep.subr.mxu0 0.0
        %7983 = vmatpush1.msra.mxu0 0.0
        %7984 = vmatprep.subr.mxu0 0.0
        %7985 = vmatpush1.msra.mxu0 0.0
        %7986 = vmatprep.subr.mxu0 0.0
        %7987 = vmatpush1.msra.mxu0 0.0
        %7988 = vmatprep.subr.mxu0 0.0
        %7989 = vmatpush1.msra.mxu0 0.0
        %7990 = vmatprep.subr.mxu0 0.0
        %7991 = vmatpush1.msra.mxu0 0.0
        %7992 = vmatprep.subr.mxu0 0.0
        %7993 = vmatpush1.msra.mxu0 0.0
        %7994 = vmatprep.subr.mxu0 0.0
        %7995 = vmatpush1.msra.mxu0 0.0
        %7996 = vmatprep.mubr.f32.mxu0 0.0
        %7997 = vmatmul.mubr.f32.gmra.mrb[0].mxu0 %v7784
        %v7998 = vpop.f32.mrb[0].mxu0
        %v7999 = vadd.f32 0.0, %v7998
        %v8000 = vpop.f32.mrb[0].mxu0
        %v8001 = vadd.f32 0.0, %v8000
        %8002 = vdwg.mxu0
        %8003 = vmatprep.subr.mxu0 %v7788
        %8004 = vmatpush1.msra.mxu0 %v7786
        %8005 = vmatprep.subr.mxu0 0.0
        %8006 = vmatpush1.msra.mxu0 0.0
        %8007 = vmatprep.subr.mxu0 0.0
        %8008 = vmatpush1.msra.mxu0 0.0
        %8009 = vmatprep.subr.mxu0 0.0
        %8010 = vmatpush1.msra.mxu0 0.0
        %8011 = vmatprep.subr.mxu0 0.0
        %8012 = vmatpush1.msra.mxu0 0.0
        %8013 = vmatprep.subr.mxu0 0.0
        %8014 = vmatpush1.msra.mxu0 0.0
        %8015 = vmatprep.subr.mxu0 0.0
        %8016 = vmatpush1.msra.mxu0 0.0
        %8017 = vmatprep.subr.mxu0 0.0
        %8018 = vmatpush1.msra.mxu0 0.0
        %8019 = vmatprep.subr.mxu0 0.0
        %8020 = vmatpush1.msra.mxu0 0.0
        %8021 = vmatprep.subr.mxu0 0.0
        %8022 = vmatpush1.msra.mxu0 0.0
        %8023 = vmatprep.subr.mxu0 0.0
        %8024 = vmatpush1.msra.mxu0 0.0
        %8025 = vmatprep.subr.mxu0 0.0
        %8026 = vmatpush1.msra.mxu0 0.0
        %8027 = vmatprep.subr.mxu0 0.0
        %8028 = vmatpush1.msra.mxu0 0.0
        %8029 = vmatprep.subr.mxu0 0.0
        %8030 = vmatpush1.msra.mxu0 0.0
        %8031 = vmatprep.subr.mxu0 0.0
        %8032 = vmatpush1.msra.mxu0 0.0
        %8033 = vmatprep.subr.mxu0 0.0
        %8034 = vmatpush1.msra.mxu0 0.0
        %8035 = vmatprep.subr.mxu0 0.0
        %8036 = vmatpush1.msra.mxu0 0.0
        %8037 = vmatprep.subr.mxu0 0.0
        %8038 = vmatpush1.msra.mxu0 0.0
        %8039 = vmatprep.subr.mxu0 0.0
        %8040 = vmatpush1.msra.mxu0 0.0
        %8041 = vmatprep.subr.mxu0 0.0
        %8042 = vmatpush1.msra.mxu0 0.0
        %8043 = vmatprep.subr.mxu0 0.0
        %8044 = vmatpush1.msra.mxu0 0.0
        %8045 = vmatprep.subr.mxu0 0.0
        %8046 = vmatpush1.msra.mxu0 0.0
        %8047 = vmatprep.subr.mxu0 0.0
        %8048 = vmatpush1.msra.mxu0 0.0
        %8049 = vmatprep.subr.mxu0 0.0
        %8050 = vmatpush1.msra.mxu0 0.0
        %8051 = vmatprep.subr.mxu0 0.0
        %8052 = vmatpush1.msra.mxu0 0.0
        %8053 = vmatprep.subr.mxu0 0.0
        %8054 = vmatpush1.msra.mxu0 0.0
        %8055 = vmatprep.subr.mxu0 0.0
        %8056 = vmatpush1.msra.mxu0 0.0
        %8057 = vmatprep.subr.mxu0 0.0
        %8058 = vmatpush1.msra.mxu0 0.0
        %8059 = vmatprep.subr.mxu0 0.0
        %8060 = vmatpush1.msra.mxu0 0.0
        %8061 = vmatprep.subr.mxu0 0.0
        %8062 = vmatpush1.msra.mxu0 0.0
        %8063 = vmatprep.subr.mxu0 0.0
        %8064 = vmatpush1.msra.mxu0 0.0
        %8065 = vmatprep.subr.mxu0 0.0
        %8066 = vmatpush1.msra.mxu0 0.0
        %8067 = vmatprep.mubr.f32.mxu0 0.0
        %8068 = vmatmul.mubr.f32.gmra.mrb[0].mxu0 %v7784
        %v8069 = vpop.f32.mrb[0].mxu0
        %v8070 = vadd.f32 0.0, %v8069
        %v8071 = vpop.f32.mrb[0].mxu0
        %v8072 = vadd.f32 0.0, %v8071
        %8073 = vdwg.mxu0
        %v8074 = vadd.f32 %v7558, %v7857
        %v8075 = vadd.f32 %v7560, %v7859
        %v8076 = vadd.f32 %v7629, %v7928
        %v8077 = vadd.f32 %v7631, %v7930
        %v8078 = vadd.f32 %v7700, %v7999
        %v8079 = vadd.f32 %v7702, %v8001
        %v8080 = vadd.f32 %v7771, %v8070
        %v8081 = vadd.f32 %v7773, %v8072
        %v8082 = vlaneseq
        %v8083 = vshrl.u32 %v8082, 7
        %v8084 = vsub.s32 1, %v8083
        %v8085 = vrot.slane %v441, %v8084
        %v8086 = vlaneseq
        %v8087 = vshrl.u32 %v8086, 7
        %v8088 = vsub.s32 1, %v8087
        %v8089 = vrot.slane %v443, %v8088
        %v8090 = vmul.f32 %v8074, %v8085
        %v8091 = vmul.f32 %v8075, %v8089
        %v8092 = vmul.f32 %v8076, %v8085
        %v8093 = vmul.f32 %v8077, %v8089
        %v8094 = vmul.f32 %v8078, %v8085
        %v8095 = vmul.f32 %v8079, %v8089
        %v8096 = vmul.f32 %v8080, %v8085
        %v8097 = vmul.f32 %v8081, %v8089
        %v8098 = vadd.f32 %v7136, %v8090
        %v8099 = vadd.f32 %v7137, %v8091
        %v8100 = vadd.f32 %v7138, %v8092
        %v8101 = vadd.f32 %v7139, %v8093
        %v8102 = vadd.f32 %v7140, %v8094
        %v8103 = vadd.f32 %v7141, %v8095
        %v8104 = vadd.f32 %v7142, %v8096
        %v8105 = vadd.f32 %v7143, %v8097
        %s8106 = scalar_lea.vmem %s3, 32
        %v8107 = vld [vmem:[%s8106] sm:$0x7]
        %s8108 = scalar_lea.vmem %s3, 68
        %v8109 = vld [vmem:[%s8108] sm:$0x7]
        %8110 = vrot.lane.b32.xlu0 %v413, 111
        %v8111 = vpop.permute.xlu0 %8110
        %8112 = vrot.lane.b32.xlu0 %v435, 111
        %v8113 = vpop.permute.xlu0 %8112
        %8114 = vrot.lane.b32.xlu0 %v414, 111
        %v8115 = vpop.permute.xlu0 %8114
        %8116 = vrot.lane.b32.xlu0 %v436, 111
        %v8117 = vpop.permute.xlu0 %8116
        %8118 = vrot.lane.b32.xlu0 %v415, 111
        %v8119 = vpop.permute.xlu0 %8118
        %8120 = vrot.lane.b32.xlu0 %v437, 111
        %v8121 = vpop.permute.xlu0 %8120
        %8122 = vrot.lane.b32.xlu0 %v416, 111
        %v8123 = vpop.permute.xlu0 %8122
        %8124 = vrot.lane.b32.xlu0 %v438, 111
        %v8125 = vpop.permute.xlu0 %8124
        %8126 = vrot.lane.b32.xlu0 %v428, 111
        %v8127 = vpop.permute.xlu0 %8126
        %vm8128 = vcmask 908288
        %v8129 = vsel %vm8128, %v8111, %v8113
        %v8130 = vsel %vm8128, %v8113, %v8115
        %v8131 = vsel %vm8128, %v8115, %v8117
        %v8132 = vsel %vm8128, %v8117, %v8119
        %v8133 = vsel %vm8128, %v8119, %v8121
        %v8134 = vsel %vm8128, %v8121, %v8123
        %v8135 = vsel %vm8128, %v8123, %v8125
        %v8136 = vsel %vm8128, %v8125, %v8127
        %v8138 = vsel %vm475, %v8109, 0
        %v8140 = vsel %vm479, %v8129, 0
        %v8142 = vsel %vm479, %v8130, 0
        %v8144 = vsel %vm479, %v8131, 0
        %v8146 = vsel %vm479, %v8132, 0
        %v8148 = vsel %vm479, %v8133, 0
        %v8150 = vsel %vm479, %v8134, 0
        %v8152 = vsel %vm479, %v8135, 0
        %v8154 = vsel %vm479, %v8136, 0
        %8156 = vmatprep.subr.mxu0 %v8142
        %8157 = vmatpush1.msra.mxu0 %v8140
        %8158 = vmatprep.subr.mxu0 0.0
        %8159 = vmatpush1.msra.mxu0 0.0
        %8160 = vmatprep.subr.mxu0 0.0
        %8161 = vmatpush1.msra.mxu0 0.0
        %8162 = vmatprep.subr.mxu0 0.0
        %8163 = vmatpush1.msra.mxu0 0.0
        %8164 = vmatprep.subr.mxu0 0.0
        %8165 = vmatpush1.msra.mxu0 0.0
        %8166 = vmatprep.subr.mxu0 0.0
        %8167 = vmatpush1.msra.mxu0 0.0
        %8168 = vmatprep.subr.mxu0 0.0
        %8169 = vmatpush1.msra.mxu0 0.0
        %8170 = vmatprep.subr.mxu0 0.0
        %8171 = vmatpush1.msra.mxu0 0.0
        %8172 = vmatprep.subr.mxu0 0.0
        %8173 = vmatpush1.msra.mxu0 0.0
        %8174 = vmatprep.subr.mxu0 0.0
        %8175 = vmatpush1.msra.mxu0 0.0
        %8176 = vmatprep.subr.mxu0 0.0
        %8177 = vmatpush1.msra.mxu0 0.0
        %8178 = vmatprep.subr.mxu0 0.0
        %8179 = vmatpush1.msra.mxu0 0.0
        %8180 = vmatprep.subr.mxu0 0.0
        %8181 = vmatpush1.msra.mxu0 0.0
        %8182 = vmatprep.subr.mxu0 0.0
        %8183 = vmatpush1.msra.mxu0 0.0
        %8184 = vmatprep.subr.mxu0 0.0
        %8185 = vmatpush1.msra.mxu0 0.0
        %8186 = vmatprep.subr.mxu0 0.0
        %8187 = vmatpush1.msra.mxu0 0.0
        %8188 = vmatprep.subr.mxu0 0.0
        %8189 = vmatpush1.msra.mxu0 0.0
        %8190 = vmatprep.subr.mxu0 0.0
        %8191 = vmatpush1.msra.mxu0 0.0
        %8192 = vmatprep.subr.mxu0 0.0
        %8193 = vmatpush1.msra.mxu0 0.0
        %8194 = vmatprep.subr.mxu0 0.0
        %8195 = vmatpush1.msra.mxu0 0.0
        %8196 = vmatprep.subr.mxu0 0.0
        %8197 = vmatpush1.msra.mxu0 0.0
        %8198 = vmatprep.subr.mxu0 0.0
        %8199 = vmatpush1.msra.mxu0 0.0
        %8200 = vmatprep.subr.mxu0 0.0
        %8201 = vmatpush1.msra.mxu0 0.0
        %8202 = vmatprep.subr.mxu0 0.0
        %8203 = vmatpush1.msra.mxu0 0.0
        %8204 = vmatprep.subr.mxu0 0.0
        %8205 = vmatpush1.msra.mxu0 0.0
        %8206 = vmatprep.subr.mxu0 0.0
        %8207 = vmatpush1.msra.mxu0 0.0
        %8208 = vmatprep.subr.mxu0 0.0
        %8209 = vmatpush1.msra.mxu0 0.0
        %8210 = vmatprep.subr.mxu0 0.0
        %8211 = vmatpush1.msra.mxu0 0.0
        %8212 = vmatprep.subr.mxu0 0.0
        %8213 = vmatpush1.msra.mxu0 0.0
        %8214 = vmatprep.subr.mxu0 0.0
        %8215 = vmatpush1.msra.mxu0 0.0
        %8216 = vmatprep.subr.mxu0 0.0
        %8217 = vmatpush1.msra.mxu0 0.0
        %8218 = vmatprep.subr.mxu0 0.0
        %8219 = vmatpush1.msra.mxu0 0.0
        %8220 = vmatprep.mubr.f32.mxu0 0.0
        %8221 = vmatmul.mubr.f32.gmra.mrb[0].mxu0 %v8138
        %v8222 = vpop.f32.mrb[0].mxu0
        %v8223 = vadd.f32 0.0, %v8222
        %v8224 = vpop.f32.mrb[0].mxu0
        %v8225 = vadd.f32 0.0, %v8224
        %8226 = vdwg.mxu0
        %8227 = vmatprep.subr.mxu0 %v8146
        %8228 = vmatpush1.msra.mxu0 %v8144
        %8229 = vmatprep.subr.mxu0 0.0
        %8230 = vmatpush1.msra.mxu0 0.0
        %8231 = vmatprep.subr.mxu0 0.0
        %8232 = vmatpush1.msra.mxu0 0.0
        %8233 = vmatprep.subr.mxu0 0.0
        %8234 = vmatpush1.msra.mxu0 0.0
        %8235 = vmatprep.subr.mxu0 0.0
        %8236 = vmatpush1.msra.mxu0 0.0
        %8237 = vmatprep.subr.mxu0 0.0
        %8238 = vmatpush1.msra.mxu0 0.0
        %8239 = vmatprep.subr.mxu0 0.0
        %8240 = vmatpush1.msra.mxu0 0.0
        %8241 = vmatprep.subr.mxu0 0.0
        %8242 = vmatpush1.msra.mxu0 0.0
        %8243 = vmatprep.subr.mxu0 0.0
        %8244 = vmatpush1.msra.mxu0 0.0
        %8245 = vmatprep.subr.mxu0 0.0
        %8246 = vmatpush1.msra.mxu0 0.0
        %8247 = vmatprep.subr.mxu0 0.0
        %8248 = vmatpush1.msra.mxu0 0.0
        %8249 = vmatprep.subr.mxu0 0.0
        %8250 = vmatpush1.msra.mxu0 0.0
        %8251 = vmatprep.subr.mxu0 0.0
        %8252 = vmatpush1.msra.mxu0 0.0
        %8253 = vmatprep.subr.mxu0 0.0
        %8254 = vmatpush1.msra.mxu0 0.0
        %8255 = vmatprep.subr.mxu0 0.0
        %8256 = vmatpush1.msra.mxu0 0.0
        %8257 = vmatprep.subr.mxu0 0.0
        %8258 = vmatpush1.msra.mxu0 0.0
        %8259 = vmatprep.subr.mxu0 0.0
        %8260 = vmatpush1.msra.mxu0 0.0
        %8261 = vmatprep.subr.mxu0 0.0
        %8262 = vmatpush1.msra.mxu0 0.0
        %8263 = vmatprep.subr.mxu0 0.0
        %8264 = vmatpush1.msra.mxu0 0.0
        %8265 = vmatprep.subr.mxu0 0.0
        %8266 = vmatpush1.msra.mxu0 0.0
        %8267 = vmatprep.subr.mxu0 0.0
        %8268 = vmatpush1.msra.mxu0 0.0
        %8269 = vmatprep.subr.mxu0 0.0
        %8270 = vmatpush1.msra.mxu0 0.0
        %8271 = vmatprep.subr.mxu0 0.0
        %8272 = vmatpush1.msra.mxu0 0.0
        %8273 = vmatprep.subr.mxu0 0.0
        %8274 = vmatpush1.msra.mxu0 0.0
        %8275 = vmatprep.subr.mxu0 0.0
        %8276 = vmatpush1.msra.mxu0 0.0
        %8277 = vmatprep.subr.mxu0 0.0
        %8278 = vmatpush1.msra.mxu0 0.0
        %8279 = vmatprep.subr.mxu0 0.0
        %8280 = vmatpush1.msra.mxu0 0.0
        %8281 = vmatprep.subr.mxu0 0.0
        %8282 = vmatpush1.msra.mxu0 0.0
        %8283 = vmatprep.subr.mxu0 0.0
        %8284 = vmatpush1.msra.mxu0 0.0
        %8285 = vmatprep.subr.mxu0 0.0
        %8286 = vmatpush1.msra.mxu0 0.0
        %8287 = vmatprep.subr.mxu0 0.0
        %8288 = vmatpush1.msra.mxu0 0.0
        %8289 = vmatprep.subr.mxu0 0.0
        %8290 = vmatpush1.msra.mxu0 0.0
        %8291 = vmatprep.mubr.f32.mxu0 0.0
        %8292 = vmatmul.mubr.f32.gmra.mrb[0].mxu0 %v8138
        %v8293 = vpop.f32.mrb[0].mxu0
        %v8294 = vadd.f32 0.0, %v8293
        %v8295 = vpop.f32.mrb[0].mxu0
        %v8296 = vadd.f32 0.0, %v8295
        %8297 = vdwg.mxu0
        %8298 = vmatprep.subr.mxu0 %v8150
        %8299 = vmatpush1.msra.mxu0 %v8148
        %8300 = vmatprep.subr.mxu0 0.0
        %8301 = vmatpush1.msra.mxu0 0.0
        %8302 = vmatprep.subr.mxu0 0.0
        %8303 = vmatpush1.msra.mxu0 0.0
        %8304 = vmatprep.subr.mxu0 0.0
        %8305 = vmatpush1.msra.mxu0 0.0
        %8306 = vmatprep.subr.mxu0 0.0
        %8307 = vmatpush1.msra.mxu0 0.0
        %8308 = vmatprep.subr.mxu0 0.0
        %8309 = vmatpush1.msra.mxu0 0.0
        %8310 = vmatprep.subr.mxu0 0.0
        %8311 = vmatpush1.msra.mxu0 0.0
        %8312 = vmatprep.subr.mxu0 0.0
        %8313 = vmatpush1.msra.mxu0 0.0
        %8314 = vmatprep.subr.mxu0 0.0
        %8315 = vmatpush1.msra.mxu0 0.0
        %8316 = vmatprep.subr.mxu0 0.0
        %8317 = vmatpush1.msra.mxu0 0.0
        %8318 = vmatprep.subr.mxu0 0.0
        %8319 = vmatpush1.msra.mxu0 0.0
        %8320 = vmatprep.subr.mxu0 0.0
        %8321 = vmatpush1.msra.mxu0 0.0
        %8322 = vmatprep.subr.mxu0 0.0
        %8323 = vmatpush1.msra.mxu0 0.0
        %8324 = vmatprep.subr.mxu0 0.0
        %8325 = vmatpush1.msra.mxu0 0.0
        %8326 = vmatprep.subr.mxu0 0.0
        %8327 = vmatpush1.msra.mxu0 0.0
        %8328 = vmatprep.subr.mxu0 0.0
        %8329 = vmatpush1.msra.mxu0 0.0
        %8330 = vmatprep.subr.mxu0 0.0
        %8331 = vmatpush1.msra.mxu0 0.0
        %8332 = vmatprep.subr.mxu0 0.0
        %8333 = vmatpush1.msra.mxu0 0.0
        %8334 = vmatprep.subr.mxu0 0.0
        %8335 = vmatpush1.msra.mxu0 0.0
        %8336 = vmatprep.subr.mxu0 0.0
        %8337 = vmatpush1.msra.mxu0 0.0
        %8338 = vmatprep.subr.mxu0 0.0
        %8339 = vmatpush1.msra.mxu0 0.0
        %8340 = vmatprep.subr.mxu0 0.0
        %8341 = vmatpush1.msra.mxu0 0.0
        %8342 = vmatprep.subr.mxu0 0.0
        %8343 = vmatpush1.msra.mxu0 0.0
        %8344 = vmatprep.subr.mxu0 0.0
        %8345 = vmatpush1.msra.mxu0 0.0
        %8346 = vmatprep.subr.mxu0 0.0
        %8347 = vmatpush1.msra.mxu0 0.0
        %8348 = vmatprep.subr.mxu0 0.0
        %8349 = vmatpush1.msra.mxu0 0.0
        %8350 = vmatprep.subr.mxu0 0.0
        %8351 = vmatpush1.msra.mxu0 0.0
        %8352 = vmatprep.subr.mxu0 0.0
        %8353 = vmatpush1.msra.mxu0 0.0
        %8354 = vmatprep.subr.mxu0 0.0
        %8355 = vmatpush1.msra.mxu0 0.0
        %8356 = vmatprep.subr.mxu0 0.0
        %8357 = vmatpush1.msra.mxu0 0.0
        %8358 = vmatprep.subr.mxu0 0.0
        %8359 = vmatpush1.msra.mxu0 0.0
        %8360 = vmatprep.subr.mxu0 0.0
        %8361 = vmatpush1.msra.mxu0 0.0
        %8362 = vmatprep.mubr.f32.mxu0 0.0
        %8363 = vmatmul.mubr.f32.gmra.mrb[0].mxu0 %v8138
        %v8364 = vpop.f32.mrb[0].mxu0
        %v8365 = vadd.f32 0.0, %v8364
        %v8366 = vpop.f32.mrb[0].mxu0
        %v8367 = vadd.f32 0.0, %v8366
        %8368 = vdwg.mxu0
        %8369 = vmatprep.subr.mxu0 %v8154
        %8370 = vmatpush1.msra.mxu0 %v8152
        %8371 = vmatprep.subr.mxu0 0.0
        %8372 = vmatpush1.msra.mxu0 0.0
        %8373 = vmatprep.subr.mxu0 0.0
        %8374 = vmatpush1.msra.mxu0 0.0
        %8375 = vmatprep.subr.mxu0 0.0
        %8376 = vmatpush1.msra.mxu0 0.0
        %8377 = vmatprep.subr.mxu0 0.0
        %8378 = vmatpush1.msra.mxu0 0.0
        %8379 = vmatprep.subr.mxu0 0.0
        %8380 = vmatpush1.msra.mxu0 0.0
        %8381 = vmatprep.subr.mxu0 0.0
        %8382 = vmatpush1.msra.mxu0 0.0
        %8383 = vmatprep.subr.mxu0 0.0
        %8384 = vmatpush1.msra.mxu0 0.0
        %8385 = vmatprep.subr.mxu0 0.0
        %8386 = vmatpush1.msra.mxu0 0.0
        %8387 = vmatprep.subr.mxu0 0.0
        %8388 = vmatpush1.msra.mxu0 0.0
        %8389 = vmatprep.subr.mxu0 0.0
        %8390 = vmatpush1.msra.mxu0 0.0
        %8391 = vmatprep.subr.mxu0 0.0
        %8392 = vmatpush1.msra.mxu0 0.0
        %8393 = vmatprep.subr.mxu0 0.0
        %8394 = vmatpush1.msra.mxu0 0.0
        %8395 = vmatprep.subr.mxu0 0.0
        %8396 = vmatpush1.msra.mxu0 0.0
        %8397 = vmatprep.subr.mxu0 0.0
        %8398 = vmatpush1.msra.mxu0 0.0
        %8399 = vmatprep.subr.mxu0 0.0
        %8400 = vmatpush1.msra.mxu0 0.0
        %8401 = vmatprep.subr.mxu0 0.0
        %8402 = vmatpush1.msra.mxu0 0.0
        %8403 = vmatprep.subr.mxu0 0.0
        %8404 = vmatpush1.msra.mxu0 0.0
        %8405 = vmatprep.subr.mxu0 0.0
        %8406 = vmatpush1.msra.mxu0 0.0
        %8407 = vmatprep.subr.mxu0 0.0
        %8408 = vmatpush1.msra.mxu0 0.0
        %8409 = vmatprep.subr.mxu0 0.0
        %8410 = vmatpush1.msra.mxu0 0.0
        %8411 = vmatprep.subr.mxu0 0.0
        %8412 = vmatpush1.msra.mxu0 0.0
        %8413 = vmatprep.subr.mxu0 0.0
        %8414 = vmatpush1.msra.mxu0 0.0
        %8415 = vmatprep.subr.mxu0 0.0
        %8416 = vmatpush1.msra.mxu0 0.0
        %8417 = vmatprep.subr.mxu0 0.0
        %8418 = vmatpush1.msra.mxu0 0.0
        %8419 = vmatprep.subr.mxu0 0.0
        %8420 = vmatpush1.msra.mxu0 0.0
        %8421 = vmatprep.subr.mxu0 0.0
        %8422 = vmatpush1.msra.mxu0 0.0
        %8423 = vmatprep.subr.mxu0 0.0
        %8424 = vmatpush1.msra.mxu0 0.0
        %8425 = vmatprep.subr.mxu0 0.0
        %8426 = vmatpush1.msra.mxu0 0.0
        %8427 = vmatprep.subr.mxu0 0.0
        %8428 = vmatpush1.msra.mxu0 0.0
        %8429 = vmatprep.subr.mxu0 0.0
        %8430 = vmatpush1.msra.mxu0 0.0
        %8431 = vmatprep.subr.mxu0 0.0
        %8432 = vmatpush1.msra.mxu0 0.0
        %8433 = vmatprep.mubr.f32.mxu0 0.0
        %8434 = vmatmul.mubr.f32.gmra.mrb[0].mxu0 %v8138
        %v8435 = vpop.f32.mrb[0].mxu0
        %v8436 = vadd.f32 0.0, %v8435
        %v8437 = vpop.f32.mrb[0].mxu0
        %v8438 = vadd.f32 0.0, %v8437
        %8439 = vdwg.mxu0
        %8440 = vrot.lane.b32.xlu0 %v423, 111
        %v8441 = vpop.permute.xlu0 %8440
        %8442 = vrot.lane.b32.xlu0 %v430, 111
        %v8443 = vpop.permute.xlu0 %8442
        %v8444 = vsel %vm8128, %v8441, %v8443
        %v8445 = vsel %vm8128, %v8443, %v8111
        %v8447 = vsel %vm475, %v8107, 0
        %v8449 = vsel %vm479, %v8444, 0
        %v8451 = vsel %vm479, %v8445, 0
        %8453 = vmatprep.subr.mxu0 %v8451
        %8454 = vmatpush1.msra.mxu0 %v8449
        %8455 = vmatprep.subr.mxu0 0.0
        %8456 = vmatpush1.msra.mxu0 0.0
        %8457 = vmatprep.subr.mxu0 0.0
        %8458 = vmatpush1.msra.mxu0 0.0
        %8459 = vmatprep.subr.mxu0 0.0
        %8460 = vmatpush1.msra.mxu0 0.0
        %8461 = vmatprep.subr.mxu0 0.0
        %8462 = vmatpush1.msra.mxu0 0.0
        %8463 = vmatprep.subr.mxu0 0.0
        %8464 = vmatpush1.msra.mxu0 0.0
        %8465 = vmatprep.subr.mxu0 0.0
        %8466 = vmatpush1.msra.mxu0 0.0
        %8467 = vmatprep.subr.mxu0 0.0
        %8468 = vmatpush1.msra.mxu0 0.0
        %8469 = vmatprep.subr.mxu0 0.0
        %8470 = vmatpush1.msra.mxu0 0.0
        %8471 = vmatprep.subr.mxu0 0.0
        %8472 = vmatpush1.msra.mxu0 0.0
        %8473 = vmatprep.subr.mxu0 0.0
        %8474 = vmatpush1.msra.mxu0 0.0
        %8475 = vmatprep.subr.mxu0 0.0
        %8476 = vmatpush1.msra.mxu0 0.0
        %8477 = vmatprep.subr.mxu0 0.0
        %8478 = vmatpush1.msra.mxu0 0.0
        %8479 = vmatprep.subr.mxu0 0.0
        %8480 = vmatpush1.msra.mxu0 0.0
        %8481 = vmatprep.subr.mxu0 0.0
        %8482 = vmatpush1.msra.mxu0 0.0
        %8483 = vmatprep.subr.mxu0 0.0
        %8484 = vmatpush1.msra.mxu0 0.0
        %8485 = vmatprep.subr.mxu0 0.0
        %8486 = vmatpush1.msra.mxu0 0.0
        %8487 = vmatprep.subr.mxu0 0.0
        %8488 = vmatpush1.msra.mxu0 0.0
        %8489 = vmatprep.subr.mxu0 0.0
        %8490 = vmatpush1.msra.mxu0 0.0
        %8491 = vmatprep.subr.mxu0 0.0
        %8492 = vmatpush1.msra.mxu0 0.0
        %8493 = vmatprep.subr.mxu0 0.0
        %8494 = vmatpush1.msra.mxu0 0.0
        %8495 = vmatprep.subr.mxu0 0.0
        %8496 = vmatpush1.msra.mxu0 0.0
        %8497 = vmatprep.subr.mxu0 0.0
        %8498 = vmatpush1.msra.mxu0 0.0
        %8499 = vmatprep.subr.mxu0 0.0
        %8500 = vmatpush1.msra.mxu0 0.0
        %8501 = vmatprep.subr.mxu0 0.0
        %8502 = vmatpush1.msra.mxu0 0.0
        %8503 = vmatprep.subr.mxu0 0.0
        %8504 = vmatpush1.msra.mxu0 0.0
        %8505 = vmatprep.subr.mxu0 0.0
        %8506 = vmatpush1.msra.mxu0 0.0
        %8507 = vmatprep.subr.mxu0 0.0
        %8508 = vmatpush1.msra.mxu0 0.0
        %8509 = vmatprep.subr.mxu0 0.0
        %8510 = vmatpush1.msra.mxu0 0.0
        %8511 = vmatprep.subr.mxu0 0.0
        %8512 = vmatpush1.msra.mxu0 0.0
        %8513 = vmatprep.subr.mxu0 0.0
        %8514 = vmatpush1.msra.mxu0 0.0
        %8515 = vmatprep.subr.mxu0 0.0
        %8516 = vmatpush1.msra.mxu0 0.0
        %8517 = vmatprep.mubr.f32.mxu0 0.0
        %8518 = vmatmul.mubr.f32.gmra.mrb[0].mxu0 %v8447
        %v8519 = vpop.f32.mrb[0].mxu0
        %v8520 = vadd.f32 %v8223, %v8519
        %v8521 = vpop.f32.mrb[0].mxu0
        %v8522 = vadd.f32 %v8225, %v8521
        %8523 = vdwg.mxu0
        %8524 = vmatprep.subr.mxu0 %v8142
        %8525 = vmatpush1.msra.mxu0 %v8140
        %8526 = vmatprep.subr.mxu0 0.0
        %8527 = vmatpush1.msra.mxu0 0.0
        %8528 = vmatprep.subr.mxu0 0.0
        %8529 = vmatpush1.msra.mxu0 0.0
        %8530 = vmatprep.subr.mxu0 0.0
        %8531 = vmatpush1.msra.mxu0 0.0
        %8532 = vmatprep.subr.mxu0 0.0
        %8533 = vmatpush1.msra.mxu0 0.0
        %8534 = vmatprep.subr.mxu0 0.0
        %8535 = vmatpush1.msra.mxu0 0.0
        %8536 = vmatprep.subr.mxu0 0.0
        %8537 = vmatpush1.msra.mxu0 0.0
        %8538 = vmatprep.subr.mxu0 0.0
        %8539 = vmatpush1.msra.mxu0 0.0
        %8540 = vmatprep.subr.mxu0 0.0
        %8541 = vmatpush1.msra.mxu0 0.0
        %8542 = vmatprep.subr.mxu0 0.0
        %8543 = vmatpush1.msra.mxu0 0.0
        %8544 = vmatprep.subr.mxu0 0.0
        %8545 = vmatpush1.msra.mxu0 0.0
        %8546 = vmatprep.subr.mxu0 0.0
        %8547 = vmatpush1.msra.mxu0 0.0
        %8548 = vmatprep.subr.mxu0 0.0
        %8549 = vmatpush1.msra.mxu0 0.0
        %8550 = vmatprep.subr.mxu0 0.0
        %8551 = vmatpush1.msra.mxu0 0.0
        %8552 = vmatprep.subr.mxu0 0.0
        %8553 = vmatpush1.msra.mxu0 0.0
        %8554 = vmatprep.subr.mxu0 0.0
        %8555 = vmatpush1.msra.mxu0 0.0
        %8556 = vmatprep.subr.mxu0 0.0
        %8557 = vmatpush1.msra.mxu0 0.0
        %8558 = vmatprep.subr.mxu0 0.0
        %8559 = vmatpush1.msra.mxu0 0.0
        %8560 = vmatprep.subr.mxu0 0.0
        %8561 = vmatpush1.msra.mxu0 0.0
        %8562 = vmatprep.subr.mxu0 0.0
        %8563 = vmatpush1.msra.mxu0 0.0
        %8564 = vmatprep.subr.mxu0 0.0
        %8565 = vmatpush1.msra.mxu0 0.0
        %8566 = vmatprep.subr.mxu0 0.0
        %8567 = vmatpush1.msra.mxu0 0.0
        %8568 = vmatprep.subr.mxu0 0.0
        %8569 = vmatpush1.msra.mxu0 0.0
        %8570 = vmatprep.subr.mxu0 0.0
        %8571 = vmatpush1.msra.mxu0 0.0
        %8572 = vmatprep.subr.mxu0 0.0
        %8573 = vmatpush1.msra.mxu0 0.0
        %8574 = vmatprep.subr.mxu0 0.0
        %8575 = vmatpush1.msra.mxu0 0.0
        %8576 = vmatprep.subr.mxu0 0.0
        %8577 = vmatpush1.msra.mxu0 0.0
        %8578 = vmatprep.subr.mxu0 0.0
        %8579 = vmatpush1.msra.mxu0 0.0
        %8580 = vmatprep.subr.mxu0 0.0
        %8581 = vmatpush1.msra.mxu0 0.0
        %8582 = vmatprep.subr.mxu0 0.0
        %8583 = vmatpush1.msra.mxu0 0.0
        %8584 = vmatprep.subr.mxu0 0.0
        %8585 = vmatpush1.msra.mxu0 0.0
        %8586 = vmatprep.subr.mxu0 0.0
        %8587 = vmatpush1.msra.mxu0 0.0
        %8588 = vmatprep.mubr.f32.mxu0 0.0
        %8589 = vmatmul.mubr.f32.gmra.mrb[0].mxu0 %v8447
        %v8590 = vpop.f32.mrb[0].mxu0
        %v8591 = vadd.f32 %v8294, %v8590
        %v8592 = vpop.f32.mrb[0].mxu0
        %v8593 = vadd.f32 %v8296, %v8592
        %8594 = vdwg.mxu0
        %8595 = vmatprep.subr.mxu0 %v8146
        %8596 = vmatpush1.msra.mxu0 %v8144
        %8597 = vmatprep.subr.mxu0 0.0
        %8598 = vmatpush1.msra.mxu0 0.0
        %8599 = vmatprep.subr.mxu0 0.0
        %8600 = vmatpush1.msra.mxu0 0.0
        %8601 = vmatprep.subr.mxu0 0.0
        %8602 = vmatpush1.msra.mxu0 0.0
        %8603 = vmatprep.subr.mxu0 0.0
        %8604 = vmatpush1.msra.mxu0 0.0
        %8605 = vmatprep.subr.mxu0 0.0
        %8606 = vmatpush1.msra.mxu0 0.0
        %8607 = vmatprep.subr.mxu0 0.0
        %8608 = vmatpush1.msra.mxu0 0.0
        %8609 = vmatprep.subr.mxu0 0.0
        %8610 = vmatpush1.msra.mxu0 0.0
        %8611 = vmatprep.subr.mxu0 0.0
        %8612 = vmatpush1.msra.mxu0 0.0
        %8613 = vmatprep.subr.mxu0 0.0
        %8614 = vmatpush1.msra.mxu0 0.0
        %8615 = vmatprep.subr.mxu0 0.0
        %8616 = vmatpush1.msra.mxu0 0.0
        %8617 = vmatprep.subr.mxu0 0.0
        %8618 = vmatpush1.msra.mxu0 0.0
        %8619 = vmatprep.subr.mxu0 0.0
        %8620 = vmatpush1.msra.mxu0 0.0
        %8621 = vmatprep.subr.mxu0 0.0
        %8622 = vmatpush1.msra.mxu0 0.0
        %8623 = vmatprep.subr.mxu0 0.0
        %8624 = vmatpush1.msra.mxu0 0.0
        %8625 = vmatprep.subr.mxu0 0.0
        %8626 = vmatpush1.msra.mxu0 0.0
        %8627 = vmatprep.subr.mxu0 0.0
        %8628 = vmatpush1.msra.mxu0 0.0
        %8629 = vmatprep.subr.mxu0 0.0
        %8630 = vmatpush1.msra.mxu0 0.0
        %8631 = vmatprep.subr.mxu0 0.0
        %8632 = vmatpush1.msra.mxu0 0.0
        %8633 = vmatprep.subr.mxu0 0.0
        %8634 = vmatpush1.msra.mxu0 0.0
        %8635 = vmatprep.subr.mxu0 0.0
        %8636 = vmatpush1.msra.mxu0 0.0
        %8637 = vmatprep.subr.mxu0 0.0
        %8638 = vmatpush1.msra.mxu0 0.0
        %8639 = vmatprep.subr.mxu0 0.0
        %8640 = vmatpush1.msra.mxu0 0.0
        %8641 = vmatprep.subr.mxu0 0.0
        %8642 = vmatpush1.msra.mxu0 0.0
        %8643 = vmatprep.subr.mxu0 0.0
        %8644 = vmatpush1.msra.mxu0 0.0
        %8645 = vmatprep.subr.mxu0 0.0
        %8646 = vmatpush1.msra.mxu0 0.0
        %8647 = vmatprep.subr.mxu0 0.0
        %8648 = vmatpush1.msra.mxu0 0.0
        %8649 = vmatprep.subr.mxu0 0.0
        %8650 = vmatpush1.msra.mxu0 0.0
        %8651 = vmatprep.subr.mxu0 0.0
        %8652 = vmatpush1.msra.mxu0 0.0
        %8653 = vmatprep.subr.mxu0 0.0
        %8654 = vmatpush1.msra.mxu0 0.0
        %8655 = vmatprep.subr.mxu0 0.0
        %8656 = vmatpush1.msra.mxu0 0.0
        %8657 = vmatprep.subr.mxu0 0.0
        %8658 = vmatpush1.msra.mxu0 0.0
        %8659 = vmatprep.mubr.f32.mxu0 0.0
        %8660 = vmatmul.mubr.f32.gmra.mrb[0].mxu0 %v8447
        %v8661 = vpop.f32.mrb[0].mxu0
        %v8662 = vadd.f32 %v8365, %v8661
        %v8663 = vpop.f32.mrb[0].mxu0
        %v8664 = vadd.f32 %v8367, %v8663
        %8665 = vdwg.mxu0
        %8666 = vmatprep.subr.mxu0 %v8150
        %8667 = vmatpush1.msra.mxu0 %v8148
        %8668 = vmatprep.subr.mxu0 0.0
        %8669 = vmatpush1.msra.mxu0 0.0
        %8670 = vmatprep.subr.mxu0 0.0
        %8671 = vmatpush1.msra.mxu0 0.0
        %8672 = vmatprep.subr.mxu0 0.0
        %8673 = vmatpush1.msra.mxu0 0.0
        %8674 = vmatprep.subr.mxu0 0.0
        %8675 = vmatpush1.msra.mxu0 0.0
        %8676 = vmatprep.subr.mxu0 0.0
        %8677 = vmatpush1.msra.mxu0 0.0
        %8678 = vmatprep.subr.mxu0 0.0
        %8679 = vmatpush1.msra.mxu0 0.0
        %8680 = vmatprep.subr.mxu0 0.0
        %8681 = vmatpush1.msra.mxu0 0.0
        %8682 = vmatprep.subr.mxu0 0.0
        %8683 = vmatpush1.msra.mxu0 0.0
        %8684 = vmatprep.subr.mxu0 0.0
        %8685 = vmatpush1.msra.mxu0 0.0
        %8686 = vmatprep.subr.mxu0 0.0
        %8687 = vmatpush1.msra.mxu0 0.0
        %8688 = vmatprep.subr.mxu0 0.0
        %8689 = vmatpush1.msra.mxu0 0.0
        %8690 = vmatprep.subr.mxu0 0.0
        %8691 = vmatpush1.msra.mxu0 0.0
        %8692 = vmatprep.subr.mxu0 0.0
        %8693 = vmatpush1.msra.mxu0 0.0
        %8694 = vmatprep.subr.mxu0 0.0
        %8695 = vmatpush1.msra.mxu0 0.0
        %8696 = vmatprep.subr.mxu0 0.0
        %8697 = vmatpush1.msra.mxu0 0.0
        %8698 = vmatprep.subr.mxu0 0.0
        %8699 = vmatpush1.msra.mxu0 0.0
        %8700 = vmatprep.subr.mxu0 0.0
        %8701 = vmatpush1.msra.mxu0 0.0
        %8702 = vmatprep.subr.mxu0 0.0
        %8703 = vmatpush1.msra.mxu0 0.0
        %8704 = vmatprep.subr.mxu0 0.0
        %8705 = vmatpush1.msra.mxu0 0.0
        %8706 = vmatprep.subr.mxu0 0.0
        %8707 = vmatpush1.msra.mxu0 0.0
        %8708 = vmatprep.subr.mxu0 0.0
        %8709 = vmatpush1.msra.mxu0 0.0
        %8710 = vmatprep.subr.mxu0 0.0
        %8711 = vmatpush1.msra.mxu0 0.0
        %8712 = vmatprep.subr.mxu0 0.0
        %8713 = vmatpush1.msra.mxu0 0.0
        %8714 = vmatprep.subr.mxu0 0.0
        %8715 = vmatpush1.msra.mxu0 0.0
        %8716 = vmatprep.subr.mxu0 0.0
        %8717 = vmatpush1.msra.mxu0 0.0
        %8718 = vmatprep.subr.mxu0 0.0
        %8719 = vmatpush1.msra.mxu0 0.0
        %8720 = vmatprep.subr.mxu0 0.0
        %8721 = vmatpush1.msra.mxu0 0.0
        %8722 = vmatprep.subr.mxu0 0.0
        %8723 = vmatpush1.msra.mxu0 0.0
        %8724 = vmatprep.subr.mxu0 0.0
        %8725 = vmatpush1.msra.mxu0 0.0
        %8726 = vmatprep.subr.mxu0 0.0
        %8727 = vmatpush1.msra.mxu0 0.0
        %8728 = vmatprep.subr.mxu0 0.0
        %8729 = vmatpush1.msra.mxu0 0.0
        %8730 = vmatprep.mubr.f32.mxu0 0.0
        %8731 = vmatmul.mubr.f32.gmra.mrb[0].mxu0 %v8447
        %v8732 = vpop.f32.mrb[0].mxu0
        %v8733 = vadd.f32 %v8436, %v8732
        %v8734 = vpop.f32.mrb[0].mxu0
        %v8735 = vadd.f32 %v8438, %v8734
        %8736 = vdwg.mxu0
        %s8737 = scalar_lea.vmem %s3, 104
        %v8738 = vld [vmem:[%s8737] sm:$0x7]
        %8739 = vrot.lane.b32.xlu0 %v440, 111
        %v8740 = vpop.permute.xlu0 %8739
        %8741 = vrot.lane.b32.xlu0 0.0, 111
        %v8742 = vpop.permute.xlu0 %8741
        %v8743 = vsel %vm8128, %v8127, %v8740
        %v8744 = vsel %vm8128, %v8740, %v8742
        %v8746 = vsel %vm475, %v8738, 0
        %v8748 = vsel %vm479, %v8743, 0
        %v8750 = vsel %vm479, %v8744, 0
        %8752 = vmatprep.subr.mxu0 %v8146
        %8753 = vmatpush1.msra.mxu0 %v8144
        %8754 = vmatprep.subr.mxu0 0.0
        %8755 = vmatpush1.msra.mxu0 0.0
        %8756 = vmatprep.subr.mxu0 0.0
        %8757 = vmatpush1.msra.mxu0 0.0
        %8758 = vmatprep.subr.mxu0 0.0
        %8759 = vmatpush1.msra.mxu0 0.0
        %8760 = vmatprep.subr.mxu0 0.0
        %8761 = vmatpush1.msra.mxu0 0.0
        %8762 = vmatprep.subr.mxu0 0.0
        %8763 = vmatpush1.msra.mxu0 0.0
        %8764 = vmatprep.subr.mxu0 0.0
        %8765 = vmatpush1.msra.mxu0 0.0
        %8766 = vmatprep.subr.mxu0 0.0
        %8767 = vmatpush1.msra.mxu0 0.0
        %8768 = vmatprep.subr.mxu0 0.0
        %8769 = vmatpush1.msra.mxu0 0.0
        %8770 = vmatprep.subr.mxu0 0.0
        %8771 = vmatpush1.msra.mxu0 0.0
        %8772 = vmatprep.subr.mxu0 0.0
        %8773 = vmatpush1.msra.mxu0 0.0
        %8774 = vmatprep.subr.mxu0 0.0
        %8775 = vmatpush1.msra.mxu0 0.0
        %8776 = vmatprep.subr.mxu0 0.0
        %8777 = vmatpush1.msra.mxu0 0.0
        %8778 = vmatprep.subr.mxu0 0.0
        %8779 = vmatpush1.msra.mxu0 0.0
        %8780 = vmatprep.subr.mxu0 0.0
        %8781 = vmatpush1.msra.mxu0 0.0
        %8782 = vmatprep.subr.mxu0 0.0
        %8783 = vmatpush1.msra.mxu0 0.0
        %8784 = vmatprep.subr.mxu0 0.0
        %8785 = vmatpush1.msra.mxu0 0.0
        %8786 = vmatprep.subr.mxu0 0.0
        %8787 = vmatpush1.msra.mxu0 0.0
        %8788 = vmatprep.subr.mxu0 0.0
        %8789 = vmatpush1.msra.mxu0 0.0
        %8790 = vmatprep.subr.mxu0 0.0
        %8791 = vmatpush1.msra.mxu0 0.0
        %8792 = vmatprep.subr.mxu0 0.0
        %8793 = vmatpush1.msra.mxu0 0.0
        %8794 = vmatprep.subr.mxu0 0.0
        %8795 = vmatpush1.msra.mxu0 0.0
        %8796 = vmatprep.subr.mxu0 0.0
        %8797 = vmatpush1.msra.mxu0 0.0
        %8798 = vmatprep.subr.mxu0 0.0
        %8799 = vmatpush1.msra.mxu0 0.0
        %8800 = vmatprep.subr.mxu0 0.0
        %8801 = vmatpush1.msra.mxu0 0.0
        %8802 = vmatprep.subr.mxu0 0.0
        %8803 = vmatpush1.msra.mxu0 0.0
        %8804 = vmatprep.subr.mxu0 0.0
        %8805 = vmatpush1.msra.mxu0 0.0
        %8806 = vmatprep.subr.mxu0 0.0
        %8807 = vmatpush1.msra.mxu0 0.0
        %8808 = vmatprep.subr.mxu0 0.0
        %8809 = vmatpush1.msra.mxu0 0.0
        %8810 = vmatprep.subr.mxu0 0.0
        %8811 = vmatpush1.msra.mxu0 0.0
        %8812 = vmatprep.subr.mxu0 0.0
        %8813 = vmatpush1.msra.mxu0 0.0
        %8814 = vmatprep.subr.mxu0 0.0
        %8815 = vmatpush1.msra.mxu0 0.0
        %8816 = vmatprep.mubr.f32.mxu0 0.0
        %8817 = vmatmul.mubr.f32.gmra.mrb[0].mxu0 %v8746
        %v8818 = vpop.f32.mrb[0].mxu0
        %v8819 = vadd.f32 0.0, %v8818
        %v8820 = vpop.f32.mrb[0].mxu0
        %v8821 = vadd.f32 0.0, %v8820
        %8822 = vdwg.mxu0
        %8823 = vmatprep.subr.mxu0 %v8150
        %8824 = vmatpush1.msra.mxu0 %v8148
        %8825 = vmatprep.subr.mxu0 0.0
        %8826 = vmatpush1.msra.mxu0 0.0
        %8827 = vmatprep.subr.mxu0 0.0
        %8828 = vmatpush1.msra.mxu0 0.0
        %8829 = vmatprep.subr.mxu0 0.0
        %8830 = vmatpush1.msra.mxu0 0.0
        %8831 = vmatprep.subr.mxu0 0.0
        %8832 = vmatpush1.msra.mxu0 0.0
        %8833 = vmatprep.subr.mxu0 0.0
        %8834 = vmatpush1.msra.mxu0 0.0
        %8835 = vmatprep.subr.mxu0 0.0
        %8836 = vmatpush1.msra.mxu0 0.0
        %8837 = vmatprep.subr.mxu0 0.0
        %8838 = vmatpush1.msra.mxu0 0.0
        %8839 = vmatprep.subr.mxu0 0.0
        %8840 = vmatpush1.msra.mxu0 0.0
        %8841 = vmatprep.subr.mxu0 0.0
        %8842 = vmatpush1.msra.mxu0 0.0
        %8843 = vmatprep.subr.mxu0 0.0
        %8844 = vmatpush1.msra.mxu0 0.0
        %8845 = vmatprep.subr.mxu0 0.0
        %8846 = vmatpush1.msra.mxu0 0.0
        %8847 = vmatprep.subr.mxu0 0.0
        %8848 = vmatpush1.msra.mxu0 0.0
        %8849 = vmatprep.subr.mxu0 0.0
        %8850 = vmatpush1.msra.mxu0 0.0
        %8851 = vmatprep.subr.mxu0 0.0
        %8852 = vmatpush1.msra.mxu0 0.0
        %8853 = vmatprep.subr.mxu0 0.0
        %8854 = vmatpush1.msra.mxu0 0.0
        %8855 = vmatprep.subr.mxu0 0.0
        %8856 = vmatpush1.msra.mxu0 0.0
        %8857 = vmatprep.subr.mxu0 0.0
        %8858 = vmatpush1.msra.mxu0 0.0
        %8859 = vmatprep.subr.mxu0 0.0
        %8860 = vmatpush1.msra.mxu0 0.0
        %8861 = vmatprep.subr.mxu0 0.0
        %8862 = vmatpush1.msra.mxu0 0.0
        %8863 = vmatprep.subr.mxu0 0.0
        %8864 = vmatpush1.msra.mxu0 0.0
        %8865 = vmatprep.subr.mxu0 0.0
        %8866 = vmatpush1.msra.mxu0 0.0
        %8867 = vmatprep.subr.mxu0 0.0
        %8868 = vmatpush1.msra.mxu0 0.0
        %8869 = vmatprep.subr.mxu0 0.0
        %8870 = vmatpush1.msra.mxu0 0.0
        %8871 = vmatprep.subr.mxu0 0.0
        %8872 = vmatpush1.msra.mxu0 0.0
        %8873 = vmatprep.subr.mxu0 0.0
        %8874 = vmatpush1.msra.mxu0 0.0
        %8875 = vmatprep.subr.mxu0 0.0
        %8876 = vmatpush1.msra.mxu0 0.0
        %8877 = vmatprep.subr.mxu0 0.0
        %8878 = vmatpush1.msra.mxu0 0.0
        %8879 = vmatprep.subr.mxu0 0.0
        %8880 = vmatpush1.msra.mxu0 0.0
        %8881 = vmatprep.subr.mxu0 0.0
        %8882 = vmatpush1.msra.mxu0 0.0
        %8883 = vmatprep.subr.mxu0 0.0
        %8884 = vmatpush1.msra.mxu0 0.0
        %8885 = vmatprep.subr.mxu0 0.0
        %8886 = vmatpush1.msra.mxu0 0.0
        %8887 = vmatprep.mubr.f32.mxu0 0.0
        %8888 = vmatmul.mubr.f32.gmra.mrb[0].mxu0 %v8746
        %v8889 = vpop.f32.mrb[0].mxu0
        %v8890 = vadd.f32 0.0, %v8889
        %v8891 = vpop.f32.mrb[0].mxu0
        %v8892 = vadd.f32 0.0, %v8891
        %8893 = vdwg.mxu0
        %8894 = vmatprep.subr.mxu0 %v8154
        %8895 = vmatpush1.msra.mxu0 %v8152
        %8896 = vmatprep.subr.mxu0 0.0
        %8897 = vmatpush1.msra.mxu0 0.0
        %8898 = vmatprep.subr.mxu0 0.0
        %8899 = vmatpush1.msra.mxu0 0.0
        %8900 = vmatprep.subr.mxu0 0.0
        %8901 = vmatpush1.msra.mxu0 0.0
        %8902 = vmatprep.subr.mxu0 0.0
        %8903 = vmatpush1.msra.mxu0 0.0
        %8904 = vmatprep.subr.mxu0 0.0
        %8905 = vmatpush1.msra.mxu0 0.0
        %8906 = vmatprep.subr.mxu0 0.0
        %8907 = vmatpush1.msra.mxu0 0.0
        %8908 = vmatprep.subr.mxu0 0.0
        %8909 = vmatpush1.msra.mxu0 0.0
        %8910 = vmatprep.subr.mxu0 0.0
        %8911 = vmatpush1.msra.mxu0 0.0
        %8912 = vmatprep.subr.mxu0 0.0
        %8913 = vmatpush1.msra.mxu0 0.0
        %8914 = vmatprep.subr.mxu0 0.0
        %8915 = vmatpush1.msra.mxu0 0.0
        %8916 = vmatprep.subr.mxu0 0.0
        %8917 = vmatpush1.msra.mxu0 0.0
        %8918 = vmatprep.subr.mxu0 0.0
        %8919 = vmatpush1.msra.mxu0 0.0
        %8920 = vmatprep.subr.mxu0 0.0
        %8921 = vmatpush1.msra.mxu0 0.0
        %8922 = vmatprep.subr.mxu0 0.0
        %8923 = vmatpush1.msra.mxu0 0.0
        %8924 = vmatprep.subr.mxu0 0.0
        %8925 = vmatpush1.msra.mxu0 0.0
        %8926 = vmatprep.subr.mxu0 0.0
        %8927 = vmatpush1.msra.mxu0 0.0
        %8928 = vmatprep.subr.mxu0 0.0
        %8929 = vmatpush1.msra.mxu0 0.0
        %8930 = vmatprep.subr.mxu0 0.0
        %8931 = vmatpush1.msra.mxu0 0.0
        %8932 = vmatprep.subr.mxu0 0.0
        %8933 = vmatpush1.msra.mxu0 0.0
        %8934 = vmatprep.subr.mxu0 0.0
        %8935 = vmatpush1.msra.mxu0 0.0
        %8936 = vmatprep.subr.mxu0 0.0
        %8937 = vmatpush1.msra.mxu0 0.0
        %8938 = vmatprep.subr.mxu0 0.0
        %8939 = vmatpush1.msra.mxu0 0.0
        %8940 = vmatprep.subr.mxu0 0.0
        %8941 = vmatpush1.msra.mxu0 0.0
        %8942 = vmatprep.subr.mxu0 0.0
        %8943 = vmatpush1.msra.mxu0 0.0
        %8944 = vmatprep.subr.mxu0 0.0
        %8945 = vmatpush1.msra.mxu0 0.0
        %8946 = vmatprep.subr.mxu0 0.0
        %8947 = vmatpush1.msra.mxu0 0.0
        %8948 = vmatprep.subr.mxu0 0.0
        %8949 = vmatpush1.msra.mxu0 0.0
        %8950 = vmatprep.subr.mxu0 0.0
        %8951 = vmatpush1.msra.mxu0 0.0
        %8952 = vmatprep.subr.mxu0 0.0
        %8953 = vmatpush1.msra.mxu0 0.0
        %8954 = vmatprep.subr.mxu0 0.0
        %8955 = vmatpush1.msra.mxu0 0.0
        %8956 = vmatprep.subr.mxu0 0.0
        %8957 = vmatpush1.msra.mxu0 0.0
        %8958 = vmatprep.mubr.f32.mxu0 0.0
        %8959 = vmatmul.mubr.f32.gmra.mrb[0].mxu0 %v8746
        %v8960 = vpop.f32.mrb[0].mxu0
        %v8961 = vadd.f32 0.0, %v8960
        %v8962 = vpop.f32.mrb[0].mxu0
        %v8963 = vadd.f32 0.0, %v8962
        %8964 = vdwg.mxu0
        %8965 = vmatprep.subr.mxu0 %v8750
        %8966 = vmatpush1.msra.mxu0 %v8748
        %8967 = vmatprep.subr.mxu0 0.0
        %8968 = vmatpush1.msra.mxu0 0.0
        %8969 = vmatprep.subr.mxu0 0.0
        %8970 = vmatpush1.msra.mxu0 0.0
        %8971 = vmatprep.subr.mxu0 0.0
        %8972 = vmatpush1.msra.mxu0 0.0
        %8973 = vmatprep.subr.mxu0 0.0
        %8974 = vmatpush1.msra.mxu0 0.0
        %8975 = vmatprep.subr.mxu0 0.0
        %8976 = vmatpush1.msra.mxu0 0.0
        %8977 = vmatprep.subr.mxu0 0.0
        %8978 = vmatpush1.msra.mxu0 0.0
        %8979 = vmatprep.subr.mxu0 0.0
        %8980 = vmatpush1.msra.mxu0 0.0
        %8981 = vmatprep.subr.mxu0 0.0
        %8982 = vmatpush1.msra.mxu0 0.0
        %8983 = vmatprep.subr.mxu0 0.0
        %8984 = vmatpush1.msra.mxu0 0.0
        %8985 = vmatprep.subr.mxu0 0.0
        %8986 = vmatpush1.msra.mxu0 0.0
        %8987 = vmatprep.subr.mxu0 0.0
        %8988 = vmatpush1.msra.mxu0 0.0
        %8989 = vmatprep.subr.mxu0 0.0
        %8990 = vmatpush1.msra.mxu0 0.0
        %8991 = vmatprep.subr.mxu0 0.0
        %8992 = vmatpush1.msra.mxu0 0.0
        %8993 = vmatprep.subr.mxu0 0.0
        %8994 = vmatpush1.msra.mxu0 0.0
        %8995 = vmatprep.subr.mxu0 0.0
        %8996 = vmatpush1.msra.mxu0 0.0
        %8997 = vmatprep.subr.mxu0 0.0
        %8998 = vmatpush1.msra.mxu0 0.0
        %8999 = vmatprep.subr.mxu0 0.0
        %9000 = vmatpush1.msra.mxu0 0.0
        %9001 = vmatprep.subr.mxu0 0.0
        %9002 = vmatpush1.msra.mxu0 0.0
        %9003 = vmatprep.subr.mxu0 0.0
        %9004 = vmatpush1.msra.mxu0 0.0
        %9005 = vmatprep.subr.mxu0 0.0
        %9006 = vmatpush1.msra.mxu0 0.0
        %9007 = vmatprep.subr.mxu0 0.0
        %9008 = vmatpush1.msra.mxu0 0.0
        %9009 = vmatprep.subr.mxu0 0.0
        %9010 = vmatpush1.msra.mxu0 0.0
        %9011 = vmatprep.subr.mxu0 0.0
        %9012 = vmatpush1.msra.mxu0 0.0
        %9013 = vmatprep.subr.mxu0 0.0
        %9014 = vmatpush1.msra.mxu0 0.0
        %9015 = vmatprep.subr.mxu0 0.0
        %9016 = vmatpush1.msra.mxu0 0.0
        %9017 = vmatprep.subr.mxu0 0.0
        %9018 = vmatpush1.msra.mxu0 0.0
        %9019 = vmatprep.subr.mxu0 0.0
        %9020 = vmatpush1.msra.mxu0 0.0
        %9021 = vmatprep.subr.mxu0 0.0
        %9022 = vmatpush1.msra.mxu0 0.0
        %9023 = vmatprep.subr.mxu0 0.0
        %9024 = vmatpush1.msra.mxu0 0.0
        %9025 = vmatprep.subr.mxu0 0.0
        %9026 = vmatpush1.msra.mxu0 0.0
        %9027 = vmatprep.subr.mxu0 0.0
        %9028 = vmatpush1.msra.mxu0 0.0
        %9029 = vmatprep.mubr.f32.mxu0 0.0
        %9030 = vmatmul.mubr.f32.gmra.mrb[0].mxu0 %v8746
        %v9031 = vpop.f32.mrb[0].mxu0
        %v9032 = vadd.f32 0.0, %v9031
        %v9033 = vpop.f32.mrb[0].mxu0
        %v9034 = vadd.f32 0.0, %v9033
        %9035 = vdwg.mxu0
        %v9036 = vadd.f32 %v8520, %v8819
        %v9037 = vadd.f32 %v8522, %v8821
        %v9038 = vadd.f32 %v8591, %v8890
        %v9039 = vadd.f32 %v8593, %v8892
        %v9040 = vadd.f32 %v8662, %v8961
        %v9041 = vadd.f32 %v8664, %v8963
        %v9042 = vadd.f32 %v8733, %v9032
        %v9043 = vadd.f32 %v8735, %v9034
        %v9044 = vlaneseq
        %v9045 = vshrl.u32 %v9044, 7
        %v9046 = vsub.s32 1, %v9045
        %v9047 = vrot.slane %v1389, %v9046
        %v9048 = vlaneseq
        %v9049 = vshrl.u32 %v9048, 7
        %v9050 = vsub.s32 1, %v9049
        %v9051 = vrot.slane %v1390, %v9050
        %v9052 = vmul.f32 %v9036, %v9047
        %v9053 = vmul.f32 %v9037, %v9051
        %v9054 = vmul.f32 %v9038, %v9047
        %v9055 = vmul.f32 %v9039, %v9051
        %v9056 = vmul.f32 %v9040, %v9047
        %v9057 = vmul.f32 %v9041, %v9051
        %v9058 = vmul.f32 %v9042, %v9047
        %v9059 = vmul.f32 %v9043, %v9051
        %v9060 = vadd.f32 %v8098, %v9052
        %v9061 = vadd.f32 %v8099, %v9053
        %v9062 = vadd.f32 %v8100, %v9054
        %v9063 = vadd.f32 %v8101, %v9055
        %v9064 = vadd.f32 %v8102, %v9056
        %v9065 = vadd.f32 %v8103, %v9057
        %v9066 = vadd.f32 %v8104, %v9058
        %v9067 = vadd.f32 %v8105, %v9059
        %v9068 = vld [vmem:[%s4] sm:$0x7]
        %9070 = vset.pattern.permute.xlu0 0
        %9071 = vperm.xlu0 %9070, %v9068
        %v9072 = vpop.permute.xlu0 %9071
        %v9074 = vadd.f32 %v9060, %v9072
        %v9075 = vadd.f32 %v9061, %v9072
        %v9076 = vadd.f32 %v9062, %v9072
        %v9077 = vadd.f32 %v9063, %v9072
        %v9078 = vadd.f32 %v9064, %v9072
        %v9079 = vadd.f32 %v9065, %v9072
        %v9080 = vadd.f32 %v9066, %v9072
        %v9081 = vadd.f32 %v9067, %v9072
        %v9090 = vcombine.low %v9074, %v9075
        %v9091 = vcombine.low %v9076, %v9077
        %v9092 = vcombine.low %v9078, %v9079
        %v9093 = vcombine.low %v9080, %v9081
        %9098 = vst [vmem:[%s411] sm:$0x77] %v9090
        %9099 = vst [vmem:[%s411 + $0x8] sm:$0x77] %v9091
        %9100 = vst [vmem:[%s411 + $0x10] sm:$0x77] %v9092
        %9101 = vst [vmem:[%s411 + $0x18] sm:$0x77] %v9093
        %s9102 = smul.u32 8, %s28
        %p9103 = scmp.lt.s32.totalorder %s27, 1
        %s9104 = scalar_select %p9103, %s27, 1
        %p9105 = scmp.lt.s32.totalorder %s9102, 31
        %s9106 = scalar_select %p9105, %s9102, 31
        %s9107 = smul.addr %s9104, 32
        %s9108 = sadd.s32 %s9106, %s9107
        %s9109 = smul.addr %s9108, 4
        %s9110 = scalar_lea.vmem %s6, %s9109
        // Predicated region
        $region57: #{tpu_custom_call.1} parent=43 // pred_check
          %p9111 = pneg %p218
        $region58: #{tpu_custom_call.1} parent=43 // pred_check_branch
          %9113 = sbr.rel (%p9111) target = $region60
        $region59: #{tpu_custom_call.1} parent=43 // pred_region
          %s9114 = smul.u32 8, %s28
        $region60: #{tpu_custom_call.1} parent=43 // pred_fallthru
          _
      $region44: #{tpu_custom_call.1} parent=5 // pred_fallthru
        _
      %p9115 = scmp.le.s32.totalorder 2, %s18
      // Predicated region
      $region61: #{tpu_custom_call.1} parent=5 // pred_check
        %p9116 = pneg %p9115
      $region62: #{tpu_custom_call.1} parent=5 // pred_check_branch
        %9118 = sbr.rel (%p9116) target = $region64
      $region63: #{tpu_custom_call.1} parent=5 // pred_region
        %s9119 = ssub.s32 %s18, 2
        // Predicated region
        $region65: #{tpu_custom_call.1} parent=63 // pred_check
          %p9120 = pneg %p224
        $region66: #{tpu_custom_call.1} parent=63 // pred_check_branch
          %9122 = sbr.rel (%p9120) target = $region68
        $region67: #{tpu_custom_call.1} parent=63 // pred_region
          %s9123 = smul.u32 8, %s30
          %p9124 = scmp.lt.s32.totalorder %s29, 1
          %s9125 = scalar_select %p9124, %s29, 1
          %p9126 = scmp.lt.s32.totalorder %s9123, 31
          %s9127 = scalar_select %p9126, %s9123, 31
          %s9128 = smul.addr %s9125, 32
          %s9129 = sadd.s32 %s9127, %s9128
          %s9130 = smul.addr %s9129, 4
          %s9131 = scalar_lea.vmem %s6, %s9130
        $region68: #{tpu_custom_call.1} parent=63 // pred_fallthru
          _
      $region64: #{tpu_custom_call.1} parent=5 // pred_fallthru
        _
    $region6: #{tpu_custom_call.1} parent=1 // loop_footer
      %s22 = sadd.s32 1, %s18
    $region7: #{tpu_custom_call.1} parent=1 // loop_footer_branch
      %17 = sbr.rel target = $region3
    $region8: #{tpu_custom_call.1} parent=1 // loop_exit
      _
    %9132 = vsyncpa [#allocation3], 1
    %s9133 = scalar_lea.sflag [#allocation3], 1
    %9134 = vsyncpa %s9133, 1
    %9135 = vsyncpa [#allocation5], 1
    %s9136 = scalar_lea.sflag [#allocation5], 1
    %9137 = vsyncpa %s9136, 1

</llo_original>
